<compile_context>
chip_gen: v6e
topology: v6e:2x2x1
jax: 0.10.0
libtpu: 0.0.40
codegen_flags: <defaults>
</compile_context>

<pallas_src>
import functools

import jax
import jax.numpy as jnp
from jax.experimental import pallas as pl
from jax.experimental.pallas import tpu as pltpu

LANE = 128


def _round_up(x, m):
    return ((x + m - 1) // m) * m


def _cdiv(a, b):
    return (a + b - 1) // b


def get_padding(kernel_size, dilation=1):
    return int((kernel_size * dilation - dilation) / 2)


# ----------------------------------------------------------------------------
# Pallas kernel: fused K-tap conv along H  +  bias  +  optional leaky-relu
# ----------------------------------------------------------------------------
def _conv_tap_kernel(xq_ref, w_ref, b_ref, o_ref, *, K, S, cin, hout, alpha):
    """One grid step computes `tn` batch*period columns.

    Layouts (all taps resolved with static, contiguous slices):
      cin == 1  (first conv, VPU path -- keeps the raw signal off the MXU):
        xq_ref : (tn, S, Hq, 1)     phase-major split of the padded signal
      cin >= 128 (generic conv, MXU path):
        xq_ref : (tn, Hq, S*cin)    lane-blocked phase split (free reshape)
      w_ref : (K, cin, Cpad)   b_ref : (1, Cpad)   o_ref : (tn, hout, Cpad)
    """
    tn = o_ref.shape[0]
    cpad = o_ref.shape[-1]
    bias = b_ref[...].astype(jnp.float32)                       # (1, Cpad)
    for n in range(tn):                                         # static unroll
        acc = jnp.zeros((hout, cpad), jnp.float32)
        for k in range(K):                                      # K shifted slabs
            r, j = divmod(k, S)
            if cin == 1:
                slab = xq_ref[n, j, r:r + hout, :]              # (hout, 1)
                acc = acc + slab.astype(jnp.float32) * w_ref[k].astype(jnp.float32)
            else:
                slab = xq_ref[n, r:r + hout, j * cin:(j + 1) * cin]  # (hout, cin)
                acc = acc + jnp.dot(slab, w_ref[k],
                                    preferred_element_type=jnp.float32)
        acc = acc + bias
        if alpha is not None:                                   # leaky_relu(0.1)
            acc = jnp.maximum(acc, alpha * acc)
        o_ref[n] = acc.astype(o_ref.dtype)


# ----------------------------------------------------------------------------
# Wrapper: one Conv2d((K,1),(S,1),(P,0),replicate) on channels-last activations
# ----------------------------------------------------------------------------
def _replicate_pad_rows(x, pad_top, total_rows):
    """Replicate-pad (and/or truncate) x:(N,H,C) along H to exactly total_rows."""
    N, H, C = x.shape
    parts = []
    if pad_top > 0:
        parts.append(jnp.broadcast_to(x[:, :1, :], (N, pad_top, C)))
    parts.append(x)
    pad_bot = total_rows - pad_top - H
    if pad_bot > 0:
        parts.append(jnp.broadcast_to(x[:, -1:, :], (N, pad_bot, C)))
    xp = parts[0] if len(parts) == 1 else jnp.concatenate(parts, axis=1)
    return xp[:, :total_rows, :]


def _pick_tn(n, per_n_bytes, max_tn=8, budget=6 * 1024 * 1024):
    """Largest divisor of n that keeps >=2 grid steps and fits the VMEM budget."""
    best = 1
    for tn in range(1, min(n, max_tn) + 1):
        if n % tn:
            continue
        if n >= 2 and n // tn < 2:      # keep >= 2 steps (v7x megacore)
            continue
        if tn * per_n_bytes > budget:
            continue
        best = tn
    return best


def conv_kx1_replicate(x, w_p, b_p, *, stride, pad, alpha, out_dtype):
    """x:(N,H,Cin_arr) channels-last (width/period folded into N).
    w_p:(K,Cin_arr,Cpad), b_p:(1,Cpad).  Returns (N,Hout,Cpad) in out_dtype;
    padded output channels are exactly zero."""
    N, H, cin_arr = x.shape
    K = w_p.shape[0]
    cpad = w_p.shape[-1]
    S = stride
    hout = (H + 2 * pad - K) // S + 1
    hq = hout - 1 + _cdiv(K, S)          # rows of the phase-split view
    total = S * hq                        # padded H length (multiple of S)
    xp = _replicate_pad_rows(x, pad, total)

    if cin_arr == 1:
        # raw-signal layer: phase-major so taps index a major axis (no MXU).
        xq = jnp.transpose(xp.reshape(N, hq, S), (0, 2, 1))[..., None]
        x_blk = (S, hq, 1)
        idx = lambda i: (i, 0, 0, 0)
        in_bytes_per_n = S * _round_up(hq, 8) * LANE * 4
    else:
        # free (row-major bitcast) reshape: row h holds the S phases' channels.
        xq = xp.reshape(N, hq, S * cin_arr)
        x_blk = (hq, S * cin_arr)
        idx = lambda i: (i, 0, 0)
        in_bytes_per_n = _round_up(hq, 8) * S * cin_arr * xq.dtype.itemsize

    out_item = jnp.dtype(out_dtype).itemsize
    out_bytes_per_n = _round_up(hout, 8) * cpad * (2 * out_item + 4)
    tn = _pick_tn(N, 2 * in_bytes_per_n + out_bytes_per_n)

    x_spec = pl.BlockSpec((tn,) + x_blk, idx)
    w_spec = pl.BlockSpec(w_p.shape, lambda i: (0,) * w_p.ndim)   # resident weight
    b_spec = pl.BlockSpec(b_p.shape, lambda i: (0, 0))            # resident bias
    o_spec = pl.BlockSpec((tn, hout, cpad), lambda i: (i, 0, 0))

    flops = 2 * N * hout * K * cin_arr * cpad
    bytes_accessed = (xq.size * xq.dtype.itemsize
                      + w_p.size * w_p.dtype.itemsize
                      + b_p.size * 4
                      + N * hout * cpad * out_item)

    kernel = functools.partial(_conv_tap_kernel, K=K, S=S, cin=cin_arr,
                               hout=hout, alpha=alpha)
    return pl.pallas_call(
        kernel,
        out_shape=jax.ShapeDtypeStruct((N, hout, cpad), out_dtype),
        grid=(N // tn,),
        in_specs=[x_spec, w_spec, b_spec],
        out_specs=o_spec,
        compiler_params=pltpu.CompilerParams(
            dimension_semantics=("parallel",),         # shard N over TensorCores
            vmem_limit_bytes=32 * 1024 * 1024),        # explicit (v5e default 16MiB)
        cost_estimate=pl.CostEstimate(flops=flops, transcendentals=0,
                                      bytes_accessed=bytes_accessed),
    )(xq, w_p, b_p)


# ----------------------------------------------------------------------------
# Parameters (weight_norm is a reparameterization only -> folded weights)
# ----------------------------------------------------------------------------
def _init_conv(key, cout, cin, k):
    fan_in = cin * k
    kw, kb = jax.random.split(key)
    w = jax.random.normal(kw, (cout, cin, k), jnp.float32) / jnp.sqrt(float(fan_in))
    b = jax.random.normal(kb, (cout,), jnp.float32) * 0.01
    return w, b


def _pack_conv(w, bias, *, first):
    """(Cout,Cin,K) f32 -> (K, Cin_arr, Cpad) padded kernel operand + (1,Cpad) bias."""
    cout, cin, k = w.shape
    wt = jnp.transpose(w, (2, 1, 0))                  # (K, Cin, Cout)
    cpad = _round_up(cout, LANE)
    if first:
        cin_arr, dtype = cin, jnp.float32             # raw-signal layer stays f32
    else:
        cin_arr, dtype = _round_up(cin, LANE), jnp.bfloat16
    w_p = jnp.zeros((k, cin_arr, cpad), dtype).at[:, :cin, :cout].set(wt.astype(dtype))
    b_p = jnp.zeros((1, cpad), jnp.float32).at[0, :cout].set(bias)
    return w_p, b_p


def _channel_schedule(channels, max_channels, num_layers):
    couts = [channels]
    c = channels
    for _ in range(num_layers):
        c = min(c * 2, max_channels)
        couts.append(c)
    return tuple(couts)


def init_disc_p(key, kernel_size=5, channels=32, num_layers=4, max_channels=256):
    couts = _channel_schedule(channels, max_channels, num_layers)
    cins = (1,) + couts[:-1]
    keys = jax.random.split(key, len(couts) + 1)
    convs = []
    for i, (co, ci) in enumerate(zip(couts, cins)):
        w, b = _init_conv(keys[i], co, ci, kernel_size)
        convs.append(_pack_conv(w, b, first=(i == 0)))
    w, b = _init_conv(keys[-1], 1, couts[-1], 3)      # post conv (3,1)
    post = _pack_conv(w, b, first=False)
    return {"convs": convs, "post": post}


def init_mpd(key, periods, channels, max_channels, num_layers):
    keys = jax.random.split(key, len(periods))
    return [init_disc_p(k, channels=channels, max_channels=max_channels,
                        num_layers=num_layers) for k in keys]


# ----------------------------------------------------------------------------
# Forward passes
# ----------------------------------------------------------------------------
def _to_nchw(xw, b, period, cout):
    # (b*period, Hout, Cpad) -> (b, cout, Hout, period); dtype preserved.
    _, h, _ = xw.shape
    y = xw[:, :, :cout]
    return jnp.transpose(y.reshape(b, period, h, cout), (0, 3, 2, 1))


def disc_p_forward(params, period, couts, x, stride=3):
    b, _, t = x.shape                                  # (b, 1, t)
    if t % period != 0:
        n_pad = period - t % period                    # matches F.pad(..., 'reflect')
        x = jnp.pad(x, ((0, 0), (0, 0), (0, n_pad)), mode="reflect")
        t = t + n_pad
    H = t // period
    # (b,1,t) -> (b*period, H, 1): column n = i*period + w holds samples w::period
    xw = jnp.transpose(x.reshape(b, H, period), (0, 2, 1)).reshape(b * period, H, 1)

    fmap = []
    pad = get_padding(5, 1)        # reference hardcodes get_padding(5,1) per conv
    for (w_p, b_p), cout in zip(params["convs"], couts):
        xw = conv_kx1_replicate(xw, w_p, b_p, stride=stride, pad=pad, alpha=0.1,
                                out_dtype=jnp.bfloat16)
        fmap.append(_to_nchw(xw, b, period, cout))     # bf16 NCHW fmap
    w_p, b_p = params["post"]
    xw = conv_kx1_replicate(xw, w_p, b_p, stride=1, pad=1, alpha=None,
                            out_dtype=jnp.float32)
    logit = _to_nchw(xw, b, period, 1)                 # f32 NCHW logit
    fmap.append(logit)
    return logit, fmap


@functools.partial(jax.jit, static_argnums=(1, 3))
def multi_periodic_discriminator_forward(all_params, periods, x, arch):
    channels, max_channels, num_layers = arch
    couts = _channel_schedule(channels, max_channels, num_layers)
    logits, feats = [], []
    for params, p in zip(all_params, periods):
        logit, fmap = disc_p_forward(params, p, couts, x)
        logits.append(logit)
        feats += fmap
    return logits, feats


# ----------------------------------------------------------------------------
if __name__ == "__main__":
    periods = (2, 3)
    channels = 8
    max_channels = 32
    num_layers = 2
    arch = (channels, max_channels, num_layers)

    key = jax.random.PRNGKey(0)
    k_param, k_input = jax.random.split(key)

    all_params = init_mpd(k_param, periods, channels, max_channels, num_layers)

    # input: (batch=2, channels=1, t=64) raw waveform-like signal
    x = jax.random.normal(k_input, (2, 1, 64), jnp.float32)

    logits, feats = multi_periodic_discriminator_forward(all_params, periods, x, arch)

    for l in logits:
        jax.block_until_ready(l)
    for f in feats:
        jax.block_until_ready(f)

    assert logits[0].shape == (2, 1, 2, 2), logits[0].shape
    assert logits[1].shape == (2, 1, 1, 3), logits[1].shape
    assert len(feats) == len(periods) * (num_layers + 2)
    assert all(bool(jnp.all(jnp.isfinite(l.astype(jnp.float32)))) for l in logits)

    print("KERNEL_OK")
</pallas_src>

<mosaic_0001>
module attributes {stable_mosaic.version = 11 : i64} {
  func.func @_conv_tap_kernel(%arg0: i32, %arg1: memref<3x3x9x1xf32, #tpu.memory_space<vmem>>, %arg2: memref<5x1x128xf32, #tpu.memory_space<vmem>>, %arg3: memref<1x128xf32, #tpu.memory_space<vmem>>, %arg4: memref<3x8x128xbf16, #tpu.memory_space<vmem>>) attributes {dimension_semantics = [#tpu.dimension_semantics<parallel>], iteration_bounds = array<i64: 2>, scalar_prefetch = 0 : i64, scratch_operands = 0 : i64, tpu.core_type = #tpu.core_type<tc>, window_params = [{transform_indices = @transform_0, window_bounds = array<i64: 3, 3, 9, 1>}, {pipeline_mode = #tpu.pipeline_mode<synchronous>, transform_indices = @transform_1, window_bounds = array<i64: 5, 1, 128>}, {pipeline_mode = #tpu.pipeline_mode<synchronous>, transform_indices = @transform_2, window_bounds = array<i64: 1, 128>}, {transform_indices = @transform_3, window_bounds = array<i64: 3, 8, 128>}]} {
    %c0 = arith.constant 0 : index
    %c0_0 = arith.constant 0 : index
    %0 = vector.load %arg3[%c0, %c0_0] : memref<1x128xf32, #tpu.memory_space<vmem>>, vector<1x128xf32>
    %cst = arith.constant 0.000000e+00 : f32
    %1 = vector.broadcast %cst : f32 to vector<8x128xf32>
    %c0_1 = arith.constant 0 : index
    %c0_2 = arith.constant 0 : index
    %c0_3 = arith.constant 0 : index
    %c0_4 = arith.constant 0 : index
    %2 = vector.load %arg1[%c0_1, %c0_2, %c0_3, %c0_4] : memref<3x3x9x1xf32, #tpu.memory_space<vmem>>, vector<1x1x8x1xf32>
    %3 = vector.shape_cast %2 : vector<1x1x8x1xf32> to vector<8x1xf32>
    %c0_5 = arith.constant 0 : index
    %c0_6 = arith.constant 0 : index
    %c0_7 = arith.constant 0 : index
    %4 = vector.load %arg2[%c0_5, %c0_6, %c0_7] : memref<5x1x128xf32, #tpu.memory_space<vmem>>, vector<1x1x128xf32>
    %5 = vector.shape_cast %4 : vector<1x1x128xf32> to vector<1x128xf32>
    %6 = vector.broadcast %3 : vector<8x1xf32> to vector<8x128xf32>
    %7 = vector.broadcast %5 : vector<1x128xf32> to vector<8x128xf32>
    %8 = arith.mulf %6, %7 : vector<8x128xf32>
    %9 = arith.addf %1, %8 : vector<8x128xf32>
    %c0_8 = arith.constant 0 : index
    %c1 = arith.constant 1 : index
    %c0_9 = arith.constant 0 : index
    %c0_10 = arith.constant 0 : index
    %10 = vector.load %arg1[%c0_8, %c1, %c0_9, %c0_10] : memref<3x3x9x1xf32, #tpu.memory_space<vmem>>, vector<1x1x8x1xf32>
    %11 = vector.shape_cast %10 : vector<1x1x8x1xf32> to vector<8x1xf32>
    %c1_11 = arith.constant 1 : index
    %c0_12 = arith.constant 0 : index
    %c0_13 = arith.constant 0 : index
    %12 = vector.load %arg2[%c1_11, %c0_12, %c0_13] : memref<5x1x128xf32, #tpu.memory_space<vmem>>, vector<1x1x128xf32>
    %13 = vector.shape_cast %12 : vector<1x1x128xf32> to vector<1x128xf32>
    %14 = vector.broadcast %11 : vector<8x1xf32> to vector<8x128xf32>
    %15 = vector.broadcast %13 : vector<1x128xf32> to vector<8x128xf32>
    %16 = arith.mulf %14, %15 : vector<8x128xf32>
    %17 = arith.addf %9, %16 : vector<8x128xf32>
    %c0_14 = arith.constant 0 : index
    %c2 = arith.constant 2 : index
    %c0_15 = arith.constant 0 : index
    %c0_16 = arith.constant 0 : index
    %18 = vector.load %arg1[%c0_14, %c2, %c0_15, %c0_16] : memref<3x3x9x1xf32, #tpu.memory_space<vmem>>, vector<1x1x8x1xf32>
    %19 = vector.shape_cast %18 : vector<1x1x8x1xf32> to vector<8x1xf32>
    %c2_17 = arith.constant 2 : index
    %c0_18 = arith.constant 0 : index
    %c0_19 = arith.constant 0 : index
    %20 = vector.load %arg2[%c2_17, %c0_18, %c0_19] : memref<5x1x128xf32, #tpu.memory_space<vmem>>, vector<1x1x128xf32>
    %21 = vector.shape_cast %20 : vector<1x1x128xf32> to vector<1x128xf32>
    %22 = vector.broadcast %19 : vector<8x1xf32> to vector<8x128xf32>
    %23 = vector.broadcast %21 : vector<1x128xf32> to vector<8x128xf32>
    %24 = arith.mulf %22, %23 : vector<8x128xf32>
    %25 = arith.addf %17, %24 : vector<8x128xf32>
    %c0_20 = arith.constant 0 : index
    %c0_21 = arith.constant 0 : index
    %c1_22 = arith.constant 1 : index
    %c0_23 = arith.constant 0 : index
    %26 = vector.load %arg1[%c0_20, %c0_21, %c1_22, %c0_23] : memref<3x3x9x1xf32, #tpu.memory_space<vmem>>, vector<1x1x8x1xf32>
    %27 = vector.shape_cast %26 : vector<1x1x8x1xf32> to vector<8x1xf32>
    %c3 = arith.constant 3 : index
    %c0_24 = arith.constant 0 : index
    %c0_25 = arith.constant 0 : index
    %28 = vector.load %arg2[%c3, %c0_24, %c0_25] : memref<5x1x128xf32, #tpu.memory_space<vmem>>, vector<1x1x128xf32>
    %29 = vector.shape_cast %28 : vector<1x1x128xf32> to vector<1x128xf32>
    %30 = vector.broadcast %27 : vector<8x1xf32> to vector<8x128xf32>
    %31 = vector.broadcast %29 : vector<1x128xf32> to vector<8x128xf32>
    %32 = arith.mulf %30, %31 : vector<8x128xf32>
    %33 = arith.addf %25, %32 : vector<8x128xf32>
    %c0_26 = arith.constant 0 : index
    %c1_27 = arith.constant 1 : index
    %c1_28 = arith.constant 1 : index
    %c0_29 = arith.constant 0 : index
    %34 = vector.load %arg1[%c0_26, %c1_27, %c1_28, %c0_29] : memref<3x3x9x1xf32, #tpu.memory_space<vmem>>, vector<1x1x8x1xf32>
    %35 = vector.shape_cast %34 : vector<1x1x8x1xf32> to vector<8x1xf32>
    %c4 = arith.constant 4 : index
    %c0_30 = arith.constant 0 : index
    %c0_31 = arith.constant 0 : index
    %36 = vector.load %arg2[%c4, %c0_30, %c0_31] : memref<5x1x128xf32, #tpu.memory_space<vmem>>, vector<1x1x128xf32>
    %37 = vector.shape_cast %36 : vector<1x1x128xf32> to vector<1x128xf32>
    %38 = vector.broadcast %35 : vector<8x1xf32> to vector<8x128xf32>
    %39 = vector.broadcast %37 : vector<1x128xf32> to vector<8x128xf32>
    %40 = arith.mulf %38, %39 : vector<8x128xf32>
    %41 = arith.addf %33, %40 : vector<8x128xf32>
    %42 = vector.broadcast %0 : vector<1x128xf32> to vector<8x128xf32>
    %43 = arith.addf %41, %42 : vector<8x128xf32>
    %cst_32 = arith.constant 1.000000e-01 : f32
    %44 = vector.broadcast %cst_32 : f32 to vector<8x128xf32>
    %45 = arith.mulf %44, %43 : vector<8x128xf32>
    %46 = arith.maximumf %43, %45 : vector<8x128xf32>
    %47 = arith.truncf %46 : vector<8x128xf32> to vector<8x128xbf16>
    %c0_33 = arith.constant 0 : index
    %c0_34 = arith.constant 0 : index
    %c0_35 = arith.constant 0 : index
    %48 = vector.load %arg4[%c0_33, %c0_34, %c0_35] : memref<3x8x128xbf16, #tpu.memory_space<vmem>>, vector<1x8x128xbf16>
    %49 = vector.shape_cast %48 : vector<1x8x128xbf16> to vector<8x128xbf16>
    %50 = vector.shape_cast %47 : vector<8x128xbf16> to vector<1x8x128xbf16>
    tpu.vector_store %arg4[%c0_33, %c0_34, %c0_35], %50 {strides = array<i32>} : memref<3x8x128xbf16, #tpu.memory_space<vmem>>, vector<1x8x128xbf16>,
    %cst_36 = arith.constant 0.000000e+00 : f32
    %51 = vector.broadcast %cst_36 : f32 to vector<8x128xf32>
    %c1_37 = arith.constant 1 : index
    %c0_38 = arith.constant 0 : index
    %c0_39 = arith.constant 0 : index
    %c0_40 = arith.constant 0 : index
    %52 = vector.load %arg1[%c1_37, %c0_38, %c0_39, %c0_40] : memref<3x3x9x1xf32, #tpu.memory_space<vmem>>, vector<1x1x8x1xf32>
    %53 = vector.shape_cast %52 : vector<1x1x8x1xf32> to vector<8x1xf32>
    %c0_41 = arith.constant 0 : index
    %c0_42 = arith.constant 0 : index
    %c0_43 = arith.constant 0 : index
    %54 = vector.load %arg2[%c0_41, %c0_42, %c0_43] : memref<5x1x128xf32, #tpu.memory_space<vmem>>, vector<1x1x128xf32>
    %55 = vector.shape_cast %54 : vector<1x1x128xf32> to vector<1x128xf32>
    %56 = vector.broadcast %53 : vector<8x1xf32> to vector<8x128xf32>
    %57 = vector.broadcast %55 : vector<1x128xf32> to vector<8x128xf32>
    %58 = arith.mulf %56, %57 : vector<8x128xf32>
    %59 = arith.addf %51, %58 : vector<8x128xf32>
    %c1_44 = arith.constant 1 : index
    %c1_45 = arith.constant 1 : index
    %c0_46 = arith.constant 0 : index
    %c0_47 = arith.constant 0 : index
    %60 = vector.load %arg1[%c1_44, %c1_45, %c0_46, %c0_47] : memref<3x3x9x1xf32, #tpu.memory_space<vmem>>, vector<1x1x8x1xf32>
    %61 = vector.shape_cast %60 : vector<1x1x8x1xf32> to vector<8x1xf32>
    %c1_48 = arith.constant 1 : index
    %c0_49 = arith.constant 0 : index
    %c0_50 = arith.constant 0 : index
    %62 = vector.load %arg2[%c1_48, %c0_49, %c0_50] : memref<5x1x128xf32, #tpu.memory_space<vmem>>, vector<1x1x128xf32>
    %63 = vector.shape_cast %62 : vector<1x1x128xf32> to vector<1x128xf32>
    %64 = vector.broadcast %61 : vector<8x1xf32> to vector<8x128xf32>
    %65 = vector.broadcast %63 : vector<1x128xf32> to vector<8x128xf32>
    %66 = arith.mulf %64, %65 : vector<8x128xf32>
    %67 = arith.addf %59, %66 : vector<8x128xf32>
    %c1_51 = arith.constant 1 : index
    %c2_52 = arith.constant 2 : index
    %c0_53 = arith.constant 0 : index
    %c0_54 = arith.constant 0 : index
    %68 = vector.load %arg1[%c1_51, %c2_52, %c0_53, %c0_54] : memref<3x3x9x1xf32, #tpu.memory_space<vmem>>, vector<1x1x8x1xf32>
    %69 = vector.shape_cast %68 : vector<1x1x8x1xf32> to vector<8x1xf32>
    %c2_55 = arith.constant 2 : index
    %c0_56 = arith.constant 0 : index
    %c0_57 = arith.constant 0 : index
    %70 = vector.load %arg2[%c2_55, %c0_56, %c0_57] : memref<5x1x128xf32, #tpu.memory_space<vmem>>, vector<1x1x128xf32>
    %71 = vector.shape_cast %70 : vector<1x1x128xf32> to vector<1x128xf32>
    %72 = vector.broadcast %69 : vector<8x1xf32> to vector<8x128xf32>
    %73 = vector.broadcast %71 : vector<1x128xf32> to vector<8x128xf32>
    %74 = arith.mulf %72, %73 : vector<8x128xf32>
    %75 = arith.addf %67, %74 : vector<8x128xf32>
    %c1_58 = arith.constant 1 : index
    %c0_59 = arith.constant 0 : index
    %c1_60 = arith.constant 1 : index
    %c0_61 = arith.constant 0 : index
    %76 = vector.load %arg1[%c1_58, %c0_59, %c1_60, %c0_61] : memref<3x3x9x1xf32, #tpu.memory_space<vmem>>, vector<1x1x8x1xf32>
    %77 = vector.shape_cast %76 : vector<1x1x8x1xf32> to vector<8x1xf32>
    %c3_62 = arith.constant 3 : index
    %c0_63 = arith.constant 0 : index
    %c0_64 = arith.constant 0 : index
    %78 = vector.load %arg2[%c3_62, %c0_63, %c0_64] : memref<5x1x128xf32, #tpu.memory_space<vmem>>, vector<1x1x128xf32>
    %79 = vector.shape_cast %78 : vector<1x1x128xf32> to vector<1x128xf32>
    %80 = vector.broadcast %77 : vector<8x1xf32> to vector<8x128xf32>
    %81 = vector.broadcast %79 : vector<1x128xf32> to vector<8x128xf32>
    %82 = arith.mulf %80, %81 : vector<8x128xf32>
    %83 = arith.addf %75, %82 : vector<8x128xf32>
    %c1_65 = arith.constant 1 : index
    %c1_66 = arith.constant 1 : index
    %c1_67 = arith.constant 1 : index
    %c0_68 = arith.constant 0 : index
    %84 = vector.load %arg1[%c1_65, %c1_66, %c1_67, %c0_68] : memref<3x3x9x1xf32, #tpu.memory_space<vmem>>, vector<1x1x8x1xf32>
    %85 = vector.shape_cast %84 : vector<1x1x8x1xf32> to vector<8x1xf32>
    %c4_69 = arith.constant 4 : index
    %c0_70 = arith.constant 0 : index
    %c0_71 = arith.constant 0 : index
    %86 = vector.load %arg2[%c4_69, %c0_70, %c0_71] : memref<5x1x128xf32, #tpu.memory_space<vmem>>, vector<1x1x128xf32>
    %87 = vector.shape_cast %86 : vector<1x1x128xf32> to vector<1x128xf32>
    %88 = vector.broadcast %85 : vector<8x1xf32> to vector<8x128xf32>
    %89 = vector.broadcast %87 : vector<1x128xf32> to vector<8x128xf32>
    %90 = arith.mulf %88, %89 : vector<8x128xf32>
    %91 = arith.addf %83, %90 : vector<8x128xf32>
    %92 = vector.broadcast %0 : vector<1x128xf32> to vector<8x128xf32>
    %93 = arith.addf %91, %92 : vector<8x128xf32>
    %cst_72 = arith.constant 1.000000e-01 : f32
    %94 = vector.broadcast %cst_72 : f32 to vector<8x128xf32>
    %95 = arith.mulf %94, %93 : vector<8x128xf32>
    %96 = arith.maximumf %93, %95 : vector<8x128xf32>
    %97 = arith.truncf %96 : vector<8x128xf32> to vector<8x128xbf16>
    %c1_73 = arith.constant 1 : index
    %c0_74 = arith.constant 0 : index
    %c0_75 = arith.constant 0 : index
    %98 = vector.load %arg4[%c1_73, %c0_74, %c0_75] : memref<3x8x128xbf16, #tpu.memory_space<vmem>>, vector<1x8x128xbf16>
    %99 = vector.shape_cast %98 : vector<1x8x128xbf16> to vector<8x128xbf16>
    %100 = vector.shape_cast %97 : vector<8x128xbf16> to vector<1x8x128xbf16>
    tpu.vector_store %arg4[%c1_73, %c0_74, %c0_75], %100 {strides = array<i32>} : memref<3x8x128xbf16, #tpu.memory_space<vmem>>, vector<1x8x128xbf16>,
    %cst_76 = arith.constant 0.000000e+00 : f32
    %101 = vector.broadcast %cst_76 : f32 to vector<8x128xf32>
    %c2_77 = arith.constant 2 : index
    %c0_78 = arith.constant 0 : index
    %c0_79 = arith.constant 0 : index
    %c0_80 = arith.constant 0 : index
    %102 = vector.load %arg1[%c2_77, %c0_78, %c0_79, %c0_80] : memref<3x3x9x1xf32, #tpu.memory_space<vmem>>, vector<1x1x8x1xf32>
    %103 = vector.shape_cast %102 : vector<1x1x8x1xf32> to vector<8x1xf32>
    %c0_81 = arith.constant 0 : index
    %c0_82 = arith.constant 0 : index
    %c0_83 = arith.constant 0 : index
    %104 = vector.load %arg2[%c0_81, %c0_82, %c0_83] : memref<5x1x128xf32, #tpu.memory_space<vmem>>, vector<1x1x128xf32>
    %105 = vector.shape_cast %104 : vector<1x1x128xf32> to vector<1x128xf32>
    %106 = vector.broadcast %103 : vector<8x1xf32> to vector<8x128xf32>
    %107 = vector.broadcast %105 : vector<1x128xf32> to vector<8x128xf32>
    %108 = arith.mulf %106, %107 : vector<8x128xf32>
    %109 = arith.addf %101, %108 : vector<8x128xf32>
    %c2_84 = arith.constant 2 : index
    %c1_85 = arith.constant 1 : index
    %c0_86 = arith.constant 0 : index
    %c0_87 = arith.constant 0 : index
    %110 = vector.load %arg1[%c2_84, %c1_85, %c0_86, %c0_87] : memref<3x3x9x1xf32, #tpu.memory_space<vmem>>, vector<1x1x8x1xf32>
    %111 = vector.shape_cast %110 : vector<1x1x8x1xf32> to vector<8x1xf32>
    %c1_88 = arith.constant 1 : index
    %c0_89 = arith.constant 0 : index
    %c0_90 = arith.constant 0 : index
    %112 = vector.load %arg2[%c1_88, %c0_89, %c0_90] : memref<5x1x128xf32, #tpu.memory_space<vmem>>, vector<1x1x128xf32>
    %113 = vector.shape_cast %112 : vector<1x1x128xf32> to vector<1x128xf32>
    %114 = vector.broadcast %111 : vector<8x1xf32> to vector<8x128xf32>
    %115 = vector.broadcast %113 : vector<1x128xf32> to vector<8x128xf32>
    %116 = arith.mulf %114, %115 : vector<8x128xf32>
    %117 = arith.addf %109, %116 : vector<8x128xf32>
    %c2_91 = arith.constant 2 : index
    %c2_92 = arith.constant 2 : index
    %c0_93 = arith.constant 0 : index
    %c0_94 = arith.constant 0 : index
    %118 = vector.load %arg1[%c2_91, %c2_92, %c0_93, %c0_94] : memref<3x3x9x1xf32, #tpu.memory_space<vmem>>, vector<1x1x8x1xf32>
    %119 = vector.shape_cast %118 : vector<1x1x8x1xf32> to vector<8x1xf32>
    %c2_95 = arith.constant 2 : index
    %c0_96 = arith.constant 0 : index
    %c0_97 = arith.constant 0 : index
    %120 = vector.load %arg2[%c2_95, %c0_96, %c0_97] : memref<5x1x128xf32, #tpu.memory_space<vmem>>, vector<1x1x128xf32>
    %121 = vector.shape_cast %120 : vector<1x1x128xf32> to vector<1x128xf32>
    %122 = vector.broadcast %119 : vector<8x1xf32> to vector<8x128xf32>
    %123 = vector.broadcast %121 : vector<1x128xf32> to vector<8x128xf32>
    %124 = arith.mulf %122, %123 : vector<8x128xf32>
    %125 = arith.addf %117, %124 : vector<8x128xf32>
    %c2_98 = arith.constant 2 : index
    %c0_99 = arith.constant 0 : index
    %c1_100 = arith.constant 1 : index
    %c0_101 = arith.constant 0 : index
    %126 = vector.load %arg1[%c2_98, %c0_99, %c1_100, %c0_101] : memref<3x3x9x1xf32, #tpu.memory_space<vmem>>, vector<1x1x8x1xf32>
    %127 = vector.shape_cast %126 : vector<1x1x8x1xf32> to vector<8x1xf32>
    %c3_102 = arith.constant 3 : index
    %c0_103 = arith.constant 0 : index
    %c0_104 = arith.constant 0 : index
    %128 = vector.load %arg2[%c3_102, %c0_103, %c0_104] : memref<5x1x128xf32, #tpu.memory_space<vmem>>, vector<1x1x128xf32>
    %129 = vector.shape_cast %128 : vector<1x1x128xf32> to vector<1x128xf32>
    %130 = vector.broadcast %127 : vector<8x1xf32> to vector<8x128xf32>
    %131 = vector.broadcast %129 : vector<1x128xf32> to vector<8x128xf32>
    %132 = arith.mulf %130, %131 : vector<8x128xf32>
    %133 = arith.addf %125, %132 : vector<8x128xf32>
    %c2_105 = arith.constant 2 : index
    %c1_106 = arith.constant 1 : index
    %c1_107 = arith.constant 1 : index
    %c0_108 = arith.constant 0 : index
    %134 = vector.load %arg1[%c2_105, %c1_106, %c1_107, %c0_108] : memref<3x3x9x1xf32, #tpu.memory_space<vmem>>, vector<1x1x8x1xf32>
    %135 = vector.shape_cast %134 : vector<1x1x8x1xf32> to vector<8x1xf32>
    %c4_109 = arith.constant 4 : index
    %c0_110 = arith.constant 0 : index
    %c0_111 = arith.constant 0 : index
    %136 = vector.load %arg2[%c4_109, %c0_110, %c0_111] : memref<5x1x128xf32, #tpu.memory_space<vmem>>, vector<1x1x128xf32>
    %137 = vector.shape_cast %136 : vector<1x1x128xf32> to vector<1x128xf32>
    %138 = vector.broadcast %135 : vector<8x1xf32> to vector<8x128xf32>
    %139 = vector.broadcast %137 : vector<1x128xf32> to vector<8x128xf32>
    %140 = arith.mulf %138, %139 : vector<8x128xf32>
    %141 = arith.addf %133, %140 : vector<8x128xf32>
    %142 = vector.broadcast %0 : vector<1x128xf32> to vector<8x128xf32>
    %143 = arith.addf %141, %142 : vector<8x128xf32>
    %cst_112 = arith.constant 1.000000e-01 : f32
    %144 = vector.broadcast %cst_112 : f32 to vector<8x128xf32>
    %145 = arith.mulf %144, %143 : vector<8x128xf32>
    %146 = arith.maximumf %143, %145 : vector<8x128xf32>
    %147 = arith.truncf %146 : vector<8x128xf32> to vector<8x128xbf16>
    %c2_113 = arith.constant 2 : index
    %c0_114 = arith.constant 0 : index
    %c0_115 = arith.constant 0 : index
    %148 = vector.load %arg4[%c2_113, %c0_114, %c0_115] : memref<3x8x128xbf16, #tpu.memory_space<vmem>>, vector<1x8x128xbf16>
    %149 = vector.shape_cast %148 : vector<1x8x128xbf16> to vector<8x128xbf16>
    %150 = vector.shape_cast %147 : vector<8x128xbf16> to vector<1x8x128xbf16>
    tpu.vector_store %arg4[%c2_113, %c0_114, %c0_115], %150 {strides = array<i32>} : memref<3x8x128xbf16, #tpu.memory_space<vmem>>, vector<1x8x128xbf16>,
    return
  }
  func.func @transform_0(%arg0: i32) -> (i32, i32, i32, i32) {
    %c0_i32 = arith.constant 0 : i32
    %c0_i32_0 = arith.constant 0 : i32
    %c0_i32_1 = arith.constant 0 : i32
    %c0_i32_2 = arith.constant 0 : i32
    return %arg0, %c0_i32, %c0_i32_0, %c0_i32_1 : i32, i32, i32, i32
  }
  func.func @transform_1(%arg0: i32) -> (i32, i32, i32) {
    %c0_i32 = arith.constant 0 : i32
    %c0_i32_0 = arith.constant 0 : i32
    %c0_i32_1 = arith.constant 0 : i32
    %c0_i32_2 = arith.constant 0 : i32
    return %c0_i32, %c0_i32_0, %c0_i32_1 : i32, i32, i32
  }
  func.func @transform_2(%arg0: i32) -> (i32, i32) {
    %c0_i32 = arith.constant 0 : i32
    %c0_i32_0 = arith.constant 0 : i32
    %c0_i32_1 = arith.constant 0 : i32
    return %c0_i32, %c0_i32_0 : i32, i32
  }
  func.func @transform_3(%arg0: i32) -> (i32, i32, i32) {
    %c0_i32 = arith.constant 0 : i32
    %c0_i32_0 = arith.constant 0 : i32
    %c0_i32_1 = arith.constant 0 : i32
    return %arg0, %c0_i32, %c0_i32_0 : i32, i32, i32
  }
}

module attributes {stable_mosaic.version = 11 : i64} {
  func.func @_conv_tap_kernel(%arg0: i32, %arg1: memref<3x4x384xbf16, #tpu.memory_space<vmem>>, %arg2: memref<5x128x128xbf16, #tpu.memory_space<vmem>>, %arg3: memref<1x128xf32, #tpu.memory_space<vmem>>, %arg4: memref<3x3x128xbf16, #tpu.memory_space<vmem>>) attributes {dimension_semantics = [#tpu.dimension_semantics<parallel>], iteration_bounds = array<i64: 2>, scalar_prefetch = 0 : i64, scratch_operands = 0 : i64, tpu.core_type = #tpu.core_type<tc>, window_params = [{transform_indices = @transform_0, window_bounds = array<i64: 3, 4, 384>}, {pipeline_mode = #tpu.pipeline_mode<synchronous>, transform_indices = @transform_1, window_bounds = array<i64: 5, 128, 128>}, {pipeline_mode = #tpu.pipeline_mode<synchronous>, transform_indices = @transform_2, window_bounds = array<i64: 1, 128>}, {transform_indices = @transform_3, window_bounds = array<i64: 3, 3, 128>}]} {
    %c0 = arith.constant 0 : index
    %c0_0 = arith.constant 0 : index
    %0 = vector.load %arg3[%c0, %c0_0] : memref<1x128xf32, #tpu.memory_space<vmem>>, vector<1x128xf32>
    %cst = arith.constant 0.000000e+00 : f32
    %1 = vector.broadcast %cst : f32 to vector<3x128xf32>
    %c0_1 = arith.constant 0 : index
    %c0_2 = arith.constant 0 : index
    %c0_3 = arith.constant 0 : index
    %2 = vector.load %arg1[%c0_1, %c0_2, %c0_3] : memref<3x4x384xbf16, #tpu.memory_space<vmem>>, vector<1x3x128xbf16>
    %3 = vector.shape_cast %2 : vector<1x3x128xbf16> to vector<3x128xbf16>
    %c0_4 = arith.constant 0 : index
    %c0_5 = arith.constant 0 : index
    %c0_6 = arith.constant 0 : index
    %4 = vector.load %arg2[%c0_4, %c0_5, %c0_6] : memref<5x128x128xbf16, #tpu.memory_space<vmem>>, vector<1x128x128xbf16>
    %5 = vector.shape_cast %4 : vector<1x128x128xbf16> to vector<128x128xbf16>
    %cst_7 = arith.constant dense<0.000000e+00> : vector<3x128xf32>
    %6 = tpu.matmul %3, %5, %cst_7 {dimension_numbers = #tpu.dot_dimension_numbers<[1], [0], [0], [1], [0, 0, 1, 1], [], []>} : vector<3x128xbf16>, vector<128x128xbf16>, vector<3x128xf32> -> vector<3x128xf32>
    %7 = arith.addf %1, %6 : vector<3x128xf32>
    %c0_8 = arith.constant 0 : index
    %c0_9 = arith.constant 0 : index
    %c128 = arith.constant 128 : index
    %8 = vector.load %arg1[%c0_8, %c0_9, %c128] : memref<3x4x384xbf16, #tpu.memory_space<vmem>>, vector<1x3x128xbf16>
    %9 = vector.shape_cast %8 : vector<1x3x128xbf16> to vector<3x128xbf16>
    %c1 = arith.constant 1 : index
    %c0_10 = arith.constant 0 : index
    %c0_11 = arith.constant 0 : index
    %10 = vector.load %arg2[%c1, %c0_10, %c0_11] : memref<5x128x128xbf16, #tpu.memory_space<vmem>>, vector<1x128x128xbf16>
    %11 = vector.shape_cast %10 : vector<1x128x128xbf16> to vector<128x128xbf16>
    %cst_12 = arith.constant dense<0.000000e+00> : vector<3x128xf32>
    %12 = tpu.matmul %9, %11, %cst_12 {dimension_numbers = #tpu.dot_dimension_numbers<[1], [0], [0], [1], [0, 0, 1, 1], [], []>} : vector<3x128xbf16>, vector<128x128xbf16>, vector<3x128xf32> -> vector<3x128xf32>
    %13 = arith.addf %7, %12 : vector<3x128xf32>
    %c0_13 = arith.constant 0 : index
    %c0_14 = arith.constant 0 : index
    %c256 = arith.constant 256 : index
    %14 = vector.load %arg1[%c0_13, %c0_14, %c256] : memref<3x4x384xbf16, #tpu.memory_space<vmem>>, vector<1x3x128xbf16>
    %15 = vector.shape_cast %14 : vector<1x3x128xbf16> to vector<3x128xbf16>
    %c2 = arith.constant 2 : index
    %c0_15 = arith.constant 0 : index
    %c0_16 = arith.constant 0 : index
    %16 = vector.load %arg2[%c2, %c0_15, %c0_16] : memref<5x128x128xbf16, #tpu.memory_space<vmem>>, vector<1x128x128xbf16>
    %17 = vector.shape_cast %16 : vector<1x128x128xbf16> to vector<128x128xbf16>
    %cst_17 = arith.constant dense<0.000000e+00> : vector<3x128xf32>
    %18 = tpu.matmul %15, %17, %cst_17 {dimension_numbers = #tpu.dot_dimension_numbers<[1], [0], [0], [1], [0, 0, 1, 1], [], []>} : vector<3x128xbf16>, vector<128x128xbf16>, vector<3x128xf32> -> vector<3x128xf32>
    %19 = arith.addf %13, %18 : vector<3x128xf32>
    %c0_18 = arith.constant 0 : index
    %c1_19 = arith.constant 1 : index
    %c0_20 = arith.constant 0 : index
    %20 = vector.load %arg1[%c0_18, %c1_19, %c0_20] : memref<3x4x384xbf16, #tpu.memory_space<vmem>>, vector<1x3x128xbf16>
    %21 = vector.shape_cast %20 : vector<1x3x128xbf16> to vector<3x128xbf16>
    %c3 = arith.constant 3 : index
    %c0_21 = arith.constant 0 : index
    %c0_22 = arith.constant 0 : index
    %22 = vector.load %arg2[%c3, %c0_21, %c0_22] : memref<5x128x128xbf16, #tpu.memory_space<vmem>>, vector<1x128x128xbf16>
    %23 = vector.shape_cast %22 : vector<1x128x128xbf16> to vector<128x128xbf16>
    %cst_23 = arith.constant dense<0.000000e+00> : vector<3x128xf32>
    %24 = tpu.matmul %21, %23, %cst_23 {dimension_numbers = #tpu.dot_dimension_numbers<[1], [0], [0], [1], [0, 0, 1, 1], [], []>} : vector<3x128xbf16>, vector<128x128xbf16>, vector<3x128xf32> -> vector<3x128xf32>
    %25 = arith.addf %19, %24 : vector<3x128xf32>
    %c0_24 = arith.constant 0 : index
    %c1_25 = arith.constant 1 : index
    %c128_26 = arith.constant 128 : index
    %26 = vector.load %arg1[%c0_24, %c1_25, %c128_26] : memref<3x4x384xbf16, #tpu.memory_space<vmem>>, vector<1x3x128xbf16>
    %27 = vector.shape_cast %26 : vector<1x3x128xbf16> to vector<3x128xbf16>
    %c4 = arith.constant 4 : index
    %c0_27 = arith.constant 0 : index
    %c0_28 = arith.constant 0 : index
    %28 = vector.load %arg2[%c4, %c0_27, %c0_28] : memref<5x128x128xbf16, #tpu.memory_space<vmem>>, vector<1x128x128xbf16>
    %29 = vector.shape_cast %28 : vector<1x128x128xbf16> to vector<128x128xbf16>
    %cst_29 = arith.constant dense<0.000000e+00> : vector<3x128xf32>
    %30 = tpu.matmul %27, %29, %cst_29 {dimension_numbers = #tpu.dot_dimension_numbers<[1], [0], [0], [1], [0, 0, 1, 1], [], []>} : vector<3x128xbf16>, vector<128x128xbf16>, vector<3x128xf32> -> vector<3x128xf32>
    %31 = arith.addf %25, %30 : vector<3x128xf32>
    %32 = vector.broadcast %0 : vector<1x128xf32> to vector<3x128xf32>
    %33 = arith.addf %31, %32 : vector<3x128xf32>
    %cst_30 = arith.constant 1.000000e-01 : f32
    %34 = vector.broadcast %cst_30 : f32 to vector<3x128xf32>
    %35 = arith.mulf %34, %33 : vector<3x128xf32>
    %36 = arith.maximumf %33, %35 : vector<3x128xf32>
    %37 = arith.truncf %36 : vector<3x128xf32> to vector<3x128xbf16>
    %c0_31 = arith.constant 0 : index
    %c0_32 = arith.constant 0 : index
    %c0_33 = arith.constant 0 : index
    %38 = vector.load %arg4[%c0_31, %c0_32, %c0_33] : memref<3x3x128xbf16, #tpu.memory_space<vmem>>, vector<1x3x128xbf16>
    %39 = vector.shape_cast %38 : vector<1x3x128xbf16> to vector<3x128xbf16>
    %40 = vector.shape_cast %37 : vector<3x128xbf16> to vector<1x3x128xbf16>
    tpu.vector_store %arg4[%c0_31, %c0_32, %c0_33], %40 {strides = array<i32>} : memref<3x3x128xbf16, #tpu.memory_space<vmem>>, vector<1x3x128xbf16>,
    %cst_34 = arith.constant 0.000000e+00 : f32
    %41 = vector.broadcast %cst_34 : f32 to vector<3x128xf32>
    %c1_35 = arith.constant 1 : index
    %c0_36 = arith.constant 0 : index
    %c0_37 = arith.constant 0 : index
    %42 = vector.load %arg1[%c1_35, %c0_36, %c0_37] : memref<3x4x384xbf16, #tpu.memory_space<vmem>>, vector<1x3x128xbf16>
    %43 = vector.shape_cast %42 : vector<1x3x128xbf16> to vector<3x128xbf16>
    %c0_38 = arith.constant 0 : index
    %c0_39 = arith.constant 0 : index
    %c0_40 = arith.constant 0 : index
    %44 = vector.load %arg2[%c0_38, %c0_39, %c0_40] : memref<5x128x128xbf16, #tpu.memory_space<vmem>>, vector<1x128x128xbf16>
    %45 = vector.shape_cast %44 : vector<1x128x128xbf16> to vector<128x128xbf16>
    %cst_41 = arith.constant dense<0.000000e+00> : vector<3x128xf32>
    %46 = tpu.matmul %43, %45, %cst_41 {dimension_numbers = #tpu.dot_dimension_numbers<[1], [0], [0], [1], [0, 0, 1, 1], [], []>} : vector<3x128xbf16>, vector<128x128xbf16>, vector<3x128xf32> -> vector<3x128xf32>
    %47 = arith.addf %41, %46 : vector<3x128xf32>
    %c1_42 = arith.constant 1 : index
    %c0_43 = arith.constant 0 : index
    %c128_44 = arith.constant 128 : index
    %48 = vector.load %arg1[%c1_42, %c0_43, %c128_44] : memref<3x4x384xbf16, #tpu.memory_space<vmem>>, vector<1x3x128xbf16>
    %49 = vector.shape_cast %48 : vector<1x3x128xbf16> to vector<3x128xbf16>
    %c1_45 = arith.constant 1 : index
    %c0_46 = arith.constant 0 : index
    %c0_47 = arith.constant 0 : index
    %50 = vector.load %arg2[%c1_45, %c0_46, %c0_47] : memref<5x128x128xbf16, #tpu.memory_space<vmem>>, vector<1x128x128xbf16>
    %51 = vector.shape_cast %50 : vector<1x128x128xbf16> to vector<128x128xbf16>
    %cst_48 = arith.constant dense<0.000000e+00> : vector<3x128xf32>
    %52 = tpu.matmul %49, %51, %cst_48 {dimension_numbers = #tpu.dot_dimension_numbers<[1], [0], [0], [1], [0, 0, 1, 1], [], []>} : vector<3x128xbf16>, vector<128x128xbf16>, vector<3x128xf32> -> vector<3x128xf32>
    %53 = arith.addf %47, %52 : vector<3x128xf32>
    %c1_49 = arith.constant 1 : index
    %c0_50 = arith.constant 0 : index
    %c256_51 = arith.constant 256 : index
    %54 = vector.load %arg1[%c1_49, %c0_50, %c256_51] : memref<3x4x384xbf16, #tpu.memory_space<vmem>>, vector<1x3x128xbf16>
    %55 = vector.shape_cast %54 : vector<1x3x128xbf16> to vector<3x128xbf16>
    %c2_52 = arith.constant 2 : index
    %c0_53 = arith.constant 0 : index
    %c0_54 = arith.constant 0 : index
    %56 = vector.load %arg2[%c2_52, %c0_53, %c0_54] : memref<5x128x128xbf16, #tpu.memory_space<vmem>>, vector<1x128x128xbf16>
    %57 = vector.shape_cast %56 : vector<1x128x128xbf16> to vector<128x128xbf16>
    %cst_55 = arith.constant dense<0.000000e+00> : vector<3x128xf32>
    %58 = tpu.matmul %55, %57, %cst_55 {dimension_numbers = #tpu.dot_dimension_numbers<[1], [0], [0], [1], [0, 0, 1, 1], [], []>} : vector<3x128xbf16>, vector<128x128xbf16>, vector<3x128xf32> -> vector<3x128xf32>
    %59 = arith.addf %53, %58 : vector<3x128xf32>
    %c1_56 = arith.constant 1 : index
    %c1_57 = arith.constant 1 : index
    %c0_58 = arith.constant 0 : index
    %60 = vector.load %arg1[%c1_56, %c1_57, %c0_58] : memref<3x4x384xbf16, #tpu.memory_space<vmem>>, vector<1x3x128xbf16>
    %61 = vector.shape_cast %60 : vector<1x3x128xbf16> to vector<3x128xbf16>
    %c3_59 = arith.constant 3 : index
    %c0_60 = arith.constant 0 : index
    %c0_61 = arith.constant 0 : index
    %62 = vector.load %arg2[%c3_59, %c0_60, %c0_61] : memref<5x128x128xbf16, #tpu.memory_space<vmem>>, vector<1x128x128xbf16>
    %63 = vector.shape_cast %62 : vector<1x128x128xbf16> to vector<128x128xbf16>
    %cst_62 = arith.constant dense<0.000000e+00> : vector<3x128xf32>
    %64 = tpu.matmul %61, %63, %cst_62 {dimension_numbers = #tpu.dot_dimension_numbers<[1], [0], [0], [1], [0, 0, 1, 1], [], []>} : vector<3x128xbf16>, vector<128x128xbf16>, vector<3x128xf32> -> vector<3x128xf32>
    %65 = arith.addf %59, %64 : vector<3x128xf32>
    %c1_63 = arith.constant 1 : index
    %c1_64 = arith.constant 1 : index
    %c128_65 = arith.constant 128 : index
    %66 = vector.load %arg1[%c1_63, %c1_64, %c128_65] : memref<3x4x384xbf16, #tpu.memory_space<vmem>>, vector<1x3x128xbf16>
    %67 = vector.shape_cast %66 : vector<1x3x128xbf16> to vector<3x128xbf16>
    %c4_66 = arith.constant 4 : index
    %c0_67 = arith.constant 0 : index
    %c0_68 = arith.constant 0 : index
    %68 = vector.load %arg2[%c4_66, %c0_67, %c0_68] : memref<5x128x128xbf16, #tpu.memory_space<vmem>>, vector<1x128x128xbf16>
    %69 = vector.shape_cast %68 : vector<1x128x128xbf16> to vector<128x128xbf16>
    %cst_69 = arith.constant dense<0.000000e+00> : vector<3x128xf32>
    %70 = tpu.matmul %67, %69, %cst_69 {dimension_numbers = #tpu.dot_dimension_numbers<[1], [0], [0], [1], [0, 0, 1, 1], [], []>} : vector<3x128xbf16>, vector<128x128xbf16>, vector<3x128xf32> -> vector<3x128xf32>
    %71 = arith.addf %65, %70 : vector<3x128xf32>
    %72 = vector.broadcast %0 : vector<1x128xf32> to vector<3x128xf32>
    %73 = arith.addf %71, %72 : vector<3x128xf32>
    %cst_70 = arith.constant 1.000000e-01 : f32
    %74 = vector.broadcast %cst_70 : f32 to vector<3x128xf32>
    %75 = arith.mulf %74, %73 : vector<3x128xf32>
    %76 = arith.maximumf %73, %75 : vector<3x128xf32>
    %77 = arith.truncf %76 : vector<3x128xf32> to vector<3x128xbf16>
    %c1_71 = arith.constant 1 : index
    %c0_72 = arith.constant 0 : index
    %c0_73 = arith.constant 0 : index
    %78 = vector.load %arg4[%c1_71, %c0_72, %c0_73] : memref<3x3x128xbf16, #tpu.memory_space<vmem>>, vector<1x3x128xbf16>
    %79 = vector.shape_cast %78 : vector<1x3x128xbf16> to vector<3x128xbf16>
    %80 = vector.shape_cast %77 : vector<3x128xbf16> to vector<1x3x128xbf16>
    tpu.vector_store %arg4[%c1_71, %c0_72, %c0_73], %80 {strides = array<i32>} : memref<3x3x128xbf16, #tpu.memory_space<vmem>>, vector<1x3x128xbf16>,
    %cst_74 = arith.constant 0.000000e+00 : f32
    %81 = vector.broadcast %cst_74 : f32 to vector<3x128xf32>
    %c2_75 = arith.constant 2 : index
    %c0_76 = arith.constant 0 : index
    %c0_77 = arith.constant 0 : index
    %82 = vector.load %arg1[%c2_75, %c0_76, %c0_77] : memref<3x4x384xbf16, #tpu.memory_space<vmem>>, vector<1x3x128xbf16>
    %83 = vector.shape_cast %82 : vector<1x3x128xbf16> to vector<3x128xbf16>
    %c0_78 = arith.constant 0 : index
    %c0_79 = arith.constant 0 : index
    %c0_80 = arith.constant 0 : index
    %84 = vector.load %arg2[%c0_78, %c0_79, %c0_80] : memref<5x128x128xbf16, #tpu.memory_space<vmem>>, vector<1x128x128xbf16>
    %85 = vector.shape_cast %84 : vector<1x128x128xbf16> to vector<128x128xbf16>
    %cst_81 = arith.constant dense<0.000000e+00> : vector<3x128xf32>
    %86 = tpu.matmul %83, %85, %cst_81 {dimension_numbers = #tpu.dot_dimension_numbers<[1], [0], [0], [1], [0, 0, 1, 1], [], []>} : vector<3x128xbf16>, vector<128x128xbf16>, vector<3x128xf32> -> vector<3x128xf32>
    %87 = arith.addf %81, %86 : vector<3x128xf32>
    %c2_82 = arith.constant 2 : index
    %c0_83 = arith.constant 0 : index
    %c128_84 = arith.constant 128 : index
    %88 = vector.load %arg1[%c2_82, %c0_83, %c128_84] : memref<3x4x384xbf16, #tpu.memory_space<vmem>>, vector<1x3x128xbf16>
    %89 = vector.shape_cast %88 : vector<1x3x128xbf16> to vector<3x128xbf16>
    %c1_85 = arith.constant 1 : index
    %c0_86 = arith.constant 0 : index
    %c0_87 = arith.constant 0 : index
    %90 = vector.load %arg2[%c1_85, %c0_86, %c0_87] : memref<5x128x128xbf16, #tpu.memory_space<vmem>>, vector<1x128x128xbf16>
    %91 = vector.shape_cast %90 : vector<1x128x128xbf16> to vector<128x128xbf16>
    %cst_88 = arith.constant dense<0.000000e+00> : vector<3x128xf32>
    %92 = tpu.matmul %89, %91, %cst_88 {dimension_numbers = #tpu.dot_dimension_numbers<[1], [0], [0], [1], [0, 0, 1, 1], [], []>} : vector<3x128xbf16>, vector<128x128xbf16>, vector<3x128xf32> -> vector<3x128xf32>
    %93 = arith.addf %87, %92 : vector<3x128xf32>
    %c2_89 = arith.constant 2 : index
    %c0_90 = arith.constant 0 : index
    %c256_91 = arith.constant 256 : index
    %94 = vector.load %arg1[%c2_89, %c0_90, %c256_91] : memref<3x4x384xbf16, #tpu.memory_space<vmem>>, vector<1x3x128xbf16>
    %95 = vector.shape_cast %94 : vector<1x3x128xbf16> to vector<3x128xbf16>
    %c2_92 = arith.constant 2 : index
    %c0_93 = arith.constant 0 : index
    %c0_94 = arith.constant 0 : index
    %96 = vector.load %arg2[%c2_92, %c0_93, %c0_94] : memref<5x128x128xbf16, #tpu.memory_space<vmem>>, vector<1x128x128xbf16>
    %97 = vector.shape_cast %96 : vector<1x128x128xbf16> to vector<128x128xbf16>
    %cst_95 = arith.constant dense<0.000000e+00> : vector<3x128xf32>
    %98 = tpu.matmul %95, %97, %cst_95 {dimension_numbers = #tpu.dot_dimension_numbers<[1], [0], [0], [1], [0, 0, 1, 1], [], []>} : vector<3x128xbf16>, vector<128x128xbf16>, vector<3x128xf32> -> vector<3x128xf32>
    %99 = arith.addf %93, %98 : vector<3x128xf32>
    %c2_96 = arith.constant 2 : index
    %c1_97 = arith.constant 1 : index
    %c0_98 = arith.constant 0 : index
    %100 = vector.load %arg1[%c2_96, %c1_97, %c0_98] : memref<3x4x384xbf16, #tpu.memory_space<vmem>>, vector<1x3x128xbf16>
    %101 = vector.shape_cast %100 : vector<1x3x128xbf16> to vector<3x128xbf16>
    %c3_99 = arith.constant 3 : index
    %c0_100 = arith.constant 0 : index
    %c0_101 = arith.constant 0 : index
    %102 = vector.load %arg2[%c3_99, %c0_100, %c0_101] : memref<5x128x128xbf16, #tpu.memory_space<vmem>>, vector<1x128x128xbf16>
    %103 = vector.shape_cast %102 : vector<1x128x128xbf16> to vector<128x128xbf16>
    %cst_102 = arith.constant dense<0.000000e+00> : vector<3x128xf32>
    %104 = tpu.matmul %101, %103, %cst_102 {dimension_numbers = #tpu.dot_dimension_numbers<[1], [0], [0], [1], [0, 0, 1, 1], [], []>} : vector<3x128xbf16>, vector<128x128xbf16>, vector<3x128xf32> -> vector<3x128xf32>
    %105 = arith.addf %99, %104 : vector<3x128xf32>
    %c2_103 = arith.constant 2 : index
    %c1_104 = arith.constant 1 : index
    %c128_105 = arith.constant 128 : index
    %106 = vector.load %arg1[%c2_103, %c1_104, %c128_105] : memref<3x4x384xbf16, #tpu.memory_space<vmem>>, vector<1x3x128xbf16>
    %107 = vector.shape_cast %106 : vector<1x3x128xbf16> to vector<3x128xbf16>
    %c4_106 = arith.constant 4 : index
    %c0_107 = arith.constant 0 : index
    %c0_108 = arith.constant 0 : index
    %108 = vector.load %arg2[%c4_106, %c0_107, %c0_108] : memref<5x128x128xbf16, #tpu.memory_space<vmem>>, vector<1x128x128xbf16>
    %109 = vector.shape_cast %108 : vector<1x128x128xbf16> to vector<128x128xbf16>
    %cst_109 = arith.constant dense<0.000000e+00> : vector<3x128xf32>
    %110 = tpu.matmul %107, %109, %cst_109 {dimension_numbers = #tpu.dot_dimension_numbers<[1], [0], [0], [1], [0, 0, 1, 1], [], []>} : vector<3x128xbf16>, vector<128x128xbf16>, vector<3x128xf32> -> vector<3x128xf32>
    %111 = arith.addf %105, %110 : vector<3x128xf32>
    %112 = vector.broadcast %0 : vector<1x128xf32> to vector<3x128xf32>
    %113 = arith.addf %111, %112 : vector<3x128xf32>
    %cst_110 = arith.constant 1.000000e-01 : f32
    %114 = vector.broadcast %cst_110 : f32 to vector<3x128xf32>
    %115 = arith.mulf %114, %113 : vector<3x128xf32>
    %116 = arith.maximumf %113, %115 : vector<3x128xf32>
    %117 = arith.truncf %116 : vector<3x128xf32> to vector<3x128xbf16>
    %c2_111 = arith.constant 2 : index
    %c0_112 = arith.constant 0 : index
    %c0_113 = arith.constant 0 : index
    %118 = vector.load %arg4[%c2_111, %c0_112, %c0_113] : memref<3x3x128xbf16, #tpu.memory_space<vmem>>, vector<1x3x128xbf16>
    %119 = vector.shape_cast %118 : vector<1x3x128xbf16> to vector<3x128xbf16>
    %120 = vector.shape_cast %117 : vector<3x128xbf16> to vector<1x3x128xbf16>
    tpu.vector_store %arg4[%c2_111, %c0_112, %c0_113], %120 {strides = array<i32>} : memref<3x3x128xbf16, #tpu.memory_space<vmem>>, vector<1x3x128xbf16>,
    return
  }
  func.func @transform_0(%arg0: i32) -> (i32, i32, i32) {
    %c0_i32 = arith.constant 0 : i32
    %c0_i32_0 = arith.constant 0 : i32
    %c0_i32_1 = arith.constant 0 : i32
    return %arg0, %c0_i32, %c0_i32_0 : i32, i32, i32
  }
  func.func @transform_1(%arg0: i32) -> (i32, i32, i32) {
    %c0_i32 = arith.constant 0 : i32
    %c0_i32_0 = arith.constant 0 : i32
    %c0_i32_1 = arith.constant 0 : i32
    %c0_i32_2 = arith.constant 0 : i32
    return %c0_i32, %c0_i32_0, %c0_i32_1 : i32, i32, i32
  }
  func.func @transform_2(%arg0: i32) -> (i32, i32) {
    %c0_i32 = arith.constant 0 : i32
    %c0_i32_0 = arith.constant 0 : i32
    %c0_i32_1 = arith.constant 0 : i32
    return %c0_i32, %c0_i32_0 : i32, i32
  }
  func.func @transform_3(%arg0: i32) -> (i32, i32, i32) {
    %c0_i32 = arith.constant 0 : i32
    %c0_i32_0 = arith.constant 0 : i32
    %c0_i32_1 = arith.constant 0 : i32
    return %arg0, %c0_i32, %c0_i32_0 : i32, i32, i32
  }
}

module attributes {stable_mosaic.version = 11 : i64} {
  func.func @_conv_tap_kernel(%arg0: i32, %arg1: memref<3x3x128xbf16, #tpu.memory_space<vmem>>, %arg2: memref<3x128x128xbf16, #tpu.memory_space<vmem>>, %arg3: memref<1x128xf32, #tpu.memory_space<vmem>>, %arg4: memref<3x1x128xf32, #tpu.memory_space<vmem>>) attributes {dimension_semantics = [#tpu.dimension_semantics<parallel>], iteration_bounds = array<i64: 2>, scalar_prefetch = 0 : i64, scratch_operands = 0 : i64, tpu.core_type = #tpu.core_type<tc>, window_params = [{transform_indices = @transform_0, window_bounds = array<i64: 3, 3, 128>}, {pipeline_mode = #tpu.pipeline_mode<synchronous>, transform_indices = @transform_1, window_bounds = array<i64: 3, 128, 128>}, {pipeline_mode = #tpu.pipeline_mode<synchronous>, transform_indices = @transform_2, window_bounds = array<i64: 1, 128>}, {transform_indices = @transform_3, window_bounds = array<i64: 3, 1, 128>}]} {
    %c0 = arith.constant 0 : index
    %c0_0 = arith.constant 0 : index
    %0 = vector.load %arg3[%c0, %c0_0] : memref<1x128xf32, #tpu.memory_space<vmem>>, vector<1x128xf32>
    %cst = arith.constant 0.000000e+00 : f32
    %1 = vector.broadcast %cst : f32 to vector<1x128xf32>
    %c0_1 = arith.constant 0 : index
    %c0_2 = arith.constant 0 : index
    %c0_3 = arith.constant 0 : index
    %2 = vector.load %arg1[%c0_1, %c0_2, %c0_3] : memref<3x3x128xbf16, #tpu.memory_space<vmem>>, vector<1x1x128xbf16>
    %3 = vector.shape_cast %2 : vector<1x1x128xbf16> to vector<1x128xbf16>
    %c0_4 = arith.constant 0 : index
    %c0_5 = arith.constant 0 : index
    %c0_6 = arith.constant 0 : index
    %4 = vector.load %arg2[%c0_4, %c0_5, %c0_6] : memref<3x128x128xbf16, #tpu.memory_space<vmem>>, vector<1x128x128xbf16>
    %5 = vector.shape_cast %4 : vector<1x128x128xbf16> to vector<128x128xbf16>
    %cst_7 = arith.constant dense<0.000000e+00> : vector<1x128xf32>
    %6 = tpu.matmul %3, %5, %cst_7 {dimension_numbers = #tpu.dot_dimension_numbers<[1], [0], [0], [1], [0, 0, 1, 1], [], []>} : vector<1x128xbf16>, vector<128x128xbf16>, vector<1x128xf32> -> vector<1x128xf32>
    %7 = arith.addf %1, %6 : vector<1x128xf32>
    %c0_8 = arith.constant 0 : index
    %c1 = arith.constant 1 : index
    %c0_9 = arith.constant 0 : index
    %8 = vector.load %arg1[%c0_8, %c1, %c0_9] : memref<3x3x128xbf16, #tpu.memory_space<vmem>>, vector<1x1x128xbf16>
    %9 = vector.shape_cast %8 : vector<1x1x128xbf16> to vector<1x128xbf16>
    %c1_10 = arith.constant 1 : index
    %c0_11 = arith.constant 0 : index
    %c0_12 = arith.constant 0 : index
    %10 = vector.load %arg2[%c1_10, %c0_11, %c0_12] : memref<3x128x128xbf16, #tpu.memory_space<vmem>>, vector<1x128x128xbf16>
    %11 = vector.shape_cast %10 : vector<1x128x128xbf16> to vector<128x128xbf16>
    %cst_13 = arith.constant dense<0.000000e+00> : vector<1x128xf32>
    %12 = tpu.matmul %9, %11, %cst_13 {dimension_numbers = #tpu.dot_dimension_numbers<[1], [0], [0], [1], [0, 0, 1, 1], [], []>} : vector<1x128xbf16>, vector<128x128xbf16>, vector<1x128xf32> -> vector<1x128xf32>
    %13 = arith.addf %7, %12 : vector<1x128xf32>
    %c0_14 = arith.constant 0 : index
    %c2 = arith.constant 2 : index
    %c0_15 = arith.constant 0 : index
    %14 = vector.load %arg1[%c0_14, %c2, %c0_15] : memref<3x3x128xbf16, #tpu.memory_space<vmem>>, vector<1x1x128xbf16>
    %15 = vector.shape_cast %14 : vector<1x1x128xbf16> to vector<1x128xbf16>
    %c2_16 = arith.constant 2 : index
    %c0_17 = arith.constant 0 : index
    %c0_18 = arith.constant 0 : index
    %16 = vector.load %arg2[%c2_16, %c0_17, %c0_18] : memref<3x128x128xbf16, #tpu.memory_space<vmem>>, vector<1x128x128xbf16>
    %17 = vector.shape_cast %16 : vector<1x128x128xbf16> to vector<128x128xbf16>
    %cst_19 = arith.constant dense<0.000000e+00> : vector<1x128xf32>
    %18 = tpu.matmul %15, %17, %cst_19 {dimension_numbers = #tpu.dot_dimension_numbers<[1], [0], [0], [1], [0, 0, 1, 1], [], []>} : vector<1x128xbf16>, vector<128x128xbf16>, vector<1x128xf32> -> vector<1x128xf32>
    %19 = arith.addf %13, %18 : vector<1x128xf32>
    %20 = arith.addf %19, %0 : vector<1x128xf32>
    %c0_20 = arith.constant 0 : index
    %c0_21 = arith.constant 0 : index
    %c0_22 = arith.constant 0 : index
    %21 = vector.load %arg4[%c0_20, %c0_21, %c0_22] : memref<3x1x128xf32, #tpu.memory_space<vmem>>, vector<1x1x128xf32>
    %22 = vector.shape_cast %21 : vector<1x1x128xf32> to vector<1x128xf32>
    %23 = vector.shape_cast %20 : vector<1x128xf32> to vector<1x1x128xf32>
    tpu.vector_store %arg4[%c0_20, %c0_21, %c0_22], %23 {strides = array<i32>} : memref<3x1x128xf32, #tpu.memory_space<vmem>>, vector<1x1x128xf32>,
    %cst_23 = arith.constant 0.000000e+00 : f32
    %24 = vector.broadcast %cst_23 : f32 to vector<1x128xf32>
    %c1_24 = arith.constant 1 : index
    %c0_25 = arith.constant 0 : index
    %c0_26 = arith.constant 0 : index
    %25 = vector.load %arg1[%c1_24, %c0_25, %c0_26] : memref<3x3x128xbf16, #tpu.memory_space<vmem>>, vector<1x1x128xbf16>
    %26 = vector.shape_cast %25 : vector<1x1x128xbf16> to vector<1x128xbf16>
    %c0_27 = arith.constant 0 : index
    %c0_28 = arith.constant 0 : index
    %c0_29 = arith.constant 0 : index
    %27 = vector.load %arg2[%c0_27, %c0_28, %c0_29] : memref<3x128x128xbf16, #tpu.memory_space<vmem>>, vector<1x128x128xbf16>
    %28 = vector.shape_cast %27 : vector<1x128x128xbf16> to vector<128x128xbf16>
    %cst_30 = arith.constant dense<0.000000e+00> : vector<1x128xf32>
    %29 = tpu.matmul %26, %28, %cst_30 {dimension_numbers = #tpu.dot_dimension_numbers<[1], [0], [0], [1], [0, 0, 1, 1], [], []>} : vector<1x128xbf16>, vector<128x128xbf16>, vector<1x128xf32> -> vector<1x128xf32>
    %30 = arith.addf %24, %29 : vector<1x128xf32>
    %c1_31 = arith.constant 1 : index
    %c1_32 = arith.constant 1 : index
    %c0_33 = arith.constant 0 : index
    %31 = vector.load %arg1[%c1_31, %c1_32, %c0_33] : memref<3x3x128xbf16, #tpu.memory_space<vmem>>, vector<1x1x128xbf16>
    %32 = vector.shape_cast %31 : vector<1x1x128xbf16> to vector<1x128xbf16>
    %c1_34 = arith.constant 1 : index
    %c0_35 = arith.constant 0 : index
    %c0_36 = arith.constant 0 : index
    %33 = vector.load %arg2[%c1_34, %c0_35, %c0_36] : memref<3x128x128xbf16, #tpu.memory_space<vmem>>, vector<1x128x128xbf16>
    %34 = vector.shape_cast %33 : vector<1x128x128xbf16> to vector<128x128xbf16>
    %cst_37 = arith.constant dense<0.000000e+00> : vector<1x128xf32>
    %35 = tpu.matmul %32, %34, %cst_37 {dimension_numbers = #tpu.dot_dimension_numbers<[1], [0], [0], [1], [0, 0, 1, 1], [], []>} : vector<1x128xbf16>, vector<128x128xbf16>, vector<1x128xf32> -> vector<1x128xf32>
    %36 = arith.addf %30, %35 : vector<1x128xf32>
    %c1_38 = arith.constant 1 : index
    %c2_39 = arith.constant 2 : index
    %c0_40 = arith.constant 0 : index
    %37 = vector.load %arg1[%c1_38, %c2_39, %c0_40] : memref<3x3x128xbf16, #tpu.memory_space<vmem>>, vector<1x1x128xbf16>
    %38 = vector.shape_cast %37 : vector<1x1x128xbf16> to vector<1x128xbf16>
    %c2_41 = arith.constant 2 : index
    %c0_42 = arith.constant 0 : index
    %c0_43 = arith.constant 0 : index
    %39 = vector.load %arg2[%c2_41, %c0_42, %c0_43] : memref<3x128x128xbf16, #tpu.memory_space<vmem>>, vector<1x128x128xbf16>
    %40 = vector.shape_cast %39 : vector<1x128x128xbf16> to vector<128x128xbf16>
    %cst_44 = arith.constant dense<0.000000e+00> : vector<1x128xf32>
    %41 = tpu.matmul %38, %40, %cst_44 {dimension_numbers = #tpu.dot_dimension_numbers<[1], [0], [0], [1], [0, 0, 1, 1], [], []>} : vector<1x128xbf16>, vector<128x128xbf16>, vector<1x128xf32> -> vector<1x128xf32>
    %42 = arith.addf %36, %41 : vector<1x128xf32>
    %43 = arith.addf %42, %0 : vector<1x128xf32>
    %c1_45 = arith.constant 1 : index
    %c0_46 = arith.constant 0 : index
    %c0_47 = arith.constant 0 : index
    %44 = vector.load %arg4[%c1_45, %c0_46, %c0_47] : memref<3x1x128xf32, #tpu.memory_space<vmem>>, vector<1x1x128xf32>
    %45 = vector.shape_cast %44 : vector<1x1x128xf32> to vector<1x128xf32>
    %46 = vector.shape_cast %43 : vector<1x128xf32> to vector<1x1x128xf32>
    tpu.vector_store %arg4[%c1_45, %c0_46, %c0_47], %46 {strides = array<i32>} : memref<3x1x128xf32, #tpu.memory_space<vmem>>, vector<1x1x128xf32>,
    %cst_48 = arith.constant 0.000000e+00 : f32
    %47 = vector.broadcast %cst_48 : f32 to vector<1x128xf32>
    %c2_49 = arith.constant 2 : index
    %c0_50 = arith.constant 0 : index
    %c0_51 = arith.constant 0 : index
    %48 = vector.load %arg1[%c2_49, %c0_50, %c0_51] : memref<3x3x128xbf16, #tpu.memory_space<vmem>>, vector<1x1x128xbf16>
    %49 = vector.shape_cast %48 : vector<1x1x128xbf16> to vector<1x128xbf16>
    %c0_52 = arith.constant 0 : index
    %c0_53 = arith.constant 0 : index
    %c0_54 = arith.constant 0 : index
    %50 = vector.load %arg2[%c0_52, %c0_53, %c0_54] : memref<3x128x128xbf16, #tpu.memory_space<vmem>>, vector<1x128x128xbf16>
    %51 = vector.shape_cast %50 : vector<1x128x128xbf16> to vector<128x128xbf16>
    %cst_55 = arith.constant dense<0.000000e+00> : vector<1x128xf32>
    %52 = tpu.matmul %49, %51, %cst_55 {dimension_numbers = #tpu.dot_dimension_numbers<[1], [0], [0], [1], [0, 0, 1, 1], [], []>} : vector<1x128xbf16>, vector<128x128xbf16>, vector<1x128xf32> -> vector<1x128xf32>
    %53 = arith.addf %47, %52 : vector<1x128xf32>
    %c2_56 = arith.constant 2 : index
    %c1_57 = arith.constant 1 : index
    %c0_58 = arith.constant 0 : index
    %54 = vector.load %arg1[%c2_56, %c1_57, %c0_58] : memref<3x3x128xbf16, #tpu.memory_space<vmem>>, vector<1x1x128xbf16>
    %55 = vector.shape_cast %54 : vector<1x1x128xbf16> to vector<1x128xbf16>
    %c1_59 = arith.constant 1 : index
    %c0_60 = arith.constant 0 : index
    %c0_61 = arith.constant 0 : index
    %56 = vector.load %arg2[%c1_59, %c0_60, %c0_61] : memref<3x128x128xbf16, #tpu.memory_space<vmem>>, vector<1x128x128xbf16>
    %57 = vector.shape_cast %56 : vector<1x128x128xbf16> to vector<128x128xbf16>
    %cst_62 = arith.constant dense<0.000000e+00> : vector<1x128xf32>
    %58 = tpu.matmul %55, %57, %cst_62 {dimension_numbers = #tpu.dot_dimension_numbers<[1], [0], [0], [1], [0, 0, 1, 1], [], []>} : vector<1x128xbf16>, vector<128x128xbf16>, vector<1x128xf32> -> vector<1x128xf32>
    %59 = arith.addf %53, %58 : vector<1x128xf32>
    %c2_63 = arith.constant 2 : index
    %c2_64 = arith.constant 2 : index
    %c0_65 = arith.constant 0 : index
    %60 = vector.load %arg1[%c2_63, %c2_64, %c0_65] : memref<3x3x128xbf16, #tpu.memory_space<vmem>>, vector<1x1x128xbf16>
    %61 = vector.shape_cast %60 : vector<1x1x128xbf16> to vector<1x128xbf16>
    %c2_66 = arith.constant 2 : index
    %c0_67 = arith.constant 0 : index
    %c0_68 = arith.constant 0 : index
    %62 = vector.load %arg2[%c2_66, %c0_67, %c0_68] : memref<3x128x128xbf16, #tpu.memory_space<vmem>>, vector<1x128x128xbf16>
    %63 = vector.shape_cast %62 : vector<1x128x128xbf16> to vector<128x128xbf16>
    %cst_69 = arith.constant dense<0.000000e+00> : vector<1x128xf32>
    %64 = tpu.matmul %61, %63, %cst_69 {dimension_numbers = #tpu.dot_dimension_numbers<[1], [0], [0], [1], [0, 0, 1, 1], [], []>} : vector<1x128xbf16>, vector<128x128xbf16>, vector<1x128xf32> -> vector<1x128xf32>
    %65 = arith.addf %59, %64 : vector<1x128xf32>
    %66 = arith.addf %65, %0 : vector<1x128xf32>
    %c2_70 = arith.constant 2 : index
    %c0_71 = arith.constant 0 : index
    %c0_72 = arith.constant 0 : index
    %67 = vector.load %arg4[%c2_70, %c0_71, %c0_72] : memref<3x1x128xf32, #tpu.memory_space<vmem>>, vector<1x1x128xf32>
    %68 = vector.shape_cast %67 : vector<1x1x128xf32> to vector<1x128xf32>
    %69 = vector.shape_cast %66 : vector<1x128xf32> to vector<1x1x128xf32>
    tpu.vector_store %arg4[%c2_70, %c0_71, %c0_72], %69 {strides = array<i32>} : memref<3x1x128xf32, #tpu.memory_space<vmem>>, vector<1x1x128xf32>,
    return
  }
  func.func @transform_0(%arg0: i32) -> (i32, i32, i32) {
    %c0_i32 = arith.constant 0 : i32
    %c0_i32_0 = arith.constant 0 : i32
    %c0_i32_1 = arith.constant 0 : i32
    return %arg0, %c0_i32, %c0_i32_0 : i32, i32, i32
  }
  func.func @transform_1(%arg0: i32) -> (i32, i32, i32) {
    %c0_i32 = arith.constant 0 : i32
    %c0_i32_0 = arith.constant 0 : i32
    %c0_i32_1 = arith.constant 0 : i32
    %c0_i32_2 = arith.constant 0 : i32
    return %c0_i32, %c0_i32_0, %c0_i32_1 : i32, i32, i32
  }
  func.func @transform_2(%arg0: i32) -> (i32, i32) {
    %c0_i32 = arith.constant 0 : i32
    %c0_i32_0 = arith.constant 0 : i32
    %c0_i32_1 = arith.constant 0 : i32
    return %c0_i32, %c0_i32_0 : i32, i32
  }
  func.func @transform_3(%arg0: i32) -> (i32, i32, i32) {
    %c0_i32 = arith.constant 0 : i32
    %c0_i32_0 = arith.constant 0 : i32
    %c0_i32_1 = arith.constant 0 : i32
    return %arg0, %c0_i32, %c0_i32_0 : i32, i32, i32
  }
}

module attributes {stable_mosaic.version = 11 : i64} {
  func.func @_conv_tap_kernel(%arg0: i32, %arg1: memref<3x2x384xbf16, #tpu.memory_space<vmem>>, %arg2: memref<5x128x128xbf16, #tpu.memory_space<vmem>>, %arg3: memref<1x128xf32, #tpu.memory_space<vmem>>, %arg4: memref<3x1x128xbf16, #tpu.memory_space<vmem>>) attributes {dimension_semantics = [#tpu.dimension_semantics<parallel>], iteration_bounds = array<i64: 2>, scalar_prefetch = 0 : i64, scratch_operands = 0 : i64, tpu.core_type = #tpu.core_type<tc>, window_params = [{transform_indices = @transform_0, window_bounds = array<i64: 3, 2, 384>}, {pipeline_mode = #tpu.pipeline_mode<synchronous>, transform_indices = @transform_1, window_bounds = array<i64: 5, 128, 128>}, {pipeline_mode = #tpu.pipeline_mode<synchronous>, transform_indices = @transform_2, window_bounds = array<i64: 1, 128>}, {transform_indices = @transform_3, window_bounds = array<i64: 3, 1, 128>}]} {
    %c0 = arith.constant 0 : index
    %c0_0 = arith.constant 0 : index
    %0 = vector.load %arg3[%c0, %c0_0] : memref<1x128xf32, #tpu.memory_space<vmem>>, vector<1x128xf32>
    %cst = arith.constant 0.000000e+00 : f32
    %1 = vector.broadcast %cst : f32 to vector<1x128xf32>
    %c0_1 = arith.constant 0 : index
    %c0_2 = arith.constant 0 : index
    %c0_3 = arith.constant 0 : index
    %2 = vector.load %arg1[%c0_1, %c0_2, %c0_3] : memref<3x2x384xbf16, #tpu.memory_space<vmem>>, vector<1x1x128xbf16>
    %3 = vector.shape_cast %2 : vector<1x1x128xbf16> to vector<1x128xbf16>
    %c0_4 = arith.constant 0 : index
    %c0_5 = arith.constant 0 : index
    %c0_6 = arith.constant 0 : index
    %4 = vector.load %arg2[%c0_4, %c0_5, %c0_6] : memref<5x128x128xbf16, #tpu.memory_space<vmem>>, vector<1x128x128xbf16>
    %5 = vector.shape_cast %4 : vector<1x128x128xbf16> to vector<128x128xbf16>
    %cst_7 = arith.constant dense<0.000000e+00> : vector<1x128xf32>
    %6 = tpu.matmul %3, %5, %cst_7 {dimension_numbers = #tpu.dot_dimension_numbers<[1], [0], [0], [1], [0, 0, 1, 1], [], []>} : vector<1x128xbf16>, vector<128x128xbf16>, vector<1x128xf32> -> vector<1x128xf32>
    %7 = arith.addf %1, %6 : vector<1x128xf32>
    %c0_8 = arith.constant 0 : index
    %c0_9 = arith.constant 0 : index
    %c128 = arith.constant 128 : index
    %8 = vector.load %arg1[%c0_8, %c0_9, %c128] : memref<3x2x384xbf16, #tpu.memory_space<vmem>>, vector<1x1x128xbf16>
    %9 = vector.shape_cast %8 : vector<1x1x128xbf16> to vector<1x128xbf16>
    %c1 = arith.constant 1 : index
    %c0_10 = arith.constant 0 : index
    %c0_11 = arith.constant 0 : index
    %10 = vector.load %arg2[%c1, %c0_10, %c0_11] : memref<5x128x128xbf16, #tpu.memory_space<vmem>>, vector<1x128x128xbf16>
    %11 = vector.shape_cast %10 : vector<1x128x128xbf16> to vector<128x128xbf16>
    %cst_12 = arith.constant dense<0.000000e+00> : vector<1x128xf32>
    %12 = tpu.matmul %9, %11, %cst_12 {dimension_numbers = #tpu.dot_dimension_numbers<[1], [0], [0], [1], [0, 0, 1, 1], [], []>} : vector<1x128xbf16>, vector<128x128xbf16>, vector<1x128xf32> -> vector<1x128xf32>
    %13 = arith.addf %7, %12 : vector<1x128xf32>
    %c0_13 = arith.constant 0 : index
    %c0_14 = arith.constant 0 : index
    %c256 = arith.constant 256 : index
    %14 = vector.load %arg1[%c0_13, %c0_14, %c256] : memref<3x2x384xbf16, #tpu.memory_space<vmem>>, vector<1x1x128xbf16>
    %15 = vector.shape_cast %14 : vector<1x1x128xbf16> to vector<1x128xbf16>
    %c2 = arith.constant 2 : index
    %c0_15 = arith.constant 0 : index
    %c0_16 = arith.constant 0 : index
    %16 = vector.load %arg2[%c2, %c0_15, %c0_16] : memref<5x128x128xbf16, #tpu.memory_space<vmem>>, vector<1x128x128xbf16>
    %17 = vector.shape_cast %16 : vector<1x128x128xbf16> to vector<128x128xbf16>
    %cst_17 = arith.constant dense<0.000000e+00> : vector<1x128xf32>
    %18 = tpu.matmul %15, %17, %cst_17 {dimension_numbers = #tpu.dot_dimension_numbers<[1], [0], [0], [1], [0, 0, 1, 1], [], []>} : vector<1x128xbf16>, vector<128x128xbf16>, vector<1x128xf32> -> vector<1x128xf32>
    %19 = arith.addf %13, %18 : vector<1x128xf32>
    %c0_18 = arith.constant 0 : index
    %c1_19 = arith.constant 1 : index
    %c0_20 = arith.constant 0 : index
    %20 = vector.load %arg1[%c0_18, %c1_19, %c0_20] : memref<3x2x384xbf16, #tpu.memory_space<vmem>>, vector<1x1x128xbf16>
    %21 = vector.shape_cast %20 : vector<1x1x128xbf16> to vector<1x128xbf16>
    %c3 = arith.constant 3 : index
    %c0_21 = arith.constant 0 : index
    %c0_22 = arith.constant 0 : index
    %22 = vector.load %arg2[%c3, %c0_21, %c0_22] : memref<5x128x128xbf16, #tpu.memory_space<vmem>>, vector<1x128x128xbf16>
    %23 = vector.shape_cast %22 : vector<1x128x128xbf16> to vector<128x128xbf16>
    %cst_23 = arith.constant dense<0.000000e+00> : vector<1x128xf32>
    %24 = tpu.matmul %21, %23, %cst_23 {dimension_numbers = #tpu.dot_dimension_numbers<[1], [0], [0], [1], [0, 0, 1, 1], [], []>} : vector<1x128xbf16>, vector<128x128xbf16>, vector<1x128xf32> -> vector<1x128xf32>
    %25 = arith.addf %19, %24 : vector<1x128xf32>
    %c0_24 = arith.constant 0 : index
    %c1_25 = arith.constant 1 : index
    %c128_26 = arith.constant 128 : index
    %26 = vector.load %arg1[%c0_24, %c1_25, %c128_26] : memref<3x2x384xbf16, #tpu.memory_space<vmem>>, vector<1x1x128xbf16>
    %27 = vector.shape_cast %26 : vector<1x1x128xbf16> to vector<1x128xbf16>
    %c4 = arith.constant 4 : index
    %c0_27 = arith.constant 0 : index
    %c0_28 = arith.constant 0 : index
    %28 = vector.load %arg2[%c4, %c0_27, %c0_28] : memref<5x128x128xbf16, #tpu.memory_space<vmem>>, vector<1x128x128xbf16>
    %29 = vector.shape_cast %28 : vector<1x128x128xbf16> to vector<128x128xbf16>
    %cst_29 = arith.constant dense<0.000000e+00> : vector<1x128xf32>
    %30 = tpu.matmul %27, %29, %cst_29 {dimension_numbers = #tpu.dot_dimension_numbers<[1], [0], [0], [1], [0, 0, 1, 1], [], []>} : vector<1x128xbf16>, vector<128x128xbf16>, vector<1x128xf32> -> vector<1x128xf32>
    %31 = arith.addf %25, %30 : vector<1x128xf32>
    %32 = arith.addf %31, %0 : vector<1x128xf32>
    %cst_30 = arith.constant 1.000000e-01 : f32
    %33 = vector.broadcast %cst_30 : f32 to vector<1x128xf32>
    %34 = arith.mulf %33, %32 : vector<1x128xf32>
    %35 = arith.maximumf %32, %34 : vector<1x128xf32>
    %36 = arith.truncf %35 : vector<1x128xf32> to vector<1x128xbf16>
    %c0_31 = arith.constant 0 : index
    %c0_32 = arith.constant 0 : index
    %c0_33 = arith.constant 0 : index
    %37 = vector.load %arg4[%c0_31, %c0_32, %c0_33] : memref<3x1x128xbf16, #tpu.memory_space<vmem>>, vector<1x1x128xbf16>
    %38 = vector.shape_cast %37 : vector<1x1x128xbf16> to vector<1x128xbf16>
    %39 = vector.shape_cast %36 : vector<1x128xbf16> to vector<1x1x128xbf16>
    tpu.vector_store %arg4[%c0_31, %c0_32, %c0_33], %39 {strides = array<i32>} : memref<3x1x128xbf16, #tpu.memory_space<vmem>>, vector<1x1x128xbf16>,
    %cst_34 = arith.constant 0.000000e+00 : f32
    %40 = vector.broadcast %cst_34 : f32 to vector<1x128xf32>
    %c1_35 = arith.constant 1 : index
    %c0_36 = arith.constant 0 : index
    %c0_37 = arith.constant 0 : index
    %41 = vector.load %arg1[%c1_35, %c0_36, %c0_37] : memref<3x2x384xbf16, #tpu.memory_space<vmem>>, vector<1x1x128xbf16>
    %42 = vector.shape_cast %41 : vector<1x1x128xbf16> to vector<1x128xbf16>
    %c0_38 = arith.constant 0 : index
    %c0_39 = arith.constant 0 : index
    %c0_40 = arith.constant 0 : index
    %43 = vector.load %arg2[%c0_38, %c0_39, %c0_40] : memref<5x128x128xbf16, #tpu.memory_space<vmem>>, vector<1x128x128xbf16>
    %44 = vector.shape_cast %43 : vector<1x128x128xbf16> to vector<128x128xbf16>
    %cst_41 = arith.constant dense<0.000000e+00> : vector<1x128xf32>
    %45 = tpu.matmul %42, %44, %cst_41 {dimension_numbers = #tpu.dot_dimension_numbers<[1], [0], [0], [1], [0, 0, 1, 1], [], []>} : vector<1x128xbf16>, vector<128x128xbf16>, vector<1x128xf32> -> vector<1x128xf32>
    %46 = arith.addf %40, %45 : vector<1x128xf32>
    %c1_42 = arith.constant 1 : index
    %c0_43 = arith.constant 0 : index
    %c128_44 = arith.constant 128 : index
    %47 = vector.load %arg1[%c1_42, %c0_43, %c128_44] : memref<3x2x384xbf16, #tpu.memory_space<vmem>>, vector<1x1x128xbf16>
    %48 = vector.shape_cast %47 : vector<1x1x128xbf16> to vector<1x128xbf16>
    %c1_45 = arith.constant 1 : index
    %c0_46 = arith.constant 0 : index
    %c0_47 = arith.constant 0 : index
    %49 = vector.load %arg2[%c1_45, %c0_46, %c0_47] : memref<5x128x128xbf16, #tpu.memory_space<vmem>>, vector<1x128x128xbf16>
    %50 = vector.shape_cast %49 : vector<1x128x128xbf16> to vector<128x128xbf16>
    %cst_48 = arith.constant dense<0.000000e+00> : vector<1x128xf32>
    %51 = tpu.matmul %48, %50, %cst_48 {dimension_numbers = #tpu.dot_dimension_numbers<[1], [0], [0], [1], [0, 0, 1, 1], [], []>} : vector<1x128xbf16>, vector<128x128xbf16>, vector<1x128xf32> -> vector<1x128xf32>
    %52 = arith.addf %46, %51 : vector<1x128xf32>
    %c1_49 = arith.constant 1 : index
    %c0_50 = arith.constant 0 : index
    %c256_51 = arith.constant 256 : index
    %53 = vector.load %arg1[%c1_49, %c0_50, %c256_51] : memref<3x2x384xbf16, #tpu.memory_space<vmem>>, vector<1x1x128xbf16>
    %54 = vector.shape_cast %53 : vector<1x1x128xbf16> to vector<1x128xbf16>
    %c2_52 = arith.constant 2 : index
    %c0_53 = arith.constant 0 : index
    %c0_54 = arith.constant 0 : index
    %55 = vector.load %arg2[%c2_52, %c0_53, %c0_54] : memref<5x128x128xbf16, #tpu.memory_space<vmem>>, vector<1x128x128xbf16>
    %56 = vector.shape_cast %55 : vector<1x128x128xbf16> to vector<128x128xbf16>
    %cst_55 = arith.constant dense<0.000000e+00> : vector<1x128xf32>
    %57 = tpu.matmul %54, %56, %cst_55 {dimension_numbers = #tpu.dot_dimension_numbers<[1], [0], [0], [1], [0, 0, 1, 1], [], []>} : vector<1x128xbf16>, vector<128x128xbf16>, vector<1x128xf32> -> vector<1x128xf32>
    %58 = arith.addf %52, %57 : vector<1x128xf32>
    %c1_56 = arith.constant 1 : index
    %c1_57 = arith.constant 1 : index
    %c0_58 = arith.constant 0 : index
    %59 = vector.load %arg1[%c1_56, %c1_57, %c0_58] : memref<3x2x384xbf16, #tpu.memory_space<vmem>>, vector<1x1x128xbf16>
    %60 = vector.shape_cast %59 : vector<1x1x128xbf16> to vector<1x128xbf16>
    %c3_59 = arith.constant 3 : index
    %c0_60 = arith.constant 0 : index
    %c0_61 = arith.constant 0 : index
    %61 = vector.load %arg2[%c3_59, %c0_60, %c0_61] : memref<5x128x128xbf16, #tpu.memory_space<vmem>>, vector<1x128x128xbf16>
    %62 = vector.shape_cast %61 : vector<1x128x128xbf16> to vector<128x128xbf16>
    %cst_62 = arith.constant dense<0.000000e+00> : vector<1x128xf32>
    %63 = tpu.matmul %60, %62, %cst_62 {dimension_numbers = #tpu.dot_dimension_numbers<[1], [0], [0], [1], [0, 0, 1, 1], [], []>} : vector<1x128xbf16>, vector<128x128xbf16>, vector<1x128xf32> -> vector<1x128xf32>
    %64 = arith.addf %58, %63 : vector<1x128xf32>
    %c1_63 = arith.constant 1 : index
    %c1_64 = arith.constant 1 : index
    %c128_65 = arith.constant 128 : index
    %65 = vector.load %arg1[%c1_63, %c1_64, %c128_65] : memref<3x2x384xbf16, #tpu.memory_space<vmem>>, vector<1x1x128xbf16>
    %66 = vector.shape_cast %65 : vector<1x1x128xbf16> to vector<1x128xbf16>
    %c4_66 = arith.constant 4 : index
    %c0_67 = arith.constant 0 : index
    %c0_68 = arith.constant 0 : index
    %67 = vector.load %arg2[%c4_66, %c0_67, %c0_68] : memref<5x128x128xbf16, #tpu.memory_space<vmem>>, vector<1x128x128xbf16>
    %68 = vector.shape_cast %67 : vector<1x128x128xbf16> to vector<128x128xbf16>
    %cst_69 = arith.constant dense<0.000000e+00> : vector<1x128xf32>
    %69 = tpu.matmul %66, %68, %cst_69 {dimension_numbers = #tpu.dot_dimension_numbers<[1], [0], [0], [1], [0, 0, 1, 1], [], []>} : vector<1x128xbf16>, vector<128x128xbf16>, vector<1x128xf32> -> vector<1x128xf32>
    %70 = arith.addf %64, %69 : vector<1x128xf32>
    %71 = arith.addf %70, %0 : vector<1x128xf32>
    %cst_70 = arith.constant 1.000000e-01 : f32
    %72 = vector.broadcast %cst_70 : f32 to vector<1x128xf32>
    %73 = arith.mulf %72, %71 : vector<1x128xf32>
    %74 = arith.maximumf %71, %73 : vector<1x128xf32>
    %75 = arith.truncf %74 : vector<1x128xf32> to vector<1x128xbf16>
    %c1_71 = arith.constant 1 : index
    %c0_72 = arith.constant 0 : index
    %c0_73 = arith.constant 0 : index
    %76 = vector.load %arg4[%c1_71, %c0_72, %c0_73] : memref<3x1x128xbf16, #tpu.memory_space<vmem>>, vector<1x1x128xbf16>
    %77 = vector.shape_cast %76 : vector<1x1x128xbf16> to vector<1x128xbf16>
    %78 = vector.shape_cast %75 : vector<1x128xbf16> to vector<1x1x128xbf16>
    tpu.vector_store %arg4[%c1_71, %c0_72, %c0_73], %78 {strides = array<i32>} : memref<3x1x128xbf16, #tpu.memory_space<vmem>>, vector<1x1x128xbf16>,
    %cst_74 = arith.constant 0.000000e+00 : f32
    %79 = vector.broadcast %cst_74 : f32 to vector<1x128xf32>
    %c2_75 = arith.constant 2 : index
    %c0_76 = arith.constant 0 : index
    %c0_77 = arith.constant 0 : index
    %80 = vector.load %arg1[%c2_75, %c0_76, %c0_77] : memref<3x2x384xbf16, #tpu.memory_space<vmem>>, vector<1x1x128xbf16>
    %81 = vector.shape_cast %80 : vector<1x1x128xbf16> to vector<1x128xbf16>
    %c0_78 = arith.constant 0 : index
    %c0_79 = arith.constant 0 : index
    %c0_80 = arith.constant 0 : index
    %82 = vector.load %arg2[%c0_78, %c0_79, %c0_80] : memref<5x128x128xbf16, #tpu.memory_space<vmem>>, vector<1x128x128xbf16>
    %83 = vector.shape_cast %82 : vector<1x128x128xbf16> to vector<128x128xbf16>
    %cst_81 = arith.constant dense<0.000000e+00> : vector<1x128xf32>
    %84 = tpu.matmul %81, %83, %cst_81 {dimension_numbers = #tpu.dot_dimension_numbers<[1], [0], [0], [1], [0, 0, 1, 1], [], []>} : vector<1x128xbf16>, vector<128x128xbf16>, vector<1x128xf32> -> vector<1x128xf32>
    %85 = arith.addf %79, %84 : vector<1x128xf32>
    %c2_82 = arith.constant 2 : index
    %c0_83 = arith.constant 0 : index
    %c128_84 = arith.constant 128 : index
    %86 = vector.load %arg1[%c2_82, %c0_83, %c128_84] : memref<3x2x384xbf16, #tpu.memory_space<vmem>>, vector<1x1x128xbf16>
    %87 = vector.shape_cast %86 : vector<1x1x128xbf16> to vector<1x128xbf16>
    %c1_85 = arith.constant 1 : index
    %c0_86 = arith.constant 0 : index
    %c0_87 = arith.constant 0 : index
    %88 = vector.load %arg2[%c1_85, %c0_86, %c0_87] : memref<5x128x128xbf16, #tpu.memory_space<vmem>>, vector<1x128x128xbf16>
    %89 = vector.shape_cast %88 : vector<1x128x128xbf16> to vector<128x128xbf16>
    %cst_88 = arith.constant dense<0.000000e+00> : vector<1x128xf32>
    %90 = tpu.matmul %87, %89, %cst_88 {dimension_numbers = #tpu.dot_dimension_numbers<[1], [0], [0], [1], [0, 0, 1, 1], [], []>} : vector<1x128xbf16>, vector<128x128xbf16>, vector<1x128xf32> -> vector<1x128xf32>
    %91 = arith.addf %85, %90 : vector<1x128xf32>
    %c2_89 = arith.constant 2 : index
    %c0_90 = arith.constant 0 : index
    %c256_91 = arith.constant 256 : index
    %92 = vector.load %arg1[%c2_89, %c0_90, %c256_91] : memref<3x2x384xbf16, #tpu.memory_space<vmem>>, vector<1x1x128xbf16>
    %93 = vector.shape_cast %92 : vector<1x1x128xbf16> to vector<1x128xbf16>
    %c2_92 = arith.constant 2 : index
    %c0_93 = arith.constant 0 : index
    %c0_94 = arith.constant 0 : index
    %94 = vector.load %arg2[%c2_92, %c0_93, %c0_94] : memref<5x128x128xbf16, #tpu.memory_space<vmem>>, vector<1x128x128xbf16>
    %95 = vector.shape_cast %94 : vector<1x128x128xbf16> to vector<128x128xbf16>
    %cst_95 = arith.constant dense<0.000000e+00> : vector<1x128xf32>
    %96 = tpu.matmul %93, %95, %cst_95 {dimension_numbers = #tpu.dot_dimension_numbers<[1], [0], [0], [1], [0, 0, 1, 1], [], []>} : vector<1x128xbf16>, vector<128x128xbf16>, vector<1x128xf32> -> vector<1x128xf32>
    %97 = arith.addf %91, %96 : vector<1x128xf32>
    %c2_96 = arith.constant 2 : index
    %c1_97 = arith.constant 1 : index
    %c0_98 = arith.constant 0 : index
    %98 = vector.load %arg1[%c2_96, %c1_97, %c0_98] : memref<3x2x384xbf16, #tpu.memory_space<vmem>>, vector<1x1x128xbf16>
    %99 = vector.shape_cast %98 : vector<1x1x128xbf16> to vector<1x128xbf16>
    %c3_99 = arith.constant 3 : index
    %c0_100 = arith.constant 0 : index
    %c0_101 = arith.constant 0 : index
    %100 = vector.load %arg2[%c3_99, %c0_100, %c0_101] : memref<5x128x128xbf16, #tpu.memory_space<vmem>>, vector<1x128x128xbf16>
    %101 = vector.shape_cast %100 : vector<1x128x128xbf16> to vector<128x128xbf16>
    %cst_102 = arith.constant dense<0.000000e+00> : vector<1x128xf32>
    %102 = tpu.matmul %99, %101, %cst_102 {dimension_numbers = #tpu.dot_dimension_numbers<[1], [0], [0], [1], [0, 0, 1, 1], [], []>} : vector<1x128xbf16>, vector<128x128xbf16>, vector<1x128xf32> -> vector<1x128xf32>
    %103 = arith.addf %97, %102 : vector<1x128xf32>
    %c2_103 = arith.constant 2 : index
    %c1_104 = arith.constant 1 : index
    %c128_105 = arith.constant 128 : index
    %104 = vector.load %arg1[%c2_103, %c1_104, %c128_105] : memref<3x2x384xbf16, #tpu.memory_space<vmem>>, vector<1x1x128xbf16>
    %105 = vector.shape_cast %104 : vector<1x1x128xbf16> to vector<1x128xbf16>
    %c4_106 = arith.constant 4 : index
    %c0_107 = arith.constant 0 : index
    %c0_108 = arith.constant 0 : index
    %106 = vector.load %arg2[%c4_106, %c0_107, %c0_108] : memref<5x128x128xbf16, #tpu.memory_space<vmem>>, vector<1x128x128xbf16>
    %107 = vector.shape_cast %106 : vector<1x128x128xbf16> to vector<128x128xbf16>
    %cst_109 = arith.constant dense<0.000000e+00> : vector<1x128xf32>
    %108 = tpu.matmul %105, %107, %cst_109 {dimension_numbers = #tpu.dot_dimension_numbers<[1], [0], [0], [1], [0, 0, 1, 1], [], []>} : vector<1x128xbf16>, vector<128x128xbf16>, vector<1x128xf32> -> vector<1x128xf32>
    %109 = arith.addf %103, %108 : vector<1x128xf32>
    %110 = arith.addf %109, %0 : vector<1x128xf32>
    %cst_110 = arith.constant 1.000000e-01 : f32
    %111 = vector.broadcast %cst_110 : f32 to vector<1x128xf32>
    %112 = arith.mulf %111, %110 : vector<1x128xf32>
    %113 = arith.maximumf %110, %112 : vector<1x128xf32>
    %114 = arith.truncf %113 : vector<1x128xf32> to vector<1x128xbf16>
    %c2_111 = arith.constant 2 : index
    %c0_112 = arith.constant 0 : index
    %c0_113 = arith.constant 0 : index
    %115 = vector.load %arg4[%c2_111, %c0_112, %c0_113] : memref<3x1x128xbf16, #tpu.memory_space<vmem>>, vector<1x1x128xbf16>
    %116 = vector.shape_cast %115 : vector<1x1x128xbf16> to vector<1x128xbf16>
    %117 = vector.shape_cast %114 : vector<1x128xbf16> to vector<1x1x128xbf16>
    tpu.vector_store %arg4[%c2_111, %c0_112, %c0_113], %117 {strides = array<i32>} : memref<3x1x128xbf16, #tpu.memory_space<vmem>>, vector<1x1x128xbf16>,
    return
  }
  func.func @transform_0(%arg0: i32) -> (i32, i32, i32) {
    %c0_i32 = arith.constant 0 : i32
    %c0_i32_0 = arith.constant 0 : i32
    %c0_i32_1 = arith.constant 0 : i32
    return %arg0, %c0_i32, %c0_i32_0 : i32, i32, i32
  }
  func.func @transform_1(%arg0: i32) -> (i32, i32, i32) {
    %c0_i32 = arith.constant 0 : i32
    %c0_i32_0 = arith.constant 0 : i32
    %c0_i32_1 = arith.constant 0 : i32
    %c0_i32_2 = arith.constant 0 : i32
    return %c0_i32, %c0_i32_0, %c0_i32_1 : i32, i32, i32
  }
  func.func @transform_2(%arg0: i32) -> (i32, i32) {
    %c0_i32 = arith.constant 0 : i32
    %c0_i32_0 = arith.constant 0 : i32
    %c0_i32_1 = arith.constant 0 : i32
    return %c0_i32, %c0_i32_0 : i32, i32
  }
  func.func @transform_3(%arg0: i32) -> (i32, i32, i32) {
    %c0_i32 = arith.constant 0 : i32
    %c0_i32_0 = arith.constant 0 : i32
    %c0_i32_1 = arith.constant 0 : i32
    return %arg0, %c0_i32, %c0_i32_0 : i32, i32, i32
  }
}

module attributes {stable_mosaic.version = 11 : i64} {
  func.func @_conv_tap_kernel(%arg0: i32, %arg1: memref<2x3x12x1xf32, #tpu.memory_space<vmem>>, %arg2: memref<5x1x128xf32, #tpu.memory_space<vmem>>, %arg3: memref<1x128xf32, #tpu.memory_space<vmem>>, %arg4: memref<2x11x128xbf16, #tpu.memory_space<vmem>>) attributes {dimension_semantics = [#tpu.dimension_semantics<parallel>], iteration_bounds = array<i64: 2>, scalar_prefetch = 0 : i64, scratch_operands = 0 : i64, tpu.core_type = #tpu.core_type<tc>, window_params = [{transform_indices = @transform_0, window_bounds = array<i64: 2, 3, 12, 1>}, {pipeline_mode = #tpu.pipeline_mode<synchronous>, transform_indices = @transform_1, window_bounds = array<i64: 5, 1, 128>}, {pipeline_mode = #tpu.pipeline_mode<synchronous>, transform_indices = @transform_2, window_bounds = array<i64: 1, 128>}, {transform_indices = @transform_3, window_bounds = array<i64: 2, 11, 128>}]} {
    %c0 = arith.constant 0 : index
    %c0_0 = arith.constant 0 : index
    %0 = vector.load %arg3[%c0, %c0_0] : memref<1x128xf32, #tpu.memory_space<vmem>>, vector<1x128xf32>
    %cst = arith.constant 0.000000e+00 : f32
    %1 = vector.broadcast %cst : f32 to vector<11x128xf32>
    %c0_1 = arith.constant 0 : index
    %c0_2 = arith.constant 0 : index
    %c0_3 = arith.constant 0 : index
    %c0_4 = arith.constant 0 : index
    %2 = vector.load %arg1[%c0_1, %c0_2, %c0_3, %c0_4] : memref<2x3x12x1xf32, #tpu.memory_space<vmem>>, vector<1x1x11x1xf32>
    %3 = vector.shape_cast %2 : vector<1x1x11x1xf32> to vector<11x1xf32>
    %c0_5 = arith.constant 0 : index
    %c0_6 = arith.constant 0 : index
    %c0_7 = arith.constant 0 : index
    %4 = vector.load %arg2[%c0_5, %c0_6, %c0_7] : memref<5x1x128xf32, #tpu.memory_space<vmem>>, vector<1x1x128xf32>
    %5 = vector.shape_cast %4 : vector<1x1x128xf32> to vector<1x128xf32>
    %6 = vector.broadcast %3 : vector<11x1xf32> to vector<11x128xf32>
    %7 = vector.broadcast %5 : vector<1x128xf32> to vector<11x128xf32>
    %8 = arith.mulf %6, %7 : vector<11x128xf32>
    %9 = arith.addf %1, %8 : vector<11x128xf32>
    %c0_8 = arith.constant 0 : index
    %c1 = arith.constant 1 : index
    %c0_9 = arith.constant 0 : index
    %c0_10 = arith.constant 0 : index
    %10 = vector.load %arg1[%c0_8, %c1, %c0_9, %c0_10] : memref<2x3x12x1xf32, #tpu.memory_space<vmem>>, vector<1x1x11x1xf32>
    %11 = vector.shape_cast %10 : vector<1x1x11x1xf32> to vector<11x1xf32>
    %c1_11 = arith.constant 1 : index
    %c0_12 = arith.constant 0 : index
    %c0_13 = arith.constant 0 : index
    %12 = vector.load %arg2[%c1_11, %c0_12, %c0_13] : memref<5x1x128xf32, #tpu.memory_space<vmem>>, vector<1x1x128xf32>
    %13 = vector.shape_cast %12 : vector<1x1x128xf32> to vector<1x128xf32>
    %14 = vector.broadcast %11 : vector<11x1xf32> to vector<11x128xf32>
    %15 = vector.broadcast %13 : vector<1x128xf32> to vector<11x128xf32>
    %16 = arith.mulf %14, %15 : vector<11x128xf32>
    %17 = arith.addf %9, %16 : vector<11x128xf32>
    %c0_14 = arith.constant 0 : index
    %c2 = arith.constant 2 : index
    %c0_15 = arith.constant 0 : index
    %c0_16 = arith.constant 0 : index
    %18 = vector.load %arg1[%c0_14, %c2, %c0_15, %c0_16] : memref<2x3x12x1xf32, #tpu.memory_space<vmem>>, vector<1x1x11x1xf32>
    %19 = vector.shape_cast %18 : vector<1x1x11x1xf32> to vector<11x1xf32>
    %c2_17 = arith.constant 2 : index
    %c0_18 = arith.constant 0 : index
    %c0_19 = arith.constant 0 : index
    %20 = vector.load %arg2[%c2_17, %c0_18, %c0_19] : memref<5x1x128xf32, #tpu.memory_space<vmem>>, vector<1x1x128xf32>
    %21 = vector.shape_cast %20 : vector<1x1x128xf32> to vector<1x128xf32>
    %22 = vector.broadcast %19 : vector<11x1xf32> to vector<11x128xf32>
    %23 = vector.broadcast %21 : vector<1x128xf32> to vector<11x128xf32>
    %24 = arith.mulf %22, %23 : vector<11x128xf32>
    %25 = arith.addf %17, %24 : vector<11x128xf32>
    %c0_20 = arith.constant 0 : index
    %c0_21 = arith.constant 0 : index
    %c1_22 = arith.constant 1 : index
    %c0_23 = arith.constant 0 : index
    %26 = vector.load %arg1[%c0_20, %c0_21, %c1_22, %c0_23] : memref<2x3x12x1xf32, #tpu.memory_space<vmem>>, vector<1x1x11x1xf32>
    %27 = vector.shape_cast %26 : vector<1x1x11x1xf32> to vector<11x1xf32>
    %c3 = arith.constant 3 : index
    %c0_24 = arith.constant 0 : index
    %c0_25 = arith.constant 0 : index
    %28 = vector.load %arg2[%c3, %c0_24, %c0_25] : memref<5x1x128xf32, #tpu.memory_space<vmem>>, vector<1x1x128xf32>
    %29 = vector.shape_cast %28 : vector<1x1x128xf32> to vector<1x128xf32>
    %30 = vector.broadcast %27 : vector<11x1xf32> to vector<11x128xf32>
    %31 = vector.broadcast %29 : vector<1x128xf32> to vector<11x128xf32>
    %32 = arith.mulf %30, %31 : vector<11x128xf32>
    %33 = arith.addf %25, %32 : vector<11x128xf32>
    %c0_26 = arith.constant 0 : index
    %c1_27 = arith.constant 1 : index
    %c1_28 = arith.constant 1 : index
    %c0_29 = arith.constant 0 : index
    %34 = vector.load %arg1[%c0_26, %c1_27, %c1_28, %c0_29] : memref<2x3x12x1xf32, #tpu.memory_space<vmem>>, vector<1x1x11x1xf32>
    %35 = vector.shape_cast %34 : vector<1x1x11x1xf32> to vector<11x1xf32>
    %c4 = arith.constant 4 : index
    %c0_30 = arith.constant 0 : index
    %c0_31 = arith.constant 0 : index
    %36 = vector.load %arg2[%c4, %c0_30, %c0_31] : memref<5x1x128xf32, #tpu.memory_space<vmem>>, vector<1x1x128xf32>
    %37 = vector.shape_cast %36 : vector<1x1x128xf32> to vector<1x128xf32>
    %38 = vector.broadcast %35 : vector<11x1xf32> to vector<11x128xf32>
    %39 = vector.broadcast %37 : vector<1x128xf32> to vector<11x128xf32>
    %40 = arith.mulf %38, %39 : vector<11x128xf32>
    %41 = arith.addf %33, %40 : vector<11x128xf32>
    %42 = vector.broadcast %0 : vector<1x128xf32> to vector<11x128xf32>
    %43 = arith.addf %41, %42 : vector<11x128xf32>
    %cst_32 = arith.constant 1.000000e-01 : f32
    %44 = vector.broadcast %cst_32 : f32 to vector<11x128xf32>
    %45 = arith.mulf %44, %43 : vector<11x128xf32>
    %46 = arith.maximumf %43, %45 : vector<11x128xf32>
    %47 = arith.truncf %46 : vector<11x128xf32> to vector<11x128xbf16>
    %c0_33 = arith.constant 0 : index
    %c0_34 = arith.constant 0 : index
    %c0_35 = arith.constant 0 : index
    %48 = vector.load %arg4[%c0_33, %c0_34, %c0_35] : memref<2x11x128xbf16, #tpu.memory_space<vmem>>, vector<1x11x128xbf16>
    %49 = vector.shape_cast %48 : vector<1x11x128xbf16> to vector<11x128xbf16>
    %50 = vector.shape_cast %47 : vector<11x128xbf16> to vector<1x11x128xbf16>
    tpu.vector_store %arg4[%c0_33, %c0_34, %c0_35], %50 {strides = array<i32>} : memref<2x11x128xbf16, #tpu.memory_space<vmem>>, vector<1x11x128xbf16>,
    %cst_36 = arith.constant 0.000000e+00 : f32
    %51 = vector.broadcast %cst_36 : f32 to vector<11x128xf32>
    %c1_37 = arith.constant 1 : index
    %c0_38 = arith.constant 0 : index
    %c0_39 = arith.constant 0 : index
    %c0_40 = arith.constant 0 : index
    %52 = vector.load %arg1[%c1_37, %c0_38, %c0_39, %c0_40] : memref<2x3x12x1xf32, #tpu.memory_space<vmem>>, vector<1x1x11x1xf32>
    %53 = vector.shape_cast %52 : vector<1x1x11x1xf32> to vector<11x1xf32>
    %c0_41 = arith.constant 0 : index
    %c0_42 = arith.constant 0 : index
    %c0_43 = arith.constant 0 : index
    %54 = vector.load %arg2[%c0_41, %c0_42, %c0_43] : memref<5x1x128xf32, #tpu.memory_space<vmem>>, vector<1x1x128xf32>
    %55 = vector.shape_cast %54 : vector<1x1x128xf32> to vector<1x128xf32>
    %56 = vector.broadcast %53 : vector<11x1xf32> to vector<11x128xf32>
    %57 = vector.broadcast %55 : vector<1x128xf32> to vector<11x128xf32>
    %58 = arith.mulf %56, %57 : vector<11x128xf32>
    %59 = arith.addf %51, %58 : vector<11x128xf32>
    %c1_44 = arith.constant 1 : index
    %c1_45 = arith.constant 1 : index
    %c0_46 = arith.constant 0 : index
    %c0_47 = arith.constant 0 : index
    %60 = vector.load %arg1[%c1_44, %c1_45, %c0_46, %c0_47] : memref<2x3x12x1xf32, #tpu.memory_space<vmem>>, vector<1x1x11x1xf32>
    %61 = vector.shape_cast %60 : vector<1x1x11x1xf32> to vector<11x1xf32>
    %c1_48 = arith.constant 1 : index
    %c0_49 = arith.constant 0 : index
    %c0_50 = arith.constant 0 : index
    %62 = vector.load %arg2[%c1_48, %c0_49, %c0_50] : memref<5x1x128xf32, #tpu.memory_space<vmem>>, vector<1x1x128xf32>
    %63 = vector.shape_cast %62 : vector<1x1x128xf32> to vector<1x128xf32>
    %64 = vector.broadcast %61 : vector<11x1xf32> to vector<11x128xf32>
    %65 = vector.broadcast %63 : vector<1x128xf32> to vector<11x128xf32>
    %66 = arith.mulf %64, %65 : vector<11x128xf32>
    %67 = arith.addf %59, %66 : vector<11x128xf32>
    %c1_51 = arith.constant 1 : index
    %c2_52 = arith.constant 2 : index
    %c0_53 = arith.constant 0 : index
    %c0_54 = arith.constant 0 : index
    %68 = vector.load %arg1[%c1_51, %c2_52, %c0_53, %c0_54] : memref<2x3x12x1xf32, #tpu.memory_space<vmem>>, vector<1x1x11x1xf32>
    %69 = vector.shape_cast %68 : vector<1x1x11x1xf32> to vector<11x1xf32>
    %c2_55 = arith.constant 2 : index
    %c0_56 = arith.constant 0 : index
    %c0_57 = arith.constant 0 : index
    %70 = vector.load %arg2[%c2_55, %c0_56, %c0_57] : memref<5x1x128xf32, #tpu.memory_space<vmem>>, vector<1x1x128xf32>
    %71 = vector.shape_cast %70 : vector<1x1x128xf32> to vector<1x128xf32>
    %72 = vector.broadcast %69 : vector<11x1xf32> to vector<11x128xf32>
    %73 = vector.broadcast %71 : vector<1x128xf32> to vector<11x128xf32>
    %74 = arith.mulf %72, %73 : vector<11x128xf32>
    %75 = arith.addf %67, %74 : vector<11x128xf32>
    %c1_58 = arith.constant 1 : index
    %c0_59 = arith.constant 0 : index
    %c1_60 = arith.constant 1 : index
    %c0_61 = arith.constant 0 : index
    %76 = vector.load %arg1[%c1_58, %c0_59, %c1_60, %c0_61] : memref<2x3x12x1xf32, #tpu.memory_space<vmem>>, vector<1x1x11x1xf32>
    %77 = vector.shape_cast %76 : vector<1x1x11x1xf32> to vector<11x1xf32>
    %c3_62 = arith.constant 3 : index
    %c0_63 = arith.constant 0 : index
    %c0_64 = arith.constant 0 : index
    %78 = vector.load %arg2[%c3_62, %c0_63, %c0_64] : memref<5x1x128xf32, #tpu.memory_space<vmem>>, vector<1x1x128xf32>
    %79 = vector.shape_cast %78 : vector<1x1x128xf32> to vector<1x128xf32>
    %80 = vector.broadcast %77 : vector<11x1xf32> to vector<11x128xf32>
    %81 = vector.broadcast %79 : vector<1x128xf32> to vector<11x128xf32>
    %82 = arith.mulf %80, %81 : vector<11x128xf32>
    %83 = arith.addf %75, %82 : vector<11x128xf32>
    %c1_65 = arith.constant 1 : index
    %c1_66 = arith.constant 1 : index
    %c1_67 = arith.constant 1 : index
    %c0_68 = arith.constant 0 : index
    %84 = vector.load %arg1[%c1_65, %c1_66, %c1_67, %c0_68] : memref<2x3x12x1xf32, #tpu.memory_space<vmem>>, vector<1x1x11x1xf32>
    %85 = vector.shape_cast %84 : vector<1x1x11x1xf32> to vector<11x1xf32>
    %c4_69 = arith.constant 4 : index
    %c0_70 = arith.constant 0 : index
    %c0_71 = arith.constant 0 : index
    %86 = vector.load %arg2[%c4_69, %c0_70, %c0_71] : memref<5x1x128xf32, #tpu.memory_space<vmem>>, vector<1x1x128xf32>
    %87 = vector.shape_cast %86 : vector<1x1x128xf32> to vector<1x128xf32>
    %88 = vector.broadcast %85 : vector<11x1xf32> to vector<11x128xf32>
    %89 = vector.broadcast %87 : vector<1x128xf32> to vector<11x128xf32>
    %90 = arith.mulf %88, %89 : vector<11x128xf32>
    %91 = arith.addf %83, %90 : vector<11x128xf32>
    %92 = vector.broadcast %0 : vector<1x128xf32> to vector<11x128xf32>
    %93 = arith.addf %91, %92 : vector<11x128xf32>
    %cst_72 = arith.constant 1.000000e-01 : f32
    %94 = vector.broadcast %cst_72 : f32 to vector<11x128xf32>
    %95 = arith.mulf %94, %93 : vector<11x128xf32>
    %96 = arith.maximumf %93, %95 : vector<11x128xf32>
    %97 = arith.truncf %96 : vector<11x128xf32> to vector<11x128xbf16>
    %c1_73 = arith.constant 1 : index
    %c0_74 = arith.constant 0 : index
    %c0_75 = arith.constant 0 : index
    %98 = vector.load %arg4[%c1_73, %c0_74, %c0_75] : memref<2x11x128xbf16, #tpu.memory_space<vmem>>, vector<1x11x128xbf16>
    %99 = vector.shape_cast %98 : vector<1x11x128xbf16> to vector<11x128xbf16>
    %100 = vector.shape_cast %97 : vector<11x128xbf16> to vector<1x11x128xbf16>
    tpu.vector_store %arg4[%c1_73, %c0_74, %c0_75], %100 {strides = array<i32>} : memref<2x11x128xbf16, #tpu.memory_space<vmem>>, vector<1x11x128xbf16>,
    return
  }
  func.func @transform_0(%arg0: i32) -> (i32, i32, i32, i32) {
    %c0_i32 = arith.constant 0 : i32
    %c0_i32_0 = arith.constant 0 : i32
    %c0_i32_1 = arith.constant 0 : i32
    %c0_i32_2 = arith.constant 0 : i32
    return %arg0, %c0_i32, %c0_i32_0, %c0_i32_1 : i32, i32, i32, i32
  }
  func.func @transform_1(%arg0: i32) -> (i32, i32, i32) {
    %c0_i32 = arith.constant 0 : i32
    %c0_i32_0 = arith.constant 0 : i32
    %c0_i32_1 = arith.constant 0 : i32
    %c0_i32_2 = arith.constant 0 : i32
    return %c0_i32, %c0_i32_0, %c0_i32_1 : i32, i32, i32
  }
  func.func @transform_2(%arg0: i32) -> (i32, i32) {
    %c0_i32 = arith.constant 0 : i32
    %c0_i32_0 = arith.constant 0 : i32
    %c0_i32_1 = arith.constant 0 : i32
    return %c0_i32, %c0_i32_0 : i32, i32
  }
  func.func @transform_3(%arg0: i32) -> (i32, i32, i32) {
    %c0_i32 = arith.constant 0 : i32
    %c0_i32_0 = arith.constant 0 : i32
    %c0_i32_1 = arith.constant 0 : i32
    return %arg0, %c0_i32, %c0_i32_0 : i32, i32, i32
  }
}

module attributes {stable_mosaic.version = 11 : i64} {
  func.func @_conv_tap_kernel(%arg0: i32, %arg1: memref<2x5x384xbf16, #tpu.memory_space<vmem>>, %arg2: memref<5x128x128xbf16, #tpu.memory_space<vmem>>, %arg3: memref<1x128xf32, #tpu.memory_space<vmem>>, %arg4: memref<2x4x128xbf16, #tpu.memory_space<vmem>>) attributes {dimension_semantics = [#tpu.dimension_semantics<parallel>], iteration_bounds = array<i64: 2>, scalar_prefetch = 0 : i64, scratch_operands = 0 : i64, tpu.core_type = #tpu.core_type<tc>, window_params = [{transform_indices = @transform_0, window_bounds = array<i64: 2, 5, 384>}, {pipeline_mode = #tpu.pipeline_mode<synchronous>, transform_indices = @transform_1, window_bounds = array<i64: 5, 128, 128>}, {pipeline_mode = #tpu.pipeline_mode<synchronous>, transform_indices = @transform_2, window_bounds = array<i64: 1, 128>}, {transform_indices = @transform_3, window_bounds = array<i64: 2, 4, 128>}]} {
    %c0 = arith.constant 0 : index
    %c0_0 = arith.constant 0 : index
    %0 = vector.load %arg3[%c0, %c0_0] : memref<1x128xf32, #tpu.memory_space<vmem>>, vector<1x128xf32>
    %cst = arith.constant 0.000000e+00 : f32
    %1 = vector.broadcast %cst : f32 to vector<4x128xf32>
    %c0_1 = arith.constant 0 : index
    %c0_2 = arith.constant 0 : index
    %c0_3 = arith.constant 0 : index
    %2 = vector.load %arg1[%c0_1, %c0_2, %c0_3] : memref<2x5x384xbf16, #tpu.memory_space<vmem>>, vector<1x4x128xbf16>
    %3 = vector.shape_cast %2 : vector<1x4x128xbf16> to vector<4x128xbf16>
    %c0_4 = arith.constant 0 : index
    %c0_5 = arith.constant 0 : index
    %c0_6 = arith.constant 0 : index
    %4 = vector.load %arg2[%c0_4, %c0_5, %c0_6] : memref<5x128x128xbf16, #tpu.memory_space<vmem>>, vector<1x128x128xbf16>
    %5 = vector.shape_cast %4 : vector<1x128x128xbf16> to vector<128x128xbf16>
    %cst_7 = arith.constant dense<0.000000e+00> : vector<4x128xf32>
    %6 = tpu.matmul %3, %5, %cst_7 {dimension_numbers = #tpu.dot_dimension_numbers<[1], [0], [0], [1], [0, 0, 1, 1], [], []>} : vector<4x128xbf16>, vector<128x128xbf16>, vector<4x128xf32> -> vector<4x128xf32>
    %7 = arith.addf %1, %6 : vector<4x128xf32>
    %c0_8 = arith.constant 0 : index
    %c0_9 = arith.constant 0 : index
    %c128 = arith.constant 128 : index
    %8 = vector.load %arg1[%c0_8, %c0_9, %c128] : memref<2x5x384xbf16, #tpu.memory_space<vmem>>, vector<1x4x128xbf16>
    %9 = vector.shape_cast %8 : vector<1x4x128xbf16> to vector<4x128xbf16>
    %c1 = arith.constant 1 : index
    %c0_10 = arith.constant 0 : index
    %c0_11 = arith.constant 0 : index
    %10 = vector.load %arg2[%c1, %c0_10, %c0_11] : memref<5x128x128xbf16, #tpu.memory_space<vmem>>, vector<1x128x128xbf16>
    %11 = vector.shape_cast %10 : vector<1x128x128xbf16> to vector<128x128xbf16>
    %cst_12 = arith.constant dense<0.000000e+00> : vector<4x128xf32>
    %12 = tpu.matmul %9, %11, %cst_12 {dimension_numbers = #tpu.dot_dimension_numbers<[1], [0], [0], [1], [0, 0, 1, 1], [], []>} : vector<4x128xbf16>, vector<128x128xbf16>, vector<4x128xf32> -> vector<4x128xf32>
    %13 = arith.addf %7, %12 : vector<4x128xf32>
    %c0_13 = arith.constant 0 : index
    %c0_14 = arith.constant 0 : index
    %c256 = arith.constant 256 : index
    %14 = vector.load %arg1[%c0_13, %c0_14, %c256] : memref<2x5x384xbf16, #tpu.memory_space<vmem>>, vector<1x4x128xbf16>
    %15 = vector.shape_cast %14 : vector<1x4x128xbf16> to vector<4x128xbf16>
    %c2 = arith.constant 2 : index
    %c0_15 = arith.constant 0 : index
    %c0_16 = arith.constant 0 : index
    %16 = vector.load %arg2[%c2, %c0_15, %c0_16] : memref<5x128x128xbf16, #tpu.memory_space<vmem>>, vector<1x128x128xbf16>
    %17 = vector.shape_cast %16 : vector<1x128x128xbf16> to vector<128x128xbf16>
    %cst_17 = arith.constant dense<0.000000e+00> : vector<4x128xf32>
    %18 = tpu.matmul %15, %17, %cst_17 {dimension_numbers = #tpu.dot_dimension_numbers<[1], [0], [0], [1], [0, 0, 1, 1], [], []>} : vector<4x128xbf16>, vector<128x128xbf16>, vector<4x128xf32> -> vector<4x128xf32>
    %19 = arith.addf %13, %18 : vector<4x128xf32>
    %c0_18 = arith.constant 0 : index
    %c1_19 = arith.constant 1 : index
    %c0_20 = arith.constant 0 : index
    %20 = vector.load %arg1[%c0_18, %c1_19, %c0_20] : memref<2x5x384xbf16, #tpu.memory_space<vmem>>, vector<1x4x128xbf16>
    %21 = vector.shape_cast %20 : vector<1x4x128xbf16> to vector<4x128xbf16>
    %c3 = arith.constant 3 : index
    %c0_21 = arith.constant 0 : index
    %c0_22 = arith.constant 0 : index
    %22 = vector.load %arg2[%c3, %c0_21, %c0_22] : memref<5x128x128xbf16, #tpu.memory_space<vmem>>, vector<1x128x128xbf16>
    %23 = vector.shape_cast %22 : vector<1x128x128xbf16> to vector<128x128xbf16>
    %cst_23 = arith.constant dense<0.000000e+00> : vector<4x128xf32>
    %24 = tpu.matmul %21, %23, %cst_23 {dimension_numbers = #tpu.dot_dimension_numbers<[1], [0], [0], [1], [0, 0, 1, 1], [], []>} : vector<4x128xbf16>, vector<128x128xbf16>, vector<4x128xf32> -> vector<4x128xf32>
    %25 = arith.addf %19, %24 : vector<4x128xf32>
    %c0_24 = arith.constant 0 : index
    %c1_25 = arith.constant 1 : index
    %c128_26 = arith.constant 128 : index
    %26 = vector.load %arg1[%c0_24, %c1_25, %c128_26] : memref<2x5x384xbf16, #tpu.memory_space<vmem>>, vector<1x4x128xbf16>
    %27 = vector.shape_cast %26 : vector<1x4x128xbf16> to vector<4x128xbf16>
    %c4 = arith.constant 4 : index
    %c0_27 = arith.constant 0 : index
    %c0_28 = arith.constant 0 : index
    %28 = vector.load %arg2[%c4, %c0_27, %c0_28] : memref<5x128x128xbf16, #tpu.memory_space<vmem>>, vector<1x128x128xbf16>
    %29 = vector.shape_cast %28 : vector<1x128x128xbf16> to vector<128x128xbf16>
    %cst_29 = arith.constant dense<0.000000e+00> : vector<4x128xf32>
    %30 = tpu.matmul %27, %29, %cst_29 {dimension_numbers = #tpu.dot_dimension_numbers<[1], [0], [0], [1], [0, 0, 1, 1], [], []>} : vector<4x128xbf16>, vector<128x128xbf16>, vector<4x128xf32> -> vector<4x128xf32>
    %31 = arith.addf %25, %30 : vector<4x128xf32>
    %32 = vector.broadcast %0 : vector<1x128xf32> to vector<4x128xf32>
    %33 = arith.addf %31, %32 : vector<4x128xf32>
    %cst_30 = arith.constant 1.000000e-01 : f32
    %34 = vector.broadcast %cst_30 : f32 to vector<4x128xf32>
    %35 = arith.mulf %34, %33 : vector<4x128xf32>
    %36 = arith.maximumf %33, %35 : vector<4x128xf32>
    %37 = arith.truncf %36 : vector<4x128xf32> to vector<4x128xbf16>
    %c0_31 = arith.constant 0 : index
    %c0_32 = arith.constant 0 : index
    %c0_33 = arith.constant 0 : index
    %38 = vector.load %arg4[%c0_31, %c0_32, %c0_33] : memref<2x4x128xbf16, #tpu.memory_space<vmem>>, vector<1x4x128xbf16>
    %39 = vector.shape_cast %38 : vector<1x4x128xbf16> to vector<4x128xbf16>
    %40 = vector.shape_cast %37 : vector<4x128xbf16> to vector<1x4x128xbf16>
    tpu.vector_store %arg4[%c0_31, %c0_32, %c0_33], %40 {strides = array<i32>} : memref<2x4x128xbf16, #tpu.memory_space<vmem>>, vector<1x4x128xbf16>,
    %cst_34 = arith.constant 0.000000e+00 : f32
    %41 = vector.broadcast %cst_34 : f32 to vector<4x128xf32>
    %c1_35 = arith.constant 1 : index
    %c0_36 = arith.constant 0 : index
    %c0_37 = arith.constant 0 : index
    %42 = vector.load %arg1[%c1_35, %c0_36, %c0_37] : memref<2x5x384xbf16, #tpu.memory_space<vmem>>, vector<1x4x128xbf16>
    %43 = vector.shape_cast %42 : vector<1x4x128xbf16> to vector<4x128xbf16>
    %c0_38 = arith.constant 0 : index
    %c0_39 = arith.constant 0 : index
    %c0_40 = arith.constant 0 : index
    %44 = vector.load %arg2[%c0_38, %c0_39, %c0_40] : memref<5x128x128xbf16, #tpu.memory_space<vmem>>, vector<1x128x128xbf16>
    %45 = vector.shape_cast %44 : vector<1x128x128xbf16> to vector<128x128xbf16>
    %cst_41 = arith.constant dense<0.000000e+00> : vector<4x128xf32>
    %46 = tpu.matmul %43, %45, %cst_41 {dimension_numbers = #tpu.dot_dimension_numbers<[1], [0], [0], [1], [0, 0, 1, 1], [], []>} : vector<4x128xbf16>, vector<128x128xbf16>, vector<4x128xf32> -> vector<4x128xf32>
    %47 = arith.addf %41, %46 : vector<4x128xf32>
    %c1_42 = arith.constant 1 : index
    %c0_43 = arith.constant 0 : index
    %c128_44 = arith.constant 128 : index
    %48 = vector.load %arg1[%c1_42, %c0_43, %c128_44] : memref<2x5x384xbf16, #tpu.memory_space<vmem>>, vector<1x4x128xbf16>
    %49 = vector.shape_cast %48 : vector<1x4x128xbf16> to vector<4x128xbf16>
    %c1_45 = arith.constant 1 : index
    %c0_46 = arith.constant 0 : index
    %c0_47 = arith.constant 0 : index
    %50 = vector.load %arg2[%c1_45, %c0_46, %c0_47] : memref<5x128x128xbf16, #tpu.memory_space<vmem>>, vector<1x128x128xbf16>
    %51 = vector.shape_cast %50 : vector<1x128x128xbf16> to vector<128x128xbf16>
    %cst_48 = arith.constant dense<0.000000e+00> : vector<4x128xf32>
    %52 = tpu.matmul %49, %51, %cst_48 {dimension_numbers = #tpu.dot_dimension_numbers<[1], [0], [0], [1], [0, 0, 1, 1], [], []>} : vector<4x128xbf16>, vector<128x128xbf16>, vector<4x128xf32> -> vector<4x128xf32>
    %53 = arith.addf %47, %52 : vector<4x128xf32>
    %c1_49 = arith.constant 1 : index
    %c0_50 = arith.constant 0 : index
    %c256_51 = arith.constant 256 : index
    %54 = vector.load %arg1[%c1_49, %c0_50, %c256_51] : memref<2x5x384xbf16, #tpu.memory_space<vmem>>, vector<1x4x128xbf16>
    %55 = vector.shape_cast %54 : vector<1x4x128xbf16> to vector<4x128xbf16>
    %c2_52 = arith.constant 2 : index
    %c0_53 = arith.constant 0 : index
    %c0_54 = arith.constant 0 : index
    %56 = vector.load %arg2[%c2_52, %c0_53, %c0_54] : memref<5x128x128xbf16, #tpu.memory_space<vmem>>, vector<1x128x128xbf16>
    %57 = vector.shape_cast %56 : vector<1x128x128xbf16> to vector<128x128xbf16>
    %cst_55 = arith.constant dense<0.000000e+00> : vector<4x128xf32>
    %58 = tpu.matmul %55, %57, %cst_55 {dimension_numbers = #tpu.dot_dimension_numbers<[1], [0], [0], [1], [0, 0, 1, 1], [], []>} : vector<4x128xbf16>, vector<128x128xbf16>, vector<4x128xf32> -> vector<4x128xf32>
    %59 = arith.addf %53, %58 : vector<4x128xf32>
    %c1_56 = arith.constant 1 : index
    %c1_57 = arith.constant 1 : index
    %c0_58 = arith.constant 0 : index
    %60 = vector.load %arg1[%c1_56, %c1_57, %c0_58] : memref<2x5x384xbf16, #tpu.memory_space<vmem>>, vector<1x4x128xbf16>
    %61 = vector.shape_cast %60 : vector<1x4x128xbf16> to vector<4x128xbf16>
    %c3_59 = arith.constant 3 : index
    %c0_60 = arith.constant 0 : index
    %c0_61 = arith.constant 0 : index
    %62 = vector.load %arg2[%c3_59, %c0_60, %c0_61] : memref<5x128x128xbf16, #tpu.memory_space<vmem>>, vector<1x128x128xbf16>
    %63 = vector.shape_cast %62 : vector<1x128x128xbf16> to vector<128x128xbf16>
    %cst_62 = arith.constant dense<0.000000e+00> : vector<4x128xf32>
    %64 = tpu.matmul %61, %63, %cst_62 {dimension_numbers = #tpu.dot_dimension_numbers<[1], [0], [0], [1], [0, 0, 1, 1], [], []>} : vector<4x128xbf16>, vector<128x128xbf16>, vector<4x128xf32> -> vector<4x128xf32>
    %65 = arith.addf %59, %64 : vector<4x128xf32>
    %c1_63 = arith.constant 1 : index
    %c1_64 = arith.constant 1 : index
    %c128_65 = arith.constant 128 : index
    %66 = vector.load %arg1[%c1_63, %c1_64, %c128_65] : memref<2x5x384xbf16, #tpu.memory_space<vmem>>, vector<1x4x128xbf16>
    %67 = vector.shape_cast %66 : vector<1x4x128xbf16> to vector<4x128xbf16>
    %c4_66 = arith.constant 4 : index
    %c0_67 = arith.constant 0 : index
    %c0_68 = arith.constant 0 : index
    %68 = vector.load %arg2[%c4_66, %c0_67, %c0_68] : memref<5x128x128xbf16, #tpu.memory_space<vmem>>, vector<1x128x128xbf16>
    %69 = vector.shape_cast %68 : vector<1x128x128xbf16> to vector<128x128xbf16>
    %cst_69 = arith.constant dense<0.000000e+00> : vector<4x128xf32>
    %70 = tpu.matmul %67, %69, %cst_69 {dimension_numbers = #tpu.dot_dimension_numbers<[1], [0], [0], [1], [0, 0, 1, 1], [], []>} : vector<4x128xbf16>, vector<128x128xbf16>, vector<4x128xf32> -> vector<4x128xf32>
    %71 = arith.addf %65, %70 : vector<4x128xf32>
    %72 = vector.broadcast %0 : vector<1x128xf32> to vector<4x128xf32>
    %73 = arith.addf %71, %72 : vector<4x128xf32>
    %cst_70 = arith.constant 1.000000e-01 : f32
    %74 = vector.broadcast %cst_70 : f32 to vector<4x128xf32>
    %75 = arith.mulf %74, %73 : vector<4x128xf32>
    %76 = arith.maximumf %73, %75 : vector<4x128xf32>
    %77 = arith.truncf %76 : vector<4x128xf32> to vector<4x128xbf16>
    %c1_71 = arith.constant 1 : index
    %c0_72 = arith.constant 0 : index
    %c0_73 = arith.constant 0 : index
    %78 = vector.load %arg4[%c1_71, %c0_72, %c0_73] : memref<2x4x128xbf16, #tpu.memory_space<vmem>>, vector<1x4x128xbf16>
    %79 = vector.shape_cast %78 : vector<1x4x128xbf16> to vector<4x128xbf16>
    %80 = vector.shape_cast %77 : vector<4x128xbf16> to vector<1x4x128xbf16>
    tpu.vector_store %arg4[%c1_71, %c0_72, %c0_73], %80 {strides = array<i32>} : memref<2x4x128xbf16, #tpu.memory_space<vmem>>, vector<1x4x128xbf16>,
    return
  }
  func.func @transform_0(%arg0: i32) -> (i32, i32, i32) {
    %c0_i32 = arith.constant 0 : i32
    %c0_i32_0 = arith.constant 0 : i32
    %c0_i32_1 = arith.constant 0 : i32
    return %arg0, %c0_i32, %c0_i32_0 : i32, i32, i32
  }
  func.func @transform_1(%arg0: i32) -> (i32, i32, i32) {
    %c0_i32 = arith.constant 0 : i32
    %c0_i32_0 = arith.constant 0 : i32
    %c0_i32_1 = arith.constant 0 : i32
    %c0_i32_2 = arith.constant 0 : i32
    return %c0_i32, %c0_i32_0, %c0_i32_1 : i32, i32, i32
  }
  func.func @transform_2(%arg0: i32) -> (i32, i32) {
    %c0_i32 = arith.constant 0 : i32
    %c0_i32_0 = arith.constant 0 : i32
    %c0_i32_1 = arith.constant 0 : i32
    return %c0_i32, %c0_i32_0 : i32, i32
  }
  func.func @transform_3(%arg0: i32) -> (i32, i32, i32) {
    %c0_i32 = arith.constant 0 : i32
    %c0_i32_0 = arith.constant 0 : i32
    %c0_i32_1 = arith.constant 0 : i32
    return %arg0, %c0_i32, %c0_i32_0 : i32, i32, i32
  }
}

module attributes {stable_mosaic.version = 11 : i64} {
  func.func @_conv_tap_kernel(%arg0: i32, %arg1: memref<2x3x384xbf16, #tpu.memory_space<vmem>>, %arg2: memref<5x128x128xbf16, #tpu.memory_space<vmem>>, %arg3: memref<1x128xf32, #tpu.memory_space<vmem>>, %arg4: memref<2x2x128xbf16, #tpu.memory_space<vmem>>) attributes {dimension_semantics = [#tpu.dimension_semantics<parallel>], iteration_bounds = array<i64: 2>, scalar_prefetch = 0 : i64, scratch_operands = 0 : i64, tpu.core_type = #tpu.core_type<tc>, window_params = [{transform_indices = @transform_0, window_bounds = array<i64: 2, 3, 384>}, {pipeline_mode = #tpu.pipeline_mode<synchronous>, transform_indices = @transform_1, window_bounds = array<i64: 5, 128, 128>}, {pipeline_mode = #tpu.pipeline_mode<synchronous>, transform_indices = @transform_2, window_bounds = array<i64: 1, 128>}, {transform_indices = @transform_3, window_bounds = array<i64: 2, 2, 128>}]} {
    %c0 = arith.constant 0 : index
    %c0_0 = arith.constant 0 : index
    %0 = vector.load %arg3[%c0, %c0_0] : memref<1x128xf32, #tpu.memory_space<vmem>>, vector<1x128xf32>
    %cst = arith.constant 0.000000e+00 : f32
    %1 = vector.broadcast %cst : f32 to vector<2x128xf32>
    %c0_1 = arith.constant 0 : index
    %c0_2 = arith.constant 0 : index
    %c0_3 = arith.constant 0 : index
    %2 = vector.load %arg1[%c0_1, %c0_2, %c0_3] : memref<2x3x384xbf16, #tpu.memory_space<vmem>>, vector<1x2x128xbf16>
    %3 = vector.shape_cast %2 : vector<1x2x128xbf16> to vector<2x128xbf16>
    %c0_4 = arith.constant 0 : index
    %c0_5 = arith.constant 0 : index
    %c0_6 = arith.constant 0 : index
    %4 = vector.load %arg2[%c0_4, %c0_5, %c0_6] : memref<5x128x128xbf16, #tpu.memory_space<vmem>>, vector<1x128x128xbf16>
    %5 = vector.shape_cast %4 : vector<1x128x128xbf16> to vector<128x128xbf16>
    %cst_7 = arith.constant dense<0.000000e+00> : vector<2x128xf32>
    %6 = tpu.matmul %3, %5, %cst_7 {dimension_numbers = #tpu.dot_dimension_numbers<[1], [0], [0], [1], [0, 0, 1, 1], [], []>} : vector<2x128xbf16>, vector<128x128xbf16>, vector<2x128xf32> -> vector<2x128xf32>
    %7 = arith.addf %1, %6 : vector<2x128xf32>
    %c0_8 = arith.constant 0 : index
    %c0_9 = arith.constant 0 : index
    %c128 = arith.constant 128 : index
    %8 = vector.load %arg1[%c0_8, %c0_9, %c128] : memref<2x3x384xbf16, #tpu.memory_space<vmem>>, vector<1x2x128xbf16>
    %9 = vector.shape_cast %8 : vector<1x2x128xbf16> to vector<2x128xbf16>
    %c1 = arith.constant 1 : index
    %c0_10 = arith.constant 0 : index
    %c0_11 = arith.constant 0 : index
    %10 = vector.load %arg2[%c1, %c0_10, %c0_11] : memref<5x128x128xbf16, #tpu.memory_space<vmem>>, vector<1x128x128xbf16>
    %11 = vector.shape_cast %10 : vector<1x128x128xbf16> to vector<128x128xbf16>
    %cst_12 = arith.constant dense<0.000000e+00> : vector<2x128xf32>
    %12 = tpu.matmul %9, %11, %cst_12 {dimension_numbers = #tpu.dot_dimension_numbers<[1], [0], [0], [1], [0, 0, 1, 1], [], []>} : vector<2x128xbf16>, vector<128x128xbf16>, vector<2x128xf32> -> vector<2x128xf32>
    %13 = arith.addf %7, %12 : vector<2x128xf32>
    %c0_13 = arith.constant 0 : index
    %c0_14 = arith.constant 0 : index
    %c256 = arith.constant 256 : index
    %14 = vector.load %arg1[%c0_13, %c0_14, %c256] : memref<2x3x384xbf16, #tpu.memory_space<vmem>>, vector<1x2x128xbf16>
    %15 = vector.shape_cast %14 : vector<1x2x128xbf16> to vector<2x128xbf16>
    %c2 = arith.constant 2 : index
    %c0_15 = arith.constant 0 : index
    %c0_16 = arith.constant 0 : index
    %16 = vector.load %arg2[%c2, %c0_15, %c0_16] : memref<5x128x128xbf16, #tpu.memory_space<vmem>>, vector<1x128x128xbf16>
    %17 = vector.shape_cast %16 : vector<1x128x128xbf16> to vector<128x128xbf16>
    %cst_17 = arith.constant dense<0.000000e+00> : vector<2x128xf32>
    %18 = tpu.matmul %15, %17, %cst_17 {dimension_numbers = #tpu.dot_dimension_numbers<[1], [0], [0], [1], [0, 0, 1, 1], [], []>} : vector<2x128xbf16>, vector<128x128xbf16>, vector<2x128xf32> -> vector<2x128xf32>
    %19 = arith.addf %13, %18 : vector<2x128xf32>
    %c0_18 = arith.constant 0 : index
    %c1_19 = arith.constant 1 : index
    %c0_20 = arith.constant 0 : index
    %20 = vector.load %arg1[%c0_18, %c1_19, %c0_20] : memref<2x3x384xbf16, #tpu.memory_space<vmem>>, vector<1x2x128xbf16>
    %21 = vector.shape_cast %20 : vector<1x2x128xbf16> to vector<2x128xbf16>
    %c3 = arith.constant 3 : index
    %c0_21 = arith.constant 0 : index
    %c0_22 = arith.constant 0 : index
    %22 = vector.load %arg2[%c3, %c0_21, %c0_22] : memref<5x128x128xbf16, #tpu.memory_space<vmem>>, vector<1x128x128xbf16>
    %23 = vector.shape_cast %22 : vector<1x128x128xbf16> to vector<128x128xbf16>
    %cst_23 = arith.constant dense<0.000000e+00> : vector<2x128xf32>
    %24 = tpu.matmul %21, %23, %cst_23 {dimension_numbers = #tpu.dot_dimension_numbers<[1], [0], [0], [1], [0, 0, 1, 1], [], []>} : vector<2x128xbf16>, vector<128x128xbf16>, vector<2x128xf32> -> vector<2x128xf32>
    %25 = arith.addf %19, %24 : vector<2x128xf32>
    %c0_24 = arith.constant 0 : index
    %c1_25 = arith.constant 1 : index
    %c128_26 = arith.constant 128 : index
    %26 = vector.load %arg1[%c0_24, %c1_25, %c128_26] : memref<2x3x384xbf16, #tpu.memory_space<vmem>>, vector<1x2x128xbf16>
    %27 = vector.shape_cast %26 : vector<1x2x128xbf16> to vector<2x128xbf16>
    %c4 = arith.constant 4 : index
    %c0_27 = arith.constant 0 : index
    %c0_28 = arith.constant 0 : index
    %28 = vector.load %arg2[%c4, %c0_27, %c0_28] : memref<5x128x128xbf16, #tpu.memory_space<vmem>>, vector<1x128x128xbf16>
    %29 = vector.shape_cast %28 : vector<1x128x128xbf16> to vector<128x128xbf16>
    %cst_29 = arith.constant dense<0.000000e+00> : vector<2x128xf32>
    %30 = tpu.matmul %27, %29, %cst_29 {dimension_numbers = #tpu.dot_dimension_numbers<[1], [0], [0], [1], [0, 0, 1, 1], [], []>} : vector<2x128xbf16>, vector<128x128xbf16>, vector<2x128xf32> -> vector<2x128xf32>
    %31 = arith.addf %25, %30 : vector<2x128xf32>
    %32 = vector.broadcast %0 : vector<1x128xf32> to vector<2x128xf32>
    %33 = arith.addf %31, %32 : vector<2x128xf32>
    %cst_30 = arith.constant 1.000000e-01 : f32
    %34 = vector.broadcast %cst_30 : f32 to vector<2x128xf32>
    %35 = arith.mulf %34, %33 : vector<2x128xf32>
    %36 = arith.maximumf %33, %35 : vector<2x128xf32>
    %37 = arith.truncf %36 : vector<2x128xf32> to vector<2x128xbf16>
    %c0_31 = arith.constant 0 : index
    %c0_32 = arith.constant 0 : index
    %c0_33 = arith.constant 0 : index
    %38 = vector.load %arg4[%c0_31, %c0_32, %c0_33] : memref<2x2x128xbf16, #tpu.memory_space<vmem>>, vector<1x2x128xbf16>
    %39 = vector.shape_cast %38 : vector<1x2x128xbf16> to vector<2x128xbf16>
    %40 = vector.shape_cast %37 : vector<2x128xbf16> to vector<1x2x128xbf16>
    tpu.vector_store %arg4[%c0_31, %c0_32, %c0_33], %40 {strides = array<i32>} : memref<2x2x128xbf16, #tpu.memory_space<vmem>>, vector<1x2x128xbf16>,
    %cst_34 = arith.constant 0.000000e+00 : f32
    %41 = vector.broadcast %cst_34 : f32 to vector<2x128xf32>
    %c1_35 = arith.constant 1 : index
    %c0_36 = arith.constant 0 : index
    %c0_37 = arith.constant 0 : index
    %42 = vector.load %arg1[%c1_35, %c0_36, %c0_37] : memref<2x3x384xbf16, #tpu.memory_space<vmem>>, vector<1x2x128xbf16>
    %43 = vector.shape_cast %42 : vector<1x2x128xbf16> to vector<2x128xbf16>
    %c0_38 = arith.constant 0 : index
    %c0_39 = arith.constant 0 : index
    %c0_40 = arith.constant 0 : index
    %44 = vector.load %arg2[%c0_38, %c0_39, %c0_40] : memref<5x128x128xbf16, #tpu.memory_space<vmem>>, vector<1x128x128xbf16>
    %45 = vector.shape_cast %44 : vector<1x128x128xbf16> to vector<128x128xbf16>
    %cst_41 = arith.constant dense<0.000000e+00> : vector<2x128xf32>
    %46 = tpu.matmul %43, %45, %cst_41 {dimension_numbers = #tpu.dot_dimension_numbers<[1], [0], [0], [1], [0, 0, 1, 1], [], []>} : vector<2x128xbf16>, vector<128x128xbf16>, vector<2x128xf32> -> vector<2x128xf32>
    %47 = arith.addf %41, %46 : vector<2x128xf32>
    %c1_42 = arith.constant 1 : index
    %c0_43 = arith.constant 0 : index
    %c128_44 = arith.constant 128 : index
    %48 = vector.load %arg1[%c1_42, %c0_43, %c128_44] : memref<2x3x384xbf16, #tpu.memory_space<vmem>>, vector<1x2x128xbf16>
    %49 = vector.shape_cast %48 : vector<1x2x128xbf16> to vector<2x128xbf16>
    %c1_45 = arith.constant 1 : index
    %c0_46 = arith.constant 0 : index
    %c0_47 = arith.constant 0 : index
    %50 = vector.load %arg2[%c1_45, %c0_46, %c0_47] : memref<5x128x128xbf16, #tpu.memory_space<vmem>>, vector<1x128x128xbf16>
    %51 = vector.shape_cast %50 : vector<1x128x128xbf16> to vector<128x128xbf16>
    %cst_48 = arith.constant dense<0.000000e+00> : vector<2x128xf32>
    %52 = tpu.matmul %49, %51, %cst_48 {dimension_numbers = #tpu.dot_dimension_numbers<[1], [0], [0], [1], [0, 0, 1, 1], [], []>} : vector<2x128xbf16>, vector<128x128xbf16>, vector<2x128xf32> -> vector<2x128xf32>
    %53 = arith.addf %47, %52 : vector<2x128xf32>
    %c1_49 = arith.constant 1 : index
    %c0_50 = arith.constant 0 : index
    %c256_51 = arith.constant 256 : index
    %54 = vector.load %arg1[%c1_49, %c0_50, %c256_51] : memref<2x3x384xbf16, #tpu.memory_space<vmem>>, vector<1x2x128xbf16>
    %55 = vector.shape_cast %54 : vector<1x2x128xbf16> to vector<2x128xbf16>
    %c2_52 = arith.constant 2 : index
    %c0_53 = arith.constant 0 : index
    %c0_54 = arith.constant 0 : index
    %56 = vector.load %arg2[%c2_52, %c0_53, %c0_54] : memref<5x128x128xbf16, #tpu.memory_space<vmem>>, vector<1x128x128xbf16>
    %57 = vector.shape_cast %56 : vector<1x128x128xbf16> to vector<128x128xbf16>
    %cst_55 = arith.constant dense<0.000000e+00> : vector<2x128xf32>
    %58 = tpu.matmul %55, %57, %cst_55 {dimension_numbers = #tpu.dot_dimension_numbers<[1], [0], [0], [1], [0, 0, 1, 1], [], []>} : vector<2x128xbf16>, vector<128x128xbf16>, vector<2x128xf32> -> vector<2x128xf32>
    %59 = arith.addf %53, %58 : vector<2x128xf32>
    %c1_56 = arith.constant 1 : index
    %c1_57 = arith.constant 1 : index
    %c0_58 = arith.constant 0 : index
    %60 = vector.load %arg1[%c1_56, %c1_57, %c0_58] : memref<2x3x384xbf16, #tpu.memory_space<vmem>>, vector<1x2x128xbf16>
    %61 = vector.shape_cast %60 : vector<1x2x128xbf16> to vector<2x128xbf16>
    %c3_59 = arith.constant 3 : index
    %c0_60 = arith.constant 0 : index
    %c0_61 = arith.constant 0 : index
    %62 = vector.load %arg2[%c3_59, %c0_60, %c0_61] : memref<5x128x128xbf16, #tpu.memory_space<vmem>>, vector<1x128x128xbf16>
    %63 = vector.shape_cast %62 : vector<1x128x128xbf16> to vector<128x128xbf16>
    %cst_62 = arith.constant dense<0.000000e+00> : vector<2x128xf32>
    %64 = tpu.matmul %61, %63, %cst_62 {dimension_numbers = #tpu.dot_dimension_numbers<[1], [0], [0], [1], [0, 0, 1, 1], [], []>} : vector<2x128xbf16>, vector<128x128xbf16>, vector<2x128xf32> -> vector<2x128xf32>
    %65 = arith.addf %59, %64 : vector<2x128xf32>
    %c1_63 = arith.constant 1 : index
    %c1_64 = arith.constant 1 : index
    %c128_65 = arith.constant 128 : index
    %66 = vector.load %arg1[%c1_63, %c1_64, %c128_65] : memref<2x3x384xbf16, #tpu.memory_space<vmem>>, vector<1x2x128xbf16>
    %67 = vector.shape_cast %66 : vector<1x2x128xbf16> to vector<2x128xbf16>
    %c4_66 = arith.constant 4 : index
    %c0_67 = arith.constant 0 : index
    %c0_68 = arith.constant 0 : index
    %68 = vector.load %arg2[%c4_66, %c0_67, %c0_68] : memref<5x128x128xbf16, #tpu.memory_space<vmem>>, vector<1x128x128xbf16>
    %69 = vector.shape_cast %68 : vector<1x128x128xbf16> to vector<128x128xbf16>
    %cst_69 = arith.constant dense<0.000000e+00> : vector<2x128xf32>
    %70 = tpu.matmul %67, %69, %cst_69 {dimension_numbers = #tpu.dot_dimension_numbers<[1], [0], [0], [1], [0, 0, 1, 1], [], []>} : vector<2x128xbf16>, vector<128x128xbf16>, vector<2x128xf32> -> vector<2x128xf32>
    %71 = arith.addf %65, %70 : vector<2x128xf32>
    %72 = vector.broadcast %0 : vector<1x128xf32> to vector<2x128xf32>
    %73 = arith.addf %71, %72 : vector<2x128xf32>
    %cst_70 = arith.constant 1.000000e-01 : f32
    %74 = vector.broadcast %cst_70 : f32 to vector<2x128xf32>
    %75 = arith.mulf %74, %73 : vector<2x128xf32>
    %76 = arith.maximumf %73, %75 : vector<2x128xf32>
    %77 = arith.truncf %76 : vector<2x128xf32> to vector<2x128xbf16>
    %c1_71 = arith.constant 1 : index
    %c0_72 = arith.constant 0 : index
    %c0_73 = arith.constant 0 : index
    %78 = vector.load %arg4[%c1_71, %c0_72, %c0_73] : memref<2x2x128xbf16, #tpu.memory_space<vmem>>, vector<1x2x128xbf16>
    %79 = vector.shape_cast %78 : vector<1x2x128xbf16> to vector<2x128xbf16>
    %80 = vector.shape_cast %77 : vector<2x128xbf16> to vector<1x2x128xbf16>
    tpu.vector_store %arg4[%c1_71, %c0_72, %c0_73], %80 {strides = array<i32>} : memref<2x2x128xbf16, #tpu.memory_space<vmem>>, vector<1x2x128xbf16>,
    return
  }
  func.func @transform_0(%arg0: i32) -> (i32, i32, i32) {
    %c0_i32 = arith.constant 0 : i32
    %c0_i32_0 = arith.constant 0 : i32
    %c0_i32_1 = arith.constant 0 : i32
    return %arg0, %c0_i32, %c0_i32_0 : i32, i32, i32
  }
  func.func @transform_1(%arg0: i32) -> (i32, i32, i32) {
    %c0_i32 = arith.constant 0 : i32
    %c0_i32_0 = arith.constant 0 : i32
    %c0_i32_1 = arith.constant 0 : i32
    %c0_i32_2 = arith.constant 0 : i32
    return %c0_i32, %c0_i32_0, %c0_i32_1 : i32, i32, i32
  }
  func.func @transform_2(%arg0: i32) -> (i32, i32) {
    %c0_i32 = arith.constant 0 : i32
    %c0_i32_0 = arith.constant 0 : i32
    %c0_i32_1 = arith.constant 0 : i32
    return %c0_i32, %c0_i32_0 : i32, i32
  }
  func.func @transform_3(%arg0: i32) -> (i32, i32, i32) {
    %c0_i32 = arith.constant 0 : i32
    %c0_i32_0 = arith.constant 0 : i32
    %c0_i32_1 = arith.constant 0 : i32
    return %arg0, %c0_i32, %c0_i32_0 : i32, i32, i32
  }
}

module attributes {stable_mosaic.version = 11 : i64} {
  func.func @_conv_tap_kernel(%arg0: i32, %arg1: memref<2x4x128xbf16, #tpu.memory_space<vmem>>, %arg2: memref<3x128x128xbf16, #tpu.memory_space<vmem>>, %arg3: memref<1x128xf32, #tpu.memory_space<vmem>>, %arg4: memref<2x2x128xf32, #tpu.memory_space<vmem>>) attributes {dimension_semantics = [#tpu.dimension_semantics<parallel>], iteration_bounds = array<i64: 2>, scalar_prefetch = 0 : i64, scratch_operands = 0 : i64, tpu.core_type = #tpu.core_type<tc>, window_params = [{transform_indices = @transform_0, window_bounds = array<i64: 2, 4, 128>}, {pipeline_mode = #tpu.pipeline_mode<synchronous>, transform_indices = @transform_1, window_bounds = array<i64: 3, 128, 128>}, {pipeline_mode = #tpu.pipeline_mode<synchronous>, transform_indices = @transform_2, window_bounds = array<i64: 1, 128>}, {transform_indices = @transform_3, window_bounds = array<i64: 2, 2, 128>}]} {
    %c0 = arith.constant 0 : index
    %c0_0 = arith.constant 0 : index
    %0 = vector.load %arg3[%c0, %c0_0] : memref<1x128xf32, #tpu.memory_space<vmem>>, vector<1x128xf32>
    %cst = arith.constant 0.000000e+00 : f32
    %1 = vector.broadcast %cst : f32 to vector<2x128xf32>
    %c0_1 = arith.constant 0 : index
    %c0_2 = arith.constant 0 : index
    %c0_3 = arith.constant 0 : index
    %2 = vector.load %arg1[%c0_1, %c0_2, %c0_3] : memref<2x4x128xbf16, #tpu.memory_space<vmem>>, vector<1x2x128xbf16>
    %3 = vector.shape_cast %2 : vector<1x2x128xbf16> to vector<2x128xbf16>
    %c0_4 = arith.constant 0 : index
    %c0_5 = arith.constant 0 : index
    %c0_6 = arith.constant 0 : index
    %4 = vector.load %arg2[%c0_4, %c0_5, %c0_6] : memref<3x128x128xbf16, #tpu.memory_space<vmem>>, vector<1x128x128xbf16>
    %5 = vector.shape_cast %4 : vector<1x128x128xbf16> to vector<128x128xbf16>
    %cst_7 = arith.constant dense<0.000000e+00> : vector<2x128xf32>
    %6 = tpu.matmul %3, %5, %cst_7 {dimension_numbers = #tpu.dot_dimension_numbers<[1], [0], [0], [1], [0, 0, 1, 1], [], []>} : vector<2x128xbf16>, vector<128x128xbf16>, vector<2x128xf32> -> vector<2x128xf32>
    %7 = arith.addf %1, %6 : vector<2x128xf32>
    %c0_8 = arith.constant 0 : index
    %c1 = arith.constant 1 : index
    %c0_9 = arith.constant 0 : index
    %8 = vector.load %arg1[%c0_8, %c1, %c0_9] : memref<2x4x128xbf16, #tpu.memory_space<vmem>>, vector<1x2x128xbf16>
    %9 = vector.shape_cast %8 : vector<1x2x128xbf16> to vector<2x128xbf16>
    %c1_10 = arith.constant 1 : index
    %c0_11 = arith.constant 0 : index
    %c0_12 = arith.constant 0 : index
    %10 = vector.load %arg2[%c1_10, %c0_11, %c0_12] : memref<3x128x128xbf16, #tpu.memory_space<vmem>>, vector<1x128x128xbf16>
    %11 = vector.shape_cast %10 : vector<1x128x128xbf16> to vector<128x128xbf16>
    %cst_13 = arith.constant dense<0.000000e+00> : vector<2x128xf32>
    %12 = tpu.matmul %9, %11, %cst_13 {dimension_numbers = #tpu.dot_dimension_numbers<[1], [0], [0], [1], [0, 0, 1, 1], [], []>} : vector<2x128xbf16>, vector<128x128xbf16>, vector<2x128xf32> -> vector<2x128xf32>
    %13 = arith.addf %7, %12 : vector<2x128xf32>
    %c0_14 = arith.constant 0 : index
    %c2 = arith.constant 2 : index
    %c0_15 = arith.constant 0 : index
    %14 = vector.load %arg1[%c0_14, %c2, %c0_15] : memref<2x4x128xbf16, #tpu.memory_space<vmem>>, vector<1x2x128xbf16>
    %15 = vector.shape_cast %14 : vector<1x2x128xbf16> to vector<2x128xbf16>
    %c2_16 = arith.constant 2 : index
    %c0_17 = arith.constant 0 : index
    %c0_18 = arith.constant 0 : index
    %16 = vector.load %arg2[%c2_16, %c0_17, %c0_18] : memref<3x128x128xbf16, #tpu.memory_space<vmem>>, vector<1x128x128xbf16>
    %17 = vector.shape_cast %16 : vector<1x128x128xbf16> to vector<128x128xbf16>
    %cst_19 = arith.constant dense<0.000000e+00> : vector<2x128xf32>
    %18 = tpu.matmul %15, %17, %cst_19 {dimension_numbers = #tpu.dot_dimension_numbers<[1], [0], [0], [1], [0, 0, 1, 1], [], []>} : vector<2x128xbf16>, vector<128x128xbf16>, vector<2x128xf32> -> vector<2x128xf32>
    %19 = arith.addf %13, %18 : vector<2x128xf32>
    %20 = vector.broadcast %0 : vector<1x128xf32> to vector<2x128xf32>
    %21 = arith.addf %19, %20 : vector<2x128xf32>
    %c0_20 = arith.constant 0 : index
    %c0_21 = arith.constant 0 : index
    %c0_22 = arith.constant 0 : index
    %22 = vector.load %arg4[%c0_20, %c0_21, %c0_22] : memref<2x2x128xf32, #tpu.memory_space<vmem>>, vector<1x2x128xf32>
    %23 = vector.shape_cast %22 : vector<1x2x128xf32> to vector<2x128xf32>
    %24 = vector.shape_cast %21 : vector<2x128xf32> to vector<1x2x128xf32>
    tpu.vector_store %arg4[%c0_20, %c0_21, %c0_22], %24 {strides = array<i32>} : memref<2x2x128xf32, #tpu.memory_space<vmem>>, vector<1x2x128xf32>,
    %cst_23 = arith.constant 0.000000e+00 : f32
    %25 = vector.broadcast %cst_23 : f32 to vector<2x128xf32>
    %c1_24 = arith.constant 1 : index
    %c0_25 = arith.constant 0 : index
    %c0_26 = arith.constant 0 : index
    %26 = vector.load %arg1[%c1_24, %c0_25, %c0_26] : memref<2x4x128xbf16, #tpu.memory_space<vmem>>, vector<1x2x128xbf16>
    %27 = vector.shape_cast %26 : vector<1x2x128xbf16> to vector<2x128xbf16>
    %c0_27 = arith.constant 0 : index
    %c0_28 = arith.constant 0 : index
    %c0_29 = arith.constant 0 : index
    %28 = vector.load %arg2[%c0_27, %c0_28, %c0_29] : memref<3x128x128xbf16, #tpu.memory_space<vmem>>, vector<1x128x128xbf16>
    %29 = vector.shape_cast %28 : vector<1x128x128xbf16> to vector<128x128xbf16>
    %cst_30 = arith.constant dense<0.000000e+00> : vector<2x128xf32>
    %30 = tpu.matmul %27, %29, %cst_30 {dimension_numbers = #tpu.dot_dimension_numbers<[1], [0], [0], [1], [0, 0, 1, 1], [], []>} : vector<2x128xbf16>, vector<128x128xbf16>, vector<2x128xf32> -> vector<2x128xf32>
    %31 = arith.addf %25, %30 : vector<2x128xf32>
    %c1_31 = arith.constant 1 : index
    %c1_32 = arith.constant 1 : index
    %c0_33 = arith.constant 0 : index
    %32 = vector.load %arg1[%c1_31, %c1_32, %c0_33] : memref<2x4x128xbf16, #tpu.memory_space<vmem>>, vector<1x2x128xbf16>
    %33 = vector.shape_cast %32 : vector<1x2x128xbf16> to vector<2x128xbf16>
    %c1_34 = arith.constant 1 : index
    %c0_35 = arith.constant 0 : index
    %c0_36 = arith.constant 0 : index
    %34 = vector.load %arg2[%c1_34, %c0_35, %c0_36] : memref<3x128x128xbf16, #tpu.memory_space<vmem>>, vector<1x128x128xbf16>
    %35 = vector.shape_cast %34 : vector<1x128x128xbf16> to vector<128x128xbf16>
    %cst_37 = arith.constant dense<0.000000e+00> : vector<2x128xf32>
    %36 = tpu.matmul %33, %35, %cst_37 {dimension_numbers = #tpu.dot_dimension_numbers<[1], [0], [0], [1], [0, 0, 1, 1], [], []>} : vector<2x128xbf16>, vector<128x128xbf16>, vector<2x128xf32> -> vector<2x128xf32>
    %37 = arith.addf %31, %36 : vector<2x128xf32>
    %c1_38 = arith.constant 1 : index
    %c2_39 = arith.constant 2 : index
    %c0_40 = arith.constant 0 : index
    %38 = vector.load %arg1[%c1_38, %c2_39, %c0_40] : memref<2x4x128xbf16, #tpu.memory_space<vmem>>, vector<1x2x128xbf16>
    %39 = vector.shape_cast %38 : vector<1x2x128xbf16> to vector<2x128xbf16>
    %c2_41 = arith.constant 2 : index
    %c0_42 = arith.constant 0 : index
    %c0_43 = arith.constant 0 : index
    %40 = vector.load %arg2[%c2_41, %c0_42, %c0_43] : memref<3x128x128xbf16, #tpu.memory_space<vmem>>, vector<1x128x128xbf16>
    %41 = vector.shape_cast %40 : vector<1x128x128xbf16> to vector<128x128xbf16>
    %cst_44 = arith.constant dense<0.000000e+00> : vector<2x128xf32>
    %42 = tpu.matmul %39, %41, %cst_44 {dimension_numbers = #tpu.dot_dimension_numbers<[1], [0], [0], [1], [0, 0, 1, 1], [], []>} : vector<2x128xbf16>, vector<128x128xbf16>, vector<2x128xf32> -> vector<2x128xf32>
    %43 = arith.addf %37, %42 : vector<2x128xf32>
    %44 = vector.broadcast %0 : vector<1x128xf32> to vector<2x128xf32>
    %45 = arith.addf %43, %44 : vector<2x128xf32>
    %c1_45 = arith.constant 1 : index
    %c0_46 = arith.constant 0 : index
    %c0_47 = arith.constant 0 : index
    %46 = vector.load %arg4[%c1_45, %c0_46, %c0_47] : memref<2x2x128xf32, #tpu.memory_space<vmem>>, vector<1x2x128xf32>
    %47 = vector.shape_cast %46 : vector<1x2x128xf32> to vector<2x128xf32>
    %48 = vector.shape_cast %45 : vector<2x128xf32> to vector<1x2x128xf32>
    tpu.vector_store %arg4[%c1_45, %c0_46, %c0_47], %48 {strides = array<i32>} : memref<2x2x128xf32, #tpu.memory_space<vmem>>, vector<1x2x128xf32>,
    return
  }
  func.func @transform_0(%arg0: i32) -> (i32, i32, i32) {
    %c0_i32 = arith.constant 0 : i32
    %c0_i32_0 = arith.constant 0 : i32
    %c0_i32_1 = arith.constant 0 : i32
    return %arg0, %c0_i32, %c0_i32_0 : i32, i32, i32
  }
  func.func @transform_1(%arg0: i32) -> (i32, i32, i32) {
    %c0_i32 = arith.constant 0 : i32
    %c0_i32_0 = arith.constant 0 : i32
    %c0_i32_1 = arith.constant 0 : i32
    %c0_i32_2 = arith.constant 0 : i32
    return %c0_i32, %c0_i32_0, %c0_i32_1 : i32, i32, i32
  }
  func.func @transform_2(%arg0: i32) -> (i32, i32) {
    %c0_i32 = arith.constant 0 : i32
    %c0_i32_0 = arith.constant 0 : i32
    %c0_i32_1 = arith.constant 0 : i32
    return %c0_i32, %c0_i32_0 : i32, i32
  }
  func.func @transform_3(%arg0: i32) -> (i32, i32, i32) {
    %c0_i32 = arith.constant 0 : i32
    %c0_i32_0 = arith.constant 0 : i32
    %c0_i32_1 = arith.constant 0 : i32
    return %arg0, %c0_i32, %c0_i32_0 : i32, i32, i32
  }
}

</mosaic_0001>

<llo_original>
// kernel: multi_periodic_discriminator_forward.12
$region0: #{multi_periodic_discriminator_forward.12}
  #allocation0 [shape = 'u32[]', space=smem, size = 0x4, offset = 0x4, fixed_abs, tag = 'smem constant byte address 0x4 - core index']
  #allocation1 [shape = 'u32[144,128]{1,0:T(1,128)}', space=vmem, size = 0x12000, scoped, tag = 'internal scratch']
  %s0 = inlined_call_operand.vmem [shape: f32[6,3,9,1], index: 0, kind: input, shape index: {}]
  %s1 = inlined_call_operand.vmem [shape: f32[5,1,128], index: 1, kind: input, shape index: {}]
  %s2 = inlined_call_operand.vmem [shape: f32[1,128], index: 2, kind: input, shape index: {}]
  %s3 = inlined_call_operand.vmem [shape: bf16[6,8,128], index: 3, kind: output, shape index: {}]
  %s4 = sld [smem:[#allocation0]]
  $region45: #{multi_periodic_discriminator_forward.12} parent=0
    _
  %s6 = ssub.s32 1, %s4
  %s7 = scalar_select 0, %s6, %s4
  loop: start=0, step=1, limit=4
  $region2: #{multi_periodic_discriminator_forward.12} parent=0 // loop_pre_header
    _
  $region3: #{multi_periodic_discriminator_forward.12} parent=0 // loop_header
    %s9 = sphi 0, %s13
    %p10 = scmp.ge.s32.totalorder %s9, 4
    %s19 = sphi 0, %s21
    %s22 = sphi 0, %s19
    %s23 = sphi 0, %s22
    %s39 = sphi 0, %s23
    %s43 = sphi 0, %s43
    %s45 = sphi 0, %s43
    %s46 = sphi 0, %s45
    %s60 = sphi 0, %s46
    %s64 = sphi 0, %s64
    %s66 = sphi 0, %s64
    %s67 = sphi 0, %s66
    %s81 = sphi 0, %s67
    %s87 = sphi 0, %s89
    %s90 = sphi 0, %s87
    %s91 = sphi 0, %s90
    %s107 = sphi 0, %s91
  $region4: #{multi_periodic_discriminator_forward.12} parent=0 // loop_header_branch
    %12 = sbr.rel (%p10) target = $region8
  $region5: #{multi_periodic_discriminator_forward.12} parent=0 // loop_body
    %s14 = ssub.s32 %s9, 1
    %s15 = ssub.s32 %s9, 2
    %s16 = sadd.s32 %s9, 1
    %s17 = ssub.s32 %s9, %s16
    %p18 = scmp.eq.s32.totalorder %s17, 0
    %s20 = sadd.s32 %s19, 1
    %s21 = scalar_select %p18, %s19, %s20
    %p24 = pneg %p18
    %p25 = scmp.eq.s32.totalorder %s9, 1
    %p26 = por %p24, %p25
    %p27 = scmp.ne.s32.totalorder %s19, %s22
    %p28 = scmp.eq.s32.totalorder %s9, 0
    %p29 = por %p27, %p28
    %p30 = scmp.ne.s32.totalorder %s19, %s22
    %p31 = scmp.eq.s32.totalorder %s14, 1
    %p32 = por %p30, %p31
    %p33 = scmp.ne.s32.totalorder %s22, %s23
    %p34 = scmp.eq.s32.totalorder %s14, 0
    %p35 = por %p33, %p34
    %p36 = scmp.ne.s32.totalorder %s22, %s23
    %p37 = scmp.eq.s32.totalorder %s15, 1
    %p38 = por %p36, %p37
    %p40 = scmp.ne.s32.totalorder %s23, %s39
    %p41 = scmp.eq.s32.totalorder %s15, 0
    %p42 = por %p40, %p41
    %s44 = sadd.s32 %s43, 1
    %p47 = scmp.eq.s32.totalorder %s9, 1
    %p48 = scmp.ne.s32.totalorder %s43, %s45
    %p49 = scmp.eq.s32.totalorder %s9, 0
    %p50 = por %p48, %p49
    %p51 = scmp.ne.s32.totalorder %s43, %s45
    %p52 = scmp.eq.s32.totalorder %s14, 1
    %p53 = por %p51, %p52
    %p54 = scmp.ne.s32.totalorder %s45, %s46
    %p55 = scmp.eq.s32.totalorder %s14, 0
    %p56 = por %p54, %p55
    %p57 = scmp.ne.s32.totalorder %s45, %s46
    %p58 = scmp.eq.s32.totalorder %s15, 1
    %p59 = por %p57, %p58
    %p61 = scmp.ne.s32.totalorder %s46, %s60
    %p62 = scmp.eq.s32.totalorder %s15, 0
    %p63 = por %p61, %p62
    %s65 = sadd.s32 %s64, 1
    %p68 = scmp.eq.s32.totalorder %s9, 1
    %p69 = scmp.ne.s32.totalorder %s64, %s66
    %p70 = scmp.eq.s32.totalorder %s9, 0
    %p71 = por %p69, %p70
    %p72 = scmp.ne.s32.totalorder %s64, %s66
    %p73 = scmp.eq.s32.totalorder %s14, 1
    %p74 = por %p72, %p73
    %p75 = scmp.ne.s32.totalorder %s66, %s67
    %p76 = scmp.eq.s32.totalorder %s14, 0
    %p77 = por %p75, %p76
    %p78 = scmp.ne.s32.totalorder %s66, %s67
    %p79 = scmp.eq.s32.totalorder %s15, 1
    %p80 = por %p78, %p79
    %p82 = scmp.ne.s32.totalorder %s67, %s81
    %p83 = scmp.eq.s32.totalorder %s15, 0
    %p84 = por %p82, %p83
    %s85 = ssub.s32 %s9, %s16
    %p86 = scmp.eq.s32.totalorder %s85, 0
    %s88 = sadd.s32 %s87, 1
    %s89 = scalar_select %p86, %s87, %s88
    %p92 = pneg %p86
    %p93 = scmp.eq.s32.totalorder %s9, 1
    %p94 = por %p92, %p93
    %p95 = scmp.ne.s32.totalorder %s87, %s90
    %p96 = scmp.eq.s32.totalorder %s9, 0
    %p97 = por %p95, %p96
    %p98 = scmp.ne.s32.totalorder %s87, %s90
    %p99 = scmp.eq.s32.totalorder %s14, 1
    %p100 = por %p98, %p99
    %p101 = scmp.ne.s32.totalorder %s90, %s91
    %p102 = scmp.eq.s32.totalorder %s14, 0
    %p103 = por %p101, %p102
    %p104 = scmp.ne.s32.totalorder %s90, %s91
    %p105 = scmp.eq.s32.totalorder %s15, 1
    %p106 = por %p104, %p105
    %p108 = scmp.ne.s32.totalorder %s91, %s107
    %p109 = scmp.eq.s32.totalorder %s15, 0
    %p110 = por %p108, %p109
    %p111 = scmp.le.s32.totalorder 1, %s9
    %p112 = scmp.lt.s32.totalorder %s9, 3
    %p113 = pnand %p111, %p112
    %p114 = pneg %p113
    // Predicated region
    $region9: #{multi_periodic_discriminator_forward.12} parent=5 // pred_check
      _
    $region10: #{multi_periodic_discriminator_forward.12} parent=5 // pred_check_branch
      %116 = sbr.rel (%p113) target = $region12
    $region11: #{multi_periodic_discriminator_forward.12} parent=5 // pred_region
      %s117 = ssub.s32 %s9, 1
      // Predicated region
      $region13: #{multi_periodic_discriminator_forward.12} parent=11 // pred_check
        %p118 = pneg %p56
      $region14: #{multi_periodic_discriminator_forward.12} parent=11 // pred_check_branch
        %120 = sbr.rel (%p118) target = $region16
      $region15: #{multi_periodic_discriminator_forward.12} parent=11 // pred_region
        _
      $region16: #{multi_periodic_discriminator_forward.12} parent=11 // pred_fallthru
        _
      // Predicated region
      $region17: #{multi_periodic_discriminator_forward.12} parent=11 // pred_check
        %p121 = pneg %p77
      $region18: #{multi_periodic_discriminator_forward.12} parent=11 // pred_check_branch
        %123 = sbr.rel (%p121) target = $region20
      $region19: #{multi_periodic_discriminator_forward.12} parent=11 // pred_region
        _
      $region20: #{multi_periodic_discriminator_forward.12} parent=11 // pred_fallthru
        _
    $region12: #{multi_periodic_discriminator_forward.12} parent=5 // pred_fallthru
      _
    %p124 = scmp.lt.s32.totalorder %s9, 2
    // Predicated region
    $region21: #{multi_periodic_discriminator_forward.12} parent=5 // pred_check
      %p125 = pneg %p124
    $region22: #{multi_periodic_discriminator_forward.12} parent=5 // pred_check_branch
      %127 = sbr.rel (%p125) target = $region24
    $region23: #{multi_periodic_discriminator_forward.12} parent=5 // pred_region
      // Predicated region
      $region25: #{multi_periodic_discriminator_forward.12} parent=23 // pred_check
        %p128 = pneg %p29
      $region26: #{multi_periodic_discriminator_forward.12} parent=23 // pred_check_branch
        %130 = sbr.rel (%p128) target = $region28
      $region27: #{multi_periodic_discriminator_forward.12} parent=23 // pred_region
        %s131 = smul.u32 3, %s9
        %p132 = scmp.lt.s32.totalorder %s131, 5
        %s133 = scalar_select %p132, %s131, 5
        %s134 = smul.addr %s133, 6
        %s135 = smul.addr %s134, 8
        %s136 = scalar_lea.vmem %s0, %s135
        %s137 = smul.u32 3, %s9
      $region28: #{multi_periodic_discriminator_forward.12} parent=23 // pred_fallthru
        _
    $region24: #{multi_periodic_discriminator_forward.12} parent=5 // pred_fallthru
      _
    %p138 = scmp.le.s32.totalorder 1, %s9
    %p139 = scmp.lt.s32.totalorder %s9, 3
    %p140 = pnand %p138, %p139
    %p141 = pneg %p140
    // Predicated region
    $region29: #{multi_periodic_discriminator_forward.12} parent=5 // pred_check
      _
    $region30: #{multi_periodic_discriminator_forward.12} parent=5 // pred_check_branch
      %143 = sbr.rel (%p140) target = $region32
    $region31: #{multi_periodic_discriminator_forward.12} parent=5 // pred_region
      %s144 = ssub.s32 %s9, 1
      %s145 = smul.u32 3, %s14
      %p146 = scmp.lt.s32.totalorder %s145, 5
      %s147 = scalar_select %p146, %s145, 5
      %s148 = smul.addr %s147, 6
      %s149 = smul.addr %s148, 8
      %s150 = scalar_lea.vmem %s0, %s149
      %p151 = pneg %p35
      %p152 = pneg %p32
      %p153 = pneg %p56
      %p154 = pneg %p53
      %p155 = pneg %p77
      %p156 = pneg %p74
      %p157 = pneg %p103
      %p158 = pneg %p100
      %s159 = smul.u32 3, %s14
      %p160 = scmp.lt.s32.totalorder %s159, 5
      %s161 = scalar_select %p160, %s159, 5
      %s162 = smul.addr %s161, 4
      %s163 = scalar_lea.vmem %s3, %s162
      %s164 = smul.u32 3, %s14
      %p165 = scmp.lt.s32.totalorder %s164, 5
      %s166 = scalar_select %p165, %s164, 5
      %s167 = smul.addr %s166, 6
      %s168 = smul.addr %s167, 8
      %s169 = scalar_lea.vmem %s0, %s168
      %s170 = smul.u32 3, %s14
      %s171 = smul.u32 3, %s14
      %p172 = scmp.lt.s32.totalorder %s171, 5
      %s173 = scalar_select %p172, %s171, 5
      %s174 = smul.addr %s173, 4
      %s175 = scalar_lea.vmem %s3, %s174
      %s176 = smul.u32 3, %s14
      %v177 = vld [vmem:[%s2] sm:$0x1]
      %v178 = vld [vmem:[%s169] sm:$0xff]
      %v179 = vld [vmem:[%s1] sm:$0x1]
      %181 = vset.pattern.permute.xlu0 0
      %182 = vperm.xlu0 %181, %v178
      %v183 = vpop.permute.xlu0 %182
      %v186 = vlaneseq
      %v187 = vshrl.u32 %v186, 7
      %v188 = vsub.s32 0, %v187
      %v189 = vrot.slane %v179, %v188
      %v191 = vmul.f32 %v183, %v189
      %v192 = vadd.f32 %v191, 0.0
      %s193 = scalar_lea.vmem %s169, 16
      %v194 = vld [vmem:[%s193] sm:$0xff]
      %s195 = scalar_lea.vmem %s1, 1
      %v196 = vld [vmem:[%s195] sm:$0x1]
      %198 = vset.pattern.permute.xlu0 0
      %199 = vperm.xlu0 %198, %v194
      %v200 = vpop.permute.xlu0 %199
      %v203 = vlaneseq
      %v204 = vshrl.u32 %v203, 7
      %v205 = vsub.s32 0, %v204
      %v206 = vrot.slane %v196, %v205
      %v208 = vmul.f32 %v200, %v206
      %v209 = vadd.f32 %v192, %v208
      %s210 = scalar_lea.vmem %s169, 32
      %v211 = vld [vmem:[%s210] sm:$0xff]
      %s212 = scalar_lea.vmem %s1, 2
      %v213 = vld [vmem:[%s212] sm:$0x1]
      %215 = vset.pattern.permute.xlu0 0
      %216 = vperm.xlu0 %215, %v211
      %v217 = vpop.permute.xlu0 %216
      %v220 = vlaneseq
      %v221 = vshrl.u32 %v220, 7
      %v222 = vsub.s32 0, %v221
      %v223 = vrot.slane %v213, %v222
      %v225 = vmul.f32 %v217, %v223
      %v226 = vadd.f32 %v209, %v225
      %v227 = vld [vmem:[%s169 + $0x1] sm:$0xff]
      %s228 = scalar_lea.vmem %s1, 3
      %v229 = vld [vmem:[%s228] sm:$0x1]
      %231 = vset.pattern.permute.xlu0 0
      %232 = vperm.xlu0 %231, %v227
      %v233 = vpop.permute.xlu0 %232
      %v236 = vlaneseq
      %v237 = vshrl.u32 %v236, 7
      %v238 = vsub.s32 0, %v237
      %v239 = vrot.slane %v229, %v238
      %v241 = vmul.f32 %v233, %v239
      %v242 = vadd.f32 %v226, %v241
      %v243 = vld [vmem:[%s193 + $0x1] sm:$0xff]
      %s244 = scalar_lea.vmem %s1, 4
      %v245 = vld [vmem:[%s244] sm:$0x1]
      %247 = vset.pattern.permute.xlu0 0
      %248 = vperm.xlu0 %247, %v243
      %v249 = vpop.permute.xlu0 %248
      %v252 = vlaneseq
      %v253 = vshrl.u32 %v252, 7
      %v254 = vsub.s32 0, %v253
      %v255 = vrot.slane %v245, %v254
      %v257 = vmul.f32 %v249, %v255
      %v258 = vadd.f32 %v242, %v257
      %v260 = vlaneseq
      %v261 = vshrl.u32 %v260, 7
      %v262 = vsub.s32 0, %v261
      %v263 = vrot.slane %v177, %v262
      %v265 = vadd.f32 %v258, %v263
      %v266 = vmul.f32 %v265, 0.1
      %v267 = vmax.f32 %v265, %v266
      %v268 = vpack.c.bf16 %v267, %v267
      %269 = vst [vmem:[%s175] sm:$0xf] %v268
      %s270 = scalar_lea.vmem %s169, 48
      %v271 = vld [vmem:[%s270] sm:$0xff]
      %v272 = vld [vmem:[%s1] sm:$0x1]
      %274 = vset.pattern.permute.xlu0 0
      %275 = vperm.xlu0 %274, %v271
      %v276 = vpop.permute.xlu0 %275
      %v279 = vlaneseq
      %v280 = vshrl.u32 %v279, 7
      %v281 = vsub.s32 0, %v280
      %v282 = vrot.slane %v272, %v281
      %v284 = vmul.f32 %v276, %v282
      %v285 = vadd.f32 %v284, 0.0
      %s286 = scalar_lea.vmem %s169, 64
      %v287 = vld [vmem:[%s286] sm:$0xff]
      %v288 = vld [vmem:[%s195] sm:$0x1]
      %290 = vset.pattern.permute.xlu0 0
      %291 = vperm.xlu0 %290, %v287
      %v292 = vpop.permute.xlu0 %291
      %v295 = vlaneseq
      %v296 = vshrl.u32 %v295, 7
      %v297 = vsub.s32 0, %v296
      %v298 = vrot.slane %v288, %v297
      %v300 = vmul.f32 %v292, %v298
      %v301 = vadd.f32 %v285, %v300
      %s302 = scalar_lea.vmem %s169, 80
      %v303 = vld [vmem:[%s302] sm:$0xff]
      %v304 = vld [vmem:[%s212] sm:$0x1]
      %306 = vset.pattern.permute.xlu0 0
      %307 = vperm.xlu0 %306, %v303
      %v308 = vpop.permute.xlu0 %307
      %v311 = vlaneseq
      %v312 = vshrl.u32 %v311, 7
      %v313 = vsub.s32 0, %v312
      %v314 = vrot.slane %v304, %v313
      %v316 = vmul.f32 %v308, %v314
      %v317 = vadd.f32 %v301, %v316
      %v318 = vld [vmem:[%s270 + $0x1] sm:$0xff]
      %v319 = vld [vmem:[%s228] sm:$0x1]
      %321 = vset.pattern.permute.xlu0 0
      %322 = vperm.xlu0 %321, %v318
      %v323 = vpop.permute.xlu0 %322
      %v326 = vlaneseq
      %v327 = vshrl.u32 %v326, 7
      %v328 = vsub.s32 0, %v327
      %v329 = vrot.slane %v319, %v328
      %v331 = vmul.f32 %v323, %v329
      %v332 = vadd.f32 %v317, %v331
      %v333 = vld [vmem:[%s286 + $0x1] sm:$0xff]
      %v334 = vld [vmem:[%s244] sm:$0x1]
      %336 = vset.pattern.permute.xlu0 0
      %337 = vperm.xlu0 %336, %v333
      %v338 = vpop.permute.xlu0 %337
      %v341 = vlaneseq
      %v342 = vshrl.u32 %v341, 7
      %v343 = vsub.s32 0, %v342
      %v344 = vrot.slane %v334, %v343
      %v346 = vmul.f32 %v338, %v344
      %v347 = vadd.f32 %v332, %v346
      %v348 = vadd.f32 %v347, %v263
      %v349 = vmul.f32 %v348, 0.1
      %v350 = vmax.f32 %v348, %v349
      %v351 = vpack.c.bf16 %v350, %v350
      %s352 = scalar_lea.vmem %s175, 4
      %353 = vst [vmem:[%s352] sm:$0xf] %v351
      %s354 = scalar_lea.vmem %s169, 96
      %v355 = vld [vmem:[%s354] sm:$0xff]
      %v356 = vld [vmem:[%s1] sm:$0x1]
      %358 = vset.pattern.permute.xlu0 0
      %359 = vperm.xlu0 %358, %v355
      %v360 = vpop.permute.xlu0 %359
      %v363 = vlaneseq
      %v364 = vshrl.u32 %v363, 7
      %v365 = vsub.s32 0, %v364
      %v366 = vrot.slane %v356, %v365
      %v368 = vmul.f32 %v360, %v366
      %v369 = vadd.f32 %v368, 0.0
      %s370 = scalar_lea.vmem %s169, 112
      %v371 = vld [vmem:[%s370] sm:$0xff]
      %v372 = vld [vmem:[%s195] sm:$0x1]
      %374 = vset.pattern.permute.xlu0 0
      %375 = vperm.xlu0 %374, %v371
      %v376 = vpop.permute.xlu0 %375
      %v379 = vlaneseq
      %v380 = vshrl.u32 %v379, 7
      %v381 = vsub.s32 0, %v380
      %v382 = vrot.slane %v372, %v381
      %v384 = vmul.f32 %v376, %v382
      %v385 = vadd.f32 %v369, %v384
      %s386 = scalar_lea.vmem %s169, 128
      %v387 = vld [vmem:[%s386] sm:$0xff]
      %v388 = vld [vmem:[%s212] sm:$0x1]
      %390 = vset.pattern.permute.xlu0 0
      %391 = vperm.xlu0 %390, %v387
      %v392 = vpop.permute.xlu0 %391
      %v395 = vlaneseq
      %v396 = vshrl.u32 %v395, 7
      %v397 = vsub.s32 0, %v396
      %v398 = vrot.slane %v388, %v397
      %v400 = vmul.f32 %v392, %v398
      %v401 = vadd.f32 %v385, %v400
      %v402 = vld [vmem:[%s354 + $0x1] sm:$0xff]
      %v403 = vld [vmem:[%s228] sm:$0x1]
      %405 = vset.pattern.permute.xlu0 0
      %406 = vperm.xlu0 %405, %v402
      %v407 = vpop.permute.xlu0 %406
      %v410 = vlaneseq
      %v411 = vshrl.u32 %v410, 7
      %v412 = vsub.s32 0, %v411
      %v413 = vrot.slane %v403, %v412
      %v415 = vmul.f32 %v407, %v413
      %v416 = vadd.f32 %v401, %v415
      %v417 = vld [vmem:[%s370 + $0x1] sm:$0xff]
      %v418 = vld [vmem:[%s244] sm:$0x1]
      %420 = vset.pattern.permute.xlu0 0
      %421 = vperm.xlu0 %420, %v417
      %v422 = vpop.permute.xlu0 %421
      %v425 = vlaneseq
      %v426 = vshrl.u32 %v425, 7
      %v427 = vsub.s32 0, %v426
      %v428 = vrot.slane %v418, %v427
      %v430 = vmul.f32 %v422, %v428
      %v431 = vadd.f32 %v416, %v430
      %v432 = vadd.f32 %v431, %v263
      %v433 = vmul.f32 %v432, 0.1
      %v434 = vmax.f32 %v432, %v433
      %v435 = vpack.c.bf16 %v434, %v434
      %s436 = scalar_lea.vmem %s175, 8
      %437 = vst [vmem:[%s436] sm:$0xf] %v435
      %s438 = smul.u32 3, %s14
      %p439 = scmp.lt.s32.totalorder %s438, 5
      %s440 = scalar_select %p439, %s438, 5
      %s441 = smul.addr %s440, 4
      %s442 = scalar_lea.vmem %s3, %s441
      // Predicated region
      $region33: #{multi_periodic_discriminator_forward.12} parent=31 // pred_check
        %p443 = pneg %p100
      $region34: #{multi_periodic_discriminator_forward.12} parent=31 // pred_check_branch
        %445 = sbr.rel (%p443) target = $region36
      $region35: #{multi_periodic_discriminator_forward.12} parent=31 // pred_region
        %s446 = smul.u32 3, %s14
      $region36: #{multi_periodic_discriminator_forward.12} parent=31 // pred_fallthru
        _
    $region32: #{multi_periodic_discriminator_forward.12} parent=5 // pred_fallthru
      _
    %p447 = scmp.le.s32.totalorder 2, %s9
    // Predicated region
    $region37: #{multi_periodic_discriminator_forward.12} parent=5 // pred_check
      %p448 = pneg %p447
    $region38: #{multi_periodic_discriminator_forward.12} parent=5 // pred_check_branch
      %450 = sbr.rel (%p448) target = $region40
    $region39: #{multi_periodic_discriminator_forward.12} parent=5 // pred_region
      %s451 = ssub.s32 %s9, 2
      // Predicated region
      $region41: #{multi_periodic_discriminator_forward.12} parent=39 // pred_check
        %p452 = pneg %p106
      $region42: #{multi_periodic_discriminator_forward.12} parent=39 // pred_check_branch
        %454 = sbr.rel (%p452) target = $region44
      $region43: #{multi_periodic_discriminator_forward.12} parent=39 // pred_region
        %s455 = smul.u32 3, %s15
        %p456 = scmp.lt.s32.totalorder %s455, 5
        %s457 = scalar_select %p456, %s455, 5
        %s458 = smul.addr %s457, 4
        %s459 = scalar_lea.vmem %s3, %s458
      $region44: #{multi_periodic_discriminator_forward.12} parent=39 // pred_fallthru
        _
    $region40: #{multi_periodic_discriminator_forward.12} parent=5 // pred_fallthru
      _
  $region6: #{multi_periodic_discriminator_forward.12} parent=0 // loop_footer
    %s13 = sadd.s32 1, %s9
  $region7: #{multi_periodic_discriminator_forward.12} parent=0 // loop_footer_branch
    %8 = sbr.rel target = $region3
  $region8: #{multi_periodic_discriminator_forward.12} parent=0 // loop_exit
    _

// kernel: multi_periodic_discriminator_forward.15
$region0: #{multi_periodic_discriminator_forward.15}
  #allocation0 [shape = 'u32[]', space=smem, size = 0x4, offset = 0x4, fixed_abs, tag = 'smem constant byte address 0x4 - core index']
  #allocation1 [shape = 'u32[144,128]{1,0:T(1,128)}', space=vmem, size = 0x12000, scoped, tag = 'internal scratch']
  %s0 = inlined_call_operand.vmem [shape: bf16[6,3,128], index: 0, kind: input, shape index: {}]
  %s1 = inlined_call_operand.vmem [shape: bf16[3,128,128], index: 1, kind: input, shape index: {}]
  %s2 = inlined_call_operand.vmem [shape: f32[1,128], index: 2, kind: input, shape index: {}]
  %s3 = inlined_call_operand.vmem [shape: f32[6,1,128], index: 3, kind: output, shape index: {}]
  %s4 = sld [smem:[#allocation0]]
  $region45: #{multi_periodic_discriminator_forward.15} parent=0
    _
  %s6 = ssub.s32 1, %s4
  %s7 = scalar_select 0, %s6, %s4
  loop: start=0, step=1, limit=4
  $region2: #{multi_periodic_discriminator_forward.15} parent=0 // loop_pre_header
    _
  $region3: #{multi_periodic_discriminator_forward.15} parent=0 // loop_header
    %s9 = sphi 0, %s13
    %p10 = scmp.ge.s32.totalorder %s9, 4
    %s19 = sphi 0, %s21
    %s22 = sphi 0, %s19
    %s23 = sphi 0, %s22
    %s39 = sphi 0, %s23
    %s43 = sphi 0, %s43
    %s45 = sphi 0, %s43
    %s46 = sphi 0, %s45
    %s60 = sphi 0, %s46
    %s64 = sphi 0, %s64
    %s66 = sphi 0, %s64
    %s67 = sphi 0, %s66
    %s81 = sphi 0, %s67
    %s87 = sphi 0, %s89
    %s90 = sphi 0, %s87
    %s91 = sphi 0, %s90
    %s107 = sphi 0, %s91
  $region4: #{multi_periodic_discriminator_forward.15} parent=0 // loop_header_branch
    %12 = sbr.rel (%p10) target = $region8
  $region5: #{multi_periodic_discriminator_forward.15} parent=0 // loop_body
    %s14 = ssub.s32 %s9, 1
    %s15 = ssub.s32 %s9, 2
    %s16 = sadd.s32 %s9, 1
    %s17 = ssub.s32 %s9, %s16
    %p18 = scmp.eq.s32.totalorder %s17, 0
    %s20 = sadd.s32 %s19, 1
    %s21 = scalar_select %p18, %s19, %s20
    %p24 = pneg %p18
    %p25 = scmp.eq.s32.totalorder %s9, 1
    %p26 = por %p24, %p25
    %p27 = scmp.ne.s32.totalorder %s19, %s22
    %p28 = scmp.eq.s32.totalorder %s9, 0
    %p29 = por %p27, %p28
    %p30 = scmp.ne.s32.totalorder %s19, %s22
    %p31 = scmp.eq.s32.totalorder %s14, 1
    %p32 = por %p30, %p31
    %p33 = scmp.ne.s32.totalorder %s22, %s23
    %p34 = scmp.eq.s32.totalorder %s14, 0
    %p35 = por %p33, %p34
    %p36 = scmp.ne.s32.totalorder %s22, %s23
    %p37 = scmp.eq.s32.totalorder %s15, 1
    %p38 = por %p36, %p37
    %p40 = scmp.ne.s32.totalorder %s23, %s39
    %p41 = scmp.eq.s32.totalorder %s15, 0
    %p42 = por %p40, %p41
    %s44 = sadd.s32 %s43, 1
    %p47 = scmp.eq.s32.totalorder %s9, 1
    %p48 = scmp.ne.s32.totalorder %s43, %s45
    %p49 = scmp.eq.s32.totalorder %s9, 0
    %p50 = por %p48, %p49
    %p51 = scmp.ne.s32.totalorder %s43, %s45
    %p52 = scmp.eq.s32.totalorder %s14, 1
    %p53 = por %p51, %p52
    %p54 = scmp.ne.s32.totalorder %s45, %s46
    %p55 = scmp.eq.s32.totalorder %s14, 0
    %p56 = por %p54, %p55
    %p57 = scmp.ne.s32.totalorder %s45, %s46
    %p58 = scmp.eq.s32.totalorder %s15, 1
    %p59 = por %p57, %p58
    %p61 = scmp.ne.s32.totalorder %s46, %s60
    %p62 = scmp.eq.s32.totalorder %s15, 0
    %p63 = por %p61, %p62
    %s65 = sadd.s32 %s64, 1
    %p68 = scmp.eq.s32.totalorder %s9, 1
    %p69 = scmp.ne.s32.totalorder %s64, %s66
    %p70 = scmp.eq.s32.totalorder %s9, 0
    %p71 = por %p69, %p70
    %p72 = scmp.ne.s32.totalorder %s64, %s66
    %p73 = scmp.eq.s32.totalorder %s14, 1
    %p74 = por %p72, %p73
    %p75 = scmp.ne.s32.totalorder %s66, %s67
    %p76 = scmp.eq.s32.totalorder %s14, 0
    %p77 = por %p75, %p76
    %p78 = scmp.ne.s32.totalorder %s66, %s67
    %p79 = scmp.eq.s32.totalorder %s15, 1
    %p80 = por %p78, %p79
    %p82 = scmp.ne.s32.totalorder %s67, %s81
    %p83 = scmp.eq.s32.totalorder %s15, 0
    %p84 = por %p82, %p83
    %s85 = ssub.s32 %s9, %s16
    %p86 = scmp.eq.s32.totalorder %s85, 0
    %s88 = sadd.s32 %s87, 1
    %s89 = scalar_select %p86, %s87, %s88
    %p92 = pneg %p86
    %p93 = scmp.eq.s32.totalorder %s9, 1
    %p94 = por %p92, %p93
    %p95 = scmp.ne.s32.totalorder %s87, %s90
    %p96 = scmp.eq.s32.totalorder %s9, 0
    %p97 = por %p95, %p96
    %p98 = scmp.ne.s32.totalorder %s87, %s90
    %p99 = scmp.eq.s32.totalorder %s14, 1
    %p100 = por %p98, %p99
    %p101 = scmp.ne.s32.totalorder %s90, %s91
    %p102 = scmp.eq.s32.totalorder %s14, 0
    %p103 = por %p101, %p102
    %p104 = scmp.ne.s32.totalorder %s90, %s91
    %p105 = scmp.eq.s32.totalorder %s15, 1
    %p106 = por %p104, %p105
    %p108 = scmp.ne.s32.totalorder %s91, %s107
    %p109 = scmp.eq.s32.totalorder %s15, 0
    %p110 = por %p108, %p109
    %p111 = scmp.le.s32.totalorder 1, %s9
    %p112 = scmp.lt.s32.totalorder %s9, 3
    %p113 = pnand %p111, %p112
    %p114 = pneg %p113
    // Predicated region
    $region9: #{multi_periodic_discriminator_forward.15} parent=5 // pred_check
      _
    $region10: #{multi_periodic_discriminator_forward.15} parent=5 // pred_check_branch
      %116 = sbr.rel (%p113) target = $region12
    $region11: #{multi_periodic_discriminator_forward.15} parent=5 // pred_region
      %s117 = ssub.s32 %s9, 1
      // Predicated region
      $region13: #{multi_periodic_discriminator_forward.15} parent=11 // pred_check
        %p118 = pneg %p56
      $region14: #{multi_periodic_discriminator_forward.15} parent=11 // pred_check_branch
        %120 = sbr.rel (%p118) target = $region16
      $region15: #{multi_periodic_discriminator_forward.15} parent=11 // pred_region
        _
      $region16: #{multi_periodic_discriminator_forward.15} parent=11 // pred_fallthru
        _
      // Predicated region
      $region17: #{multi_periodic_discriminator_forward.15} parent=11 // pred_check
        %p121 = pneg %p77
      $region18: #{multi_periodic_discriminator_forward.15} parent=11 // pred_check_branch
        %123 = sbr.rel (%p121) target = $region20
      $region19: #{multi_periodic_discriminator_forward.15} parent=11 // pred_region
        _
      $region20: #{multi_periodic_discriminator_forward.15} parent=11 // pred_fallthru
        _
    $region12: #{multi_periodic_discriminator_forward.15} parent=5 // pred_fallthru
      _
    %p124 = scmp.lt.s32.totalorder %s9, 2
    // Predicated region
    $region21: #{multi_periodic_discriminator_forward.15} parent=5 // pred_check
      %p125 = pneg %p124
    $region22: #{multi_periodic_discriminator_forward.15} parent=5 // pred_check_branch
      %127 = sbr.rel (%p125) target = $region24
    $region23: #{multi_periodic_discriminator_forward.15} parent=5 // pred_region
      // Predicated region
      $region25: #{multi_periodic_discriminator_forward.15} parent=23 // pred_check
        %p128 = pneg %p29
      $region26: #{multi_periodic_discriminator_forward.15} parent=23 // pred_check_branch
        %130 = sbr.rel (%p128) target = $region28
      $region27: #{multi_periodic_discriminator_forward.15} parent=23 // pred_region
        %s131 = smul.u32 3, %s9
        %p132 = scmp.lt.s32.totalorder %s131, 5
        %s133 = scalar_select %p132, %s131, 5
        %s134 = smul.addr %s133, 2
        %s135 = scalar_lea.vmem %s0, %s134
        %s136 = smul.u32 3, %s9
      $region28: #{multi_periodic_discriminator_forward.15} parent=23 // pred_fallthru
        _
    $region24: #{multi_periodic_discriminator_forward.15} parent=5 // pred_fallthru
      _
    %p137 = scmp.le.s32.totalorder 1, %s9
    %p138 = scmp.lt.s32.totalorder %s9, 3
    %p139 = pnand %p137, %p138
    %p140 = pneg %p139
    // Predicated region
    $region29: #{multi_periodic_discriminator_forward.15} parent=5 // pred_check
      _
    $region30: #{multi_periodic_discriminator_forward.15} parent=5 // pred_check_branch
      %142 = sbr.rel (%p139) target = $region32
    $region31: #{multi_periodic_discriminator_forward.15} parent=5 // pred_region
      %s143 = ssub.s32 %s9, 1
      %s144 = smul.u32 3, %s14
      %p145 = scmp.lt.s32.totalorder %s144, 5
      %s146 = scalar_select %p145, %s144, 5
      %s147 = smul.addr %s146, 2
      %s148 = scalar_lea.vmem %s0, %s147
      %p149 = pneg %p35
      %p150 = pneg %p32
      %p151 = pneg %p56
      %p152 = pneg %p53
      %p153 = pneg %p77
      %p154 = pneg %p74
      %p155 = pneg %p103
      %p156 = pneg %p100
      %s157 = smul.u32 3, %s14
      %p158 = scmp.lt.s32.totalorder %s157, 5
      %s159 = scalar_select %p158, %s157, 5
      %s160 = scalar_lea.vmem %s3, %s159
      %s161 = smul.u32 3, %s14
      %p162 = scmp.lt.s32.totalorder %s161, 5
      %s163 = scalar_select %p162, %s161, 5
      %s164 = smul.addr %s163, 2
      %s165 = scalar_lea.vmem %s0, %s164
      %s166 = smul.u32 3, %s14
      %s167 = smul.u32 3, %s14
      %p168 = scmp.lt.s32.totalorder %s167, 5
      %s169 = scalar_select %p168, %s167, 5
      %s170 = scalar_lea.vmem %s3, %s169
      %s171 = smul.u32 3, %s14
      %v173 = vld [vmem:[%s2] sm:$0x1]
      %v174 = vld [vmem:[%s165] sm:$0x1]
      %v175 = vld [vmem:[%s1] sm:$0xf]
      %v176 = vld [vmem:[%s1 + $0x4] sm:$0xf]
      %v177 = vld [vmem:[%s1 + $0x8] sm:$0xf]
      %v178 = vld [vmem:[%s1 + $0xc] sm:$0xf]
      %v179 = vld [vmem:[%s1 + $0x10] sm:$0xf]
      %v180 = vld [vmem:[%s1 + $0x14] sm:$0xf]
      %v181 = vld [vmem:[%s1 + $0x18] sm:$0xf]
      %v182 = vld [vmem:[%s1 + $0x1c] sm:$0xf]
      %v183 = vld [vmem:[%s1 + $0x20] sm:$0xf]
      %v184 = vld [vmem:[%s1 + $0x24] sm:$0xf]
      %v185 = vld [vmem:[%s1 + $0x28] sm:$0xf]
      %v186 = vld [vmem:[%s1 + $0x2c] sm:$0xf]
      %v187 = vld [vmem:[%s1 + $0x30] sm:$0xf]
      %v188 = vld [vmem:[%s1 + $0x34] sm:$0xf]
      %v189 = vld [vmem:[%s1 + $0x38] sm:$0xf]
      %v190 = vld [vmem:[%s1 + $0x3c] sm:$0xf]
      %s191 = scalar_lea.vmem %s1, 64
      %v192 = vld [vmem:[%s191] sm:$0xf]
      %v193 = vld [vmem:[%s191 + $0x4] sm:$0xf]
      %v194 = vld [vmem:[%s191 + $0x8] sm:$0xf]
      %v195 = vld [vmem:[%s191 + $0xc] sm:$0xf]
      %v196 = vld [vmem:[%s191 + $0x10] sm:$0xf]
      %v197 = vld [vmem:[%s191 + $0x14] sm:$0xf]
      %v198 = vld [vmem:[%s191 + $0x18] sm:$0xf]
      %v199 = vld [vmem:[%s191 + $0x1c] sm:$0xf]
      %v200 = vld [vmem:[%s191 + $0x20] sm:$0xf]
      %v201 = vld [vmem:[%s191 + $0x24] sm:$0xf]
      %v202 = vld [vmem:[%s191 + $0x28] sm:$0xf]
      %v203 = vld [vmem:[%s191 + $0x2c] sm:$0xf]
      %v204 = vld [vmem:[%s191 + $0x30] sm:$0xf]
      %v205 = vld [vmem:[%s191 + $0x34] sm:$0xf]
      %v206 = vld [vmem:[%s191 + $0x38] sm:$0xf]
      %v207 = vld [vmem:[%s191 + $0x3c] sm:$0xf]
      %v210 = vunpack.c.l.s4 1983009808
      %v211 = vunpack.c.0.s8 %v210
      %v212 = vlaneseq
      %v213 = vshrl.u32 %v212, 7
      %v214 = vsub.s32 %v211, %v213
      %v215 = vrot.slane %v174, %v214
      %v217 = vshrl.u32 %v215, 16
      %v236 = vunpack.c.l.b16 %v192
      %v237 = vunpack.c.l.b16 %v193
      %v238 = vunpack.c.l.b16 %v194
      %v239 = vunpack.c.l.b16 %v195
      %v240 = vunpack.c.l.b16 %v196
      %v241 = vunpack.c.l.b16 %v197
      %v242 = vunpack.c.l.b16 %v198
      %v243 = vunpack.c.l.b16 %v199
      %v244 = vunpack.c.l.b16 %v200
      %v245 = vunpack.c.l.b16 %v201
      %v246 = vunpack.c.l.b16 %v202
      %v247 = vunpack.c.l.b16 %v203
      %v248 = vunpack.c.l.b16 %v204
      %v249 = vunpack.c.l.b16 %v205
      %v250 = vunpack.c.l.b16 %v206
      %v251 = vunpack.c.l.b16 %v207
      %v252 = vpack.c.b16 %v237, %v236
      %v253 = vpack.c.b16 %v239, %v238
      %v254 = vpack.c.b16 %v241, %v240
      %v255 = vpack.c.b16 %v243, %v242
      %v256 = vpack.c.b16 %v245, %v244
      %v257 = vpack.c.b16 %v247, %v246
      %v258 = vpack.c.b16 %v249, %v248
      %v259 = vpack.c.b16 %v251, %v250
      %268 = vmatprep.subr.bf16.mxu0 0
      %269 = vmatpush1.bf16.msra.mxu0 %v259
      %270 = vmatprep.subr.bf16.mxu0 0
      %271 = vmatpush1.bf16.msra.mxu0 %v258
      %272 = vmatprep.subr.bf16.mxu0 0
      %273 = vmatpush1.bf16.msra.mxu0 %v257
      %274 = vmatprep.subr.bf16.mxu0 0
      %275 = vmatpush1.bf16.msra.mxu0 %v256
      %276 = vmatprep.subr.bf16.mxu0 0
      %277 = vmatpush1.bf16.msra.mxu0 %v255
      %278 = vmatprep.subr.bf16.mxu0 0
      %279 = vmatpush1.bf16.msra.mxu0 %v254
      %280 = vmatprep.subr.bf16.mxu0 0
      %281 = vmatpush1.bf16.msra.mxu0 %v253
      %282 = vmatprep.subr.bf16.mxu0 0
      %283 = vmatpush1.bf16.msra.mxu0 %v252
      %284 = vmatprep.subr.bf16.mxu0 0
      %285 = vmatpush2.bf16.msra.mxu0 0
      %286 = vmatprep.subr.bf16.mxu0 0
      %287 = vmatpush2.bf16.msra.mxu0 0
      %288 = vmatprep.subr.bf16.mxu0 0
      %289 = vmatpush2.bf16.msra.mxu0 0
      %290 = vmatprep.subr.bf16.mxu0 0
      %291 = vmatpush2.bf16.msra.mxu0 0
      %292 = vmatprep.subr.bf16.mxu0 0
      %293 = vmatpush2.bf16.msra.mxu0 0
      %294 = vmatprep.subr.bf16.mxu0 0
      %295 = vmatpush2.bf16.msra.mxu0 0
      %296 = vmatprep.subr.bf16.mxu0 0
      %297 = vmatpush2.bf16.msra.mxu0 0
      %298 = vmatprep.subr.bf16.mxu0 0
      %299 = vmatpush2.bf16.msra.mxu0 0
      %300 = vmatprep.mubr.bf16.mxu0 0
      %301 = vmatmul.mubr.bf16.gmra.mxu0 %v217
      %v302 = vpop.f32.mrf.mxu0
      %v303 = vadd.f32 0.0, %v302
      %v304 = vpop.f32.mrf.mxu0
      %v305 = vpop.f32.mrf.mxu0
      %v306 = vpop.f32.mrf.mxu0
      %307 = vdwg.mxu0
      %v324 = vunpack.c.l.b16 %v175
      %v325 = vunpack.c.l.b16 %v176
      %v326 = vunpack.c.l.b16 %v177
      %v327 = vunpack.c.l.b16 %v178
      %v328 = vunpack.c.l.b16 %v179
      %v329 = vunpack.c.l.b16 %v180
      %v330 = vunpack.c.l.b16 %v181
      %v331 = vunpack.c.l.b16 %v182
      %v332 = vunpack.c.l.b16 %v183
      %v333 = vunpack.c.l.b16 %v184
      %v334 = vunpack.c.l.b16 %v185
      %v335 = vunpack.c.l.b16 %v186
      %v336 = vunpack.c.l.b16 %v187
      %v337 = vunpack.c.l.b16 %v188
      %v338 = vunpack.c.l.b16 %v189
      %v339 = vunpack.c.l.b16 %v190
      %v340 = vpack.c.b16 %v325, %v324
      %v341 = vpack.c.b16 %v327, %v326
      %v342 = vpack.c.b16 %v329, %v328
      %v343 = vpack.c.b16 %v331, %v330
      %v344 = vpack.c.b16 %v333, %v332
      %v345 = vpack.c.b16 %v335, %v334
      %v346 = vpack.c.b16 %v337, %v336
      %v347 = vpack.c.b16 %v339, %v338
      %356 = vmatprep.subr.bf16.mxu0 0
      %357 = vmatpush1.bf16.msra.mxu0 %v347
      %358 = vmatprep.subr.bf16.mxu0 0
      %359 = vmatpush1.bf16.msra.mxu0 %v346
      %360 = vmatprep.subr.bf16.mxu0 0
      %361 = vmatpush1.bf16.msra.mxu0 %v345
      %362 = vmatprep.subr.bf16.mxu0 0
      %363 = vmatpush1.bf16.msra.mxu0 %v344
      %364 = vmatprep.subr.bf16.mxu0 0
      %365 = vmatpush1.bf16.msra.mxu0 %v343
      %366 = vmatprep.subr.bf16.mxu0 0
      %367 = vmatpush1.bf16.msra.mxu0 %v342
      %368 = vmatprep.subr.bf16.mxu0 0
      %369 = vmatpush1.bf16.msra.mxu0 %v341
      %370 = vmatprep.subr.bf16.mxu0 0
      %371 = vmatpush1.bf16.msra.mxu0 %v340
      %372 = vmatprep.subr.bf16.mxu0 0
      %373 = vmatpush2.bf16.msra.mxu0 0
      %374 = vmatprep.subr.bf16.mxu0 0
      %375 = vmatpush2.bf16.msra.mxu0 0
      %376 = vmatprep.subr.bf16.mxu0 0
      %377 = vmatpush2.bf16.msra.mxu0 0
      %378 = vmatprep.subr.bf16.mxu0 0
      %379 = vmatpush2.bf16.msra.mxu0 0
      %380 = vmatprep.subr.bf16.mxu0 0
      %381 = vmatpush2.bf16.msra.mxu0 0
      %382 = vmatprep.subr.bf16.mxu0 0
      %383 = vmatpush2.bf16.msra.mxu0 0
      %384 = vmatprep.subr.bf16.mxu0 0
      %385 = vmatpush2.bf16.msra.mxu0 0
      %386 = vmatprep.subr.bf16.mxu0 0
      %387 = vmatpush2.bf16.msra.mxu0 0
      %388 = vmatprep.mubr.bf16.mxu0 0
      %389 = vmatmul.mubr.bf16.gmra.mxu0 %v174
      %v390 = vpop.f32.mrf.mxu0
      %v391 = vadd.f32 %v303, %v390
      %v392 = vpop.f32.mrf.mxu0
      %v393 = vpop.f32.mrf.mxu0
      %v394 = vpop.f32.mrf.mxu0
      %395 = vdwg.mxu0
      %v396 = vld [vmem:[%s165] sm:$0x2]
      %s397 = scalar_lea.vmem %s1, 128
      %v398 = vld [vmem:[%s397] sm:$0xf]
      %v399 = vld [vmem:[%s397 + $0x4] sm:$0xf]
      %v400 = vld [vmem:[%s397 + $0x8] sm:$0xf]
      %v401 = vld [vmem:[%s397 + $0xc] sm:$0xf]
      %v402 = vld [vmem:[%s397 + $0x10] sm:$0xf]
      %v403 = vld [vmem:[%s397 + $0x14] sm:$0xf]
      %v404 = vld [vmem:[%s397 + $0x18] sm:$0xf]
      %v405 = vld [vmem:[%s397 + $0x1c] sm:$0xf]
      %v406 = vld [vmem:[%s397 + $0x20] sm:$0xf]
      %v407 = vld [vmem:[%s397 + $0x24] sm:$0xf]
      %v408 = vld [vmem:[%s397 + $0x28] sm:$0xf]
      %v409 = vld [vmem:[%s397 + $0x2c] sm:$0xf]
      %v410 = vld [vmem:[%s397 + $0x30] sm:$0xf]
      %v411 = vld [vmem:[%s397 + $0x34] sm:$0xf]
      %v412 = vld [vmem:[%s397 + $0x38] sm:$0xf]
      %v413 = vld [vmem:[%s397 + $0x3c] sm:$0xf]
      %v416 = vunpack.c.l.s4 1983009808
      %v417 = vunpack.c.0.s8 %v416
      %v418 = vlaneseq
      %v419 = vshrl.u32 %v418, 7
      %v420 = vsub.s32 %v417, %v419
      %v421 = vrot.slane %v396, %v420
      %v422 = vrot.slane %v421, 1
      %v440 = vunpack.c.l.b16 %v398
      %v441 = vunpack.c.l.b16 %v399
      %v442 = vunpack.c.l.b16 %v400
      %v443 = vunpack.c.l.b16 %v401
      %v444 = vunpack.c.l.b16 %v402
      %v445 = vunpack.c.l.b16 %v403
      %v446 = vunpack.c.l.b16 %v404
      %v447 = vunpack.c.l.b16 %v405
      %v448 = vunpack.c.l.b16 %v406
      %v449 = vunpack.c.l.b16 %v407
      %v450 = vunpack.c.l.b16 %v408
      %v451 = vunpack.c.l.b16 %v409
      %v452 = vunpack.c.l.b16 %v410
      %v453 = vunpack.c.l.b16 %v411
      %v454 = vunpack.c.l.b16 %v412
      %v455 = vunpack.c.l.b16 %v413
      %v456 = vpack.c.b16 %v441, %v440
      %v457 = vpack.c.b16 %v443, %v442
      %v458 = vpack.c.b16 %v445, %v444
      %v459 = vpack.c.b16 %v447, %v446
      %v460 = vpack.c.b16 %v449, %v448
      %v461 = vpack.c.b16 %v451, %v450
      %v462 = vpack.c.b16 %v453, %v452
      %v463 = vpack.c.b16 %v455, %v454
      %472 = vmatprep.subr.bf16.mxu0 0
      %473 = vmatpush1.bf16.msra.mxu0 %v463
      %474 = vmatprep.subr.bf16.mxu0 0
      %475 = vmatpush1.bf16.msra.mxu0 %v462
      %476 = vmatprep.subr.bf16.mxu0 0
      %477 = vmatpush1.bf16.msra.mxu0 %v461
      %478 = vmatprep.subr.bf16.mxu0 0
      %479 = vmatpush1.bf16.msra.mxu0 %v460
      %480 = vmatprep.subr.bf16.mxu0 0
      %481 = vmatpush1.bf16.msra.mxu0 %v459
      %482 = vmatprep.subr.bf16.mxu0 0
      %483 = vmatpush1.bf16.msra.mxu0 %v458
      %484 = vmatprep.subr.bf16.mxu0 0
      %485 = vmatpush1.bf16.msra.mxu0 %v457
      %486 = vmatprep.subr.bf16.mxu0 0
      %487 = vmatpush1.bf16.msra.mxu0 %v456
      %488 = vmatprep.subr.bf16.mxu0 0
      %489 = vmatpush2.bf16.msra.mxu0 0
      %490 = vmatprep.subr.bf16.mxu0 0
      %491 = vmatpush2.bf16.msra.mxu0 0
      %492 = vmatprep.subr.bf16.mxu0 0
      %493 = vmatpush2.bf16.msra.mxu0 0
      %494 = vmatprep.subr.bf16.mxu0 0
      %495 = vmatpush2.bf16.msra.mxu0 0
      %496 = vmatprep.subr.bf16.mxu0 0
      %497 = vmatpush2.bf16.msra.mxu0 0
      %498 = vmatprep.subr.bf16.mxu0 0
      %499 = vmatpush2.bf16.msra.mxu0 0
      %500 = vmatprep.subr.bf16.mxu0 0
      %501 = vmatpush2.bf16.msra.mxu0 0
      %502 = vmatprep.subr.bf16.mxu0 0
      %503 = vmatpush2.bf16.msra.mxu0 0
      %504 = vmatprep.mubr.bf16.mxu0 0
      %505 = vmatmul.mubr.bf16.gmra.mxu0 %v422
      %v506 = vpop.f32.mrf.mxu0
      %v507 = vadd.f32 0.0, %v506
      %v508 = vpop.f32.mrf.mxu0
      %v509 = vpop.f32.mrf.mxu0
      %v510 = vpop.f32.mrf.mxu0
      %511 = vdwg.mxu0
      %v512 = vadd.f32 %v391, %v507
      %v513 = vadd.f32 %v512, %v173
      %514 = vst [vmem:[%s170] sm:$0x1] %v513
      %s515 = scalar_lea.vmem %s165, 2
      %v516 = vld [vmem:[%s515] sm:$0x1]
      %v517 = vld [vmem:[%s1] sm:$0xf]
      %v518 = vld [vmem:[%s1 + $0x4] sm:$0xf]
      %v519 = vld [vmem:[%s1 + $0x8] sm:$0xf]
      %v520 = vld [vmem:[%s1 + $0xc] sm:$0xf]
      %v521 = vld [vmem:[%s1 + $0x10] sm:$0xf]
      %v522 = vld [vmem:[%s1 + $0x14] sm:$0xf]
      %v523 = vld [vmem:[%s1 + $0x18] sm:$0xf]
      %v524 = vld [vmem:[%s1 + $0x1c] sm:$0xf]
      %v525 = vld [vmem:[%s1 + $0x20] sm:$0xf]
      %v526 = vld [vmem:[%s1 + $0x24] sm:$0xf]
      %v527 = vld [vmem:[%s1 + $0x28] sm:$0xf]
      %v528 = vld [vmem:[%s1 + $0x2c] sm:$0xf]
      %v529 = vld [vmem:[%s1 + $0x30] sm:$0xf]
      %v530 = vld [vmem:[%s1 + $0x34] sm:$0xf]
      %v531 = vld [vmem:[%s1 + $0x38] sm:$0xf]
      %v532 = vld [vmem:[%s1 + $0x3c] sm:$0xf]
      %v533 = vld [vmem:[%s191] sm:$0xf]
      %v534 = vld [vmem:[%s191 + $0x4] sm:$0xf]
      %v535 = vld [vmem:[%s191 + $0x8] sm:$0xf]
      %v536 = vld [vmem:[%s191 + $0xc] sm:$0xf]
      %v537 = vld [vmem:[%s191 + $0x10] sm:$0xf]
      %v538 = vld [vmem:[%s191 + $0x14] sm:$0xf]
      %v539 = vld [vmem:[%s191 + $0x18] sm:$0xf]
      %v540 = vld [vmem:[%s191 + $0x1c] sm:$0xf]
      %v541 = vld [vmem:[%s191 + $0x20] sm:$0xf]
      %v542 = vld [vmem:[%s191 + $0x24] sm:$0xf]
      %v543 = vld [vmem:[%s191 + $0x28] sm:$0xf]
      %v544 = vld [vmem:[%s191 + $0x2c] sm:$0xf]
      %v545 = vld [vmem:[%s191 + $0x30] sm:$0xf]
      %v546 = vld [vmem:[%s191 + $0x34] sm:$0xf]
      %v547 = vld [vmem:[%s191 + $0x38] sm:$0xf]
      %v548 = vld [vmem:[%s191 + $0x3c] sm:$0xf]
      %v551 = vunpack.c.l.s4 1983009808
      %v552 = vunpack.c.0.s8 %v551
      %v553 = vlaneseq
      %v554 = vshrl.u32 %v553, 7
      %v555 = vsub.s32 %v552, %v554
      %v556 = vrot.slane %v516, %v555
      %v558 = vshrl.u32 %v556, 16
      %v577 = vunpack.c.l.b16 %v533
      %v578 = vunpack.c.l.b16 %v534
      %v579 = vunpack.c.l.b16 %v535
      %v580 = vunpack.c.l.b16 %v536
      %v581 = vunpack.c.l.b16 %v537
      %v582 = vunpack.c.l.b16 %v538
      %v583 = vunpack.c.l.b16 %v539
      %v584 = vunpack.c.l.b16 %v540
      %v585 = vunpack.c.l.b16 %v541
      %v586 = vunpack.c.l.b16 %v542
      %v587 = vunpack.c.l.b16 %v543
      %v588 = vunpack.c.l.b16 %v544
      %v589 = vunpack.c.l.b16 %v545
      %v590 = vunpack.c.l.b16 %v546
      %v591 = vunpack.c.l.b16 %v547
      %v592 = vunpack.c.l.b16 %v548
      %v593 = vpack.c.b16 %v578, %v577
      %v594 = vpack.c.b16 %v580, %v579
      %v595 = vpack.c.b16 %v582, %v581
      %v596 = vpack.c.b16 %v584, %v583
      %v597 = vpack.c.b16 %v586, %v585
      %v598 = vpack.c.b16 %v588, %v587
      %v599 = vpack.c.b16 %v590, %v589
      %v600 = vpack.c.b16 %v592, %v591
      %609 = vmatprep.subr.bf16.mxu0 0
      %610 = vmatpush1.bf16.msra.mxu0 %v600
      %611 = vmatprep.subr.bf16.mxu0 0
      %612 = vmatpush1.bf16.msra.mxu0 %v599
      %613 = vmatprep.subr.bf16.mxu0 0
      %614 = vmatpush1.bf16.msra.mxu0 %v598
      %615 = vmatprep.subr.bf16.mxu0 0
      %616 = vmatpush1.bf16.msra.mxu0 %v597
      %617 = vmatprep.subr.bf16.mxu0 0
      %618 = vmatpush1.bf16.msra.mxu0 %v596
      %619 = vmatprep.subr.bf16.mxu0 0
      %620 = vmatpush1.bf16.msra.mxu0 %v595
      %621 = vmatprep.subr.bf16.mxu0 0
      %622 = vmatpush1.bf16.msra.mxu0 %v594
      %623 = vmatprep.subr.bf16.mxu0 0
      %624 = vmatpush1.bf16.msra.mxu0 %v593
      %625 = vmatprep.subr.bf16.mxu0 0
      %626 = vmatpush2.bf16.msra.mxu0 0
      %627 = vmatprep.subr.bf16.mxu0 0
      %628 = vmatpush2.bf16.msra.mxu0 0
      %629 = vmatprep.subr.bf16.mxu0 0
      %630 = vmatpush2.bf16.msra.mxu0 0
      %631 = vmatprep.subr.bf16.mxu0 0
      %632 = vmatpush2.bf16.msra.mxu0 0
      %633 = vmatprep.subr.bf16.mxu0 0
      %634 = vmatpush2.bf16.msra.mxu0 0
      %635 = vmatprep.subr.bf16.mxu0 0
      %636 = vmatpush2.bf16.msra.mxu0 0
      %637 = vmatprep.subr.bf16.mxu0 0
      %638 = vmatpush2.bf16.msra.mxu0 0
      %639 = vmatprep.subr.bf16.mxu0 0
      %640 = vmatpush2.bf16.msra.mxu0 0
      %641 = vmatprep.mubr.bf16.mxu0 0
      %642 = vmatmul.mubr.bf16.gmra.mxu0 %v558
      %v643 = vpop.f32.mrf.mxu0
      %v644 = vadd.f32 0.0, %v643
      %v645 = vpop.f32.mrf.mxu0
      %v646 = vpop.f32.mrf.mxu0
      %v647 = vpop.f32.mrf.mxu0
      %648 = vdwg.mxu0
      %v665 = vunpack.c.l.b16 %v517
      %v666 = vunpack.c.l.b16 %v518
      %v667 = vunpack.c.l.b16 %v519
      %v668 = vunpack.c.l.b16 %v520
      %v669 = vunpack.c.l.b16 %v521
      %v670 = vunpack.c.l.b16 %v522
      %v671 = vunpack.c.l.b16 %v523
      %v672 = vunpack.c.l.b16 %v524
      %v673 = vunpack.c.l.b16 %v525
      %v674 = vunpack.c.l.b16 %v526
      %v675 = vunpack.c.l.b16 %v527
      %v676 = vunpack.c.l.b16 %v528
      %v677 = vunpack.c.l.b16 %v529
      %v678 = vunpack.c.l.b16 %v530
      %v679 = vunpack.c.l.b16 %v531
      %v680 = vunpack.c.l.b16 %v532
      %v681 = vpack.c.b16 %v666, %v665
      %v682 = vpack.c.b16 %v668, %v667
      %v683 = vpack.c.b16 %v670, %v669
      %v684 = vpack.c.b16 %v672, %v671
      %v685 = vpack.c.b16 %v674, %v673
      %v686 = vpack.c.b16 %v676, %v675
      %v687 = vpack.c.b16 %v678, %v677
      %v688 = vpack.c.b16 %v680, %v679
      %697 = vmatprep.subr.bf16.mxu0 0
      %698 = vmatpush1.bf16.msra.mxu0 %v688
      %699 = vmatprep.subr.bf16.mxu0 0
      %700 = vmatpush1.bf16.msra.mxu0 %v687
      %701 = vmatprep.subr.bf16.mxu0 0
      %702 = vmatpush1.bf16.msra.mxu0 %v686
      %703 = vmatprep.subr.bf16.mxu0 0
      %704 = vmatpush1.bf16.msra.mxu0 %v685
      %705 = vmatprep.subr.bf16.mxu0 0
      %706 = vmatpush1.bf16.msra.mxu0 %v684
      %707 = vmatprep.subr.bf16.mxu0 0
      %708 = vmatpush1.bf16.msra.mxu0 %v683
      %709 = vmatprep.subr.bf16.mxu0 0
      %710 = vmatpush1.bf16.msra.mxu0 %v682
      %711 = vmatprep.subr.bf16.mxu0 0
      %712 = vmatpush1.bf16.msra.mxu0 %v681
      %713 = vmatprep.subr.bf16.mxu0 0
      %714 = vmatpush2.bf16.msra.mxu0 0
      %715 = vmatprep.subr.bf16.mxu0 0
      %716 = vmatpush2.bf16.msra.mxu0 0
      %717 = vmatprep.subr.bf16.mxu0 0
      %718 = vmatpush2.bf16.msra.mxu0 0
      %719 = vmatprep.subr.bf16.mxu0 0
      %720 = vmatpush2.bf16.msra.mxu0 0
      %721 = vmatprep.subr.bf16.mxu0 0
      %722 = vmatpush2.bf16.msra.mxu0 0
      %723 = vmatprep.subr.bf16.mxu0 0
      %724 = vmatpush2.bf16.msra.mxu0 0
      %725 = vmatprep.subr.bf16.mxu0 0
      %726 = vmatpush2.bf16.msra.mxu0 0
      %727 = vmatprep.subr.bf16.mxu0 0
      %728 = vmatpush2.bf16.msra.mxu0 0
      %729 = vmatprep.mubr.bf16.mxu0 0
      %730 = vmatmul.mubr.bf16.gmra.mxu0 %v516
      %v731 = vpop.f32.mrf.mxu0
      %v732 = vadd.f32 %v644, %v731
      %v733 = vpop.f32.mrf.mxu0
      %v734 = vpop.f32.mrf.mxu0
      %v735 = vpop.f32.mrf.mxu0
      %736 = vdwg.mxu0
      %v737 = vld [vmem:[%s515] sm:$0x2]
      %v738 = vld [vmem:[%s397] sm:$0xf]
      %v739 = vld [vmem:[%s397 + $0x4] sm:$0xf]
      %v740 = vld [vmem:[%s397 + $0x8] sm:$0xf]
      %v741 = vld [vmem:[%s397 + $0xc] sm:$0xf]
      %v742 = vld [vmem:[%s397 + $0x10] sm:$0xf]
      %v743 = vld [vmem:[%s397 + $0x14] sm:$0xf]
      %v744 = vld [vmem:[%s397 + $0x18] sm:$0xf]
      %v745 = vld [vmem:[%s397 + $0x1c] sm:$0xf]
      %v746 = vld [vmem:[%s397 + $0x20] sm:$0xf]
      %v747 = vld [vmem:[%s397 + $0x24] sm:$0xf]
      %v748 = vld [vmem:[%s397 + $0x28] sm:$0xf]
      %v749 = vld [vmem:[%s397 + $0x2c] sm:$0xf]
      %v750 = vld [vmem:[%s397 + $0x30] sm:$0xf]
      %v751 = vld [vmem:[%s397 + $0x34] sm:$0xf]
      %v752 = vld [vmem:[%s397 + $0x38] sm:$0xf]
      %v753 = vld [vmem:[%s397 + $0x3c] sm:$0xf]
      %v756 = vunpack.c.l.s4 1983009808
      %v757 = vunpack.c.0.s8 %v756
      %v758 = vlaneseq
      %v759 = vshrl.u32 %v758, 7
      %v760 = vsub.s32 %v757, %v759
      %v761 = vrot.slane %v737, %v760
      %v762 = vrot.slane %v761, 1
      %v780 = vunpack.c.l.b16 %v738
      %v781 = vunpack.c.l.b16 %v739
      %v782 = vunpack.c.l.b16 %v740
      %v783 = vunpack.c.l.b16 %v741
      %v784 = vunpack.c.l.b16 %v742
      %v785 = vunpack.c.l.b16 %v743
      %v786 = vunpack.c.l.b16 %v744
      %v787 = vunpack.c.l.b16 %v745
      %v788 = vunpack.c.l.b16 %v746
      %v789 = vunpack.c.l.b16 %v747
      %v790 = vunpack.c.l.b16 %v748
      %v791 = vunpack.c.l.b16 %v749
      %v792 = vunpack.c.l.b16 %v750
      %v793 = vunpack.c.l.b16 %v751
      %v794 = vunpack.c.l.b16 %v752
      %v795 = vunpack.c.l.b16 %v753
      %v796 = vpack.c.b16 %v781, %v780
      %v797 = vpack.c.b16 %v783, %v782
      %v798 = vpack.c.b16 %v785, %v784
      %v799 = vpack.c.b16 %v787, %v786
      %v800 = vpack.c.b16 %v789, %v788
      %v801 = vpack.c.b16 %v791, %v790
      %v802 = vpack.c.b16 %v793, %v792
      %v803 = vpack.c.b16 %v795, %v794
      %812 = vmatprep.subr.bf16.mxu0 0
      %813 = vmatpush1.bf16.msra.mxu0 %v803
      %814 = vmatprep.subr.bf16.mxu0 0
      %815 = vmatpush1.bf16.msra.mxu0 %v802
      %816 = vmatprep.subr.bf16.mxu0 0
      %817 = vmatpush1.bf16.msra.mxu0 %v801
      %818 = vmatprep.subr.bf16.mxu0 0
      %819 = vmatpush1.bf16.msra.mxu0 %v800
      %820 = vmatprep.subr.bf16.mxu0 0
      %821 = vmatpush1.bf16.msra.mxu0 %v799
      %822 = vmatprep.subr.bf16.mxu0 0
      %823 = vmatpush1.bf16.msra.mxu0 %v798
      %824 = vmatprep.subr.bf16.mxu0 0
      %825 = vmatpush1.bf16.msra.mxu0 %v797
      %826 = vmatprep.subr.bf16.mxu0 0
      %827 = vmatpush1.bf16.msra.mxu0 %v796
      %828 = vmatprep.subr.bf16.mxu0 0
      %829 = vmatpush2.bf16.msra.mxu0 0
      %830 = vmatprep.subr.bf16.mxu0 0
      %831 = vmatpush2.bf16.msra.mxu0 0
      %832 = vmatprep.subr.bf16.mxu0 0
      %833 = vmatpush2.bf16.msra.mxu0 0
      %834 = vmatprep.subr.bf16.mxu0 0
      %835 = vmatpush2.bf16.msra.mxu0 0
      %836 = vmatprep.subr.bf16.mxu0 0
      %837 = vmatpush2.bf16.msra.mxu0 0
      %838 = vmatprep.subr.bf16.mxu0 0
      %839 = vmatpush2.bf16.msra.mxu0 0
      %840 = vmatprep.subr.bf16.mxu0 0
      %841 = vmatpush2.bf16.msra.mxu0 0
      %842 = vmatprep.subr.bf16.mxu0 0
      %843 = vmatpush2.bf16.msra.mxu0 0
      %844 = vmatprep.mubr.bf16.mxu0 0
      %845 = vmatmul.mubr.bf16.gmra.mxu0 %v762
      %v846 = vpop.f32.mrf.mxu0
      %v847 = vadd.f32 0.0, %v846
      %v848 = vpop.f32.mrf.mxu0
      %v849 = vpop.f32.mrf.mxu0
      %v850 = vpop.f32.mrf.mxu0
      %851 = vdwg.mxu0
      %v852 = vadd.f32 %v732, %v847
      %v853 = vadd.f32 %v852, %v173
      %s854 = scalar_lea.vmem %s170, 1
      %855 = vst [vmem:[%s854] sm:$0x1] %v853
      %s856 = scalar_lea.vmem %s165, 4
      %v857 = vld [vmem:[%s856] sm:$0x1]
      %v858 = vld [vmem:[%s1] sm:$0xf]
      %v859 = vld [vmem:[%s1 + $0x4] sm:$0xf]
      %v860 = vld [vmem:[%s1 + $0x8] sm:$0xf]
      %v861 = vld [vmem:[%s1 + $0xc] sm:$0xf]
      %v862 = vld [vmem:[%s1 + $0x10] sm:$0xf]
      %v863 = vld [vmem:[%s1 + $0x14] sm:$0xf]
      %v864 = vld [vmem:[%s1 + $0x18] sm:$0xf]
      %v865 = vld [vmem:[%s1 + $0x1c] sm:$0xf]
      %v866 = vld [vmem:[%s1 + $0x20] sm:$0xf]
      %v867 = vld [vmem:[%s1 + $0x24] sm:$0xf]
      %v868 = vld [vmem:[%s1 + $0x28] sm:$0xf]
      %v869 = vld [vmem:[%s1 + $0x2c] sm:$0xf]
      %v870 = vld [vmem:[%s1 + $0x30] sm:$0xf]
      %v871 = vld [vmem:[%s1 + $0x34] sm:$0xf]
      %v872 = vld [vmem:[%s1 + $0x38] sm:$0xf]
      %v873 = vld [vmem:[%s1 + $0x3c] sm:$0xf]
      %v874 = vld [vmem:[%s191] sm:$0xf]
      %v875 = vld [vmem:[%s191 + $0x4] sm:$0xf]
      %v876 = vld [vmem:[%s191 + $0x8] sm:$0xf]
      %v877 = vld [vmem:[%s191 + $0xc] sm:$0xf]
      %v878 = vld [vmem:[%s191 + $0x10] sm:$0xf]
      %v879 = vld [vmem:[%s191 + $0x14] sm:$0xf]
      %v880 = vld [vmem:[%s191 + $0x18] sm:$0xf]
      %v881 = vld [vmem:[%s191 + $0x1c] sm:$0xf]
      %v882 = vld [vmem:[%s191 + $0x20] sm:$0xf]
      %v883 = vld [vmem:[%s191 + $0x24] sm:$0xf]
      %v884 = vld [vmem:[%s191 + $0x28] sm:$0xf]
      %v885 = vld [vmem:[%s191 + $0x2c] sm:$0xf]
      %v886 = vld [vmem:[%s191 + $0x30] sm:$0xf]
      %v887 = vld [vmem:[%s191 + $0x34] sm:$0xf]
      %v888 = vld [vmem:[%s191 + $0x38] sm:$0xf]
      %v889 = vld [vmem:[%s191 + $0x3c] sm:$0xf]
      %v892 = vunpack.c.l.s4 1983009808
      %v893 = vunpack.c.0.s8 %v892
      %v894 = vlaneseq
      %v895 = vshrl.u32 %v894, 7
      %v896 = vsub.s32 %v893, %v895
      %v897 = vrot.slane %v857, %v896
      %v899 = vshrl.u32 %v897, 16
      %v918 = vunpack.c.l.b16 %v874
      %v919 = vunpack.c.l.b16 %v875
      %v920 = vunpack.c.l.b16 %v876
      %v921 = vunpack.c.l.b16 %v877
      %v922 = vunpack.c.l.b16 %v878
      %v923 = vunpack.c.l.b16 %v879
      %v924 = vunpack.c.l.b16 %v880
      %v925 = vunpack.c.l.b16 %v881
      %v926 = vunpack.c.l.b16 %v882
      %v927 = vunpack.c.l.b16 %v883
      %v928 = vunpack.c.l.b16 %v884
      %v929 = vunpack.c.l.b16 %v885
      %v930 = vunpack.c.l.b16 %v886
      %v931 = vunpack.c.l.b16 %v887
      %v932 = vunpack.c.l.b16 %v888
      %v933 = vunpack.c.l.b16 %v889
      %v934 = vpack.c.b16 %v919, %v918
      %v935 = vpack.c.b16 %v921, %v920
      %v936 = vpack.c.b16 %v923, %v922
      %v937 = vpack.c.b16 %v925, %v924
      %v938 = vpack.c.b16 %v927, %v926
      %v939 = vpack.c.b16 %v929, %v928
      %v940 = vpack.c.b16 %v931, %v930
      %v941 = vpack.c.b16 %v933, %v932
      %950 = vmatprep.subr.bf16.mxu0 0
      %951 = vmatpush1.bf16.msra.mxu0 %v941
      %952 = vmatprep.subr.bf16.mxu0 0
      %953 = vmatpush1.bf16.msra.mxu0 %v940
      %954 = vmatprep.subr.bf16.mxu0 0
      %955 = vmatpush1.bf16.msra.mxu0 %v939
      %956 = vmatprep.subr.bf16.mxu0 0
      %957 = vmatpush1.bf16.msra.mxu0 %v938
      %958 = vmatprep.subr.bf16.mxu0 0
      %959 = vmatpush1.bf16.msra.mxu0 %v937
      %960 = vmatprep.subr.bf16.mxu0 0
      %961 = vmatpush1.bf16.msra.mxu0 %v936
      %962 = vmatprep.subr.bf16.mxu0 0
      %963 = vmatpush1.bf16.msra.mxu0 %v935
      %964 = vmatprep.subr.bf16.mxu0 0
      %965 = vmatpush1.bf16.msra.mxu0 %v934
      %966 = vmatprep.subr.bf16.mxu0 0
      %967 = vmatpush2.bf16.msra.mxu0 0
      %968 = vmatprep.subr.bf16.mxu0 0
      %969 = vmatpush2.bf16.msra.mxu0 0
      %970 = vmatprep.subr.bf16.mxu0 0
      %971 = vmatpush2.bf16.msra.mxu0 0
      %972 = vmatprep.subr.bf16.mxu0 0
      %973 = vmatpush2.bf16.msra.mxu0 0
      %974 = vmatprep.subr.bf16.mxu0 0
      %975 = vmatpush2.bf16.msra.mxu0 0
      %976 = vmatprep.subr.bf16.mxu0 0
      %977 = vmatpush2.bf16.msra.mxu0 0
      %978 = vmatprep.subr.bf16.mxu0 0
      %979 = vmatpush2.bf16.msra.mxu0 0
      %980 = vmatprep.subr.bf16.mxu0 0
      %981 = vmatpush2.bf16.msra.mxu0 0
      %982 = vmatprep.mubr.bf16.mxu0 0
      %983 = vmatmul.mubr.bf16.gmra.mxu0 %v899
      %v984 = vpop.f32.mrf.mxu0
      %v985 = vadd.f32 0.0, %v984
      %v986 = vpop.f32.mrf.mxu0
      %v987 = vpop.f32.mrf.mxu0
      %v988 = vpop.f32.mrf.mxu0
      %989 = vdwg.mxu0
      %v1006 = vunpack.c.l.b16 %v858
      %v1007 = vunpack.c.l.b16 %v859
      %v1008 = vunpack.c.l.b16 %v860
      %v1009 = vunpack.c.l.b16 %v861
      %v1010 = vunpack.c.l.b16 %v862
      %v1011 = vunpack.c.l.b16 %v863
      %v1012 = vunpack.c.l.b16 %v864
      %v1013 = vunpack.c.l.b16 %v865
      %v1014 = vunpack.c.l.b16 %v866
      %v1015 = vunpack.c.l.b16 %v867
      %v1016 = vunpack.c.l.b16 %v868
      %v1017 = vunpack.c.l.b16 %v869
      %v1018 = vunpack.c.l.b16 %v870
      %v1019 = vunpack.c.l.b16 %v871
      %v1020 = vunpack.c.l.b16 %v872
      %v1021 = vunpack.c.l.b16 %v873
      %v1022 = vpack.c.b16 %v1007, %v1006
      %v1023 = vpack.c.b16 %v1009, %v1008
      %v1024 = vpack.c.b16 %v1011, %v1010
      %v1025 = vpack.c.b16 %v1013, %v1012
      %v1026 = vpack.c.b16 %v1015, %v1014
      %v1027 = vpack.c.b16 %v1017, %v1016
      %v1028 = vpack.c.b16 %v1019, %v1018
      %v1029 = vpack.c.b16 %v1021, %v1020
      %1038 = vmatprep.subr.bf16.mxu0 0
      %1039 = vmatpush1.bf16.msra.mxu0 %v1029
      %1040 = vmatprep.subr.bf16.mxu0 0
      %1041 = vmatpush1.bf16.msra.mxu0 %v1028
      %1042 = vmatprep.subr.bf16.mxu0 0
      %1043 = vmatpush1.bf16.msra.mxu0 %v1027
      %1044 = vmatprep.subr.bf16.mxu0 0
      %1045 = vmatpush1.bf16.msra.mxu0 %v1026
      %1046 = vmatprep.subr.bf16.mxu0 0
      %1047 = vmatpush1.bf16.msra.mxu0 %v1025
      %1048 = vmatprep.subr.bf16.mxu0 0
      %1049 = vmatpush1.bf16.msra.mxu0 %v1024
      %1050 = vmatprep.subr.bf16.mxu0 0
      %1051 = vmatpush1.bf16.msra.mxu0 %v1023
      %1052 = vmatprep.subr.bf16.mxu0 0
      %1053 = vmatpush1.bf16.msra.mxu0 %v1022
      %1054 = vmatprep.subr.bf16.mxu0 0
      %1055 = vmatpush2.bf16.msra.mxu0 0
      %1056 = vmatprep.subr.bf16.mxu0 0
      %1057 = vmatpush2.bf16.msra.mxu0 0
      %1058 = vmatprep.subr.bf16.mxu0 0
      %1059 = vmatpush2.bf16.msra.mxu0 0
      %1060 = vmatprep.subr.bf16.mxu0 0
      %1061 = vmatpush2.bf16.msra.mxu0 0
      %1062 = vmatprep.subr.bf16.mxu0 0
      %1063 = vmatpush2.bf16.msra.mxu0 0
      %1064 = vmatprep.subr.bf16.mxu0 0
      %1065 = vmatpush2.bf16.msra.mxu0 0
      %1066 = vmatprep.subr.bf16.mxu0 0
      %1067 = vmatpush2.bf16.msra.mxu0 0
      %1068 = vmatprep.subr.bf16.mxu0 0
      %1069 = vmatpush2.bf16.msra.mxu0 0
      %1070 = vmatprep.mubr.bf16.mxu0 0
      %1071 = vmatmul.mubr.bf16.gmra.mxu0 %v857
      %v1072 = vpop.f32.mrf.mxu0
      %v1073 = vadd.f32 %v985, %v1072
      %v1074 = vpop.f32.mrf.mxu0
      %v1075 = vpop.f32.mrf.mxu0
      %v1076 = vpop.f32.mrf.mxu0
      %1077 = vdwg.mxu0
      %v1078 = vld [vmem:[%s856] sm:$0x2]
      %v1079 = vld [vmem:[%s397] sm:$0xf]
      %v1080 = vld [vmem:[%s397 + $0x4] sm:$0xf]
      %v1081 = vld [vmem:[%s397 + $0x8] sm:$0xf]
      %v1082 = vld [vmem:[%s397 + $0xc] sm:$0xf]
      %v1083 = vld [vmem:[%s397 + $0x10] sm:$0xf]
      %v1084 = vld [vmem:[%s397 + $0x14] sm:$0xf]
      %v1085 = vld [vmem:[%s397 + $0x18] sm:$0xf]
      %v1086 = vld [vmem:[%s397 + $0x1c] sm:$0xf]
      %v1087 = vld [vmem:[%s397 + $0x20] sm:$0xf]
      %v1088 = vld [vmem:[%s397 + $0x24] sm:$0xf]
      %v1089 = vld [vmem:[%s397 + $0x28] sm:$0xf]
      %v1090 = vld [vmem:[%s397 + $0x2c] sm:$0xf]
      %v1091 = vld [vmem:[%s397 + $0x30] sm:$0xf]
      %v1092 = vld [vmem:[%s397 + $0x34] sm:$0xf]
      %v1093 = vld [vmem:[%s397 + $0x38] sm:$0xf]
      %v1094 = vld [vmem:[%s397 + $0x3c] sm:$0xf]
      %v1097 = vunpack.c.l.s4 1983009808
      %v1098 = vunpack.c.0.s8 %v1097
      %v1099 = vlaneseq
      %v1100 = vshrl.u32 %v1099, 7
      %v1101 = vsub.s32 %v1098, %v1100
      %v1102 = vrot.slane %v1078, %v1101
      %v1103 = vrot.slane %v1102, 1
      %v1121 = vunpack.c.l.b16 %v1079
      %v1122 = vunpack.c.l.b16 %v1080
      %v1123 = vunpack.c.l.b16 %v1081
      %v1124 = vunpack.c.l.b16 %v1082
      %v1125 = vunpack.c.l.b16 %v1083
      %v1126 = vunpack.c.l.b16 %v1084
      %v1127 = vunpack.c.l.b16 %v1085
      %v1128 = vunpack.c.l.b16 %v1086
      %v1129 = vunpack.c.l.b16 %v1087
      %v1130 = vunpack.c.l.b16 %v1088
      %v1131 = vunpack.c.l.b16 %v1089
      %v1132 = vunpack.c.l.b16 %v1090
      %v1133 = vunpack.c.l.b16 %v1091
      %v1134 = vunpack.c.l.b16 %v1092
      %v1135 = vunpack.c.l.b16 %v1093
      %v1136 = vunpack.c.l.b16 %v1094
      %v1137 = vpack.c.b16 %v1122, %v1121
      %v1138 = vpack.c.b16 %v1124, %v1123
      %v1139 = vpack.c.b16 %v1126, %v1125
      %v1140 = vpack.c.b16 %v1128, %v1127
      %v1141 = vpack.c.b16 %v1130, %v1129
      %v1142 = vpack.c.b16 %v1132, %v1131
      %v1143 = vpack.c.b16 %v1134, %v1133
      %v1144 = vpack.c.b16 %v1136, %v1135
      %1153 = vmatprep.subr.bf16.mxu0 0
      %1154 = vmatpush1.bf16.msra.mxu0 %v1144
      %1155 = vmatprep.subr.bf16.mxu0 0
      %1156 = vmatpush1.bf16.msra.mxu0 %v1143
      %1157 = vmatprep.subr.bf16.mxu0 0
      %1158 = vmatpush1.bf16.msra.mxu0 %v1142
      %1159 = vmatprep.subr.bf16.mxu0 0
      %1160 = vmatpush1.bf16.msra.mxu0 %v1141
      %1161 = vmatprep.subr.bf16.mxu0 0
      %1162 = vmatpush1.bf16.msra.mxu0 %v1140
      %1163 = vmatprep.subr.bf16.mxu0 0
      %1164 = vmatpush1.bf16.msra.mxu0 %v1139
      %1165 = vmatprep.subr.bf16.mxu0 0
      %1166 = vmatpush1.bf16.msra.mxu0 %v1138
      %1167 = vmatprep.subr.bf16.mxu0 0
      %1168 = vmatpush1.bf16.msra.mxu0 %v1137
      %1169 = vmatprep.subr.bf16.mxu0 0
      %1170 = vmatpush2.bf16.msra.mxu0 0
      %1171 = vmatprep.subr.bf16.mxu0 0
      %1172 = vmatpush2.bf16.msra.mxu0 0
      %1173 = vmatprep.subr.bf16.mxu0 0
      %1174 = vmatpush2.bf16.msra.mxu0 0
      %1175 = vmatprep.subr.bf16.mxu0 0
      %1176 = vmatpush2.bf16.msra.mxu0 0
      %1177 = vmatprep.subr.bf16.mxu0 0
      %1178 = vmatpush2.bf16.msra.mxu0 0
      %1179 = vmatprep.subr.bf16.mxu0 0
      %1180 = vmatpush2.bf16.msra.mxu0 0
      %1181 = vmatprep.subr.bf16.mxu0 0
      %1182 = vmatpush2.bf16.msra.mxu0 0
      %1183 = vmatprep.subr.bf16.mxu0 0
      %1184 = vmatpush2.bf16.msra.mxu0 0
      %1185 = vmatprep.mubr.bf16.mxu0 0
      %1186 = vmatmul.mubr.bf16.gmra.mxu0 %v1103
      %v1187 = vpop.f32.mrf.mxu0
      %v1188 = vadd.f32 0.0, %v1187
      %v1189 = vpop.f32.mrf.mxu0
      %v1190 = vpop.f32.mrf.mxu0
      %v1191 = vpop.f32.mrf.mxu0
      %1192 = vdwg.mxu0
      %v1193 = vadd.f32 %v1073, %v1188
      %v1194 = vadd.f32 %v1193, %v173
      %s1195 = scalar_lea.vmem %s170, 2
      %1196 = vst [vmem:[%s1195] sm:$0x1] %v1194
      %s1197 = smul.u32 3, %s14
      %p1198 = scmp.lt.s32.totalorder %s1197, 5
      %s1199 = scalar_select %p1198, %s1197, 5
      %s1200 = scalar_lea.vmem %s3, %s1199
      // Predicated region
      $region33: #{multi_periodic_discriminator_forward.15} parent=31 // pred_check
        %p1201 = pneg %p100
      $region34: #{multi_periodic_discriminator_forward.15} parent=31 // pred_check_branch
        %1203 = sbr.rel (%p1201) target = $region36
      $region35: #{multi_periodic_discriminator_forward.15} parent=31 // pred_region
        %s1204 = smul.u32 3, %s14
      $region36: #{multi_periodic_discriminator_forward.15} parent=31 // pred_fallthru
        _
    $region32: #{multi_periodic_discriminator_forward.15} parent=5 // pred_fallthru
      _
    %p1205 = scmp.le.s32.totalorder 2, %s9
    // Predicated region
    $region37: #{multi_periodic_discriminator_forward.15} parent=5 // pred_check
      %p1206 = pneg %p1205
    $region38: #{multi_periodic_discriminator_forward.15} parent=5 // pred_check_branch
      %1208 = sbr.rel (%p1206) target = $region40
    $region39: #{multi_periodic_discriminator_forward.15} parent=5 // pred_region
      %s1209 = ssub.s32 %s9, 2
      // Predicated region
      $region41: #{multi_periodic_discriminator_forward.15} parent=39 // pred_check
        %p1210 = pneg %p106
      $region42: #{multi_periodic_discriminator_forward.15} parent=39 // pred_check_branch
        %1212 = sbr.rel (%p1210) target = $region44
      $region43: #{multi_periodic_discriminator_forward.15} parent=39 // pred_region
        %s1213 = smul.u32 3, %s15
        %p1214 = scmp.lt.s32.totalorder %s1213, 5
        %s1215 = scalar_select %p1214, %s1213, 5
        %s1216 = scalar_lea.vmem %s3, %s1215
      $region44: #{multi_periodic_discriminator_forward.15} parent=39 // pred_fallthru
        _
    $region40: #{multi_periodic_discriminator_forward.15} parent=5 // pred_fallthru
      _
  $region6: #{multi_periodic_discriminator_forward.15} parent=0 // loop_footer
    %s13 = sadd.s32 1, %s9
  $region7: #{multi_periodic_discriminator_forward.15} parent=0 // loop_footer_branch
    %8 = sbr.rel target = $region3
  $region8: #{multi_periodic_discriminator_forward.15} parent=0 // loop_exit
    _

// kernel: multi_periodic_discriminator_forward.13
$region0: #{multi_periodic_discriminator_forward.13}
  #allocation0 [shape = 'u32[]', space=smem, size = 0x4, offset = 0x4, fixed_abs, tag = 'smem constant byte address 0x4 - core index']
  #allocation1 [shape = 'u32[144,128]{1,0:T(1,128)}', space=vmem, size = 0x12000, scoped, tag = 'internal scratch']
  %s0 = inlined_call_operand.vmem [shape: bf16[6,4,384], index: 0, kind: input, shape index: {}]
  %s1 = inlined_call_operand.vmem [shape: bf16[5,128,128], index: 1, kind: input, shape index: {}]
  %s2 = inlined_call_operand.vmem [shape: f32[1,128], index: 2, kind: input, shape index: {}]
  %s3 = inlined_call_operand.vmem [shape: bf16[6,3,128], index: 3, kind: output, shape index: {}]
  %s4 = sld [smem:[#allocation0]]
  $region45: #{multi_periodic_discriminator_forward.13} parent=0
    _
  %s6 = ssub.s32 1, %s4
  %s7 = scalar_select 0, %s6, %s4
  loop: start=0, step=1, limit=4
  $region2: #{multi_periodic_discriminator_forward.13} parent=0 // loop_pre_header
    _
  $region3: #{multi_periodic_discriminator_forward.13} parent=0 // loop_header
    %s9 = sphi 0, %s13
    %p10 = scmp.ge.s32.totalorder %s9, 4
    %s19 = sphi 0, %s21
    %s22 = sphi 0, %s19
    %s23 = sphi 0, %s22
    %s39 = sphi 0, %s23
    %s43 = sphi 0, %s43
    %s45 = sphi 0, %s43
    %s46 = sphi 0, %s45
    %s60 = sphi 0, %s46
    %s64 = sphi 0, %s64
    %s66 = sphi 0, %s64
    %s67 = sphi 0, %s66
    %s81 = sphi 0, %s67
    %s87 = sphi 0, %s89
    %s90 = sphi 0, %s87
    %s91 = sphi 0, %s90
    %s107 = sphi 0, %s91
  $region4: #{multi_periodic_discriminator_forward.13} parent=0 // loop_header_branch
    %12 = sbr.rel (%p10) target = $region8
  $region5: #{multi_periodic_discriminator_forward.13} parent=0 // loop_body
    %s14 = ssub.s32 %s9, 1
    %s15 = ssub.s32 %s9, 2
    %s16 = sadd.s32 %s9, 1
    %s17 = ssub.s32 %s9, %s16
    %p18 = scmp.eq.s32.totalorder %s17, 0
    %s20 = sadd.s32 %s19, 1
    %s21 = scalar_select %p18, %s19, %s20
    %p24 = pneg %p18
    %p25 = scmp.eq.s32.totalorder %s9, 1
    %p26 = por %p24, %p25
    %p27 = scmp.ne.s32.totalorder %s19, %s22
    %p28 = scmp.eq.s32.totalorder %s9, 0
    %p29 = por %p27, %p28
    %p30 = scmp.ne.s32.totalorder %s19, %s22
    %p31 = scmp.eq.s32.totalorder %s14, 1
    %p32 = por %p30, %p31
    %p33 = scmp.ne.s32.totalorder %s22, %s23
    %p34 = scmp.eq.s32.totalorder %s14, 0
    %p35 = por %p33, %p34
    %p36 = scmp.ne.s32.totalorder %s22, %s23
    %p37 = scmp.eq.s32.totalorder %s15, 1
    %p38 = por %p36, %p37
    %p40 = scmp.ne.s32.totalorder %s23, %s39
    %p41 = scmp.eq.s32.totalorder %s15, 0
    %p42 = por %p40, %p41
    %s44 = sadd.s32 %s43, 1
    %p47 = scmp.eq.s32.totalorder %s9, 1
    %p48 = scmp.ne.s32.totalorder %s43, %s45
    %p49 = scmp.eq.s32.totalorder %s9, 0
    %p50 = por %p48, %p49
    %p51 = scmp.ne.s32.totalorder %s43, %s45
    %p52 = scmp.eq.s32.totalorder %s14, 1
    %p53 = por %p51, %p52
    %p54 = scmp.ne.s32.totalorder %s45, %s46
    %p55 = scmp.eq.s32.totalorder %s14, 0
    %p56 = por %p54, %p55
    %p57 = scmp.ne.s32.totalorder %s45, %s46
    %p58 = scmp.eq.s32.totalorder %s15, 1
    %p59 = por %p57, %p58
    %p61 = scmp.ne.s32.totalorder %s46, %s60
    %p62 = scmp.eq.s32.totalorder %s15, 0
    %p63 = por %p61, %p62
    %s65 = sadd.s32 %s64, 1
    %p68 = scmp.eq.s32.totalorder %s9, 1
    %p69 = scmp.ne.s32.totalorder %s64, %s66
    %p70 = scmp.eq.s32.totalorder %s9, 0
    %p71 = por %p69, %p70
    %p72 = scmp.ne.s32.totalorder %s64, %s66
    %p73 = scmp.eq.s32.totalorder %s14, 1
    %p74 = por %p72, %p73
    %p75 = scmp.ne.s32.totalorder %s66, %s67
    %p76 = scmp.eq.s32.totalorder %s14, 0
    %p77 = por %p75, %p76
    %p78 = scmp.ne.s32.totalorder %s66, %s67
    %p79 = scmp.eq.s32.totalorder %s15, 1
    %p80 = por %p78, %p79
    %p82 = scmp.ne.s32.totalorder %s67, %s81
    %p83 = scmp.eq.s32.totalorder %s15, 0
    %p84 = por %p82, %p83
    %s85 = ssub.s32 %s9, %s16
    %p86 = scmp.eq.s32.totalorder %s85, 0
    %s88 = sadd.s32 %s87, 1
    %s89 = scalar_select %p86, %s87, %s88
    %p92 = pneg %p86
    %p93 = scmp.eq.s32.totalorder %s9, 1
    %p94 = por %p92, %p93
    %p95 = scmp.ne.s32.totalorder %s87, %s90
    %p96 = scmp.eq.s32.totalorder %s9, 0
    %p97 = por %p95, %p96
    %p98 = scmp.ne.s32.totalorder %s87, %s90
    %p99 = scmp.eq.s32.totalorder %s14, 1
    %p100 = por %p98, %p99
    %p101 = scmp.ne.s32.totalorder %s90, %s91
    %p102 = scmp.eq.s32.totalorder %s14, 0
    %p103 = por %p101, %p102
    %p104 = scmp.ne.s32.totalorder %s90, %s91
    %p105 = scmp.eq.s32.totalorder %s15, 1
    %p106 = por %p104, %p105
    %p108 = scmp.ne.s32.totalorder %s91, %s107
    %p109 = scmp.eq.s32.totalorder %s15, 0
    %p110 = por %p108, %p109
    %p111 = scmp.le.s32.totalorder 1, %s9
    %p112 = scmp.lt.s32.totalorder %s9, 3
    %p113 = pnand %p111, %p112
    %p114 = pneg %p113
    // Predicated region
    $region9: #{multi_periodic_discriminator_forward.13} parent=5 // pred_check
      _
    $region10: #{multi_periodic_discriminator_forward.13} parent=5 // pred_check_branch
      %116 = sbr.rel (%p113) target = $region12
    $region11: #{multi_periodic_discriminator_forward.13} parent=5 // pred_region
      %s117 = ssub.s32 %s9, 1
      // Predicated region
      $region13: #{multi_periodic_discriminator_forward.13} parent=11 // pred_check
        %p118 = pneg %p56
      $region14: #{multi_periodic_discriminator_forward.13} parent=11 // pred_check_branch
        %120 = sbr.rel (%p118) target = $region16
      $region15: #{multi_periodic_discriminator_forward.13} parent=11 // pred_region
        _
      $region16: #{multi_periodic_discriminator_forward.13} parent=11 // pred_fallthru
        _
      // Predicated region
      $region17: #{multi_periodic_discriminator_forward.13} parent=11 // pred_check
        %p121 = pneg %p77
      $region18: #{multi_periodic_discriminator_forward.13} parent=11 // pred_check_branch
        %123 = sbr.rel (%p121) target = $region20
      $region19: #{multi_periodic_discriminator_forward.13} parent=11 // pred_region
        _
      $region20: #{multi_periodic_discriminator_forward.13} parent=11 // pred_fallthru
        _
    $region12: #{multi_periodic_discriminator_forward.13} parent=5 // pred_fallthru
      _
    %p124 = scmp.lt.s32.totalorder %s9, 2
    // Predicated region
    $region21: #{multi_periodic_discriminator_forward.13} parent=5 // pred_check
      %p125 = pneg %p124
    $region22: #{multi_periodic_discriminator_forward.13} parent=5 // pred_check_branch
      %127 = sbr.rel (%p125) target = $region24
    $region23: #{multi_periodic_discriminator_forward.13} parent=5 // pred_region
      // Predicated region
      $region25: #{multi_periodic_discriminator_forward.13} parent=23 // pred_check
        %p128 = pneg %p29
      $region26: #{multi_periodic_discriminator_forward.13} parent=23 // pred_check_branch
        %130 = sbr.rel (%p128) target = $region28
      $region27: #{multi_periodic_discriminator_forward.13} parent=23 // pred_region
        %s131 = smul.u32 3, %s9
        %p132 = scmp.lt.s32.totalorder %s131, 5
        %s133 = scalar_select %p132, %s131, 5
        %s134 = smul.addr %s133, 3
        %s135 = smul.addr %s134, 2
        %s136 = scalar_lea.vmem %s0, %s135
        %s137 = smul.u32 3, %s9
      $region28: #{multi_periodic_discriminator_forward.13} parent=23 // pred_fallthru
        _
    $region24: #{multi_periodic_discriminator_forward.13} parent=5 // pred_fallthru
      _
    %p138 = scmp.le.s32.totalorder 1, %s9
    %p139 = scmp.lt.s32.totalorder %s9, 3
    %p140 = pnand %p138, %p139
    %p141 = pneg %p140
    // Predicated region
    $region29: #{multi_periodic_discriminator_forward.13} parent=5 // pred_check
      _
    $region30: #{multi_periodic_discriminator_forward.13} parent=5 // pred_check_branch
      %143 = sbr.rel (%p140) target = $region32
    $region31: #{multi_periodic_discriminator_forward.13} parent=5 // pred_region
      %s144 = ssub.s32 %s9, 1
      %s145 = smul.u32 3, %s14
      %p146 = scmp.lt.s32.totalorder %s145, 5
      %s147 = scalar_select %p146, %s145, 5
      %s148 = smul.addr %s147, 3
      %s149 = smul.addr %s148, 2
      %s150 = scalar_lea.vmem %s0, %s149
      %p151 = pneg %p35
      %p152 = pneg %p32
      %p153 = pneg %p56
      %p154 = pneg %p53
      %p155 = pneg %p77
      %p156 = pneg %p74
      %p157 = pneg %p103
      %p158 = pneg %p100
      %s159 = smul.u32 3, %s14
      %p160 = scmp.lt.s32.totalorder %s159, 5
      %s161 = scalar_select %p160, %s159, 5
      %s162 = smul.addr %s161, 2
      %s163 = scalar_lea.vmem %s3, %s162
      %s164 = smul.u32 3, %s14
      %p165 = scmp.lt.s32.totalorder %s164, 5
      %s166 = scalar_select %p165, %s164, 5
      %s167 = smul.addr %s166, 3
      %s168 = smul.addr %s167, 2
      %s169 = scalar_lea.vmem %s0, %s168
      %s170 = smul.u32 3, %s14
      %s171 = smul.u32 3, %s14
      %p172 = scmp.lt.s32.totalorder %s171, 5
      %s173 = scalar_select %p172, %s171, 5
      %s174 = smul.addr %s173, 2
      %s175 = scalar_lea.vmem %s3, %s174
      %s176 = smul.u32 3, %s14
      %v178 = vld [vmem:[%s2] sm:$0x1]
      %v179 = vld [vmem:[%s169] sm:$0x3]
      %v180 = vld [vmem:[%s1] sm:$0xf]
      %v181 = vld [vmem:[%s1 + $0x4] sm:$0xf]
      %v182 = vld [vmem:[%s1 + $0x8] sm:$0xf]
      %v183 = vld [vmem:[%s1 + $0xc] sm:$0xf]
      %v184 = vld [vmem:[%s1 + $0x10] sm:$0xf]
      %v185 = vld [vmem:[%s1 + $0x14] sm:$0xf]
      %v186 = vld [vmem:[%s1 + $0x18] sm:$0xf]
      %v187 = vld [vmem:[%s1 + $0x1c] sm:$0xf]
      %v188 = vld [vmem:[%s1 + $0x20] sm:$0xf]
      %v189 = vld [vmem:[%s1 + $0x24] sm:$0xf]
      %v190 = vld [vmem:[%s1 + $0x28] sm:$0xf]
      %v191 = vld [vmem:[%s1 + $0x2c] sm:$0xf]
      %v192 = vld [vmem:[%s1 + $0x30] sm:$0xf]
      %v193 = vld [vmem:[%s1 + $0x34] sm:$0xf]
      %v194 = vld [vmem:[%s1 + $0x38] sm:$0xf]
      %v195 = vld [vmem:[%s1 + $0x3c] sm:$0xf]
      %v196 = vld [vmem:[%s169 + $0x2] sm:$0x3]
      %s197 = scalar_lea.vmem %s1, 64
      %v198 = vld [vmem:[%s197] sm:$0xf]
      %v199 = vld [vmem:[%s197 + $0x4] sm:$0xf]
      %v200 = vld [vmem:[%s197 + $0x8] sm:$0xf]
      %v201 = vld [vmem:[%s197 + $0xc] sm:$0xf]
      %v202 = vld [vmem:[%s197 + $0x10] sm:$0xf]
      %v203 = vld [vmem:[%s197 + $0x14] sm:$0xf]
      %v204 = vld [vmem:[%s197 + $0x18] sm:$0xf]
      %v205 = vld [vmem:[%s197 + $0x1c] sm:$0xf]
      %v206 = vld [vmem:[%s197 + $0x20] sm:$0xf]
      %v207 = vld [vmem:[%s197 + $0x24] sm:$0xf]
      %v208 = vld [vmem:[%s197 + $0x28] sm:$0xf]
      %v209 = vld [vmem:[%s197 + $0x2c] sm:$0xf]
      %v210 = vld [vmem:[%s197 + $0x30] sm:$0xf]
      %v211 = vld [vmem:[%s197 + $0x34] sm:$0xf]
      %v212 = vld [vmem:[%s197 + $0x38] sm:$0xf]
      %v213 = vld [vmem:[%s197 + $0x3c] sm:$0xf]
      %v230 = vunpack.c.l.b16 %v198
      %v231 = vunpack.c.l.b16 %v199
      %v232 = vunpack.c.l.b16 %v200
      %v233 = vunpack.c.l.b16 %v201
      %v234 = vunpack.c.l.b16 %v202
      %v235 = vunpack.c.l.b16 %v203
      %v236 = vunpack.c.l.b16 %v204
      %v237 = vunpack.c.l.b16 %v205
      %v238 = vunpack.c.l.b16 %v206
      %v239 = vunpack.c.l.b16 %v207
      %v240 = vunpack.c.l.b16 %v208
      %v241 = vunpack.c.l.b16 %v209
      %v242 = vunpack.c.l.b16 %v210
      %v243 = vunpack.c.l.b16 %v211
      %v244 = vunpack.c.l.b16 %v212
      %v245 = vunpack.c.l.b16 %v213
      %v246 = vpack.c.b16 %v231, %v230
      %v247 = vpack.c.b16 %v233, %v232
      %v248 = vpack.c.b16 %v235, %v234
      %v249 = vpack.c.b16 %v237, %v236
      %v250 = vpack.c.b16 %v239, %v238
      %v251 = vpack.c.b16 %v241, %v240
      %v252 = vpack.c.b16 %v243, %v242
      %v253 = vpack.c.b16 %v245, %v244
      %262 = vmatprep.subr.bf16.mxu0 0
      %263 = vmatpush1.bf16.msra.mxu0 %v253
      %264 = vmatprep.subr.bf16.mxu0 0
      %265 = vmatpush1.bf16.msra.mxu0 %v252
      %266 = vmatprep.subr.bf16.mxu0 0
      %267 = vmatpush1.bf16.msra.mxu0 %v251
      %268 = vmatprep.subr.bf16.mxu0 0
      %269 = vmatpush1.bf16.msra.mxu0 %v250
      %270 = vmatprep.subr.bf16.mxu0 0
      %271 = vmatpush1.bf16.msra.mxu0 %v249
      %272 = vmatprep.subr.bf16.mxu0 0
      %273 = vmatpush1.bf16.msra.mxu0 %v248
      %274 = vmatprep.subr.bf16.mxu0 0
      %275 = vmatpush1.bf16.msra.mxu0 %v247
      %276 = vmatprep.subr.bf16.mxu0 0
      %277 = vmatpush1.bf16.msra.mxu0 %v246
      %278 = vmatprep.subr.bf16.mxu0 0
      %279 = vmatpush2.bf16.msra.mxu0 0
      %280 = vmatprep.subr.bf16.mxu0 0
      %281 = vmatpush2.bf16.msra.mxu0 0
      %282 = vmatprep.subr.bf16.mxu0 0
      %283 = vmatpush2.bf16.msra.mxu0 0
      %284 = vmatprep.subr.bf16.mxu0 0
      %285 = vmatpush2.bf16.msra.mxu0 0
      %286 = vmatprep.subr.bf16.mxu0 0
      %287 = vmatpush2.bf16.msra.mxu0 0
      %288 = vmatprep.subr.bf16.mxu0 0
      %289 = vmatpush2.bf16.msra.mxu0 0
      %290 = vmatprep.subr.bf16.mxu0 0
      %291 = vmatpush2.bf16.msra.mxu0 0
      %292 = vmatprep.subr.bf16.mxu0 0
      %293 = vmatpush2.bf16.msra.mxu0 0
      %294 = vmatprep.mubr.bf16.mxu0 0
      %295 = vmatmul.mubr.bf16.gmra.mxu0 %v196
      %v296 = vpop.f32.mrf.mxu0
      %v297 = vadd.f32 0.0, %v296
      %v298 = vpop.f32.mrf.mxu0
      %v299 = vpop.f32.mrf.mxu0
      %v300 = vpop.f32.mrf.mxu0
      %301 = vdwg.mxu0
      %v318 = vunpack.c.l.b16 %v180
      %v319 = vunpack.c.l.b16 %v181
      %v320 = vunpack.c.l.b16 %v182
      %v321 = vunpack.c.l.b16 %v183
      %v322 = vunpack.c.l.b16 %v184
      %v323 = vunpack.c.l.b16 %v185
      %v324 = vunpack.c.l.b16 %v186
      %v325 = vunpack.c.l.b16 %v187
      %v326 = vunpack.c.l.b16 %v188
      %v327 = vunpack.c.l.b16 %v189
      %v328 = vunpack.c.l.b16 %v190
      %v329 = vunpack.c.l.b16 %v191
      %v330 = vunpack.c.l.b16 %v192
      %v331 = vunpack.c.l.b16 %v193
      %v332 = vunpack.c.l.b16 %v194
      %v333 = vunpack.c.l.b16 %v195
      %v334 = vpack.c.b16 %v319, %v318
      %v335 = vpack.c.b16 %v321, %v320
      %v336 = vpack.c.b16 %v323, %v322
      %v337 = vpack.c.b16 %v325, %v324
      %v338 = vpack.c.b16 %v327, %v326
      %v339 = vpack.c.b16 %v329, %v328
      %v340 = vpack.c.b16 %v331, %v330
      %v341 = vpack.c.b16 %v333, %v332
      %350 = vmatprep.subr.bf16.mxu0 0
      %351 = vmatpush1.bf16.msra.mxu0 %v341
      %352 = vmatprep.subr.bf16.mxu0 0
      %353 = vmatpush1.bf16.msra.mxu0 %v340
      %354 = vmatprep.subr.bf16.mxu0 0
      %355 = vmatpush1.bf16.msra.mxu0 %v339
      %356 = vmatprep.subr.bf16.mxu0 0
      %357 = vmatpush1.bf16.msra.mxu0 %v338
      %358 = vmatprep.subr.bf16.mxu0 0
      %359 = vmatpush1.bf16.msra.mxu0 %v337
      %360 = vmatprep.subr.bf16.mxu0 0
      %361 = vmatpush1.bf16.msra.mxu0 %v336
      %362 = vmatprep.subr.bf16.mxu0 0
      %363 = vmatpush1.bf16.msra.mxu0 %v335
      %364 = vmatprep.subr.bf16.mxu0 0
      %365 = vmatpush1.bf16.msra.mxu0 %v334
      %366 = vmatprep.subr.bf16.mxu0 0
      %367 = vmatpush2.bf16.msra.mxu0 0
      %368 = vmatprep.subr.bf16.mxu0 0
      %369 = vmatpush2.bf16.msra.mxu0 0
      %370 = vmatprep.subr.bf16.mxu0 0
      %371 = vmatpush2.bf16.msra.mxu0 0
      %372 = vmatprep.subr.bf16.mxu0 0
      %373 = vmatpush2.bf16.msra.mxu0 0
      %374 = vmatprep.subr.bf16.mxu0 0
      %375 = vmatpush2.bf16.msra.mxu0 0
      %376 = vmatprep.subr.bf16.mxu0 0
      %377 = vmatpush2.bf16.msra.mxu0 0
      %378 = vmatprep.subr.bf16.mxu0 0
      %379 = vmatpush2.bf16.msra.mxu0 0
      %380 = vmatprep.subr.bf16.mxu0 0
      %381 = vmatpush2.bf16.msra.mxu0 0
      %382 = vmatprep.mubr.bf16.mxu0 0
      %383 = vmatmul.mubr.bf16.gmra.mxu0 %v179
      %v384 = vpop.f32.mrf.mxu0
      %v385 = vadd.f32 %v297, %v384
      %v386 = vpop.f32.mrf.mxu0
      %v387 = vpop.f32.mrf.mxu0
      %v388 = vpop.f32.mrf.mxu0
      %389 = vdwg.mxu0
      %v390 = vld [vmem:[%s169 + $0x4] sm:$0x3]
      %s391 = scalar_lea.vmem %s1, 128
      %v392 = vld [vmem:[%s391] sm:$0xf]
      %v393 = vld [vmem:[%s391 + $0x4] sm:$0xf]
      %v394 = vld [vmem:[%s391 + $0x8] sm:$0xf]
      %v395 = vld [vmem:[%s391 + $0xc] sm:$0xf]
      %v396 = vld [vmem:[%s391 + $0x10] sm:$0xf]
      %v397 = vld [vmem:[%s391 + $0x14] sm:$0xf]
      %v398 = vld [vmem:[%s391 + $0x18] sm:$0xf]
      %v399 = vld [vmem:[%s391 + $0x1c] sm:$0xf]
      %v400 = vld [vmem:[%s391 + $0x20] sm:$0xf]
      %v401 = vld [vmem:[%s391 + $0x24] sm:$0xf]
      %v402 = vld [vmem:[%s391 + $0x28] sm:$0xf]
      %v403 = vld [vmem:[%s391 + $0x2c] sm:$0xf]
      %v404 = vld [vmem:[%s391 + $0x30] sm:$0xf]
      %v405 = vld [vmem:[%s391 + $0x34] sm:$0xf]
      %v406 = vld [vmem:[%s391 + $0x38] sm:$0xf]
      %v407 = vld [vmem:[%s391 + $0x3c] sm:$0xf]
      %v424 = vunpack.c.l.b16 %v392
      %v425 = vunpack.c.l.b16 %v393
      %v426 = vunpack.c.l.b16 %v394
      %v427 = vunpack.c.l.b16 %v395
      %v428 = vunpack.c.l.b16 %v396
      %v429 = vunpack.c.l.b16 %v397
      %v430 = vunpack.c.l.b16 %v398
      %v431 = vunpack.c.l.b16 %v399
      %v432 = vunpack.c.l.b16 %v400
      %v433 = vunpack.c.l.b16 %v401
      %v434 = vunpack.c.l.b16 %v402
      %v435 = vunpack.c.l.b16 %v403
      %v436 = vunpack.c.l.b16 %v404
      %v437 = vunpack.c.l.b16 %v405
      %v438 = vunpack.c.l.b16 %v406
      %v439 = vunpack.c.l.b16 %v407
      %v440 = vpack.c.b16 %v425, %v424
      %v441 = vpack.c.b16 %v427, %v426
      %v442 = vpack.c.b16 %v429, %v428
      %v443 = vpack.c.b16 %v431, %v430
      %v444 = vpack.c.b16 %v433, %v432
      %v445 = vpack.c.b16 %v435, %v434
      %v446 = vpack.c.b16 %v437, %v436
      %v447 = vpack.c.b16 %v439, %v438
      %456 = vmatprep.subr.bf16.mxu0 0
      %457 = vmatpush1.bf16.msra.mxu0 %v447
      %458 = vmatprep.subr.bf16.mxu0 0
      %459 = vmatpush1.bf16.msra.mxu0 %v446
      %460 = vmatprep.subr.bf16.mxu0 0
      %461 = vmatpush1.bf16.msra.mxu0 %v445
      %462 = vmatprep.subr.bf16.mxu0 0
      %463 = vmatpush1.bf16.msra.mxu0 %v444
      %464 = vmatprep.subr.bf16.mxu0 0
      %465 = vmatpush1.bf16.msra.mxu0 %v443
      %466 = vmatprep.subr.bf16.mxu0 0
      %467 = vmatpush1.bf16.msra.mxu0 %v442
      %468 = vmatprep.subr.bf16.mxu0 0
      %469 = vmatpush1.bf16.msra.mxu0 %v441
      %470 = vmatprep.subr.bf16.mxu0 0
      %471 = vmatpush1.bf16.msra.mxu0 %v440
      %472 = vmatprep.subr.bf16.mxu0 0
      %473 = vmatpush2.bf16.msra.mxu0 0
      %474 = vmatprep.subr.bf16.mxu0 0
      %475 = vmatpush2.bf16.msra.mxu0 0
      %476 = vmatprep.subr.bf16.mxu0 0
      %477 = vmatpush2.bf16.msra.mxu0 0
      %478 = vmatprep.subr.bf16.mxu0 0
      %479 = vmatpush2.bf16.msra.mxu0 0
      %480 = vmatprep.subr.bf16.mxu0 0
      %481 = vmatpush2.bf16.msra.mxu0 0
      %482 = vmatprep.subr.bf16.mxu0 0
      %483 = vmatpush2.bf16.msra.mxu0 0
      %484 = vmatprep.subr.bf16.mxu0 0
      %485 = vmatpush2.bf16.msra.mxu0 0
      %486 = vmatprep.subr.bf16.mxu0 0
      %487 = vmatpush2.bf16.msra.mxu0 0
      %488 = vmatprep.mubr.bf16.mxu0 0
      %489 = vmatmul.mubr.bf16.gmra.mxu0 %v390
      %v490 = vpop.f32.mrf.mxu0
      %v491 = vadd.f32 0.0, %v490
      %v492 = vpop.f32.mrf.mxu0
      %v493 = vpop.f32.mrf.mxu0
      %v494 = vpop.f32.mrf.mxu0
      %495 = vdwg.mxu0
      %v496 = vadd.f32 %v385, %v491
      %s497 = scalar_lea.vmem %s1, 192
      %v498 = vld [vmem:[%s497] sm:$0xf]
      %v499 = vld [vmem:[%s497 + $0x4] sm:$0xf]
      %v500 = vld [vmem:[%s497 + $0x8] sm:$0xf]
      %v501 = vld [vmem:[%s497 + $0xc] sm:$0xf]
      %v502 = vld [vmem:[%s497 + $0x10] sm:$0xf]
      %v503 = vld [vmem:[%s497 + $0x14] sm:$0xf]
      %v504 = vld [vmem:[%s497 + $0x18] sm:$0xf]
      %v505 = vld [vmem:[%s497 + $0x1c] sm:$0xf]
      %v506 = vld [vmem:[%s497 + $0x20] sm:$0xf]
      %v507 = vld [vmem:[%s497 + $0x24] sm:$0xf]
      %v508 = vld [vmem:[%s497 + $0x28] sm:$0xf]
      %v509 = vld [vmem:[%s497 + $0x2c] sm:$0xf]
      %v510 = vld [vmem:[%s497 + $0x30] sm:$0xf]
      %v511 = vld [vmem:[%s497 + $0x34] sm:$0xf]
      %v512 = vld [vmem:[%s497 + $0x38] sm:$0xf]
      %v513 = vld [vmem:[%s497 + $0x3c] sm:$0xf]
      %v516 = vunpack.c.l.s4 1983009808
      %v517 = vunpack.c.0.s8 %v516
      %v518 = vlaneseq
      %v519 = vshrl.u32 %v518, 7
      %v520 = vsub.s32 %v517, %v519
      %v521 = vrot.slane %v179, %v520
      %v523 = vshrl.u32 %v521, 16
      %v525 = vshll.u32 %v521, 16
      %v527 = vrot.slane %v525, 1
      %v528 = vor.u32 %v523, %v527
      %v546 = vunpack.c.l.b16 %v498
      %v547 = vunpack.c.l.b16 %v499
      %v548 = vunpack.c.l.b16 %v500
      %v549 = vunpack.c.l.b16 %v501
      %v550 = vunpack.c.l.b16 %v502
      %v551 = vunpack.c.l.b16 %v503
      %v552 = vunpack.c.l.b16 %v504
      %v553 = vunpack.c.l.b16 %v505
      %v554 = vunpack.c.l.b16 %v506
      %v555 = vunpack.c.l.b16 %v507
      %v556 = vunpack.c.l.b16 %v508
      %v557 = vunpack.c.l.b16 %v509
      %v558 = vunpack.c.l.b16 %v510
      %v559 = vunpack.c.l.b16 %v511
      %v560 = vunpack.c.l.b16 %v512
      %v561 = vunpack.c.l.b16 %v513
      %v562 = vpack.c.b16 %v547, %v546
      %v563 = vpack.c.b16 %v549, %v548
      %v564 = vpack.c.b16 %v551, %v550
      %v565 = vpack.c.b16 %v553, %v552
      %v566 = vpack.c.b16 %v555, %v554
      %v567 = vpack.c.b16 %v557, %v556
      %v568 = vpack.c.b16 %v559, %v558
      %v569 = vpack.c.b16 %v561, %v560
      %578 = vmatprep.subr.bf16.mxu0 0
      %579 = vmatpush1.bf16.msra.mxu0 %v569
      %580 = vmatprep.subr.bf16.mxu0 0
      %581 = vmatpush1.bf16.msra.mxu0 %v568
      %582 = vmatprep.subr.bf16.mxu0 0
      %583 = vmatpush1.bf16.msra.mxu0 %v567
      %584 = vmatprep.subr.bf16.mxu0 0
      %585 = vmatpush1.bf16.msra.mxu0 %v566
      %586 = vmatprep.subr.bf16.mxu0 0
      %587 = vmatpush1.bf16.msra.mxu0 %v565
      %588 = vmatprep.subr.bf16.mxu0 0
      %589 = vmatpush1.bf16.msra.mxu0 %v564
      %590 = vmatprep.subr.bf16.mxu0 0
      %591 = vmatpush1.bf16.msra.mxu0 %v563
      %592 = vmatprep.subr.bf16.mxu0 0
      %593 = vmatpush1.bf16.msra.mxu0 %v562
      %594 = vmatprep.subr.bf16.mxu0 0
      %595 = vmatpush2.bf16.msra.mxu0 0
      %596 = vmatprep.subr.bf16.mxu0 0
      %597 = vmatpush2.bf16.msra.mxu0 0
      %598 = vmatprep.subr.bf16.mxu0 0
      %599 = vmatpush2.bf16.msra.mxu0 0
      %600 = vmatprep.subr.bf16.mxu0 0
      %601 = vmatpush2.bf16.msra.mxu0 0
      %602 = vmatprep.subr.bf16.mxu0 0
      %603 = vmatpush2.bf16.msra.mxu0 0
      %604 = vmatprep.subr.bf16.mxu0 0
      %605 = vmatpush2.bf16.msra.mxu0 0
      %606 = vmatprep.subr.bf16.mxu0 0
      %607 = vmatpush2.bf16.msra.mxu0 0
      %608 = vmatprep.subr.bf16.mxu0 0
      %609 = vmatpush2.bf16.msra.mxu0 0
      %610 = vmatprep.mubr.bf16.mxu0 0
      %611 = vmatmul.mubr.bf16.gmra.mxu0 %v528
      %v612 = vpop.f32.mrf.mxu0
      %v613 = vadd.f32 0.0, %v612
      %v614 = vpop.f32.mrf.mxu0
      %v615 = vpop.f32.mrf.mxu0
      %v616 = vpop.f32.mrf.mxu0
      %617 = vdwg.mxu0
      %v618 = vadd.f32 %v496, %v613
      %v619 = vld [vmem:[%s169 + $0x2] sm:$0x3]
      %s620 = scalar_lea.vmem %s1, 256
      %v621 = vld [vmem:[%s620] sm:$0xf]
      %v622 = vld [vmem:[%s620 + $0x4] sm:$0xf]
      %v623 = vld [vmem:[%s620 + $0x8] sm:$0xf]
      %v624 = vld [vmem:[%s620 + $0xc] sm:$0xf]
      %v625 = vld [vmem:[%s620 + $0x10] sm:$0xf]
      %v626 = vld [vmem:[%s620 + $0x14] sm:$0xf]
      %v627 = vld [vmem:[%s620 + $0x18] sm:$0xf]
      %v628 = vld [vmem:[%s620 + $0x1c] sm:$0xf]
      %v629 = vld [vmem:[%s620 + $0x20] sm:$0xf]
      %v630 = vld [vmem:[%s620 + $0x24] sm:$0xf]
      %v631 = vld [vmem:[%s620 + $0x28] sm:$0xf]
      %v632 = vld [vmem:[%s620 + $0x2c] sm:$0xf]
      %v633 = vld [vmem:[%s620 + $0x30] sm:$0xf]
      %v634 = vld [vmem:[%s620 + $0x34] sm:$0xf]
      %v635 = vld [vmem:[%s620 + $0x38] sm:$0xf]
      %v636 = vld [vmem:[%s620 + $0x3c] sm:$0xf]
      %v639 = vunpack.c.l.s4 1983009808
      %v640 = vunpack.c.0.s8 %v639
      %v641 = vlaneseq
      %v642 = vshrl.u32 %v641, 7
      %v643 = vsub.s32 %v640, %v642
      %v644 = vrot.slane %v619, %v643
      %v646 = vshrl.u32 %v644, 16
      %v648 = vshll.u32 %v644, 16
      %v650 = vrot.slane %v648, 1
      %v651 = vor.u32 %v646, %v650
      %v669 = vunpack.c.l.b16 %v621
      %v670 = vunpack.c.l.b16 %v622
      %v671 = vunpack.c.l.b16 %v623
      %v672 = vunpack.c.l.b16 %v624
      %v673 = vunpack.c.l.b16 %v625
      %v674 = vunpack.c.l.b16 %v626
      %v675 = vunpack.c.l.b16 %v627
      %v676 = vunpack.c.l.b16 %v628
      %v677 = vunpack.c.l.b16 %v629
      %v678 = vunpack.c.l.b16 %v630
      %v679 = vunpack.c.l.b16 %v631
      %v680 = vunpack.c.l.b16 %v632
      %v681 = vunpack.c.l.b16 %v633
      %v682 = vunpack.c.l.b16 %v634
      %v683 = vunpack.c.l.b16 %v635
      %v684 = vunpack.c.l.b16 %v636
      %v685 = vpack.c.b16 %v670, %v669
      %v686 = vpack.c.b16 %v672, %v671
      %v687 = vpack.c.b16 %v674, %v673
      %v688 = vpack.c.b16 %v676, %v675
      %v689 = vpack.c.b16 %v678, %v677
      %v690 = vpack.c.b16 %v680, %v679
      %v691 = vpack.c.b16 %v682, %v681
      %v692 = vpack.c.b16 %v684, %v683
      %701 = vmatprep.subr.bf16.mxu0 0
      %702 = vmatpush1.bf16.msra.mxu0 %v692
      %703 = vmatprep.subr.bf16.mxu0 0
      %704 = vmatpush1.bf16.msra.mxu0 %v691
      %705 = vmatprep.subr.bf16.mxu0 0
      %706 = vmatpush1.bf16.msra.mxu0 %v690
      %707 = vmatprep.subr.bf16.mxu0 0
      %708 = vmatpush1.bf16.msra.mxu0 %v689
      %709 = vmatprep.subr.bf16.mxu0 0
      %710 = vmatpush1.bf16.msra.mxu0 %v688
      %711 = vmatprep.subr.bf16.mxu0 0
      %712 = vmatpush1.bf16.msra.mxu0 %v687
      %713 = vmatprep.subr.bf16.mxu0 0
      %714 = vmatpush1.bf16.msra.mxu0 %v686
      %715 = vmatprep.subr.bf16.mxu0 0
      %716 = vmatpush1.bf16.msra.mxu0 %v685
      %717 = vmatprep.subr.bf16.mxu0 0
      %718 = vmatpush2.bf16.msra.mxu0 0
      %719 = vmatprep.subr.bf16.mxu0 0
      %720 = vmatpush2.bf16.msra.mxu0 0
      %721 = vmatprep.subr.bf16.mxu0 0
      %722 = vmatpush2.bf16.msra.mxu0 0
      %723 = vmatprep.subr.bf16.mxu0 0
      %724 = vmatpush2.bf16.msra.mxu0 0
      %725 = vmatprep.subr.bf16.mxu0 0
      %726 = vmatpush2.bf16.msra.mxu0 0
      %727 = vmatprep.subr.bf16.mxu0 0
      %728 = vmatpush2.bf16.msra.mxu0 0
      %729 = vmatprep.subr.bf16.mxu0 0
      %730 = vmatpush2.bf16.msra.mxu0 0
      %731 = vmatprep.subr.bf16.mxu0 0
      %732 = vmatpush2.bf16.msra.mxu0 0
      %733 = vmatprep.mubr.bf16.mxu0 0
      %734 = vmatmul.mubr.bf16.gmra.mxu0 %v651
      %v735 = vpop.f32.mrf.mxu0
      %v736 = vadd.f32 0.0, %v735
      %v737 = vpop.f32.mrf.mxu0
      %v738 = vpop.f32.mrf.mxu0
      %v739 = vpop.f32.mrf.mxu0
      %740 = vdwg.mxu0
      %v741 = vadd.f32 %v618, %v736
      %v743 = vlaneseq
      %v744 = vshrl.u32 %v743, 7
      %v745 = vsub.s32 0, %v744
      %v746 = vrot.slane %v178, %v745
      %v748 = vadd.f32 %v741, %v746
      %v749 = vmul.f32 %v748, 0.1
      %v750 = vmax.f32 %v748, %v749
      %v751 = vpack.c.bf16 %v750, %v750
      %vm752 = vcmask 1041408
      %vm753 = vsmask.f32 1280
      %vm754 = vmand %vm752, %vm753
      %v755 = vld [vmem:[%s175] sm:$0x3]
      %v756 = vsel %vm754, %v751, %v755
      %757 = vst [vmem:[%s175] sm:$0x3] %v756
      %s758 = scalar_lea.vmem %s169, 6
      %v759 = vld [vmem:[%s758] sm:$0x3]
      %v760 = vld [vmem:[%s1] sm:$0xf]
      %v761 = vld [vmem:[%s1 + $0x4] sm:$0xf]
      %v762 = vld [vmem:[%s1 + $0x8] sm:$0xf]
      %v763 = vld [vmem:[%s1 + $0xc] sm:$0xf]
      %v764 = vld [vmem:[%s1 + $0x10] sm:$0xf]
      %v765 = vld [vmem:[%s1 + $0x14] sm:$0xf]
      %v766 = vld [vmem:[%s1 + $0x18] sm:$0xf]
      %v767 = vld [vmem:[%s1 + $0x1c] sm:$0xf]
      %v768 = vld [vmem:[%s1 + $0x20] sm:$0xf]
      %v769 = vld [vmem:[%s1 + $0x24] sm:$0xf]
      %v770 = vld [vmem:[%s1 + $0x28] sm:$0xf]
      %v771 = vld [vmem:[%s1 + $0x2c] sm:$0xf]
      %v772 = vld [vmem:[%s1 + $0x30] sm:$0xf]
      %v773 = vld [vmem:[%s1 + $0x34] sm:$0xf]
      %v774 = vld [vmem:[%s1 + $0x38] sm:$0xf]
      %v775 = vld [vmem:[%s1 + $0x3c] sm:$0xf]
      %v776 = vld [vmem:[%s758 + $0x2] sm:$0x3]
      %v777 = vld [vmem:[%s197] sm:$0xf]
      %v778 = vld [vmem:[%s197 + $0x4] sm:$0xf]
      %v779 = vld [vmem:[%s197 + $0x8] sm:$0xf]
      %v780 = vld [vmem:[%s197 + $0xc] sm:$0xf]
      %v781 = vld [vmem:[%s197 + $0x10] sm:$0xf]
      %v782 = vld [vmem:[%s197 + $0x14] sm:$0xf]
      %v783 = vld [vmem:[%s197 + $0x18] sm:$0xf]
      %v784 = vld [vmem:[%s197 + $0x1c] sm:$0xf]
      %v785 = vld [vmem:[%s197 + $0x20] sm:$0xf]
      %v786 = vld [vmem:[%s197 + $0x24] sm:$0xf]
      %v787 = vld [vmem:[%s197 + $0x28] sm:$0xf]
      %v788 = vld [vmem:[%s197 + $0x2c] sm:$0xf]
      %v789 = vld [vmem:[%s197 + $0x30] sm:$0xf]
      %v790 = vld [vmem:[%s197 + $0x34] sm:$0xf]
      %v791 = vld [vmem:[%s197 + $0x38] sm:$0xf]
      %v792 = vld [vmem:[%s197 + $0x3c] sm:$0xf]
      %v809 = vunpack.c.l.b16 %v777
      %v810 = vunpack.c.l.b16 %v778
      %v811 = vunpack.c.l.b16 %v779
      %v812 = vunpack.c.l.b16 %v780
      %v813 = vunpack.c.l.b16 %v781
      %v814 = vunpack.c.l.b16 %v782
      %v815 = vunpack.c.l.b16 %v783
      %v816 = vunpack.c.l.b16 %v784
      %v817 = vunpack.c.l.b16 %v785
      %v818 = vunpack.c.l.b16 %v786
      %v819 = vunpack.c.l.b16 %v787
      %v820 = vunpack.c.l.b16 %v788
      %v821 = vunpack.c.l.b16 %v789
      %v822 = vunpack.c.l.b16 %v790
      %v823 = vunpack.c.l.b16 %v791
      %v824 = vunpack.c.l.b16 %v792
      %v825 = vpack.c.b16 %v810, %v809
      %v826 = vpack.c.b16 %v812, %v811
      %v827 = vpack.c.b16 %v814, %v813
      %v828 = vpack.c.b16 %v816, %v815
      %v829 = vpack.c.b16 %v818, %v817
      %v830 = vpack.c.b16 %v820, %v819
      %v831 = vpack.c.b16 %v822, %v821
      %v832 = vpack.c.b16 %v824, %v823
      %841 = vmatprep.subr.bf16.mxu0 0
      %842 = vmatpush1.bf16.msra.mxu0 %v832
      %843 = vmatprep.subr.bf16.mxu0 0
      %844 = vmatpush1.bf16.msra.mxu0 %v831
      %845 = vmatprep.subr.bf16.mxu0 0
      %846 = vmatpush1.bf16.msra.mxu0 %v830
      %847 = vmatprep.subr.bf16.mxu0 0
      %848 = vmatpush1.bf16.msra.mxu0 %v829
      %849 = vmatprep.subr.bf16.mxu0 0
      %850 = vmatpush1.bf16.msra.mxu0 %v828
      %851 = vmatprep.subr.bf16.mxu0 0
      %852 = vmatpush1.bf16.msra.mxu0 %v827
      %853 = vmatprep.subr.bf16.mxu0 0
      %854 = vmatpush1.bf16.msra.mxu0 %v826
      %855 = vmatprep.subr.bf16.mxu0 0
      %856 = vmatpush1.bf16.msra.mxu0 %v825
      %857 = vmatprep.subr.bf16.mxu0 0
      %858 = vmatpush2.bf16.msra.mxu0 0
      %859 = vmatprep.subr.bf16.mxu0 0
      %860 = vmatpush2.bf16.msra.mxu0 0
      %861 = vmatprep.subr.bf16.mxu0 0
      %862 = vmatpush2.bf16.msra.mxu0 0
      %863 = vmatprep.subr.bf16.mxu0 0
      %864 = vmatpush2.bf16.msra.mxu0 0
      %865 = vmatprep.subr.bf16.mxu0 0
      %866 = vmatpush2.bf16.msra.mxu0 0
      %867 = vmatprep.subr.bf16.mxu0 0
      %868 = vmatpush2.bf16.msra.mxu0 0
      %869 = vmatprep.subr.bf16.mxu0 0
      %870 = vmatpush2.bf16.msra.mxu0 0
      %871 = vmatprep.subr.bf16.mxu0 0
      %872 = vmatpush2.bf16.msra.mxu0 0
      %873 = vmatprep.mubr.bf16.mxu0 0
      %874 = vmatmul.mubr.bf16.gmra.mxu0 %v776
      %v875 = vpop.f32.mrf.mxu0
      %v876 = vadd.f32 0.0, %v875
      %v877 = vpop.f32.mrf.mxu0
      %v878 = vpop.f32.mrf.mxu0
      %v879 = vpop.f32.mrf.mxu0
      %880 = vdwg.mxu0
      %v897 = vunpack.c.l.b16 %v760
      %v898 = vunpack.c.l.b16 %v761
      %v899 = vunpack.c.l.b16 %v762
      %v900 = vunpack.c.l.b16 %v763
      %v901 = vunpack.c.l.b16 %v764
      %v902 = vunpack.c.l.b16 %v765
      %v903 = vunpack.c.l.b16 %v766
      %v904 = vunpack.c.l.b16 %v767
      %v905 = vunpack.c.l.b16 %v768
      %v906 = vunpack.c.l.b16 %v769
      %v907 = vunpack.c.l.b16 %v770
      %v908 = vunpack.c.l.b16 %v771
      %v909 = vunpack.c.l.b16 %v772
      %v910 = vunpack.c.l.b16 %v773
      %v911 = vunpack.c.l.b16 %v774
      %v912 = vunpack.c.l.b16 %v775
      %v913 = vpack.c.b16 %v898, %v897
      %v914 = vpack.c.b16 %v900, %v899
      %v915 = vpack.c.b16 %v902, %v901
      %v916 = vpack.c.b16 %v904, %v903
      %v917 = vpack.c.b16 %v906, %v905
      %v918 = vpack.c.b16 %v908, %v907
      %v919 = vpack.c.b16 %v910, %v909
      %v920 = vpack.c.b16 %v912, %v911
      %929 = vmatprep.subr.bf16.mxu0 0
      %930 = vmatpush1.bf16.msra.mxu0 %v920
      %931 = vmatprep.subr.bf16.mxu0 0
      %932 = vmatpush1.bf16.msra.mxu0 %v919
      %933 = vmatprep.subr.bf16.mxu0 0
      %934 = vmatpush1.bf16.msra.mxu0 %v918
      %935 = vmatprep.subr.bf16.mxu0 0
      %936 = vmatpush1.bf16.msra.mxu0 %v917
      %937 = vmatprep.subr.bf16.mxu0 0
      %938 = vmatpush1.bf16.msra.mxu0 %v916
      %939 = vmatprep.subr.bf16.mxu0 0
      %940 = vmatpush1.bf16.msra.mxu0 %v915
      %941 = vmatprep.subr.bf16.mxu0 0
      %942 = vmatpush1.bf16.msra.mxu0 %v914
      %943 = vmatprep.subr.bf16.mxu0 0
      %944 = vmatpush1.bf16.msra.mxu0 %v913
      %945 = vmatprep.subr.bf16.mxu0 0
      %946 = vmatpush2.bf16.msra.mxu0 0
      %947 = vmatprep.subr.bf16.mxu0 0
      %948 = vmatpush2.bf16.msra.mxu0 0
      %949 = vmatprep.subr.bf16.mxu0 0
      %950 = vmatpush2.bf16.msra.mxu0 0
      %951 = vmatprep.subr.bf16.mxu0 0
      %952 = vmatpush2.bf16.msra.mxu0 0
      %953 = vmatprep.subr.bf16.mxu0 0
      %954 = vmatpush2.bf16.msra.mxu0 0
      %955 = vmatprep.subr.bf16.mxu0 0
      %956 = vmatpush2.bf16.msra.mxu0 0
      %957 = vmatprep.subr.bf16.mxu0 0
      %958 = vmatpush2.bf16.msra.mxu0 0
      %959 = vmatprep.subr.bf16.mxu0 0
      %960 = vmatpush2.bf16.msra.mxu0 0
      %961 = vmatprep.mubr.bf16.mxu0 0
      %962 = vmatmul.mubr.bf16.gmra.mxu0 %v759
      %v963 = vpop.f32.mrf.mxu0
      %v964 = vadd.f32 %v876, %v963
      %v965 = vpop.f32.mrf.mxu0
      %v966 = vpop.f32.mrf.mxu0
      %v967 = vpop.f32.mrf.mxu0
      %968 = vdwg.mxu0
      %v969 = vld [vmem:[%s758 + $0x4] sm:$0x3]
      %v970 = vld [vmem:[%s391] sm:$0xf]
      %v971 = vld [vmem:[%s391 + $0x4] sm:$0xf]
      %v972 = vld [vmem:[%s391 + $0x8] sm:$0xf]
      %v973 = vld [vmem:[%s391 + $0xc] sm:$0xf]
      %v974 = vld [vmem:[%s391 + $0x10] sm:$0xf]
      %v975 = vld [vmem:[%s391 + $0x14] sm:$0xf]
      %v976 = vld [vmem:[%s391 + $0x18] sm:$0xf]
      %v977 = vld [vmem:[%s391 + $0x1c] sm:$0xf]
      %v978 = vld [vmem:[%s391 + $0x20] sm:$0xf]
      %v979 = vld [vmem:[%s391 + $0x24] sm:$0xf]
      %v980 = vld [vmem:[%s391 + $0x28] sm:$0xf]
      %v981 = vld [vmem:[%s391 + $0x2c] sm:$0xf]
      %v982 = vld [vmem:[%s391 + $0x30] sm:$0xf]
      %v983 = vld [vmem:[%s391 + $0x34] sm:$0xf]
      %v984 = vld [vmem:[%s391 + $0x38] sm:$0xf]
      %v985 = vld [vmem:[%s391 + $0x3c] sm:$0xf]
      %v1002 = vunpack.c.l.b16 %v970
      %v1003 = vunpack.c.l.b16 %v971
      %v1004 = vunpack.c.l.b16 %v972
      %v1005 = vunpack.c.l.b16 %v973
      %v1006 = vunpack.c.l.b16 %v974
      %v1007 = vunpack.c.l.b16 %v975
      %v1008 = vunpack.c.l.b16 %v976
      %v1009 = vunpack.c.l.b16 %v977
      %v1010 = vunpack.c.l.b16 %v978
      %v1011 = vunpack.c.l.b16 %v979
      %v1012 = vunpack.c.l.b16 %v980
      %v1013 = vunpack.c.l.b16 %v981
      %v1014 = vunpack.c.l.b16 %v982
      %v1015 = vunpack.c.l.b16 %v983
      %v1016 = vunpack.c.l.b16 %v984
      %v1017 = vunpack.c.l.b16 %v985
      %v1018 = vpack.c.b16 %v1003, %v1002
      %v1019 = vpack.c.b16 %v1005, %v1004
      %v1020 = vpack.c.b16 %v1007, %v1006
      %v1021 = vpack.c.b16 %v1009, %v1008
      %v1022 = vpack.c.b16 %v1011, %v1010
      %v1023 = vpack.c.b16 %v1013, %v1012
      %v1024 = vpack.c.b16 %v1015, %v1014
      %v1025 = vpack.c.b16 %v1017, %v1016
      %1034 = vmatprep.subr.bf16.mxu0 0
      %1035 = vmatpush1.bf16.msra.mxu0 %v1025
      %1036 = vmatprep.subr.bf16.mxu0 0
      %1037 = vmatpush1.bf16.msra.mxu0 %v1024
      %1038 = vmatprep.subr.bf16.mxu0 0
      %1039 = vmatpush1.bf16.msra.mxu0 %v1023
      %1040 = vmatprep.subr.bf16.mxu0 0
      %1041 = vmatpush1.bf16.msra.mxu0 %v1022
      %1042 = vmatprep.subr.bf16.mxu0 0
      %1043 = vmatpush1.bf16.msra.mxu0 %v1021
      %1044 = vmatprep.subr.bf16.mxu0 0
      %1045 = vmatpush1.bf16.msra.mxu0 %v1020
      %1046 = vmatprep.subr.bf16.mxu0 0
      %1047 = vmatpush1.bf16.msra.mxu0 %v1019
      %1048 = vmatprep.subr.bf16.mxu0 0
      %1049 = vmatpush1.bf16.msra.mxu0 %v1018
      %1050 = vmatprep.subr.bf16.mxu0 0
      %1051 = vmatpush2.bf16.msra.mxu0 0
      %1052 = vmatprep.subr.bf16.mxu0 0
      %1053 = vmatpush2.bf16.msra.mxu0 0
      %1054 = vmatprep.subr.bf16.mxu0 0
      %1055 = vmatpush2.bf16.msra.mxu0 0
      %1056 = vmatprep.subr.bf16.mxu0 0
      %1057 = vmatpush2.bf16.msra.mxu0 0
      %1058 = vmatprep.subr.bf16.mxu0 0
      %1059 = vmatpush2.bf16.msra.mxu0 0
      %1060 = vmatprep.subr.bf16.mxu0 0
      %1061 = vmatpush2.bf16.msra.mxu0 0
      %1062 = vmatprep.subr.bf16.mxu0 0
      %1063 = vmatpush2.bf16.msra.mxu0 0
      %1064 = vmatprep.subr.bf16.mxu0 0
      %1065 = vmatpush2.bf16.msra.mxu0 0
      %1066 = vmatprep.mubr.bf16.mxu0 0
      %1067 = vmatmul.mubr.bf16.gmra.mxu0 %v969
      %v1068 = vpop.f32.mrf.mxu0
      %v1069 = vadd.f32 0.0, %v1068
      %v1070 = vpop.f32.mrf.mxu0
      %v1071 = vpop.f32.mrf.mxu0
      %v1072 = vpop.f32.mrf.mxu0
      %1073 = vdwg.mxu0
      %v1074 = vadd.f32 %v964, %v1069
      %v1075 = vld [vmem:[%s497] sm:$0xf]
      %v1076 = vld [vmem:[%s497 + $0x4] sm:$0xf]
      %v1077 = vld [vmem:[%s497 + $0x8] sm:$0xf]
      %v1078 = vld [vmem:[%s497 + $0xc] sm:$0xf]
      %v1079 = vld [vmem:[%s497 + $0x10] sm:$0xf]
      %v1080 = vld [vmem:[%s497 + $0x14] sm:$0xf]
      %v1081 = vld [vmem:[%s497 + $0x18] sm:$0xf]
      %v1082 = vld [vmem:[%s497 + $0x1c] sm:$0xf]
      %v1083 = vld [vmem:[%s497 + $0x20] sm:$0xf]
      %v1084 = vld [vmem:[%s497 + $0x24] sm:$0xf]
      %v1085 = vld [vmem:[%s497 + $0x28] sm:$0xf]
      %v1086 = vld [vmem:[%s497 + $0x2c] sm:$0xf]
      %v1087 = vld [vmem:[%s497 + $0x30] sm:$0xf]
      %v1088 = vld [vmem:[%s497 + $0x34] sm:$0xf]
      %v1089 = vld [vmem:[%s497 + $0x38] sm:$0xf]
      %v1090 = vld [vmem:[%s497 + $0x3c] sm:$0xf]
      %v1093 = vunpack.c.l.s4 1983009808
      %v1094 = vunpack.c.0.s8 %v1093
      %v1095 = vlaneseq
      %v1096 = vshrl.u32 %v1095, 7
      %v1097 = vsub.s32 %v1094, %v1096
      %v1098 = vrot.slane %v759, %v1097
      %v1100 = vshrl.u32 %v1098, 16
      %v1102 = vshll.u32 %v1098, 16
      %v1104 = vrot.slane %v1102, 1
      %v1105 = vor.u32 %v1100, %v1104
      %v1123 = vunpack.c.l.b16 %v1075
      %v1124 = vunpack.c.l.b16 %v1076
      %v1125 = vunpack.c.l.b16 %v1077
      %v1126 = vunpack.c.l.b16 %v1078
      %v1127 = vunpack.c.l.b16 %v1079
      %v1128 = vunpack.c.l.b16 %v1080
      %v1129 = vunpack.c.l.b16 %v1081
      %v1130 = vunpack.c.l.b16 %v1082
      %v1131 = vunpack.c.l.b16 %v1083
      %v1132 = vunpack.c.l.b16 %v1084
      %v1133 = vunpack.c.l.b16 %v1085
      %v1134 = vunpack.c.l.b16 %v1086
      %v1135 = vunpack.c.l.b16 %v1087
      %v1136 = vunpack.c.l.b16 %v1088
      %v1137 = vunpack.c.l.b16 %v1089
      %v1138 = vunpack.c.l.b16 %v1090
      %v1139 = vpack.c.b16 %v1124, %v1123
      %v1140 = vpack.c.b16 %v1126, %v1125
      %v1141 = vpack.c.b16 %v1128, %v1127
      %v1142 = vpack.c.b16 %v1130, %v1129
      %v1143 = vpack.c.b16 %v1132, %v1131
      %v1144 = vpack.c.b16 %v1134, %v1133
      %v1145 = vpack.c.b16 %v1136, %v1135
      %v1146 = vpack.c.b16 %v1138, %v1137
      %1155 = vmatprep.subr.bf16.mxu0 0
      %1156 = vmatpush1.bf16.msra.mxu0 %v1146
      %1157 = vmatprep.subr.bf16.mxu0 0
      %1158 = vmatpush1.bf16.msra.mxu0 %v1145
      %1159 = vmatprep.subr.bf16.mxu0 0
      %1160 = vmatpush1.bf16.msra.mxu0 %v1144
      %1161 = vmatprep.subr.bf16.mxu0 0
      %1162 = vmatpush1.bf16.msra.mxu0 %v1143
      %1163 = vmatprep.subr.bf16.mxu0 0
      %1164 = vmatpush1.bf16.msra.mxu0 %v1142
      %1165 = vmatprep.subr.bf16.mxu0 0
      %1166 = vmatpush1.bf16.msra.mxu0 %v1141
      %1167 = vmatprep.subr.bf16.mxu0 0
      %1168 = vmatpush1.bf16.msra.mxu0 %v1140
      %1169 = vmatprep.subr.bf16.mxu0 0
      %1170 = vmatpush1.bf16.msra.mxu0 %v1139
      %1171 = vmatprep.subr.bf16.mxu0 0
      %1172 = vmatpush2.bf16.msra.mxu0 0
      %1173 = vmatprep.subr.bf16.mxu0 0
      %1174 = vmatpush2.bf16.msra.mxu0 0
      %1175 = vmatprep.subr.bf16.mxu0 0
      %1176 = vmatpush2.bf16.msra.mxu0 0
      %1177 = vmatprep.subr.bf16.mxu0 0
      %1178 = vmatpush2.bf16.msra.mxu0 0
      %1179 = vmatprep.subr.bf16.mxu0 0
      %1180 = vmatpush2.bf16.msra.mxu0 0
      %1181 = vmatprep.subr.bf16.mxu0 0
      %1182 = vmatpush2.bf16.msra.mxu0 0
      %1183 = vmatprep.subr.bf16.mxu0 0
      %1184 = vmatpush2.bf16.msra.mxu0 0
      %1185 = vmatprep.subr.bf16.mxu0 0
      %1186 = vmatpush2.bf16.msra.mxu0 0
      %1187 = vmatprep.mubr.bf16.mxu0 0
      %1188 = vmatmul.mubr.bf16.gmra.mxu0 %v1105
      %v1189 = vpop.f32.mrf.mxu0
      %v1190 = vadd.f32 0.0, %v1189
      %v1191 = vpop.f32.mrf.mxu0
      %v1192 = vpop.f32.mrf.mxu0
      %v1193 = vpop.f32.mrf.mxu0
      %1194 = vdwg.mxu0
      %v1195 = vadd.f32 %v1074, %v1190
      %v1196 = vld [vmem:[%s758 + $0x2] sm:$0x3]
      %v1197 = vld [vmem:[%s620] sm:$0xf]
      %v1198 = vld [vmem:[%s620 + $0x4] sm:$0xf]
      %v1199 = vld [vmem:[%s620 + $0x8] sm:$0xf]
      %v1200 = vld [vmem:[%s620 + $0xc] sm:$0xf]
      %v1201 = vld [vmem:[%s620 + $0x10] sm:$0xf]
      %v1202 = vld [vmem:[%s620 + $0x14] sm:$0xf]
      %v1203 = vld [vmem:[%s620 + $0x18] sm:$0xf]
      %v1204 = vld [vmem:[%s620 + $0x1c] sm:$0xf]
      %v1205 = vld [vmem:[%s620 + $0x20] sm:$0xf]
      %v1206 = vld [vmem:[%s620 + $0x24] sm:$0xf]
      %v1207 = vld [vmem:[%s620 + $0x28] sm:$0xf]
      %v1208 = vld [vmem:[%s620 + $0x2c] sm:$0xf]
      %v1209 = vld [vmem:[%s620 + $0x30] sm:$0xf]
      %v1210 = vld [vmem:[%s620 + $0x34] sm:$0xf]
      %v1211 = vld [vmem:[%s620 + $0x38] sm:$0xf]
      %v1212 = vld [vmem:[%s620 + $0x3c] sm:$0xf]
      %v1215 = vunpack.c.l.s4 1983009808
      %v1216 = vunpack.c.0.s8 %v1215
      %v1217 = vlaneseq
      %v1218 = vshrl.u32 %v1217, 7
      %v1219 = vsub.s32 %v1216, %v1218
      %v1220 = vrot.slane %v1196, %v1219
      %v1222 = vshrl.u32 %v1220, 16
      %v1224 = vshll.u32 %v1220, 16
      %v1226 = vrot.slane %v1224, 1
      %v1227 = vor.u32 %v1222, %v1226
      %v1245 = vunpack.c.l.b16 %v1197
      %v1246 = vunpack.c.l.b16 %v1198
      %v1247 = vunpack.c.l.b16 %v1199
      %v1248 = vunpack.c.l.b16 %v1200
      %v1249 = vunpack.c.l.b16 %v1201
      %v1250 = vunpack.c.l.b16 %v1202
      %v1251 = vunpack.c.l.b16 %v1203
      %v1252 = vunpack.c.l.b16 %v1204
      %v1253 = vunpack.c.l.b16 %v1205
      %v1254 = vunpack.c.l.b16 %v1206
      %v1255 = vunpack.c.l.b16 %v1207
      %v1256 = vunpack.c.l.b16 %v1208
      %v1257 = vunpack.c.l.b16 %v1209
      %v1258 = vunpack.c.l.b16 %v1210
      %v1259 = vunpack.c.l.b16 %v1211
      %v1260 = vunpack.c.l.b16 %v1212
      %v1261 = vpack.c.b16 %v1246, %v1245
      %v1262 = vpack.c.b16 %v1248, %v1247
      %v1263 = vpack.c.b16 %v1250, %v1249
      %v1264 = vpack.c.b16 %v1252, %v1251
      %v1265 = vpack.c.b16 %v1254, %v1253
      %v1266 = vpack.c.b16 %v1256, %v1255
      %v1267 = vpack.c.b16 %v1258, %v1257
      %v1268 = vpack.c.b16 %v1260, %v1259
      %1277 = vmatprep.subr.bf16.mxu0 0
      %1278 = vmatpush1.bf16.msra.mxu0 %v1268
      %1279 = vmatprep.subr.bf16.mxu0 0
      %1280 = vmatpush1.bf16.msra.mxu0 %v1267
      %1281 = vmatprep.subr.bf16.mxu0 0
      %1282 = vmatpush1.bf16.msra.mxu0 %v1266
      %1283 = vmatprep.subr.bf16.mxu0 0
      %1284 = vmatpush1.bf16.msra.mxu0 %v1265
      %1285 = vmatprep.subr.bf16.mxu0 0
      %1286 = vmatpush1.bf16.msra.mxu0 %v1264
      %1287 = vmatprep.subr.bf16.mxu0 0
      %1288 = vmatpush1.bf16.msra.mxu0 %v1263
      %1289 = vmatprep.subr.bf16.mxu0 0
      %1290 = vmatpush1.bf16.msra.mxu0 %v1262
      %1291 = vmatprep.subr.bf16.mxu0 0
      %1292 = vmatpush1.bf16.msra.mxu0 %v1261
      %1293 = vmatprep.subr.bf16.mxu0 0
      %1294 = vmatpush2.bf16.msra.mxu0 0
      %1295 = vmatprep.subr.bf16.mxu0 0
      %1296 = vmatpush2.bf16.msra.mxu0 0
      %1297 = vmatprep.subr.bf16.mxu0 0
      %1298 = vmatpush2.bf16.msra.mxu0 0
      %1299 = vmatprep.subr.bf16.mxu0 0
      %1300 = vmatpush2.bf16.msra.mxu0 0
      %1301 = vmatprep.subr.bf16.mxu0 0
      %1302 = vmatpush2.bf16.msra.mxu0 0
      %1303 = vmatprep.subr.bf16.mxu0 0
      %1304 = vmatpush2.bf16.msra.mxu0 0
      %1305 = vmatprep.subr.bf16.mxu0 0
      %1306 = vmatpush2.bf16.msra.mxu0 0
      %1307 = vmatprep.subr.bf16.mxu0 0
      %1308 = vmatpush2.bf16.msra.mxu0 0
      %1309 = vmatprep.mubr.bf16.mxu0 0
      %1310 = vmatmul.mubr.bf16.gmra.mxu0 %v1227
      %v1311 = vpop.f32.mrf.mxu0
      %v1312 = vadd.f32 0.0, %v1311
      %v1313 = vpop.f32.mrf.mxu0
      %v1314 = vpop.f32.mrf.mxu0
      %v1315 = vpop.f32.mrf.mxu0
      %1316 = vdwg.mxu0
      %v1317 = vadd.f32 %v1195, %v1312
      %v1318 = vadd.f32 %v1317, %v746
      %v1319 = vmul.f32 %v1318, 0.1
      %v1320 = vmax.f32 %v1318, %v1319
      %v1321 = vpack.c.bf16 %v1320, %v1320
      %s1322 = scalar_lea.vmem %s175, 2
      %v1323 = vld [vmem:[%s1322] sm:$0x3]
      %v1324 = vsel %vm754, %v1321, %v1323
      %1325 = vst [vmem:[%s1322] sm:$0x3] %v1324
      %s1326 = scalar_lea.vmem %s169, 12
      %v1327 = vld [vmem:[%s1326] sm:$0x3]
      %v1328 = vld [vmem:[%s1] sm:$0xf]
      %v1329 = vld [vmem:[%s1 + $0x4] sm:$0xf]
      %v1330 = vld [vmem:[%s1 + $0x8] sm:$0xf]
      %v1331 = vld [vmem:[%s1 + $0xc] sm:$0xf]
      %v1332 = vld [vmem:[%s1 + $0x10] sm:$0xf]
      %v1333 = vld [vmem:[%s1 + $0x14] sm:$0xf]
      %v1334 = vld [vmem:[%s1 + $0x18] sm:$0xf]
      %v1335 = vld [vmem:[%s1 + $0x1c] sm:$0xf]
      %v1336 = vld [vmem:[%s1 + $0x20] sm:$0xf]
      %v1337 = vld [vmem:[%s1 + $0x24] sm:$0xf]
      %v1338 = vld [vmem:[%s1 + $0x28] sm:$0xf]
      %v1339 = vld [vmem:[%s1 + $0x2c] sm:$0xf]
      %v1340 = vld [vmem:[%s1 + $0x30] sm:$0xf]
      %v1341 = vld [vmem:[%s1 + $0x34] sm:$0xf]
      %v1342 = vld [vmem:[%s1 + $0x38] sm:$0xf]
      %v1343 = vld [vmem:[%s1 + $0x3c] sm:$0xf]
      %v1344 = vld [vmem:[%s1326 + $0x2] sm:$0x3]
      %v1345 = vld [vmem:[%s197] sm:$0xf]
      %v1346 = vld [vmem:[%s197 + $0x4] sm:$0xf]
      %v1347 = vld [vmem:[%s197 + $0x8] sm:$0xf]
      %v1348 = vld [vmem:[%s197 + $0xc] sm:$0xf]
      %v1349 = vld [vmem:[%s197 + $0x10] sm:$0xf]
      %v1350 = vld [vmem:[%s197 + $0x14] sm:$0xf]
      %v1351 = vld [vmem:[%s197 + $0x18] sm:$0xf]
      %v1352 = vld [vmem:[%s197 + $0x1c] sm:$0xf]
      %v1353 = vld [vmem:[%s197 + $0x20] sm:$0xf]
      %v1354 = vld [vmem:[%s197 + $0x24] sm:$0xf]
      %v1355 = vld [vmem:[%s197 + $0x28] sm:$0xf]
      %v1356 = vld [vmem:[%s197 + $0x2c] sm:$0xf]
      %v1357 = vld [vmem:[%s197 + $0x30] sm:$0xf]
      %v1358 = vld [vmem:[%s197 + $0x34] sm:$0xf]
      %v1359 = vld [vmem:[%s197 + $0x38] sm:$0xf]
      %v1360 = vld [vmem:[%s197 + $0x3c] sm:$0xf]
      %v1377 = vunpack.c.l.b16 %v1345
      %v1378 = vunpack.c.l.b16 %v1346
      %v1379 = vunpack.c.l.b16 %v1347
      %v1380 = vunpack.c.l.b16 %v1348
      %v1381 = vunpack.c.l.b16 %v1349
      %v1382 = vunpack.c.l.b16 %v1350
      %v1383 = vunpack.c.l.b16 %v1351
      %v1384 = vunpack.c.l.b16 %v1352
      %v1385 = vunpack.c.l.b16 %v1353
      %v1386 = vunpack.c.l.b16 %v1354
      %v1387 = vunpack.c.l.b16 %v1355
      %v1388 = vunpack.c.l.b16 %v1356
      %v1389 = vunpack.c.l.b16 %v1357
      %v1390 = vunpack.c.l.b16 %v1358
      %v1391 = vunpack.c.l.b16 %v1359
      %v1392 = vunpack.c.l.b16 %v1360
      %v1393 = vpack.c.b16 %v1378, %v1377
      %v1394 = vpack.c.b16 %v1380, %v1379
      %v1395 = vpack.c.b16 %v1382, %v1381
      %v1396 = vpack.c.b16 %v1384, %v1383
      %v1397 = vpack.c.b16 %v1386, %v1385
      %v1398 = vpack.c.b16 %v1388, %v1387
      %v1399 = vpack.c.b16 %v1390, %v1389
      %v1400 = vpack.c.b16 %v1392, %v1391
      %1409 = vmatprep.subr.bf16.mxu0 0
      %1410 = vmatpush1.bf16.msra.mxu0 %v1400
      %1411 = vmatprep.subr.bf16.mxu0 0
      %1412 = vmatpush1.bf16.msra.mxu0 %v1399
      %1413 = vmatprep.subr.bf16.mxu0 0
      %1414 = vmatpush1.bf16.msra.mxu0 %v1398
      %1415 = vmatprep.subr.bf16.mxu0 0
      %1416 = vmatpush1.bf16.msra.mxu0 %v1397
      %1417 = vmatprep.subr.bf16.mxu0 0
      %1418 = vmatpush1.bf16.msra.mxu0 %v1396
      %1419 = vmatprep.subr.bf16.mxu0 0
      %1420 = vmatpush1.bf16.msra.mxu0 %v1395
      %1421 = vmatprep.subr.bf16.mxu0 0
      %1422 = vmatpush1.bf16.msra.mxu0 %v1394
      %1423 = vmatprep.subr.bf16.mxu0 0
      %1424 = vmatpush1.bf16.msra.mxu0 %v1393
      %1425 = vmatprep.subr.bf16.mxu0 0
      %1426 = vmatpush2.bf16.msra.mxu0 0
      %1427 = vmatprep.subr.bf16.mxu0 0
      %1428 = vmatpush2.bf16.msra.mxu0 0
      %1429 = vmatprep.subr.bf16.mxu0 0
      %1430 = vmatpush2.bf16.msra.mxu0 0
      %1431 = vmatprep.subr.bf16.mxu0 0
      %1432 = vmatpush2.bf16.msra.mxu0 0
      %1433 = vmatprep.subr.bf16.mxu0 0
      %1434 = vmatpush2.bf16.msra.mxu0 0
      %1435 = vmatprep.subr.bf16.mxu0 0
      %1436 = vmatpush2.bf16.msra.mxu0 0
      %1437 = vmatprep.subr.bf16.mxu0 0
      %1438 = vmatpush2.bf16.msra.mxu0 0
      %1439 = vmatprep.subr.bf16.mxu0 0
      %1440 = vmatpush2.bf16.msra.mxu0 0
      %1441 = vmatprep.mubr.bf16.mxu0 0
      %1442 = vmatmul.mubr.bf16.gmra.mxu0 %v1344
      %v1443 = vpop.f32.mrf.mxu0
      %v1444 = vadd.f32 0.0, %v1443
      %v1445 = vpop.f32.mrf.mxu0
      %v1446 = vpop.f32.mrf.mxu0
      %v1447 = vpop.f32.mrf.mxu0
      %1448 = vdwg.mxu0
      %v1465 = vunpack.c.l.b16 %v1328
      %v1466 = vunpack.c.l.b16 %v1329
      %v1467 = vunpack.c.l.b16 %v1330
      %v1468 = vunpack.c.l.b16 %v1331
      %v1469 = vunpack.c.l.b16 %v1332
      %v1470 = vunpack.c.l.b16 %v1333
      %v1471 = vunpack.c.l.b16 %v1334
      %v1472 = vunpack.c.l.b16 %v1335
      %v1473 = vunpack.c.l.b16 %v1336
      %v1474 = vunpack.c.l.b16 %v1337
      %v1475 = vunpack.c.l.b16 %v1338
      %v1476 = vunpack.c.l.b16 %v1339
      %v1477 = vunpack.c.l.b16 %v1340
      %v1478 = vunpack.c.l.b16 %v1341
      %v1479 = vunpack.c.l.b16 %v1342
      %v1480 = vunpack.c.l.b16 %v1343
      %v1481 = vpack.c.b16 %v1466, %v1465
      %v1482 = vpack.c.b16 %v1468, %v1467
      %v1483 = vpack.c.b16 %v1470, %v1469
      %v1484 = vpack.c.b16 %v1472, %v1471
      %v1485 = vpack.c.b16 %v1474, %v1473
      %v1486 = vpack.c.b16 %v1476, %v1475
      %v1487 = vpack.c.b16 %v1478, %v1477
      %v1488 = vpack.c.b16 %v1480, %v1479
      %1497 = vmatprep.subr.bf16.mxu0 0
      %1498 = vmatpush1.bf16.msra.mxu0 %v1488
      %1499 = vmatprep.subr.bf16.mxu0 0
      %1500 = vmatpush1.bf16.msra.mxu0 %v1487
      %1501 = vmatprep.subr.bf16.mxu0 0
      %1502 = vmatpush1.bf16.msra.mxu0 %v1486
      %1503 = vmatprep.subr.bf16.mxu0 0
      %1504 = vmatpush1.bf16.msra.mxu0 %v1485
      %1505 = vmatprep.subr.bf16.mxu0 0
      %1506 = vmatpush1.bf16.msra.mxu0 %v1484
      %1507 = vmatprep.subr.bf16.mxu0 0
      %1508 = vmatpush1.bf16.msra.mxu0 %v1483
      %1509 = vmatprep.subr.bf16.mxu0 0
      %1510 = vmatpush1.bf16.msra.mxu0 %v1482
      %1511 = vmatprep.subr.bf16.mxu0 0
      %1512 = vmatpush1.bf16.msra.mxu0 %v1481
      %1513 = vmatprep.subr.bf16.mxu0 0
      %1514 = vmatpush2.bf16.msra.mxu0 0
      %1515 = vmatprep.subr.bf16.mxu0 0
      %1516 = vmatpush2.bf16.msra.mxu0 0
      %1517 = vmatprep.subr.bf16.mxu0 0
      %1518 = vmatpush2.bf16.msra.mxu0 0
      %1519 = vmatprep.subr.bf16.mxu0 0
      %1520 = vmatpush2.bf16.msra.mxu0 0
      %1521 = vmatprep.subr.bf16.mxu0 0
      %1522 = vmatpush2.bf16.msra.mxu0 0
      %1523 = vmatprep.subr.bf16.mxu0 0
      %1524 = vmatpush2.bf16.msra.mxu0 0
      %1525 = vmatprep.subr.bf16.mxu0 0
      %1526 = vmatpush2.bf16.msra.mxu0 0
      %1527 = vmatprep.subr.bf16.mxu0 0
      %1528 = vmatpush2.bf16.msra.mxu0 0
      %1529 = vmatprep.mubr.bf16.mxu0 0
      %1530 = vmatmul.mubr.bf16.gmra.mxu0 %v1327
      %v1531 = vpop.f32.mrf.mxu0
      %v1532 = vadd.f32 %v1444, %v1531
      %v1533 = vpop.f32.mrf.mxu0
      %v1534 = vpop.f32.mrf.mxu0
      %v1535 = vpop.f32.mrf.mxu0
      %1536 = vdwg.mxu0
      %v1537 = vld [vmem:[%s1326 + $0x4] sm:$0x3]
      %v1538 = vld [vmem:[%s391] sm:$0xf]
      %v1539 = vld [vmem:[%s391 + $0x4] sm:$0xf]
      %v1540 = vld [vmem:[%s391 + $0x8] sm:$0xf]
      %v1541 = vld [vmem:[%s391 + $0xc] sm:$0xf]
      %v1542 = vld [vmem:[%s391 + $0x10] sm:$0xf]
      %v1543 = vld [vmem:[%s391 + $0x14] sm:$0xf]
      %v1544 = vld [vmem:[%s391 + $0x18] sm:$0xf]
      %v1545 = vld [vmem:[%s391 + $0x1c] sm:$0xf]
      %v1546 = vld [vmem:[%s391 + $0x20] sm:$0xf]
      %v1547 = vld [vmem:[%s391 + $0x24] sm:$0xf]
      %v1548 = vld [vmem:[%s391 + $0x28] sm:$0xf]
      %v1549 = vld [vmem:[%s391 + $0x2c] sm:$0xf]
      %v1550 = vld [vmem:[%s391 + $0x30] sm:$0xf]
      %v1551 = vld [vmem:[%s391 + $0x34] sm:$0xf]
      %v1552 = vld [vmem:[%s391 + $0x38] sm:$0xf]
      %v1553 = vld [vmem:[%s391 + $0x3c] sm:$0xf]
      %v1570 = vunpack.c.l.b16 %v1538
      %v1571 = vunpack.c.l.b16 %v1539
      %v1572 = vunpack.c.l.b16 %v1540
      %v1573 = vunpack.c.l.b16 %v1541
      %v1574 = vunpack.c.l.b16 %v1542
      %v1575 = vunpack.c.l.b16 %v1543
      %v1576 = vunpack.c.l.b16 %v1544
      %v1577 = vunpack.c.l.b16 %v1545
      %v1578 = vunpack.c.l.b16 %v1546
      %v1579 = vunpack.c.l.b16 %v1547
      %v1580 = vunpack.c.l.b16 %v1548
      %v1581 = vunpack.c.l.b16 %v1549
      %v1582 = vunpack.c.l.b16 %v1550
      %v1583 = vunpack.c.l.b16 %v1551
      %v1584 = vunpack.c.l.b16 %v1552
      %v1585 = vunpack.c.l.b16 %v1553
      %v1586 = vpack.c.b16 %v1571, %v1570
      %v1587 = vpack.c.b16 %v1573, %v1572
      %v1588 = vpack.c.b16 %v1575, %v1574
      %v1589 = vpack.c.b16 %v1577, %v1576
      %v1590 = vpack.c.b16 %v1579, %v1578
      %v1591 = vpack.c.b16 %v1581, %v1580
      %v1592 = vpack.c.b16 %v1583, %v1582
      %v1593 = vpack.c.b16 %v1585, %v1584
      %1602 = vmatprep.subr.bf16.mxu0 0
      %1603 = vmatpush1.bf16.msra.mxu0 %v1593
      %1604 = vmatprep.subr.bf16.mxu0 0
      %1605 = vmatpush1.bf16.msra.mxu0 %v1592
      %1606 = vmatprep.subr.bf16.mxu0 0
      %1607 = vmatpush1.bf16.msra.mxu0 %v1591
      %1608 = vmatprep.subr.bf16.mxu0 0
      %1609 = vmatpush1.bf16.msra.mxu0 %v1590
      %1610 = vmatprep.subr.bf16.mxu0 0
      %1611 = vmatpush1.bf16.msra.mxu0 %v1589
      %1612 = vmatprep.subr.bf16.mxu0 0
      %1613 = vmatpush1.bf16.msra.mxu0 %v1588
      %1614 = vmatprep.subr.bf16.mxu0 0
      %1615 = vmatpush1.bf16.msra.mxu0 %v1587
      %1616 = vmatprep.subr.bf16.mxu0 0
      %1617 = vmatpush1.bf16.msra.mxu0 %v1586
      %1618 = vmatprep.subr.bf16.mxu0 0
      %1619 = vmatpush2.bf16.msra.mxu0 0
      %1620 = vmatprep.subr.bf16.mxu0 0
      %1621 = vmatpush2.bf16.msra.mxu0 0
      %1622 = vmatprep.subr.bf16.mxu0 0
      %1623 = vmatpush2.bf16.msra.mxu0 0
      %1624 = vmatprep.subr.bf16.mxu0 0
      %1625 = vmatpush2.bf16.msra.mxu0 0
      %1626 = vmatprep.subr.bf16.mxu0 0
      %1627 = vmatpush2.bf16.msra.mxu0 0
      %1628 = vmatprep.subr.bf16.mxu0 0
      %1629 = vmatpush2.bf16.msra.mxu0 0
      %1630 = vmatprep.subr.bf16.mxu0 0
      %1631 = vmatpush2.bf16.msra.mxu0 0
      %1632 = vmatprep.subr.bf16.mxu0 0
      %1633 = vmatpush2.bf16.msra.mxu0 0
      %1634 = vmatprep.mubr.bf16.mxu0 0
      %1635 = vmatmul.mubr.bf16.gmra.mxu0 %v1537
      %v1636 = vpop.f32.mrf.mxu0
      %v1637 = vadd.f32 0.0, %v1636
      %v1638 = vpop.f32.mrf.mxu0
      %v1639 = vpop.f32.mrf.mxu0
      %v1640 = vpop.f32.mrf.mxu0
      %1641 = vdwg.mxu0
      %v1642 = vadd.f32 %v1532, %v1637
      %v1643 = vld [vmem:[%s497] sm:$0xf]
      %v1644 = vld [vmem:[%s497 + $0x4] sm:$0xf]
      %v1645 = vld [vmem:[%s497 + $0x8] sm:$0xf]
      %v1646 = vld [vmem:[%s497 + $0xc] sm:$0xf]
      %v1647 = vld [vmem:[%s497 + $0x10] sm:$0xf]
      %v1648 = vld [vmem:[%s497 + $0x14] sm:$0xf]
      %v1649 = vld [vmem:[%s497 + $0x18] sm:$0xf]
      %v1650 = vld [vmem:[%s497 + $0x1c] sm:$0xf]
      %v1651 = vld [vmem:[%s497 + $0x20] sm:$0xf]
      %v1652 = vld [vmem:[%s497 + $0x24] sm:$0xf]
      %v1653 = vld [vmem:[%s497 + $0x28] sm:$0xf]
      %v1654 = vld [vmem:[%s497 + $0x2c] sm:$0xf]
      %v1655 = vld [vmem:[%s497 + $0x30] sm:$0xf]
      %v1656 = vld [vmem:[%s497 + $0x34] sm:$0xf]
      %v1657 = vld [vmem:[%s497 + $0x38] sm:$0xf]
      %v1658 = vld [vmem:[%s497 + $0x3c] sm:$0xf]
      %v1661 = vunpack.c.l.s4 1983009808
      %v1662 = vunpack.c.0.s8 %v1661
      %v1663 = vlaneseq
      %v1664 = vshrl.u32 %v1663, 7
      %v1665 = vsub.s32 %v1662, %v1664
      %v1666 = vrot.slane %v1327, %v1665
      %v1668 = vshrl.u32 %v1666, 16
      %v1670 = vshll.u32 %v1666, 16
      %v1672 = vrot.slane %v1670, 1
      %v1673 = vor.u32 %v1668, %v1672
      %v1691 = vunpack.c.l.b16 %v1643
      %v1692 = vunpack.c.l.b16 %v1644
      %v1693 = vunpack.c.l.b16 %v1645
      %v1694 = vunpack.c.l.b16 %v1646
      %v1695 = vunpack.c.l.b16 %v1647
      %v1696 = vunpack.c.l.b16 %v1648
      %v1697 = vunpack.c.l.b16 %v1649
      %v1698 = vunpack.c.l.b16 %v1650
      %v1699 = vunpack.c.l.b16 %v1651
      %v1700 = vunpack.c.l.b16 %v1652
      %v1701 = vunpack.c.l.b16 %v1653
      %v1702 = vunpack.c.l.b16 %v1654
      %v1703 = vunpack.c.l.b16 %v1655
      %v1704 = vunpack.c.l.b16 %v1656
      %v1705 = vunpack.c.l.b16 %v1657
      %v1706 = vunpack.c.l.b16 %v1658
      %v1707 = vpack.c.b16 %v1692, %v1691
      %v1708 = vpack.c.b16 %v1694, %v1693
      %v1709 = vpack.c.b16 %v1696, %v1695
      %v1710 = vpack.c.b16 %v1698, %v1697
      %v1711 = vpack.c.b16 %v1700, %v1699
      %v1712 = vpack.c.b16 %v1702, %v1701
      %v1713 = vpack.c.b16 %v1704, %v1703
      %v1714 = vpack.c.b16 %v1706, %v1705
      %1723 = vmatprep.subr.bf16.mxu0 0
      %1724 = vmatpush1.bf16.msra.mxu0 %v1714
      %1725 = vmatprep.subr.bf16.mxu0 0
      %1726 = vmatpush1.bf16.msra.mxu0 %v1713
      %1727 = vmatprep.subr.bf16.mxu0 0
      %1728 = vmatpush1.bf16.msra.mxu0 %v1712
      %1729 = vmatprep.subr.bf16.mxu0 0
      %1730 = vmatpush1.bf16.msra.mxu0 %v1711
      %1731 = vmatprep.subr.bf16.mxu0 0
      %1732 = vmatpush1.bf16.msra.mxu0 %v1710
      %1733 = vmatprep.subr.bf16.mxu0 0
      %1734 = vmatpush1.bf16.msra.mxu0 %v1709
      %1735 = vmatprep.subr.bf16.mxu0 0
      %1736 = vmatpush1.bf16.msra.mxu0 %v1708
      %1737 = vmatprep.subr.bf16.mxu0 0
      %1738 = vmatpush1.bf16.msra.mxu0 %v1707
      %1739 = vmatprep.subr.bf16.mxu0 0
      %1740 = vmatpush2.bf16.msra.mxu0 0
      %1741 = vmatprep.subr.bf16.mxu0 0
      %1742 = vmatpush2.bf16.msra.mxu0 0
      %1743 = vmatprep.subr.bf16.mxu0 0
      %1744 = vmatpush2.bf16.msra.mxu0 0
      %1745 = vmatprep.subr.bf16.mxu0 0
      %1746 = vmatpush2.bf16.msra.mxu0 0
      %1747 = vmatprep.subr.bf16.mxu0 0
      %1748 = vmatpush2.bf16.msra.mxu0 0
      %1749 = vmatprep.subr.bf16.mxu0 0
      %1750 = vmatpush2.bf16.msra.mxu0 0
      %1751 = vmatprep.subr.bf16.mxu0 0
      %1752 = vmatpush2.bf16.msra.mxu0 0
      %1753 = vmatprep.subr.bf16.mxu0 0
      %1754 = vmatpush2.bf16.msra.mxu0 0
      %1755 = vmatprep.mubr.bf16.mxu0 0
      %1756 = vmatmul.mubr.bf16.gmra.mxu0 %v1673
      %v1757 = vpop.f32.mrf.mxu0
      %v1758 = vadd.f32 0.0, %v1757
      %v1759 = vpop.f32.mrf.mxu0
      %v1760 = vpop.f32.mrf.mxu0
      %v1761 = vpop.f32.mrf.mxu0
      %1762 = vdwg.mxu0
      %v1763 = vadd.f32 %v1642, %v1758
      %v1764 = vld [vmem:[%s1326 + $0x2] sm:$0x3]
      %v1765 = vld [vmem:[%s620] sm:$0xf]
      %v1766 = vld [vmem:[%s620 + $0x4] sm:$0xf]
      %v1767 = vld [vmem:[%s620 + $0x8] sm:$0xf]
      %v1768 = vld [vmem:[%s620 + $0xc] sm:$0xf]
      %v1769 = vld [vmem:[%s620 + $0x10] sm:$0xf]
      %v1770 = vld [vmem:[%s620 + $0x14] sm:$0xf]
      %v1771 = vld [vmem:[%s620 + $0x18] sm:$0xf]
      %v1772 = vld [vmem:[%s620 + $0x1c] sm:$0xf]
      %v1773 = vld [vmem:[%s620 + $0x20] sm:$0xf]
      %v1774 = vld [vmem:[%s620 + $0x24] sm:$0xf]
      %v1775 = vld [vmem:[%s620 + $0x28] sm:$0xf]
      %v1776 = vld [vmem:[%s620 + $0x2c] sm:$0xf]
      %v1777 = vld [vmem:[%s620 + $0x30] sm:$0xf]
      %v1778 = vld [vmem:[%s620 + $0x34] sm:$0xf]
      %v1779 = vld [vmem:[%s620 + $0x38] sm:$0xf]
      %v1780 = vld [vmem:[%s620 + $0x3c] sm:$0xf]
      %v1783 = vunpack.c.l.s4 1983009808
      %v1784 = vunpack.c.0.s8 %v1783
      %v1785 = vlaneseq
      %v1786 = vshrl.u32 %v1785, 7
      %v1787 = vsub.s32 %v1784, %v1786
      %v1788 = vrot.slane %v1764, %v1787
      %v1790 = vshrl.u32 %v1788, 16
      %v1792 = vshll.u32 %v1788, 16
      %v1794 = vrot.slane %v1792, 1
      %v1795 = vor.u32 %v1790, %v1794
      %v1813 = vunpack.c.l.b16 %v1765
      %v1814 = vunpack.c.l.b16 %v1766
      %v1815 = vunpack.c.l.b16 %v1767
      %v1816 = vunpack.c.l.b16 %v1768
      %v1817 = vunpack.c.l.b16 %v1769
      %v1818 = vunpack.c.l.b16 %v1770
      %v1819 = vunpack.c.l.b16 %v1771
      %v1820 = vunpack.c.l.b16 %v1772
      %v1821 = vunpack.c.l.b16 %v1773
      %v1822 = vunpack.c.l.b16 %v1774
      %v1823 = vunpack.c.l.b16 %v1775
      %v1824 = vunpack.c.l.b16 %v1776
      %v1825 = vunpack.c.l.b16 %v1777
      %v1826 = vunpack.c.l.b16 %v1778
      %v1827 = vunpack.c.l.b16 %v1779
      %v1828 = vunpack.c.l.b16 %v1780
      %v1829 = vpack.c.b16 %v1814, %v1813
      %v1830 = vpack.c.b16 %v1816, %v1815
      %v1831 = vpack.c.b16 %v1818, %v1817
      %v1832 = vpack.c.b16 %v1820, %v1819
      %v1833 = vpack.c.b16 %v1822, %v1821
      %v1834 = vpack.c.b16 %v1824, %v1823
      %v1835 = vpack.c.b16 %v1826, %v1825
      %v1836 = vpack.c.b16 %v1828, %v1827
      %1845 = vmatprep.subr.bf16.mxu0 0
      %1846 = vmatpush1.bf16.msra.mxu0 %v1836
      %1847 = vmatprep.subr.bf16.mxu0 0
      %1848 = vmatpush1.bf16.msra.mxu0 %v1835
      %1849 = vmatprep.subr.bf16.mxu0 0
      %1850 = vmatpush1.bf16.msra.mxu0 %v1834
      %1851 = vmatprep.subr.bf16.mxu0 0
      %1852 = vmatpush1.bf16.msra.mxu0 %v1833
      %1853 = vmatprep.subr.bf16.mxu0 0
      %1854 = vmatpush1.bf16.msra.mxu0 %v1832
      %1855 = vmatprep.subr.bf16.mxu0 0
      %1856 = vmatpush1.bf16.msra.mxu0 %v1831
      %1857 = vmatprep.subr.bf16.mxu0 0
      %1858 = vmatpush1.bf16.msra.mxu0 %v1830
      %1859 = vmatprep.subr.bf16.mxu0 0
      %1860 = vmatpush1.bf16.msra.mxu0 %v1829
      %1861 = vmatprep.subr.bf16.mxu0 0
      %1862 = vmatpush2.bf16.msra.mxu0 0
      %1863 = vmatprep.subr.bf16.mxu0 0
      %1864 = vmatpush2.bf16.msra.mxu0 0
      %1865 = vmatprep.subr.bf16.mxu0 0
      %1866 = vmatpush2.bf16.msra.mxu0 0
      %1867 = vmatprep.subr.bf16.mxu0 0
      %1868 = vmatpush2.bf16.msra.mxu0 0
      %1869 = vmatprep.subr.bf16.mxu0 0
      %1870 = vmatpush2.bf16.msra.mxu0 0
      %1871 = vmatprep.subr.bf16.mxu0 0
      %1872 = vmatpush2.bf16.msra.mxu0 0
      %1873 = vmatprep.subr.bf16.mxu0 0
      %1874 = vmatpush2.bf16.msra.mxu0 0
      %1875 = vmatprep.subr.bf16.mxu0 0
      %1876 = vmatpush2.bf16.msra.mxu0 0
      %1877 = vmatprep.mubr.bf16.mxu0 0
      %1878 = vmatmul.mubr.bf16.gmra.mxu0 %v1795
      %v1879 = vpop.f32.mrf.mxu0
      %v1880 = vadd.f32 0.0, %v1879
      %v1881 = vpop.f32.mrf.mxu0
      %v1882 = vpop.f32.mrf.mxu0
      %v1883 = vpop.f32.mrf.mxu0
      %1884 = vdwg.mxu0
      %v1885 = vadd.f32 %v1763, %v1880
      %v1886 = vadd.f32 %v1885, %v746
      %v1887 = vmul.f32 %v1886, 0.1
      %v1888 = vmax.f32 %v1886, %v1887
      %v1889 = vpack.c.bf16 %v1888, %v1888
      %s1890 = scalar_lea.vmem %s175, 4
      %v1891 = vld [vmem:[%s1890] sm:$0x3]
      %v1892 = vsel %vm754, %v1889, %v1891
      %1893 = vst [vmem:[%s1890] sm:$0x3] %v1892
      %s1894 = smul.u32 3, %s14
      %p1895 = scmp.lt.s32.totalorder %s1894, 5
      %s1896 = scalar_select %p1895, %s1894, 5
      %s1897 = smul.addr %s1896, 2
      %s1898 = scalar_lea.vmem %s3, %s1897
      // Predicated region
      $region33: #{multi_periodic_discriminator_forward.13} parent=31 // pred_check
        %p1899 = pneg %p100
      $region34: #{multi_periodic_discriminator_forward.13} parent=31 // pred_check_branch
        %1901 = sbr.rel (%p1899) target = $region36
      $region35: #{multi_periodic_discriminator_forward.13} parent=31 // pred_region
        %s1902 = smul.u32 3, %s14
      $region36: #{multi_periodic_discriminator_forward.13} parent=31 // pred_fallthru
        _
    $region32: #{multi_periodic_discriminator_forward.13} parent=5 // pred_fallthru
      _
    %p1903 = scmp.le.s32.totalorder 2, %s9
    // Predicated region
    $region37: #{multi_periodic_discriminator_forward.13} parent=5 // pred_check
      %p1904 = pneg %p1903
    $region38: #{multi_periodic_discriminator_forward.13} parent=5 // pred_check_branch
      %1906 = sbr.rel (%p1904) target = $region40
    $region39: #{multi_periodic_discriminator_forward.13} parent=5 // pred_region
      %s1907 = ssub.s32 %s9, 2
      // Predicated region
      $region41: #{multi_periodic_discriminator_forward.13} parent=39 // pred_check
        %p1908 = pneg %p106
      $region42: #{multi_periodic_discriminator_forward.13} parent=39 // pred_check_branch
        %1910 = sbr.rel (%p1908) target = $region44
      $region43: #{multi_periodic_discriminator_forward.13} parent=39 // pred_region
        %s1911 = smul.u32 3, %s15
        %p1912 = scmp.lt.s32.totalorder %s1911, 5
        %s1913 = scalar_select %p1912, %s1911, 5
        %s1914 = smul.addr %s1913, 2
        %s1915 = scalar_lea.vmem %s3, %s1914
      $region44: #{multi_periodic_discriminator_forward.13} parent=39 // pred_fallthru
        _
    $region40: #{multi_periodic_discriminator_forward.13} parent=5 // pred_fallthru
      _
  $region6: #{multi_periodic_discriminator_forward.13} parent=0 // loop_footer
    %s13 = sadd.s32 1, %s9
  $region7: #{multi_periodic_discriminator_forward.13} parent=0 // loop_footer_branch
    %8 = sbr.rel target = $region3
  $region8: #{multi_periodic_discriminator_forward.13} parent=0 // loop_exit
    _

// kernel: multi_periodic_discriminator_forward.14
$region0: #{multi_periodic_discriminator_forward.14}
  #allocation0 [shape = 'u32[]', space=smem, size = 0x4, offset = 0x4, fixed_abs, tag = 'smem constant byte address 0x4 - core index']
  #allocation1 [shape = 'u32[144,128]{1,0:T(1,128)}', space=vmem, size = 0x12000, scoped, tag = 'internal scratch']
  %s0 = inlined_call_operand.vmem [shape: bf16[6,2,384], index: 0, kind: input, shape index: {}]
  %s1 = inlined_call_operand.vmem [shape: bf16[5,128,128], index: 1, kind: input, shape index: {}]
  %s2 = inlined_call_operand.vmem [shape: f32[1,128], index: 2, kind: input, shape index: {}]
  %s3 = inlined_call_operand.vmem [shape: bf16[6,1,128], index: 3, kind: output, shape index: {}]
  %s4 = sld [smem:[#allocation0]]
  $region45: #{multi_periodic_discriminator_forward.14} parent=0
    _
  %s6 = ssub.s32 1, %s4
  %s7 = scalar_select 0, %s6, %s4
  loop: start=0, step=1, limit=4
  $region2: #{multi_periodic_discriminator_forward.14} parent=0 // loop_pre_header
    _
  $region3: #{multi_periodic_discriminator_forward.14} parent=0 // loop_header
    %s9 = sphi 0, %s13
    %p10 = scmp.ge.s32.totalorder %s9, 4
    %s19 = sphi 0, %s21
    %s22 = sphi 0, %s19
    %s23 = sphi 0, %s22
    %s39 = sphi 0, %s23
    %s43 = sphi 0, %s43
    %s45 = sphi 0, %s43
    %s46 = sphi 0, %s45
    %s60 = sphi 0, %s46
    %s64 = sphi 0, %s64
    %s66 = sphi 0, %s64
    %s67 = sphi 0, %s66
    %s81 = sphi 0, %s67
    %s87 = sphi 0, %s89
    %s90 = sphi 0, %s87
    %s91 = sphi 0, %s90
    %s107 = sphi 0, %s91
  $region4: #{multi_periodic_discriminator_forward.14} parent=0 // loop_header_branch
    %12 = sbr.rel (%p10) target = $region8
  $region5: #{multi_periodic_discriminator_forward.14} parent=0 // loop_body
    %s14 = ssub.s32 %s9, 1
    %s15 = ssub.s32 %s9, 2
    %s16 = sadd.s32 %s9, 1
    %s17 = ssub.s32 %s9, %s16
    %p18 = scmp.eq.s32.totalorder %s17, 0
    %s20 = sadd.s32 %s19, 1
    %s21 = scalar_select %p18, %s19, %s20
    %p24 = pneg %p18
    %p25 = scmp.eq.s32.totalorder %s9, 1
    %p26 = por %p24, %p25
    %p27 = scmp.ne.s32.totalorder %s19, %s22
    %p28 = scmp.eq.s32.totalorder %s9, 0
    %p29 = por %p27, %p28
    %p30 = scmp.ne.s32.totalorder %s19, %s22
    %p31 = scmp.eq.s32.totalorder %s14, 1
    %p32 = por %p30, %p31
    %p33 = scmp.ne.s32.totalorder %s22, %s23
    %p34 = scmp.eq.s32.totalorder %s14, 0
    %p35 = por %p33, %p34
    %p36 = scmp.ne.s32.totalorder %s22, %s23
    %p37 = scmp.eq.s32.totalorder %s15, 1
    %p38 = por %p36, %p37
    %p40 = scmp.ne.s32.totalorder %s23, %s39
    %p41 = scmp.eq.s32.totalorder %s15, 0
    %p42 = por %p40, %p41
    %s44 = sadd.s32 %s43, 1
    %p47 = scmp.eq.s32.totalorder %s9, 1
    %p48 = scmp.ne.s32.totalorder %s43, %s45
    %p49 = scmp.eq.s32.totalorder %s9, 0
    %p50 = por %p48, %p49
    %p51 = scmp.ne.s32.totalorder %s43, %s45
    %p52 = scmp.eq.s32.totalorder %s14, 1
    %p53 = por %p51, %p52
    %p54 = scmp.ne.s32.totalorder %s45, %s46
    %p55 = scmp.eq.s32.totalorder %s14, 0
    %p56 = por %p54, %p55
    %p57 = scmp.ne.s32.totalorder %s45, %s46
    %p58 = scmp.eq.s32.totalorder %s15, 1
    %p59 = por %p57, %p58
    %p61 = scmp.ne.s32.totalorder %s46, %s60
    %p62 = scmp.eq.s32.totalorder %s15, 0
    %p63 = por %p61, %p62
    %s65 = sadd.s32 %s64, 1
    %p68 = scmp.eq.s32.totalorder %s9, 1
    %p69 = scmp.ne.s32.totalorder %s64, %s66
    %p70 = scmp.eq.s32.totalorder %s9, 0
    %p71 = por %p69, %p70
    %p72 = scmp.ne.s32.totalorder %s64, %s66
    %p73 = scmp.eq.s32.totalorder %s14, 1
    %p74 = por %p72, %p73
    %p75 = scmp.ne.s32.totalorder %s66, %s67
    %p76 = scmp.eq.s32.totalorder %s14, 0
    %p77 = por %p75, %p76
    %p78 = scmp.ne.s32.totalorder %s66, %s67
    %p79 = scmp.eq.s32.totalorder %s15, 1
    %p80 = por %p78, %p79
    %p82 = scmp.ne.s32.totalorder %s67, %s81
    %p83 = scmp.eq.s32.totalorder %s15, 0
    %p84 = por %p82, %p83
    %s85 = ssub.s32 %s9, %s16
    %p86 = scmp.eq.s32.totalorder %s85, 0
    %s88 = sadd.s32 %s87, 1
    %s89 = scalar_select %p86, %s87, %s88
    %p92 = pneg %p86
    %p93 = scmp.eq.s32.totalorder %s9, 1
    %p94 = por %p92, %p93
    %p95 = scmp.ne.s32.totalorder %s87, %s90
    %p96 = scmp.eq.s32.totalorder %s9, 0
    %p97 = por %p95, %p96
    %p98 = scmp.ne.s32.totalorder %s87, %s90
    %p99 = scmp.eq.s32.totalorder %s14, 1
    %p100 = por %p98, %p99
    %p101 = scmp.ne.s32.totalorder %s90, %s91
    %p102 = scmp.eq.s32.totalorder %s14, 0
    %p103 = por %p101, %p102
    %p104 = scmp.ne.s32.totalorder %s90, %s91
    %p105 = scmp.eq.s32.totalorder %s15, 1
    %p106 = por %p104, %p105
    %p108 = scmp.ne.s32.totalorder %s91, %s107
    %p109 = scmp.eq.s32.totalorder %s15, 0
    %p110 = por %p108, %p109
    %p111 = scmp.le.s32.totalorder 1, %s9
    %p112 = scmp.lt.s32.totalorder %s9, 3
    %p113 = pnand %p111, %p112
    %p114 = pneg %p113
    // Predicated region
    $region9: #{multi_periodic_discriminator_forward.14} parent=5 // pred_check
      _
    $region10: #{multi_periodic_discriminator_forward.14} parent=5 // pred_check_branch
      %116 = sbr.rel (%p113) target = $region12
    $region11: #{multi_periodic_discriminator_forward.14} parent=5 // pred_region
      %s117 = ssub.s32 %s9, 1
      // Predicated region
      $region13: #{multi_periodic_discriminator_forward.14} parent=11 // pred_check
        %p118 = pneg %p56
      $region14: #{multi_periodic_discriminator_forward.14} parent=11 // pred_check_branch
        %120 = sbr.rel (%p118) target = $region16
      $region15: #{multi_periodic_discriminator_forward.14} parent=11 // pred_region
        _
      $region16: #{multi_periodic_discriminator_forward.14} parent=11 // pred_fallthru
        _
      // Predicated region
      $region17: #{multi_periodic_discriminator_forward.14} parent=11 // pred_check
        %p121 = pneg %p77
      $region18: #{multi_periodic_discriminator_forward.14} parent=11 // pred_check_branch
        %123 = sbr.rel (%p121) target = $region20
      $region19: #{multi_periodic_discriminator_forward.14} parent=11 // pred_region
        _
      $region20: #{multi_periodic_discriminator_forward.14} parent=11 // pred_fallthru
        _
    $region12: #{multi_periodic_discriminator_forward.14} parent=5 // pred_fallthru
      _
    %p124 = scmp.lt.s32.totalorder %s9, 2
    // Predicated region
    $region21: #{multi_periodic_discriminator_forward.14} parent=5 // pred_check
      %p125 = pneg %p124
    $region22: #{multi_periodic_discriminator_forward.14} parent=5 // pred_check_branch
      %127 = sbr.rel (%p125) target = $region24
    $region23: #{multi_periodic_discriminator_forward.14} parent=5 // pred_region
      // Predicated region
      $region25: #{multi_periodic_discriminator_forward.14} parent=23 // pred_check
        %p128 = pneg %p29
      $region26: #{multi_periodic_discriminator_forward.14} parent=23 // pred_check_branch
        %130 = sbr.rel (%p128) target = $region28
      $region27: #{multi_periodic_discriminator_forward.14} parent=23 // pred_region
        %s131 = smul.u32 3, %s9
        %p132 = scmp.lt.s32.totalorder %s131, 5
        %s133 = scalar_select %p132, %s131, 5
        %s134 = smul.addr %s133, 3
        %s135 = scalar_lea.vmem %s0, %s134
        %s136 = smul.u32 3, %s9
      $region28: #{multi_periodic_discriminator_forward.14} parent=23 // pred_fallthru
        _
    $region24: #{multi_periodic_discriminator_forward.14} parent=5 // pred_fallthru
      _
    %p137 = scmp.le.s32.totalorder 1, %s9
    %p138 = scmp.lt.s32.totalorder %s9, 3
    %p139 = pnand %p137, %p138
    %p140 = pneg %p139
    // Predicated region
    $region29: #{multi_periodic_discriminator_forward.14} parent=5 // pred_check
      _
    $region30: #{multi_periodic_discriminator_forward.14} parent=5 // pred_check_branch
      %142 = sbr.rel (%p139) target = $region32
    $region31: #{multi_periodic_discriminator_forward.14} parent=5 // pred_region
      %s143 = ssub.s32 %s9, 1
      %s144 = smul.u32 3, %s14
      %p145 = scmp.lt.s32.totalorder %s144, 5
      %s146 = scalar_select %p145, %s144, 5
      %s147 = smul.addr %s146, 3
      %s148 = scalar_lea.vmem %s0, %s147
      %p149 = pneg %p35
      %p150 = pneg %p32
      %p151 = pneg %p56
      %p152 = pneg %p53
      %p153 = pneg %p77
      %p154 = pneg %p74
      %p155 = pneg %p103
      %p156 = pneg %p100
      %s157 = smul.u32 3, %s14
      %p158 = scmp.lt.s32.totalorder %s157, 5
      %s159 = scalar_select %p158, %s157, 5
      %s160 = scalar_lea.vmem %s3, %s159
      %s161 = smul.u32 3, %s14
      %p162 = scmp.lt.s32.totalorder %s161, 5
      %s163 = scalar_select %p162, %s161, 5
      %s164 = smul.addr %s163, 3
      %s165 = scalar_lea.vmem %s0, %s164
      %s166 = smul.u32 3, %s14
      %s167 = smul.u32 3, %s14
      %p168 = scmp.lt.s32.totalorder %s167, 5
      %s169 = scalar_select %p168, %s167, 5
      %s170 = scalar_lea.vmem %s3, %s169
      %s171 = smul.u32 3, %s14
      %v173 = vld [vmem:[%s2] sm:$0x1]
      %v174 = vld [vmem:[%s165] sm:$0x1]
      %v175 = vld [vmem:[%s1] sm:$0xf]
      %v176 = vld [vmem:[%s1 + $0x4] sm:$0xf]
      %v177 = vld [vmem:[%s1 + $0x8] sm:$0xf]
      %v178 = vld [vmem:[%s1 + $0xc] sm:$0xf]
      %v179 = vld [vmem:[%s1 + $0x10] sm:$0xf]
      %v180 = vld [vmem:[%s1 + $0x14] sm:$0xf]
      %v181 = vld [vmem:[%s1 + $0x18] sm:$0xf]
      %v182 = vld [vmem:[%s1 + $0x1c] sm:$0xf]
      %v183 = vld [vmem:[%s1 + $0x20] sm:$0xf]
      %v184 = vld [vmem:[%s1 + $0x24] sm:$0xf]
      %v185 = vld [vmem:[%s1 + $0x28] sm:$0xf]
      %v186 = vld [vmem:[%s1 + $0x2c] sm:$0xf]
      %v187 = vld [vmem:[%s1 + $0x30] sm:$0xf]
      %v188 = vld [vmem:[%s1 + $0x34] sm:$0xf]
      %v189 = vld [vmem:[%s1 + $0x38] sm:$0xf]
      %v190 = vld [vmem:[%s1 + $0x3c] sm:$0xf]
      %v191 = vld [vmem:[%s165 + $0x1] sm:$0x1]
      %s192 = scalar_lea.vmem %s1, 64
      %v193 = vld [vmem:[%s192] sm:$0xf]
      %v194 = vld [vmem:[%s192 + $0x4] sm:$0xf]
      %v195 = vld [vmem:[%s192 + $0x8] sm:$0xf]
      %v196 = vld [vmem:[%s192 + $0xc] sm:$0xf]
      %v197 = vld [vmem:[%s192 + $0x10] sm:$0xf]
      %v198 = vld [vmem:[%s192 + $0x14] sm:$0xf]
      %v199 = vld [vmem:[%s192 + $0x18] sm:$0xf]
      %v200 = vld [vmem:[%s192 + $0x1c] sm:$0xf]
      %v201 = vld [vmem:[%s192 + $0x20] sm:$0xf]
      %v202 = vld [vmem:[%s192 + $0x24] sm:$0xf]
      %v203 = vld [vmem:[%s192 + $0x28] sm:$0xf]
      %v204 = vld [vmem:[%s192 + $0x2c] sm:$0xf]
      %v205 = vld [vmem:[%s192 + $0x30] sm:$0xf]
      %v206 = vld [vmem:[%s192 + $0x34] sm:$0xf]
      %v207 = vld [vmem:[%s192 + $0x38] sm:$0xf]
      %v208 = vld [vmem:[%s192 + $0x3c] sm:$0xf]
      %v225 = vunpack.c.l.b16 %v193
      %v226 = vunpack.c.l.b16 %v194
      %v227 = vunpack.c.l.b16 %v195
      %v228 = vunpack.c.l.b16 %v196
      %v229 = vunpack.c.l.b16 %v197
      %v230 = vunpack.c.l.b16 %v198
      %v231 = vunpack.c.l.b16 %v199
      %v232 = vunpack.c.l.b16 %v200
      %v233 = vunpack.c.l.b16 %v201
      %v234 = vunpack.c.l.b16 %v202
      %v235 = vunpack.c.l.b16 %v203
      %v236 = vunpack.c.l.b16 %v204
      %v237 = vunpack.c.l.b16 %v205
      %v238 = vunpack.c.l.b16 %v206
      %v239 = vunpack.c.l.b16 %v207
      %v240 = vunpack.c.l.b16 %v208
      %v241 = vpack.c.b16 %v226, %v225
      %v242 = vpack.c.b16 %v228, %v227
      %v243 = vpack.c.b16 %v230, %v229
      %v244 = vpack.c.b16 %v232, %v231
      %v245 = vpack.c.b16 %v234, %v233
      %v246 = vpack.c.b16 %v236, %v235
      %v247 = vpack.c.b16 %v238, %v237
      %v248 = vpack.c.b16 %v240, %v239
      %257 = vmatprep.subr.bf16.mxu0 0
      %258 = vmatpush1.bf16.msra.mxu0 %v248
      %259 = vmatprep.subr.bf16.mxu0 0
      %260 = vmatpush1.bf16.msra.mxu0 %v247
      %261 = vmatprep.subr.bf16.mxu0 0
      %262 = vmatpush1.bf16.msra.mxu0 %v246
      %263 = vmatprep.subr.bf16.mxu0 0
      %264 = vmatpush1.bf16.msra.mxu0 %v245
      %265 = vmatprep.subr.bf16.mxu0 0
      %266 = vmatpush1.bf16.msra.mxu0 %v244
      %267 = vmatprep.subr.bf16.mxu0 0
      %268 = vmatpush1.bf16.msra.mxu0 %v243
      %269 = vmatprep.subr.bf16.mxu0 0
      %270 = vmatpush1.bf16.msra.mxu0 %v242
      %271 = vmatprep.subr.bf16.mxu0 0
      %272 = vmatpush1.bf16.msra.mxu0 %v241
      %273 = vmatprep.subr.bf16.mxu0 0
      %274 = vmatpush2.bf16.msra.mxu0 0
      %275 = vmatprep.subr.bf16.mxu0 0
      %276 = vmatpush2.bf16.msra.mxu0 0
      %277 = vmatprep.subr.bf16.mxu0 0
      %278 = vmatpush2.bf16.msra.mxu0 0
      %279 = vmatprep.subr.bf16.mxu0 0
      %280 = vmatpush2.bf16.msra.mxu0 0
      %281 = vmatprep.subr.bf16.mxu0 0
      %282 = vmatpush2.bf16.msra.mxu0 0
      %283 = vmatprep.subr.bf16.mxu0 0
      %284 = vmatpush2.bf16.msra.mxu0 0
      %285 = vmatprep.subr.bf16.mxu0 0
      %286 = vmatpush2.bf16.msra.mxu0 0
      %287 = vmatprep.subr.bf16.mxu0 0
      %288 = vmatpush2.bf16.msra.mxu0 0
      %289 = vmatprep.mubr.bf16.mxu0 0
      %290 = vmatmul.mubr.bf16.gmra.mxu0 %v191
      %v291 = vpop.f32.mrf.mxu0
      %v292 = vadd.f32 0.0, %v291
      %v293 = vpop.f32.mrf.mxu0
      %v294 = vpop.f32.mrf.mxu0
      %v295 = vpop.f32.mrf.mxu0
      %296 = vdwg.mxu0
      %v313 = vunpack.c.l.b16 %v175
      %v314 = vunpack.c.l.b16 %v176
      %v315 = vunpack.c.l.b16 %v177
      %v316 = vunpack.c.l.b16 %v178
      %v317 = vunpack.c.l.b16 %v179
      %v318 = vunpack.c.l.b16 %v180
      %v319 = vunpack.c.l.b16 %v181
      %v320 = vunpack.c.l.b16 %v182
      %v321 = vunpack.c.l.b16 %v183
      %v322 = vunpack.c.l.b16 %v184
      %v323 = vunpack.c.l.b16 %v185
      %v324 = vunpack.c.l.b16 %v186
      %v325 = vunpack.c.l.b16 %v187
      %v326 = vunpack.c.l.b16 %v188
      %v327 = vunpack.c.l.b16 %v189
      %v328 = vunpack.c.l.b16 %v190
      %v329 = vpack.c.b16 %v314, %v313
      %v330 = vpack.c.b16 %v316, %v315
      %v331 = vpack.c.b16 %v318, %v317
      %v332 = vpack.c.b16 %v320, %v319
      %v333 = vpack.c.b16 %v322, %v321
      %v334 = vpack.c.b16 %v324, %v323
      %v335 = vpack.c.b16 %v326, %v325
      %v336 = vpack.c.b16 %v328, %v327
      %345 = vmatprep.subr.bf16.mxu0 0
      %346 = vmatpush1.bf16.msra.mxu0 %v336
      %347 = vmatprep.subr.bf16.mxu0 0
      %348 = vmatpush1.bf16.msra.mxu0 %v335
      %349 = vmatprep.subr.bf16.mxu0 0
      %350 = vmatpush1.bf16.msra.mxu0 %v334
      %351 = vmatprep.subr.bf16.mxu0 0
      %352 = vmatpush1.bf16.msra.mxu0 %v333
      %353 = vmatprep.subr.bf16.mxu0 0
      %354 = vmatpush1.bf16.msra.mxu0 %v332
      %355 = vmatprep.subr.bf16.mxu0 0
      %356 = vmatpush1.bf16.msra.mxu0 %v331
      %357 = vmatprep.subr.bf16.mxu0 0
      %358 = vmatpush1.bf16.msra.mxu0 %v330
      %359 = vmatprep.subr.bf16.mxu0 0
      %360 = vmatpush1.bf16.msra.mxu0 %v329
      %361 = vmatprep.subr.bf16.mxu0 0
      %362 = vmatpush2.bf16.msra.mxu0 0
      %363 = vmatprep.subr.bf16.mxu0 0
      %364 = vmatpush2.bf16.msra.mxu0 0
      %365 = vmatprep.subr.bf16.mxu0 0
      %366 = vmatpush2.bf16.msra.mxu0 0
      %367 = vmatprep.subr.bf16.mxu0 0
      %368 = vmatpush2.bf16.msra.mxu0 0
      %369 = vmatprep.subr.bf16.mxu0 0
      %370 = vmatpush2.bf16.msra.mxu0 0
      %371 = vmatprep.subr.bf16.mxu0 0
      %372 = vmatpush2.bf16.msra.mxu0 0
      %373 = vmatprep.subr.bf16.mxu0 0
      %374 = vmatpush2.bf16.msra.mxu0 0
      %375 = vmatprep.subr.bf16.mxu0 0
      %376 = vmatpush2.bf16.msra.mxu0 0
      %377 = vmatprep.mubr.bf16.mxu0 0
      %378 = vmatmul.mubr.bf16.gmra.mxu0 %v174
      %v379 = vpop.f32.mrf.mxu0
      %v380 = vadd.f32 %v292, %v379
      %v381 = vpop.f32.mrf.mxu0
      %v382 = vpop.f32.mrf.mxu0
      %v383 = vpop.f32.mrf.mxu0
      %384 = vdwg.mxu0
      %v385 = vld [vmem:[%s165 + $0x2] sm:$0x1]
      %s386 = scalar_lea.vmem %s1, 128
      %v387 = vld [vmem:[%s386] sm:$0xf]
      %v388 = vld [vmem:[%s386 + $0x4] sm:$0xf]
      %v389 = vld [vmem:[%s386 + $0x8] sm:$0xf]
      %v390 = vld [vmem:[%s386 + $0xc] sm:$0xf]
      %v391 = vld [vmem:[%s386 + $0x10] sm:$0xf]
      %v392 = vld [vmem:[%s386 + $0x14] sm:$0xf]
      %v393 = vld [vmem:[%s386 + $0x18] sm:$0xf]
      %v394 = vld [vmem:[%s386 + $0x1c] sm:$0xf]
      %v395 = vld [vmem:[%s386 + $0x20] sm:$0xf]
      %v396 = vld [vmem:[%s386 + $0x24] sm:$0xf]
      %v397 = vld [vmem:[%s386 + $0x28] sm:$0xf]
      %v398 = vld [vmem:[%s386 + $0x2c] sm:$0xf]
      %v399 = vld [vmem:[%s386 + $0x30] sm:$0xf]
      %v400 = vld [vmem:[%s386 + $0x34] sm:$0xf]
      %v401 = vld [vmem:[%s386 + $0x38] sm:$0xf]
      %v402 = vld [vmem:[%s386 + $0x3c] sm:$0xf]
      %v419 = vunpack.c.l.b16 %v387
      %v420 = vunpack.c.l.b16 %v388
      %v421 = vunpack.c.l.b16 %v389
      %v422 = vunpack.c.l.b16 %v390
      %v423 = vunpack.c.l.b16 %v391
      %v424 = vunpack.c.l.b16 %v392
      %v425 = vunpack.c.l.b16 %v393
      %v426 = vunpack.c.l.b16 %v394
      %v427 = vunpack.c.l.b16 %v395
      %v428 = vunpack.c.l.b16 %v396
      %v429 = vunpack.c.l.b16 %v397
      %v430 = vunpack.c.l.b16 %v398
      %v431 = vunpack.c.l.b16 %v399
      %v432 = vunpack.c.l.b16 %v400
      %v433 = vunpack.c.l.b16 %v401
      %v434 = vunpack.c.l.b16 %v402
      %v435 = vpack.c.b16 %v420, %v419
      %v436 = vpack.c.b16 %v422, %v421
      %v437 = vpack.c.b16 %v424, %v423
      %v438 = vpack.c.b16 %v426, %v425
      %v439 = vpack.c.b16 %v428, %v427
      %v440 = vpack.c.b16 %v430, %v429
      %v441 = vpack.c.b16 %v432, %v431
      %v442 = vpack.c.b16 %v434, %v433
      %451 = vmatprep.subr.bf16.mxu0 0
      %452 = vmatpush1.bf16.msra.mxu0 %v442
      %453 = vmatprep.subr.bf16.mxu0 0
      %454 = vmatpush1.bf16.msra.mxu0 %v441
      %455 = vmatprep.subr.bf16.mxu0 0
      %456 = vmatpush1.bf16.msra.mxu0 %v440
      %457 = vmatprep.subr.bf16.mxu0 0
      %458 = vmatpush1.bf16.msra.mxu0 %v439
      %459 = vmatprep.subr.bf16.mxu0 0
      %460 = vmatpush1.bf16.msra.mxu0 %v438
      %461 = vmatprep.subr.bf16.mxu0 0
      %462 = vmatpush1.bf16.msra.mxu0 %v437
      %463 = vmatprep.subr.bf16.mxu0 0
      %464 = vmatpush1.bf16.msra.mxu0 %v436
      %465 = vmatprep.subr.bf16.mxu0 0
      %466 = vmatpush1.bf16.msra.mxu0 %v435
      %467 = vmatprep.subr.bf16.mxu0 0
      %468 = vmatpush2.bf16.msra.mxu0 0
      %469 = vmatprep.subr.bf16.mxu0 0
      %470 = vmatpush2.bf16.msra.mxu0 0
      %471 = vmatprep.subr.bf16.mxu0 0
      %472 = vmatpush2.bf16.msra.mxu0 0
      %473 = vmatprep.subr.bf16.mxu0 0
      %474 = vmatpush2.bf16.msra.mxu0 0
      %475 = vmatprep.subr.bf16.mxu0 0
      %476 = vmatpush2.bf16.msra.mxu0 0
      %477 = vmatprep.subr.bf16.mxu0 0
      %478 = vmatpush2.bf16.msra.mxu0 0
      %479 = vmatprep.subr.bf16.mxu0 0
      %480 = vmatpush2.bf16.msra.mxu0 0
      %481 = vmatprep.subr.bf16.mxu0 0
      %482 = vmatpush2.bf16.msra.mxu0 0
      %483 = vmatprep.mubr.bf16.mxu0 0
      %484 = vmatmul.mubr.bf16.gmra.mxu0 %v385
      %v485 = vpop.f32.mrf.mxu0
      %v486 = vadd.f32 0.0, %v485
      %v487 = vpop.f32.mrf.mxu0
      %v488 = vpop.f32.mrf.mxu0
      %v489 = vpop.f32.mrf.mxu0
      %490 = vdwg.mxu0
      %v491 = vadd.f32 %v380, %v486
      %s492 = scalar_lea.vmem %s1, 192
      %v493 = vld [vmem:[%s492] sm:$0xf]
      %v494 = vld [vmem:[%s492 + $0x4] sm:$0xf]
      %v495 = vld [vmem:[%s492 + $0x8] sm:$0xf]
      %v496 = vld [vmem:[%s492 + $0xc] sm:$0xf]
      %v497 = vld [vmem:[%s492 + $0x10] sm:$0xf]
      %v498 = vld [vmem:[%s492 + $0x14] sm:$0xf]
      %v499 = vld [vmem:[%s492 + $0x18] sm:$0xf]
      %v500 = vld [vmem:[%s492 + $0x1c] sm:$0xf]
      %v501 = vld [vmem:[%s492 + $0x20] sm:$0xf]
      %v502 = vld [vmem:[%s492 + $0x24] sm:$0xf]
      %v503 = vld [vmem:[%s492 + $0x28] sm:$0xf]
      %v504 = vld [vmem:[%s492 + $0x2c] sm:$0xf]
      %v505 = vld [vmem:[%s492 + $0x30] sm:$0xf]
      %v506 = vld [vmem:[%s492 + $0x34] sm:$0xf]
      %v507 = vld [vmem:[%s492 + $0x38] sm:$0xf]
      %v508 = vld [vmem:[%s492 + $0x3c] sm:$0xf]
      %v511 = vunpack.c.l.s4 1966171168
      %v512 = vunpack.c.0.s8 %v511
      %v513 = vlaneseq
      %v514 = vshrl.u32 %v513, 7
      %v515 = vsub.s32 %v512, %v514
      %v516 = vrot.slane %v174, %v515
      %v518 = vunpack.c.l.s4 1966171168
      %v519 = vunpack.c.0.s8 %v518
      %v520 = vlaneseq
      %v521 = vshrl.u32 %v520, 7
      %v522 = vsub.s32 %v519, %v521
      %v523 = vrot.slane %v516, %v522
      %v525 = vshrl.u32 %v523, 16
      %v544 = vunpack.c.l.b16 %v493
      %v545 = vunpack.c.l.b16 %v494
      %v546 = vunpack.c.l.b16 %v495
      %v547 = vunpack.c.l.b16 %v496
      %v548 = vunpack.c.l.b16 %v497
      %v549 = vunpack.c.l.b16 %v498
      %v550 = vunpack.c.l.b16 %v499
      %v551 = vunpack.c.l.b16 %v500
      %v552 = vunpack.c.l.b16 %v501
      %v553 = vunpack.c.l.b16 %v502
      %v554 = vunpack.c.l.b16 %v503
      %v555 = vunpack.c.l.b16 %v504
      %v556 = vunpack.c.l.b16 %v505
      %v557 = vunpack.c.l.b16 %v506
      %v558 = vunpack.c.l.b16 %v507
      %v559 = vunpack.c.l.b16 %v508
      %v560 = vpack.c.b16 %v545, %v544
      %v561 = vpack.c.b16 %v547, %v546
      %v562 = vpack.c.b16 %v549, %v548
      %v563 = vpack.c.b16 %v551, %v550
      %v564 = vpack.c.b16 %v553, %v552
      %v565 = vpack.c.b16 %v555, %v554
      %v566 = vpack.c.b16 %v557, %v556
      %v567 = vpack.c.b16 %v559, %v558
      %576 = vmatprep.subr.bf16.mxu0 0
      %577 = vmatpush1.bf16.msra.mxu0 %v567
      %578 = vmatprep.subr.bf16.mxu0 0
      %579 = vmatpush1.bf16.msra.mxu0 %v566
      %580 = vmatprep.subr.bf16.mxu0 0
      %581 = vmatpush1.bf16.msra.mxu0 %v565
      %582 = vmatprep.subr.bf16.mxu0 0
      %583 = vmatpush1.bf16.msra.mxu0 %v564
      %584 = vmatprep.subr.bf16.mxu0 0
      %585 = vmatpush1.bf16.msra.mxu0 %v563
      %586 = vmatprep.subr.bf16.mxu0 0
      %587 = vmatpush1.bf16.msra.mxu0 %v562
      %588 = vmatprep.subr.bf16.mxu0 0
      %589 = vmatpush1.bf16.msra.mxu0 %v561
      %590 = vmatprep.subr.bf16.mxu0 0
      %591 = vmatpush1.bf16.msra.mxu0 %v560
      %592 = vmatprep.subr.bf16.mxu0 0
      %593 = vmatpush2.bf16.msra.mxu0 0
      %594 = vmatprep.subr.bf16.mxu0 0
      %595 = vmatpush2.bf16.msra.mxu0 0
      %596 = vmatprep.subr.bf16.mxu0 0
      %597 = vmatpush2.bf16.msra.mxu0 0
      %598 = vmatprep.subr.bf16.mxu0 0
      %599 = vmatpush2.bf16.msra.mxu0 0
      %600 = vmatprep.subr.bf16.mxu0 0
      %601 = vmatpush2.bf16.msra.mxu0 0
      %602 = vmatprep.subr.bf16.mxu0 0
      %603 = vmatpush2.bf16.msra.mxu0 0
      %604 = vmatprep.subr.bf16.mxu0 0
      %605 = vmatpush2.bf16.msra.mxu0 0
      %606 = vmatprep.subr.bf16.mxu0 0
      %607 = vmatpush2.bf16.msra.mxu0 0
      %608 = vmatprep.mubr.bf16.mxu0 0
      %609 = vmatmul.mubr.bf16.gmra.mxu0 %v525
      %v610 = vpop.f32.mrf.mxu0
      %v611 = vadd.f32 0.0, %v610
      %v612 = vpop.f32.mrf.mxu0
      %v613 = vpop.f32.mrf.mxu0
      %v614 = vpop.f32.mrf.mxu0
      %615 = vdwg.mxu0
      %v616 = vadd.f32 %v491, %v611
      %v617 = vld [vmem:[%s165 + $0x1] sm:$0x1]
      %s618 = scalar_lea.vmem %s1, 256
      %v619 = vld [vmem:[%s618] sm:$0xf]
      %v620 = vld [vmem:[%s618 + $0x4] sm:$0xf]
      %v621 = vld [vmem:[%s618 + $0x8] sm:$0xf]
      %v622 = vld [vmem:[%s618 + $0xc] sm:$0xf]
      %v623 = vld [vmem:[%s618 + $0x10] sm:$0xf]
      %v624 = vld [vmem:[%s618 + $0x14] sm:$0xf]
      %v625 = vld [vmem:[%s618 + $0x18] sm:$0xf]
      %v626 = vld [vmem:[%s618 + $0x1c] sm:$0xf]
      %v627 = vld [vmem:[%s618 + $0x20] sm:$0xf]
      %v628 = vld [vmem:[%s618 + $0x24] sm:$0xf]
      %v629 = vld [vmem:[%s618 + $0x28] sm:$0xf]
      %v630 = vld [vmem:[%s618 + $0x2c] sm:$0xf]
      %v631 = vld [vmem:[%s618 + $0x30] sm:$0xf]
      %v632 = vld [vmem:[%s618 + $0x34] sm:$0xf]
      %v633 = vld [vmem:[%s618 + $0x38] sm:$0xf]
      %v634 = vld [vmem:[%s618 + $0x3c] sm:$0xf]
      %v637 = vunpack.c.l.s4 1966171168
      %v638 = vunpack.c.0.s8 %v637
      %v639 = vlaneseq
      %v640 = vshrl.u32 %v639, 7
      %v641 = vsub.s32 %v638, %v640
      %v642 = vrot.slane %v617, %v641
      %v644 = vunpack.c.l.s4 1966171168
      %v645 = vunpack.c.0.s8 %v644
      %v646 = vlaneseq
      %v647 = vshrl.u32 %v646, 7
      %v648 = vsub.s32 %v645, %v647
      %v649 = vrot.slane %v642, %v648
      %v651 = vshrl.u32 %v649, 16
      %v670 = vunpack.c.l.b16 %v619
      %v671 = vunpack.c.l.b16 %v620
      %v672 = vunpack.c.l.b16 %v621
      %v673 = vunpack.c.l.b16 %v622
      %v674 = vunpack.c.l.b16 %v623
      %v675 = vunpack.c.l.b16 %v624
      %v676 = vunpack.c.l.b16 %v625
      %v677 = vunpack.c.l.b16 %v626
      %v678 = vunpack.c.l.b16 %v627
      %v679 = vunpack.c.l.b16 %v628
      %v680 = vunpack.c.l.b16 %v629
      %v681 = vunpack.c.l.b16 %v630
      %v682 = vunpack.c.l.b16 %v631
      %v683 = vunpack.c.l.b16 %v632
      %v684 = vunpack.c.l.b16 %v633
      %v685 = vunpack.c.l.b16 %v634
      %v686 = vpack.c.b16 %v671, %v670
      %v687 = vpack.c.b16 %v673, %v672
      %v688 = vpack.c.b16 %v675, %v674
      %v689 = vpack.c.b16 %v677, %v676
      %v690 = vpack.c.b16 %v679, %v678
      %v691 = vpack.c.b16 %v681, %v680
      %v692 = vpack.c.b16 %v683, %v682
      %v693 = vpack.c.b16 %v685, %v684
      %702 = vmatprep.subr.bf16.mxu0 0
      %703 = vmatpush1.bf16.msra.mxu0 %v693
      %704 = vmatprep.subr.bf16.mxu0 0
      %705 = vmatpush1.bf16.msra.mxu0 %v692
      %706 = vmatprep.subr.bf16.mxu0 0
      %707 = vmatpush1.bf16.msra.mxu0 %v691
      %708 = vmatprep.subr.bf16.mxu0 0
      %709 = vmatpush1.bf16.msra.mxu0 %v690
      %710 = vmatprep.subr.bf16.mxu0 0
      %711 = vmatpush1.bf16.msra.mxu0 %v689
      %712 = vmatprep.subr.bf16.mxu0 0
      %713 = vmatpush1.bf16.msra.mxu0 %v688
      %714 = vmatprep.subr.bf16.mxu0 0
      %715 = vmatpush1.bf16.msra.mxu0 %v687
      %716 = vmatprep.subr.bf16.mxu0 0
      %717 = vmatpush1.bf16.msra.mxu0 %v686
      %718 = vmatprep.subr.bf16.mxu0 0
      %719 = vmatpush2.bf16.msra.mxu0 0
      %720 = vmatprep.subr.bf16.mxu0 0
      %721 = vmatpush2.bf16.msra.mxu0 0
      %722 = vmatprep.subr.bf16.mxu0 0
      %723 = vmatpush2.bf16.msra.mxu0 0
      %724 = vmatprep.subr.bf16.mxu0 0
      %725 = vmatpush2.bf16.msra.mxu0 0
      %726 = vmatprep.subr.bf16.mxu0 0
      %727 = vmatpush2.bf16.msra.mxu0 0
      %728 = vmatprep.subr.bf16.mxu0 0
      %729 = vmatpush2.bf16.msra.mxu0 0
      %730 = vmatprep.subr.bf16.mxu0 0
      %731 = vmatpush2.bf16.msra.mxu0 0
      %732 = vmatprep.subr.bf16.mxu0 0
      %733 = vmatpush2.bf16.msra.mxu0 0
      %734 = vmatprep.mubr.bf16.mxu0 0
      %735 = vmatmul.mubr.bf16.gmra.mxu0 %v651
      %v736 = vpop.f32.mrf.mxu0
      %v737 = vadd.f32 0.0, %v736
      %v738 = vpop.f32.mrf.mxu0
      %v739 = vpop.f32.mrf.mxu0
      %v740 = vpop.f32.mrf.mxu0
      %741 = vdwg.mxu0
      %v742 = vadd.f32 %v616, %v737
      %v743 = vadd.f32 %v742, %v173
      %v744 = vmul.f32 %v743, 0.1
      %v745 = vmax.f32 %v743, %v744
      %v746 = vpack.c.bf16 %v745, %v745
      %vm747 = vcmask 1040384
      %vm748 = vsmask.f32 256
      %vm749 = vmand %vm747, %vm748
      %v750 = vld [vmem:[%s170] sm:$0x1]
      %v751 = vsel %vm749, %v746, %v750
      %752 = vst [vmem:[%s170] sm:$0x1] %v751
      %s753 = scalar_lea.vmem %s165, 3
      %v754 = vld [vmem:[%s753] sm:$0x1]
      %v755 = vld [vmem:[%s1] sm:$0xf]
      %v756 = vld [vmem:[%s1 + $0x4] sm:$0xf]
      %v757 = vld [vmem:[%s1 + $0x8] sm:$0xf]
      %v758 = vld [vmem:[%s1 + $0xc] sm:$0xf]
      %v759 = vld [vmem:[%s1 + $0x10] sm:$0xf]
      %v760 = vld [vmem:[%s1 + $0x14] sm:$0xf]
      %v761 = vld [vmem:[%s1 + $0x18] sm:$0xf]
      %v762 = vld [vmem:[%s1 + $0x1c] sm:$0xf]
      %v763 = vld [vmem:[%s1 + $0x20] sm:$0xf]
      %v764 = vld [vmem:[%s1 + $0x24] sm:$0xf]
      %v765 = vld [vmem:[%s1 + $0x28] sm:$0xf]
      %v766 = vld [vmem:[%s1 + $0x2c] sm:$0xf]
      %v767 = vld [vmem:[%s1 + $0x30] sm:$0xf]
      %v768 = vld [vmem:[%s1 + $0x34] sm:$0xf]
      %v769 = vld [vmem:[%s1 + $0x38] sm:$0xf]
      %v770 = vld [vmem:[%s1 + $0x3c] sm:$0xf]
      %v771 = vld [vmem:[%s753 + $0x1] sm:$0x1]
      %v772 = vld [vmem:[%s192] sm:$0xf]
      %v773 = vld [vmem:[%s192 + $0x4] sm:$0xf]
      %v774 = vld [vmem:[%s192 + $0x8] sm:$0xf]
      %v775 = vld [vmem:[%s192 + $0xc] sm:$0xf]
      %v776 = vld [vmem:[%s192 + $0x10] sm:$0xf]
      %v777 = vld [vmem:[%s192 + $0x14] sm:$0xf]
      %v778 = vld [vmem:[%s192 + $0x18] sm:$0xf]
      %v779 = vld [vmem:[%s192 + $0x1c] sm:$0xf]
      %v780 = vld [vmem:[%s192 + $0x20] sm:$0xf]
      %v781 = vld [vmem:[%s192 + $0x24] sm:$0xf]
      %v782 = vld [vmem:[%s192 + $0x28] sm:$0xf]
      %v783 = vld [vmem:[%s192 + $0x2c] sm:$0xf]
      %v784 = vld [vmem:[%s192 + $0x30] sm:$0xf]
      %v785 = vld [vmem:[%s192 + $0x34] sm:$0xf]
      %v786 = vld [vmem:[%s192 + $0x38] sm:$0xf]
      %v787 = vld [vmem:[%s192 + $0x3c] sm:$0xf]
      %v804 = vunpack.c.l.b16 %v772
      %v805 = vunpack.c.l.b16 %v773
      %v806 = vunpack.c.l.b16 %v774
      %v807 = vunpack.c.l.b16 %v775
      %v808 = vunpack.c.l.b16 %v776
      %v809 = vunpack.c.l.b16 %v777
      %v810 = vunpack.c.l.b16 %v778
      %v811 = vunpack.c.l.b16 %v779
      %v812 = vunpack.c.l.b16 %v780
      %v813 = vunpack.c.l.b16 %v781
      %v814 = vunpack.c.l.b16 %v782
      %v815 = vunpack.c.l.b16 %v783
      %v816 = vunpack.c.l.b16 %v784
      %v817 = vunpack.c.l.b16 %v785
      %v818 = vunpack.c.l.b16 %v786
      %v819 = vunpack.c.l.b16 %v787
      %v820 = vpack.c.b16 %v805, %v804
      %v821 = vpack.c.b16 %v807, %v806
      %v822 = vpack.c.b16 %v809, %v808
      %v823 = vpack.c.b16 %v811, %v810
      %v824 = vpack.c.b16 %v813, %v812
      %v825 = vpack.c.b16 %v815, %v814
      %v826 = vpack.c.b16 %v817, %v816
      %v827 = vpack.c.b16 %v819, %v818
      %836 = vmatprep.subr.bf16.mxu0 0
      %837 = vmatpush1.bf16.msra.mxu0 %v827
      %838 = vmatprep.subr.bf16.mxu0 0
      %839 = vmatpush1.bf16.msra.mxu0 %v826
      %840 = vmatprep.subr.bf16.mxu0 0
      %841 = vmatpush1.bf16.msra.mxu0 %v825
      %842 = vmatprep.subr.bf16.mxu0 0
      %843 = vmatpush1.bf16.msra.mxu0 %v824
      %844 = vmatprep.subr.bf16.mxu0 0
      %845 = vmatpush1.bf16.msra.mxu0 %v823
      %846 = vmatprep.subr.bf16.mxu0 0
      %847 = vmatpush1.bf16.msra.mxu0 %v822
      %848 = vmatprep.subr.bf16.mxu0 0
      %849 = vmatpush1.bf16.msra.mxu0 %v821
      %850 = vmatprep.subr.bf16.mxu0 0
      %851 = vmatpush1.bf16.msra.mxu0 %v820
      %852 = vmatprep.subr.bf16.mxu0 0
      %853 = vmatpush2.bf16.msra.mxu0 0
      %854 = vmatprep.subr.bf16.mxu0 0
      %855 = vmatpush2.bf16.msra.mxu0 0
      %856 = vmatprep.subr.bf16.mxu0 0
      %857 = vmatpush2.bf16.msra.mxu0 0
      %858 = vmatprep.subr.bf16.mxu0 0
      %859 = vmatpush2.bf16.msra.mxu0 0
      %860 = vmatprep.subr.bf16.mxu0 0
      %861 = vmatpush2.bf16.msra.mxu0 0
      %862 = vmatprep.subr.bf16.mxu0 0
      %863 = vmatpush2.bf16.msra.mxu0 0
      %864 = vmatprep.subr.bf16.mxu0 0
      %865 = vmatpush2.bf16.msra.mxu0 0
      %866 = vmatprep.subr.bf16.mxu0 0
      %867 = vmatpush2.bf16.msra.mxu0 0
      %868 = vmatprep.mubr.bf16.mxu0 0
      %869 = vmatmul.mubr.bf16.gmra.mxu0 %v771
      %v870 = vpop.f32.mrf.mxu0
      %v871 = vadd.f32 0.0, %v870
      %v872 = vpop.f32.mrf.mxu0
      %v873 = vpop.f32.mrf.mxu0
      %v874 = vpop.f32.mrf.mxu0
      %875 = vdwg.mxu0
      %v892 = vunpack.c.l.b16 %v755
      %v893 = vunpack.c.l.b16 %v756
      %v894 = vunpack.c.l.b16 %v757
      %v895 = vunpack.c.l.b16 %v758
      %v896 = vunpack.c.l.b16 %v759
      %v897 = vunpack.c.l.b16 %v760
      %v898 = vunpack.c.l.b16 %v761
      %v899 = vunpack.c.l.b16 %v762
      %v900 = vunpack.c.l.b16 %v763
      %v901 = vunpack.c.l.b16 %v764
      %v902 = vunpack.c.l.b16 %v765
      %v903 = vunpack.c.l.b16 %v766
      %v904 = vunpack.c.l.b16 %v767
      %v905 = vunpack.c.l.b16 %v768
      %v906 = vunpack.c.l.b16 %v769
      %v907 = vunpack.c.l.b16 %v770
      %v908 = vpack.c.b16 %v893, %v892
      %v909 = vpack.c.b16 %v895, %v894
      %v910 = vpack.c.b16 %v897, %v896
      %v911 = vpack.c.b16 %v899, %v898
      %v912 = vpack.c.b16 %v901, %v900
      %v913 = vpack.c.b16 %v903, %v902
      %v914 = vpack.c.b16 %v905, %v904
      %v915 = vpack.c.b16 %v907, %v906
      %924 = vmatprep.subr.bf16.mxu0 0
      %925 = vmatpush1.bf16.msra.mxu0 %v915
      %926 = vmatprep.subr.bf16.mxu0 0
      %927 = vmatpush1.bf16.msra.mxu0 %v914
      %928 = vmatprep.subr.bf16.mxu0 0
      %929 = vmatpush1.bf16.msra.mxu0 %v913
      %930 = vmatprep.subr.bf16.mxu0 0
      %931 = vmatpush1.bf16.msra.mxu0 %v912
      %932 = vmatprep.subr.bf16.mxu0 0
      %933 = vmatpush1.bf16.msra.mxu0 %v911
      %934 = vmatprep.subr.bf16.mxu0 0
      %935 = vmatpush1.bf16.msra.mxu0 %v910
      %936 = vmatprep.subr.bf16.mxu0 0
      %937 = vmatpush1.bf16.msra.mxu0 %v909
      %938 = vmatprep.subr.bf16.mxu0 0
      %939 = vmatpush1.bf16.msra.mxu0 %v908
      %940 = vmatprep.subr.bf16.mxu0 0
      %941 = vmatpush2.bf16.msra.mxu0 0
      %942 = vmatprep.subr.bf16.mxu0 0
      %943 = vmatpush2.bf16.msra.mxu0 0
      %944 = vmatprep.subr.bf16.mxu0 0
      %945 = vmatpush2.bf16.msra.mxu0 0
      %946 = vmatprep.subr.bf16.mxu0 0
      %947 = vmatpush2.bf16.msra.mxu0 0
      %948 = vmatprep.subr.bf16.mxu0 0
      %949 = vmatpush2.bf16.msra.mxu0 0
      %950 = vmatprep.subr.bf16.mxu0 0
      %951 = vmatpush2.bf16.msra.mxu0 0
      %952 = vmatprep.subr.bf16.mxu0 0
      %953 = vmatpush2.bf16.msra.mxu0 0
      %954 = vmatprep.subr.bf16.mxu0 0
      %955 = vmatpush2.bf16.msra.mxu0 0
      %956 = vmatprep.mubr.bf16.mxu0 0
      %957 = vmatmul.mubr.bf16.gmra.mxu0 %v754
      %v958 = vpop.f32.mrf.mxu0
      %v959 = vadd.f32 %v871, %v958
      %v960 = vpop.f32.mrf.mxu0
      %v961 = vpop.f32.mrf.mxu0
      %v962 = vpop.f32.mrf.mxu0
      %963 = vdwg.mxu0
      %v964 = vld [vmem:[%s753 + $0x2] sm:$0x1]
      %v965 = vld [vmem:[%s386] sm:$0xf]
      %v966 = vld [vmem:[%s386 + $0x4] sm:$0xf]
      %v967 = vld [vmem:[%s386 + $0x8] sm:$0xf]
      %v968 = vld [vmem:[%s386 + $0xc] sm:$0xf]
      %v969 = vld [vmem:[%s386 + $0x10] sm:$0xf]
      %v970 = vld [vmem:[%s386 + $0x14] sm:$0xf]
      %v971 = vld [vmem:[%s386 + $0x18] sm:$0xf]
      %v972 = vld [vmem:[%s386 + $0x1c] sm:$0xf]
      %v973 = vld [vmem:[%s386 + $0x20] sm:$0xf]
      %v974 = vld [vmem:[%s386 + $0x24] sm:$0xf]
      %v975 = vld [vmem:[%s386 + $0x28] sm:$0xf]
      %v976 = vld [vmem:[%s386 + $0x2c] sm:$0xf]
      %v977 = vld [vmem:[%s386 + $0x30] sm:$0xf]
      %v978 = vld [vmem:[%s386 + $0x34] sm:$0xf]
      %v979 = vld [vmem:[%s386 + $0x38] sm:$0xf]
      %v980 = vld [vmem:[%s386 + $0x3c] sm:$0xf]
      %v997 = vunpack.c.l.b16 %v965
      %v998 = vunpack.c.l.b16 %v966
      %v999 = vunpack.c.l.b16 %v967
      %v1000 = vunpack.c.l.b16 %v968
      %v1001 = vunpack.c.l.b16 %v969
      %v1002 = vunpack.c.l.b16 %v970
      %v1003 = vunpack.c.l.b16 %v971
      %v1004 = vunpack.c.l.b16 %v972
      %v1005 = vunpack.c.l.b16 %v973
      %v1006 = vunpack.c.l.b16 %v974
      %v1007 = vunpack.c.l.b16 %v975
      %v1008 = vunpack.c.l.b16 %v976
      %v1009 = vunpack.c.l.b16 %v977
      %v1010 = vunpack.c.l.b16 %v978
      %v1011 = vunpack.c.l.b16 %v979
      %v1012 = vunpack.c.l.b16 %v980
      %v1013 = vpack.c.b16 %v998, %v997
      %v1014 = vpack.c.b16 %v1000, %v999
      %v1015 = vpack.c.b16 %v1002, %v1001
      %v1016 = vpack.c.b16 %v1004, %v1003
      %v1017 = vpack.c.b16 %v1006, %v1005
      %v1018 = vpack.c.b16 %v1008, %v1007
      %v1019 = vpack.c.b16 %v1010, %v1009
      %v1020 = vpack.c.b16 %v1012, %v1011
      %1029 = vmatprep.subr.bf16.mxu0 0
      %1030 = vmatpush1.bf16.msra.mxu0 %v1020
      %1031 = vmatprep.subr.bf16.mxu0 0
      %1032 = vmatpush1.bf16.msra.mxu0 %v1019
      %1033 = vmatprep.subr.bf16.mxu0 0
      %1034 = vmatpush1.bf16.msra.mxu0 %v1018
      %1035 = vmatprep.subr.bf16.mxu0 0
      %1036 = vmatpush1.bf16.msra.mxu0 %v1017
      %1037 = vmatprep.subr.bf16.mxu0 0
      %1038 = vmatpush1.bf16.msra.mxu0 %v1016
      %1039 = vmatprep.subr.bf16.mxu0 0
      %1040 = vmatpush1.bf16.msra.mxu0 %v1015
      %1041 = vmatprep.subr.bf16.mxu0 0
      %1042 = vmatpush1.bf16.msra.mxu0 %v1014
      %1043 = vmatprep.subr.bf16.mxu0 0
      %1044 = vmatpush1.bf16.msra.mxu0 %v1013
      %1045 = vmatprep.subr.bf16.mxu0 0
      %1046 = vmatpush2.bf16.msra.mxu0 0
      %1047 = vmatprep.subr.bf16.mxu0 0
      %1048 = vmatpush2.bf16.msra.mxu0 0
      %1049 = vmatprep.subr.bf16.mxu0 0
      %1050 = vmatpush2.bf16.msra.mxu0 0
      %1051 = vmatprep.subr.bf16.mxu0 0
      %1052 = vmatpush2.bf16.msra.mxu0 0
      %1053 = vmatprep.subr.bf16.mxu0 0
      %1054 = vmatpush2.bf16.msra.mxu0 0
      %1055 = vmatprep.subr.bf16.mxu0 0
      %1056 = vmatpush2.bf16.msra.mxu0 0
      %1057 = vmatprep.subr.bf16.mxu0 0
      %1058 = vmatpush2.bf16.msra.mxu0 0
      %1059 = vmatprep.subr.bf16.mxu0 0
      %1060 = vmatpush2.bf16.msra.mxu0 0
      %1061 = vmatprep.mubr.bf16.mxu0 0
      %1062 = vmatmul.mubr.bf16.gmra.mxu0 %v964
      %v1063 = vpop.f32.mrf.mxu0
      %v1064 = vadd.f32 0.0, %v1063
      %v1065 = vpop.f32.mrf.mxu0
      %v1066 = vpop.f32.mrf.mxu0
      %v1067 = vpop.f32.mrf.mxu0
      %1068 = vdwg.mxu0
      %v1069 = vadd.f32 %v959, %v1064
      %v1070 = vld [vmem:[%s492] sm:$0xf]
      %v1071 = vld [vmem:[%s492 + $0x4] sm:$0xf]
      %v1072 = vld [vmem:[%s492 + $0x8] sm:$0xf]
      %v1073 = vld [vmem:[%s492 + $0xc] sm:$0xf]
      %v1074 = vld [vmem:[%s492 + $0x10] sm:$0xf]
      %v1075 = vld [vmem:[%s492 + $0x14] sm:$0xf]
      %v1076 = vld [vmem:[%s492 + $0x18] sm:$0xf]
      %v1077 = vld [vmem:[%s492 + $0x1c] sm:$0xf]
      %v1078 = vld [vmem:[%s492 + $0x20] sm:$0xf]
      %v1079 = vld [vmem:[%s492 + $0x24] sm:$0xf]
      %v1080 = vld [vmem:[%s492 + $0x28] sm:$0xf]
      %v1081 = vld [vmem:[%s492 + $0x2c] sm:$0xf]
      %v1082 = vld [vmem:[%s492 + $0x30] sm:$0xf]
      %v1083 = vld [vmem:[%s492 + $0x34] sm:$0xf]
      %v1084 = vld [vmem:[%s492 + $0x38] sm:$0xf]
      %v1085 = vld [vmem:[%s492 + $0x3c] sm:$0xf]
      %v1088 = vunpack.c.l.s4 1966171168
      %v1089 = vunpack.c.0.s8 %v1088
      %v1090 = vlaneseq
      %v1091 = vshrl.u32 %v1090, 7
      %v1092 = vsub.s32 %v1089, %v1091
      %v1093 = vrot.slane %v754, %v1092
      %v1095 = vunpack.c.l.s4 1966171168
      %v1096 = vunpack.c.0.s8 %v1095
      %v1097 = vlaneseq
      %v1098 = vshrl.u32 %v1097, 7
      %v1099 = vsub.s32 %v1096, %v1098
      %v1100 = vrot.slane %v1093, %v1099
      %v1102 = vshrl.u32 %v1100, 16
      %v1121 = vunpack.c.l.b16 %v1070
      %v1122 = vunpack.c.l.b16 %v1071
      %v1123 = vunpack.c.l.b16 %v1072
      %v1124 = vunpack.c.l.b16 %v1073
      %v1125 = vunpack.c.l.b16 %v1074
      %v1126 = vunpack.c.l.b16 %v1075
      %v1127 = vunpack.c.l.b16 %v1076
      %v1128 = vunpack.c.l.b16 %v1077
      %v1129 = vunpack.c.l.b16 %v1078
      %v1130 = vunpack.c.l.b16 %v1079
      %v1131 = vunpack.c.l.b16 %v1080
      %v1132 = vunpack.c.l.b16 %v1081
      %v1133 = vunpack.c.l.b16 %v1082
      %v1134 = vunpack.c.l.b16 %v1083
      %v1135 = vunpack.c.l.b16 %v1084
      %v1136 = vunpack.c.l.b16 %v1085
      %v1137 = vpack.c.b16 %v1122, %v1121
      %v1138 = vpack.c.b16 %v1124, %v1123
      %v1139 = vpack.c.b16 %v1126, %v1125
      %v1140 = vpack.c.b16 %v1128, %v1127
      %v1141 = vpack.c.b16 %v1130, %v1129
      %v1142 = vpack.c.b16 %v1132, %v1131
      %v1143 = vpack.c.b16 %v1134, %v1133
      %v1144 = vpack.c.b16 %v1136, %v1135
      %1153 = vmatprep.subr.bf16.mxu0 0
      %1154 = vmatpush1.bf16.msra.mxu0 %v1144
      %1155 = vmatprep.subr.bf16.mxu0 0
      %1156 = vmatpush1.bf16.msra.mxu0 %v1143
      %1157 = vmatprep.subr.bf16.mxu0 0
      %1158 = vmatpush1.bf16.msra.mxu0 %v1142
      %1159 = vmatprep.subr.bf16.mxu0 0
      %1160 = vmatpush1.bf16.msra.mxu0 %v1141
      %1161 = vmatprep.subr.bf16.mxu0 0
      %1162 = vmatpush1.bf16.msra.mxu0 %v1140
      %1163 = vmatprep.subr.bf16.mxu0 0
      %1164 = vmatpush1.bf16.msra.mxu0 %v1139
      %1165 = vmatprep.subr.bf16.mxu0 0
      %1166 = vmatpush1.bf16.msra.mxu0 %v1138
      %1167 = vmatprep.subr.bf16.mxu0 0
      %1168 = vmatpush1.bf16.msra.mxu0 %v1137
      %1169 = vmatprep.subr.bf16.mxu0 0
      %1170 = vmatpush2.bf16.msra.mxu0 0
      %1171 = vmatprep.subr.bf16.mxu0 0
      %1172 = vmatpush2.bf16.msra.mxu0 0
      %1173 = vmatprep.subr.bf16.mxu0 0
      %1174 = vmatpush2.bf16.msra.mxu0 0
      %1175 = vmatprep.subr.bf16.mxu0 0
      %1176 = vmatpush2.bf16.msra.mxu0 0
      %1177 = vmatprep.subr.bf16.mxu0 0
      %1178 = vmatpush2.bf16.msra.mxu0 0
      %1179 = vmatprep.subr.bf16.mxu0 0
      %1180 = vmatpush2.bf16.msra.mxu0 0
      %1181 = vmatprep.subr.bf16.mxu0 0
      %1182 = vmatpush2.bf16.msra.mxu0 0
      %1183 = vmatprep.subr.bf16.mxu0 0
      %1184 = vmatpush2.bf16.msra.mxu0 0
      %1185 = vmatprep.mubr.bf16.mxu0 0
      %1186 = vmatmul.mubr.bf16.gmra.mxu0 %v1102
      %v1187 = vpop.f32.mrf.mxu0
      %v1188 = vadd.f32 0.0, %v1187
      %v1189 = vpop.f32.mrf.mxu0
      %v1190 = vpop.f32.mrf.mxu0
      %v1191 = vpop.f32.mrf.mxu0
      %1192 = vdwg.mxu0
      %v1193 = vadd.f32 %v1069, %v1188
      %v1194 = vld [vmem:[%s753 + $0x1] sm:$0x1]
      %v1195 = vld [vmem:[%s618] sm:$0xf]
      %v1196 = vld [vmem:[%s618 + $0x4] sm:$0xf]
      %v1197 = vld [vmem:[%s618 + $0x8] sm:$0xf]
      %v1198 = vld [vmem:[%s618 + $0xc] sm:$0xf]
      %v1199 = vld [vmem:[%s618 + $0x10] sm:$0xf]
      %v1200 = vld [vmem:[%s618 + $0x14] sm:$0xf]
      %v1201 = vld [vmem:[%s618 + $0x18] sm:$0xf]
      %v1202 = vld [vmem:[%s618 + $0x1c] sm:$0xf]
      %v1203 = vld [vmem:[%s618 + $0x20] sm:$0xf]
      %v1204 = vld [vmem:[%s618 + $0x24] sm:$0xf]
      %v1205 = vld [vmem:[%s618 + $0x28] sm:$0xf]
      %v1206 = vld [vmem:[%s618 + $0x2c] sm:$0xf]
      %v1207 = vld [vmem:[%s618 + $0x30] sm:$0xf]
      %v1208 = vld [vmem:[%s618 + $0x34] sm:$0xf]
      %v1209 = vld [vmem:[%s618 + $0x38] sm:$0xf]
      %v1210 = vld [vmem:[%s618 + $0x3c] sm:$0xf]
      %v1213 = vunpack.c.l.s4 1966171168
      %v1214 = vunpack.c.0.s8 %v1213
      %v1215 = vlaneseq
      %v1216 = vshrl.u32 %v1215, 7
      %v1217 = vsub.s32 %v1214, %v1216
      %v1218 = vrot.slane %v1194, %v1217
      %v1220 = vunpack.c.l.s4 1966171168
      %v1221 = vunpack.c.0.s8 %v1220
      %v1222 = vlaneseq
      %v1223 = vshrl.u32 %v1222, 7
      %v1224 = vsub.s32 %v1221, %v1223
      %v1225 = vrot.slane %v1218, %v1224
      %v1227 = vshrl.u32 %v1225, 16
      %v1246 = vunpack.c.l.b16 %v1195
      %v1247 = vunpack.c.l.b16 %v1196
      %v1248 = vunpack.c.l.b16 %v1197
      %v1249 = vunpack.c.l.b16 %v1198
      %v1250 = vunpack.c.l.b16 %v1199
      %v1251 = vunpack.c.l.b16 %v1200
      %v1252 = vunpack.c.l.b16 %v1201
      %v1253 = vunpack.c.l.b16 %v1202
      %v1254 = vunpack.c.l.b16 %v1203
      %v1255 = vunpack.c.l.b16 %v1204
      %v1256 = vunpack.c.l.b16 %v1205
      %v1257 = vunpack.c.l.b16 %v1206
      %v1258 = vunpack.c.l.b16 %v1207
      %v1259 = vunpack.c.l.b16 %v1208
      %v1260 = vunpack.c.l.b16 %v1209
      %v1261 = vunpack.c.l.b16 %v1210
      %v1262 = vpack.c.b16 %v1247, %v1246
      %v1263 = vpack.c.b16 %v1249, %v1248
      %v1264 = vpack.c.b16 %v1251, %v1250
      %v1265 = vpack.c.b16 %v1253, %v1252
      %v1266 = vpack.c.b16 %v1255, %v1254
      %v1267 = vpack.c.b16 %v1257, %v1256
      %v1268 = vpack.c.b16 %v1259, %v1258
      %v1269 = vpack.c.b16 %v1261, %v1260
      %1278 = vmatprep.subr.bf16.mxu0 0
      %1279 = vmatpush1.bf16.msra.mxu0 %v1269
      %1280 = vmatprep.subr.bf16.mxu0 0
      %1281 = vmatpush1.bf16.msra.mxu0 %v1268
      %1282 = vmatprep.subr.bf16.mxu0 0
      %1283 = vmatpush1.bf16.msra.mxu0 %v1267
      %1284 = vmatprep.subr.bf16.mxu0 0
      %1285 = vmatpush1.bf16.msra.mxu0 %v1266
      %1286 = vmatprep.subr.bf16.mxu0 0
      %1287 = vmatpush1.bf16.msra.mxu0 %v1265
      %1288 = vmatprep.subr.bf16.mxu0 0
      %1289 = vmatpush1.bf16.msra.mxu0 %v1264
      %1290 = vmatprep.subr.bf16.mxu0 0
      %1291 = vmatpush1.bf16.msra.mxu0 %v1263
      %1292 = vmatprep.subr.bf16.mxu0 0
      %1293 = vmatpush1.bf16.msra.mxu0 %v1262
      %1294 = vmatprep.subr.bf16.mxu0 0
      %1295 = vmatpush2.bf16.msra.mxu0 0
      %1296 = vmatprep.subr.bf16.mxu0 0
      %1297 = vmatpush2.bf16.msra.mxu0 0
      %1298 = vmatprep.subr.bf16.mxu0 0
      %1299 = vmatpush2.bf16.msra.mxu0 0
      %1300 = vmatprep.subr.bf16.mxu0 0
      %1301 = vmatpush2.bf16.msra.mxu0 0
      %1302 = vmatprep.subr.bf16.mxu0 0
      %1303 = vmatpush2.bf16.msra.mxu0 0
      %1304 = vmatprep.subr.bf16.mxu0 0
      %1305 = vmatpush2.bf16.msra.mxu0 0
      %1306 = vmatprep.subr.bf16.mxu0 0
      %1307 = vmatpush2.bf16.msra.mxu0 0
      %1308 = vmatprep.subr.bf16.mxu0 0
      %1309 = vmatpush2.bf16.msra.mxu0 0
      %1310 = vmatprep.mubr.bf16.mxu0 0
      %1311 = vmatmul.mubr.bf16.gmra.mxu0 %v1227
      %v1312 = vpop.f32.mrf.mxu0
      %v1313 = vadd.f32 0.0, %v1312
      %v1314 = vpop.f32.mrf.mxu0
      %v1315 = vpop.f32.mrf.mxu0
      %v1316 = vpop.f32.mrf.mxu0
      %1317 = vdwg.mxu0
      %v1318 = vadd.f32 %v1193, %v1313
      %v1319 = vadd.f32 %v1318, %v173
      %v1320 = vmul.f32 %v1319, 0.1
      %v1321 = vmax.f32 %v1319, %v1320
      %v1322 = vpack.c.bf16 %v1321, %v1321
      %s1323 = scalar_lea.vmem %s170, 1
      %v1324 = vld [vmem:[%s1323] sm:$0x1]
      %v1325 = vsel %vm749, %v1322, %v1324
      %1326 = vst [vmem:[%s1323] sm:$0x1] %v1325
      %s1327 = scalar_lea.vmem %s165, 6
      %v1328 = vld [vmem:[%s1327] sm:$0x1]
      %v1329 = vld [vmem:[%s1] sm:$0xf]
      %v1330 = vld [vmem:[%s1 + $0x4] sm:$0xf]
      %v1331 = vld [vmem:[%s1 + $0x8] sm:$0xf]
      %v1332 = vld [vmem:[%s1 + $0xc] sm:$0xf]
      %v1333 = vld [vmem:[%s1 + $0x10] sm:$0xf]
      %v1334 = vld [vmem:[%s1 + $0x14] sm:$0xf]
      %v1335 = vld [vmem:[%s1 + $0x18] sm:$0xf]
      %v1336 = vld [vmem:[%s1 + $0x1c] sm:$0xf]
      %v1337 = vld [vmem:[%s1 + $0x20] sm:$0xf]
      %v1338 = vld [vmem:[%s1 + $0x24] sm:$0xf]
      %v1339 = vld [vmem:[%s1 + $0x28] sm:$0xf]
      %v1340 = vld [vmem:[%s1 + $0x2c] sm:$0xf]
      %v1341 = vld [vmem:[%s1 + $0x30] sm:$0xf]
      %v1342 = vld [vmem:[%s1 + $0x34] sm:$0xf]
      %v1343 = vld [vmem:[%s1 + $0x38] sm:$0xf]
      %v1344 = vld [vmem:[%s1 + $0x3c] sm:$0xf]
      %v1345 = vld [vmem:[%s1327 + $0x1] sm:$0x1]
      %v1346 = vld [vmem:[%s192] sm:$0xf]
      %v1347 = vld [vmem:[%s192 + $0x4] sm:$0xf]
      %v1348 = vld [vmem:[%s192 + $0x8] sm:$0xf]
      %v1349 = vld [vmem:[%s192 + $0xc] sm:$0xf]
      %v1350 = vld [vmem:[%s192 + $0x10] sm:$0xf]
      %v1351 = vld [vmem:[%s192 + $0x14] sm:$0xf]
      %v1352 = vld [vmem:[%s192 + $0x18] sm:$0xf]
      %v1353 = vld [vmem:[%s192 + $0x1c] sm:$0xf]
      %v1354 = vld [vmem:[%s192 + $0x20] sm:$0xf]
      %v1355 = vld [vmem:[%s192 + $0x24] sm:$0xf]
      %v1356 = vld [vmem:[%s192 + $0x28] sm:$0xf]
      %v1357 = vld [vmem:[%s192 + $0x2c] sm:$0xf]
      %v1358 = vld [vmem:[%s192 + $0x30] sm:$0xf]
      %v1359 = vld [vmem:[%s192 + $0x34] sm:$0xf]
      %v1360 = vld [vmem:[%s192 + $0x38] sm:$0xf]
      %v1361 = vld [vmem:[%s192 + $0x3c] sm:$0xf]
      %v1378 = vunpack.c.l.b16 %v1346
      %v1379 = vunpack.c.l.b16 %v1347
      %v1380 = vunpack.c.l.b16 %v1348
      %v1381 = vunpack.c.l.b16 %v1349
      %v1382 = vunpack.c.l.b16 %v1350
      %v1383 = vunpack.c.l.b16 %v1351
      %v1384 = vunpack.c.l.b16 %v1352
      %v1385 = vunpack.c.l.b16 %v1353
      %v1386 = vunpack.c.l.b16 %v1354
      %v1387 = vunpack.c.l.b16 %v1355
      %v1388 = vunpack.c.l.b16 %v1356
      %v1389 = vunpack.c.l.b16 %v1357
      %v1390 = vunpack.c.l.b16 %v1358
      %v1391 = vunpack.c.l.b16 %v1359
      %v1392 = vunpack.c.l.b16 %v1360
      %v1393 = vunpack.c.l.b16 %v1361
      %v1394 = vpack.c.b16 %v1379, %v1378
      %v1395 = vpack.c.b16 %v1381, %v1380
      %v1396 = vpack.c.b16 %v1383, %v1382
      %v1397 = vpack.c.b16 %v1385, %v1384
      %v1398 = vpack.c.b16 %v1387, %v1386
      %v1399 = vpack.c.b16 %v1389, %v1388
      %v1400 = vpack.c.b16 %v1391, %v1390
      %v1401 = vpack.c.b16 %v1393, %v1392
      %1410 = vmatprep.subr.bf16.mxu0 0
      %1411 = vmatpush1.bf16.msra.mxu0 %v1401
      %1412 = vmatprep.subr.bf16.mxu0 0
      %1413 = vmatpush1.bf16.msra.mxu0 %v1400
      %1414 = vmatprep.subr.bf16.mxu0 0
      %1415 = vmatpush1.bf16.msra.mxu0 %v1399
      %1416 = vmatprep.subr.bf16.mxu0 0
      %1417 = vmatpush1.bf16.msra.mxu0 %v1398
      %1418 = vmatprep.subr.bf16.mxu0 0
      %1419 = vmatpush1.bf16.msra.mxu0 %v1397
      %1420 = vmatprep.subr.bf16.mxu0 0
      %1421 = vmatpush1.bf16.msra.mxu0 %v1396
      %1422 = vmatprep.subr.bf16.mxu0 0
      %1423 = vmatpush1.bf16.msra.mxu0 %v1395
      %1424 = vmatprep.subr.bf16.mxu0 0
      %1425 = vmatpush1.bf16.msra.mxu0 %v1394
      %1426 = vmatprep.subr.bf16.mxu0 0
      %1427 = vmatpush2.bf16.msra.mxu0 0
      %1428 = vmatprep.subr.bf16.mxu0 0
      %1429 = vmatpush2.bf16.msra.mxu0 0
      %1430 = vmatprep.subr.bf16.mxu0 0
      %1431 = vmatpush2.bf16.msra.mxu0 0
      %1432 = vmatprep.subr.bf16.mxu0 0
      %1433 = vmatpush2.bf16.msra.mxu0 0
      %1434 = vmatprep.subr.bf16.mxu0 0
      %1435 = vmatpush2.bf16.msra.mxu0 0
      %1436 = vmatprep.subr.bf16.mxu0 0
      %1437 = vmatpush2.bf16.msra.mxu0 0
      %1438 = vmatprep.subr.bf16.mxu0 0
      %1439 = vmatpush2.bf16.msra.mxu0 0
      %1440 = vmatprep.subr.bf16.mxu0 0
      %1441 = vmatpush2.bf16.msra.mxu0 0
      %1442 = vmatprep.mubr.bf16.mxu0 0
      %1443 = vmatmul.mubr.bf16.gmra.mxu0 %v1345
      %v1444 = vpop.f32.mrf.mxu0
      %v1445 = vadd.f32 0.0, %v1444
      %v1446 = vpop.f32.mrf.mxu0
      %v1447 = vpop.f32.mrf.mxu0
      %v1448 = vpop.f32.mrf.mxu0
      %1449 = vdwg.mxu0
      %v1466 = vunpack.c.l.b16 %v1329
      %v1467 = vunpack.c.l.b16 %v1330
      %v1468 = vunpack.c.l.b16 %v1331
      %v1469 = vunpack.c.l.b16 %v1332
      %v1470 = vunpack.c.l.b16 %v1333
      %v1471 = vunpack.c.l.b16 %v1334
      %v1472 = vunpack.c.l.b16 %v1335
      %v1473 = vunpack.c.l.b16 %v1336
      %v1474 = vunpack.c.l.b16 %v1337
      %v1475 = vunpack.c.l.b16 %v1338
      %v1476 = vunpack.c.l.b16 %v1339
      %v1477 = vunpack.c.l.b16 %v1340
      %v1478 = vunpack.c.l.b16 %v1341
      %v1479 = vunpack.c.l.b16 %v1342
      %v1480 = vunpack.c.l.b16 %v1343
      %v1481 = vunpack.c.l.b16 %v1344
      %v1482 = vpack.c.b16 %v1467, %v1466
      %v1483 = vpack.c.b16 %v1469, %v1468
      %v1484 = vpack.c.b16 %v1471, %v1470
      %v1485 = vpack.c.b16 %v1473, %v1472
      %v1486 = vpack.c.b16 %v1475, %v1474
      %v1487 = vpack.c.b16 %v1477, %v1476
      %v1488 = vpack.c.b16 %v1479, %v1478
      %v1489 = vpack.c.b16 %v1481, %v1480
      %1498 = vmatprep.subr.bf16.mxu0 0
      %1499 = vmatpush1.bf16.msra.mxu0 %v1489
      %1500 = vmatprep.subr.bf16.mxu0 0
      %1501 = vmatpush1.bf16.msra.mxu0 %v1488
      %1502 = vmatprep.subr.bf16.mxu0 0
      %1503 = vmatpush1.bf16.msra.mxu0 %v1487
      %1504 = vmatprep.subr.bf16.mxu0 0
      %1505 = vmatpush1.bf16.msra.mxu0 %v1486
      %1506 = vmatprep.subr.bf16.mxu0 0
      %1507 = vmatpush1.bf16.msra.mxu0 %v1485
      %1508 = vmatprep.subr.bf16.mxu0 0
      %1509 = vmatpush1.bf16.msra.mxu0 %v1484
      %1510 = vmatprep.subr.bf16.mxu0 0
      %1511 = vmatpush1.bf16.msra.mxu0 %v1483
      %1512 = vmatprep.subr.bf16.mxu0 0
      %1513 = vmatpush1.bf16.msra.mxu0 %v1482
      %1514 = vmatprep.subr.bf16.mxu0 0
      %1515 = vmatpush2.bf16.msra.mxu0 0
      %1516 = vmatprep.subr.bf16.mxu0 0
      %1517 = vmatpush2.bf16.msra.mxu0 0
      %1518 = vmatprep.subr.bf16.mxu0 0
      %1519 = vmatpush2.bf16.msra.mxu0 0
      %1520 = vmatprep.subr.bf16.mxu0 0
      %1521 = vmatpush2.bf16.msra.mxu0 0
      %1522 = vmatprep.subr.bf16.mxu0 0
      %1523 = vmatpush2.bf16.msra.mxu0 0
      %1524 = vmatprep.subr.bf16.mxu0 0
      %1525 = vmatpush2.bf16.msra.mxu0 0
      %1526 = vmatprep.subr.bf16.mxu0 0
      %1527 = vmatpush2.bf16.msra.mxu0 0
      %1528 = vmatprep.subr.bf16.mxu0 0
      %1529 = vmatpush2.bf16.msra.mxu0 0
      %1530 = vmatprep.mubr.bf16.mxu0 0
      %1531 = vmatmul.mubr.bf16.gmra.mxu0 %v1328
      %v1532 = vpop.f32.mrf.mxu0
      %v1533 = vadd.f32 %v1445, %v1532
      %v1534 = vpop.f32.mrf.mxu0
      %v1535 = vpop.f32.mrf.mxu0
      %v1536 = vpop.f32.mrf.mxu0
      %1537 = vdwg.mxu0
      %v1538 = vld [vmem:[%s1327 + $0x2] sm:$0x1]
      %v1539 = vld [vmem:[%s386] sm:$0xf]
      %v1540 = vld [vmem:[%s386 + $0x4] sm:$0xf]
      %v1541 = vld [vmem:[%s386 + $0x8] sm:$0xf]
      %v1542 = vld [vmem:[%s386 + $0xc] sm:$0xf]
      %v1543 = vld [vmem:[%s386 + $0x10] sm:$0xf]
      %v1544 = vld [vmem:[%s386 + $0x14] sm:$0xf]
      %v1545 = vld [vmem:[%s386 + $0x18] sm:$0xf]
      %v1546 = vld [vmem:[%s386 + $0x1c] sm:$0xf]
      %v1547 = vld [vmem:[%s386 + $0x20] sm:$0xf]
      %v1548 = vld [vmem:[%s386 + $0x24] sm:$0xf]
      %v1549 = vld [vmem:[%s386 + $0x28] sm:$0xf]
      %v1550 = vld [vmem:[%s386 + $0x2c] sm:$0xf]
      %v1551 = vld [vmem:[%s386 + $0x30] sm:$0xf]
      %v1552 = vld [vmem:[%s386 + $0x34] sm:$0xf]
      %v1553 = vld [vmem:[%s386 + $0x38] sm:$0xf]
      %v1554 = vld [vmem:[%s386 + $0x3c] sm:$0xf]
      %v1571 = vunpack.c.l.b16 %v1539
      %v1572 = vunpack.c.l.b16 %v1540
      %v1573 = vunpack.c.l.b16 %v1541
      %v1574 = vunpack.c.l.b16 %v1542
      %v1575 = vunpack.c.l.b16 %v1543
      %v1576 = vunpack.c.l.b16 %v1544
      %v1577 = vunpack.c.l.b16 %v1545
      %v1578 = vunpack.c.l.b16 %v1546
      %v1579 = vunpack.c.l.b16 %v1547
      %v1580 = vunpack.c.l.b16 %v1548
      %v1581 = vunpack.c.l.b16 %v1549
      %v1582 = vunpack.c.l.b16 %v1550
      %v1583 = vunpack.c.l.b16 %v1551
      %v1584 = vunpack.c.l.b16 %v1552
      %v1585 = vunpack.c.l.b16 %v1553
      %v1586 = vunpack.c.l.b16 %v1554
      %v1587 = vpack.c.b16 %v1572, %v1571
      %v1588 = vpack.c.b16 %v1574, %v1573
      %v1589 = vpack.c.b16 %v1576, %v1575
      %v1590 = vpack.c.b16 %v1578, %v1577
      %v1591 = vpack.c.b16 %v1580, %v1579
      %v1592 = vpack.c.b16 %v1582, %v1581
      %v1593 = vpack.c.b16 %v1584, %v1583
      %v1594 = vpack.c.b16 %v1586, %v1585
      %1603 = vmatprep.subr.bf16.mxu0 0
      %1604 = vmatpush1.bf16.msra.mxu0 %v1594
      %1605 = vmatprep.subr.bf16.mxu0 0
      %1606 = vmatpush1.bf16.msra.mxu0 %v1593
      %1607 = vmatprep.subr.bf16.mxu0 0
      %1608 = vmatpush1.bf16.msra.mxu0 %v1592
      %1609 = vmatprep.subr.bf16.mxu0 0
      %1610 = vmatpush1.bf16.msra.mxu0 %v1591
      %1611 = vmatprep.subr.bf16.mxu0 0
      %1612 = vmatpush1.bf16.msra.mxu0 %v1590
      %1613 = vmatprep.subr.bf16.mxu0 0
      %1614 = vmatpush1.bf16.msra.mxu0 %v1589
      %1615 = vmatprep.subr.bf16.mxu0 0
      %1616 = vmatpush1.bf16.msra.mxu0 %v1588
      %1617 = vmatprep.subr.bf16.mxu0 0
      %1618 = vmatpush1.bf16.msra.mxu0 %v1587
      %1619 = vmatprep.subr.bf16.mxu0 0
      %1620 = vmatpush2.bf16.msra.mxu0 0
      %1621 = vmatprep.subr.bf16.mxu0 0
      %1622 = vmatpush2.bf16.msra.mxu0 0
      %1623 = vmatprep.subr.bf16.mxu0 0
      %1624 = vmatpush2.bf16.msra.mxu0 0
      %1625 = vmatprep.subr.bf16.mxu0 0
      %1626 = vmatpush2.bf16.msra.mxu0 0
      %1627 = vmatprep.subr.bf16.mxu0 0
      %1628 = vmatpush2.bf16.msra.mxu0 0
      %1629 = vmatprep.subr.bf16.mxu0 0
      %1630 = vmatpush2.bf16.msra.mxu0 0
      %1631 = vmatprep.subr.bf16.mxu0 0
      %1632 = vmatpush2.bf16.msra.mxu0 0
      %1633 = vmatprep.subr.bf16.mxu0 0
      %1634 = vmatpush2.bf16.msra.mxu0 0
      %1635 = vmatprep.mubr.bf16.mxu0 0
      %1636 = vmatmul.mubr.bf16.gmra.mxu0 %v1538
      %v1637 = vpop.f32.mrf.mxu0
      %v1638 = vadd.f32 0.0, %v1637
      %v1639 = vpop.f32.mrf.mxu0
      %v1640 = vpop.f32.mrf.mxu0
      %v1641 = vpop.f32.mrf.mxu0
      %1642 = vdwg.mxu0
      %v1643 = vadd.f32 %v1533, %v1638
      %v1644 = vld [vmem:[%s492] sm:$0xf]
      %v1645 = vld [vmem:[%s492 + $0x4] sm:$0xf]
      %v1646 = vld [vmem:[%s492 + $0x8] sm:$0xf]
      %v1647 = vld [vmem:[%s492 + $0xc] sm:$0xf]
      %v1648 = vld [vmem:[%s492 + $0x10] sm:$0xf]
      %v1649 = vld [vmem:[%s492 + $0x14] sm:$0xf]
      %v1650 = vld [vmem:[%s492 + $0x18] sm:$0xf]
      %v1651 = vld [vmem:[%s492 + $0x1c] sm:$0xf]
      %v1652 = vld [vmem:[%s492 + $0x20] sm:$0xf]
      %v1653 = vld [vmem:[%s492 + $0x24] sm:$0xf]
      %v1654 = vld [vmem:[%s492 + $0x28] sm:$0xf]
      %v1655 = vld [vmem:[%s492 + $0x2c] sm:$0xf]
      %v1656 = vld [vmem:[%s492 + $0x30] sm:$0xf]
      %v1657 = vld [vmem:[%s492 + $0x34] sm:$0xf]
      %v1658 = vld [vmem:[%s492 + $0x38] sm:$0xf]
      %v1659 = vld [vmem:[%s492 + $0x3c] sm:$0xf]
      %v1662 = vunpack.c.l.s4 1966171168
      %v1663 = vunpack.c.0.s8 %v1662
      %v1664 = vlaneseq
      %v1665 = vshrl.u32 %v1664, 7
      %v1666 = vsub.s32 %v1663, %v1665
      %v1667 = vrot.slane %v1328, %v1666
      %v1669 = vunpack.c.l.s4 1966171168
      %v1670 = vunpack.c.0.s8 %v1669
      %v1671 = vlaneseq
      %v1672 = vshrl.u32 %v1671, 7
      %v1673 = vsub.s32 %v1670, %v1672
      %v1674 = vrot.slane %v1667, %v1673
      %v1676 = vshrl.u32 %v1674, 16
      %v1695 = vunpack.c.l.b16 %v1644
      %v1696 = vunpack.c.l.b16 %v1645
      %v1697 = vunpack.c.l.b16 %v1646
      %v1698 = vunpack.c.l.b16 %v1647
      %v1699 = vunpack.c.l.b16 %v1648
      %v1700 = vunpack.c.l.b16 %v1649
      %v1701 = vunpack.c.l.b16 %v1650
      %v1702 = vunpack.c.l.b16 %v1651
      %v1703 = vunpack.c.l.b16 %v1652
      %v1704 = vunpack.c.l.b16 %v1653
      %v1705 = vunpack.c.l.b16 %v1654
      %v1706 = vunpack.c.l.b16 %v1655
      %v1707 = vunpack.c.l.b16 %v1656
      %v1708 = vunpack.c.l.b16 %v1657
      %v1709 = vunpack.c.l.b16 %v1658
      %v1710 = vunpack.c.l.b16 %v1659
      %v1711 = vpack.c.b16 %v1696, %v1695
      %v1712 = vpack.c.b16 %v1698, %v1697
      %v1713 = vpack.c.b16 %v1700, %v1699
      %v1714 = vpack.c.b16 %v1702, %v1701
      %v1715 = vpack.c.b16 %v1704, %v1703
      %v1716 = vpack.c.b16 %v1706, %v1705
      %v1717 = vpack.c.b16 %v1708, %v1707
      %v1718 = vpack.c.b16 %v1710, %v1709
      %1727 = vmatprep.subr.bf16.mxu0 0
      %1728 = vmatpush1.bf16.msra.mxu0 %v1718
      %1729 = vmatprep.subr.bf16.mxu0 0
      %1730 = vmatpush1.bf16.msra.mxu0 %v1717
      %1731 = vmatprep.subr.bf16.mxu0 0
      %1732 = vmatpush1.bf16.msra.mxu0 %v1716
      %1733 = vmatprep.subr.bf16.mxu0 0
      %1734 = vmatpush1.bf16.msra.mxu0 %v1715
      %1735 = vmatprep.subr.bf16.mxu0 0
      %1736 = vmatpush1.bf16.msra.mxu0 %v1714
      %1737 = vmatprep.subr.bf16.mxu0 0
      %1738 = vmatpush1.bf16.msra.mxu0 %v1713
      %1739 = vmatprep.subr.bf16.mxu0 0
      %1740 = vmatpush1.bf16.msra.mxu0 %v1712
      %1741 = vmatprep.subr.bf16.mxu0 0
      %1742 = vmatpush1.bf16.msra.mxu0 %v1711
      %1743 = vmatprep.subr.bf16.mxu0 0
      %1744 = vmatpush2.bf16.msra.mxu0 0
      %1745 = vmatprep.subr.bf16.mxu0 0
      %1746 = vmatpush2.bf16.msra.mxu0 0
      %1747 = vmatprep.subr.bf16.mxu0 0
      %1748 = vmatpush2.bf16.msra.mxu0 0
      %1749 = vmatprep.subr.bf16.mxu0 0
      %1750 = vmatpush2.bf16.msra.mxu0 0
      %1751 = vmatprep.subr.bf16.mxu0 0
      %1752 = vmatpush2.bf16.msra.mxu0 0
      %1753 = vmatprep.subr.bf16.mxu0 0
      %1754 = vmatpush2.bf16.msra.mxu0 0
      %1755 = vmatprep.subr.bf16.mxu0 0
      %1756 = vmatpush2.bf16.msra.mxu0 0
      %1757 = vmatprep.subr.bf16.mxu0 0
      %1758 = vmatpush2.bf16.msra.mxu0 0
      %1759 = vmatprep.mubr.bf16.mxu0 0
      %1760 = vmatmul.mubr.bf16.gmra.mxu0 %v1676
      %v1761 = vpop.f32.mrf.mxu0
      %v1762 = vadd.f32 0.0, %v1761
      %v1763 = vpop.f32.mrf.mxu0
      %v1764 = vpop.f32.mrf.mxu0
      %v1765 = vpop.f32.mrf.mxu0
      %1766 = vdwg.mxu0
      %v1767 = vadd.f32 %v1643, %v1762
      %v1768 = vld [vmem:[%s1327 + $0x1] sm:$0x1]
      %v1769 = vld [vmem:[%s618] sm:$0xf]
      %v1770 = vld [vmem:[%s618 + $0x4] sm:$0xf]
      %v1771 = vld [vmem:[%s618 + $0x8] sm:$0xf]
      %v1772 = vld [vmem:[%s618 + $0xc] sm:$0xf]
      %v1773 = vld [vmem:[%s618 + $0x10] sm:$0xf]
      %v1774 = vld [vmem:[%s618 + $0x14] sm:$0xf]
      %v1775 = vld [vmem:[%s618 + $0x18] sm:$0xf]
      %v1776 = vld [vmem:[%s618 + $0x1c] sm:$0xf]
      %v1777 = vld [vmem:[%s618 + $0x20] sm:$0xf]
      %v1778 = vld [vmem:[%s618 + $0x24] sm:$0xf]
      %v1779 = vld [vmem:[%s618 + $0x28] sm:$0xf]
      %v1780 = vld [vmem:[%s618 + $0x2c] sm:$0xf]
      %v1781 = vld [vmem:[%s618 + $0x30] sm:$0xf]
      %v1782 = vld [vmem:[%s618 + $0x34] sm:$0xf]
      %v1783 = vld [vmem:[%s618 + $0x38] sm:$0xf]
      %v1784 = vld [vmem:[%s618 + $0x3c] sm:$0xf]
      %v1787 = vunpack.c.l.s4 1966171168
      %v1788 = vunpack.c.0.s8 %v1787
      %v1789 = vlaneseq
      %v1790 = vshrl.u32 %v1789, 7
      %v1791 = vsub.s32 %v1788, %v1790
      %v1792 = vrot.slane %v1768, %v1791
      %v1794 = vunpack.c.l.s4 1966171168
      %v1795 = vunpack.c.0.s8 %v1794
      %v1796 = vlaneseq
      %v1797 = vshrl.u32 %v1796, 7
      %v1798 = vsub.s32 %v1795, %v1797
      %v1799 = vrot.slane %v1792, %v1798
      %v1801 = vshrl.u32 %v1799, 16
      %v1820 = vunpack.c.l.b16 %v1769
      %v1821 = vunpack.c.l.b16 %v1770
      %v1822 = vunpack.c.l.b16 %v1771
      %v1823 = vunpack.c.l.b16 %v1772
      %v1824 = vunpack.c.l.b16 %v1773
      %v1825 = vunpack.c.l.b16 %v1774
      %v1826 = vunpack.c.l.b16 %v1775
      %v1827 = vunpack.c.l.b16 %v1776
      %v1828 = vunpack.c.l.b16 %v1777
      %v1829 = vunpack.c.l.b16 %v1778
      %v1830 = vunpack.c.l.b16 %v1779
      %v1831 = vunpack.c.l.b16 %v1780
      %v1832 = vunpack.c.l.b16 %v1781
      %v1833 = vunpack.c.l.b16 %v1782
      %v1834 = vunpack.c.l.b16 %v1783
      %v1835 = vunpack.c.l.b16 %v1784
      %v1836 = vpack.c.b16 %v1821, %v1820
      %v1837 = vpack.c.b16 %v1823, %v1822
      %v1838 = vpack.c.b16 %v1825, %v1824
      %v1839 = vpack.c.b16 %v1827, %v1826
      %v1840 = vpack.c.b16 %v1829, %v1828
      %v1841 = vpack.c.b16 %v1831, %v1830
      %v1842 = vpack.c.b16 %v1833, %v1832
      %v1843 = vpack.c.b16 %v1835, %v1834
      %1852 = vmatprep.subr.bf16.mxu0 0
      %1853 = vmatpush1.bf16.msra.mxu0 %v1843
      %1854 = vmatprep.subr.bf16.mxu0 0
      %1855 = vmatpush1.bf16.msra.mxu0 %v1842
      %1856 = vmatprep.subr.bf16.mxu0 0
      %1857 = vmatpush1.bf16.msra.mxu0 %v1841
      %1858 = vmatprep.subr.bf16.mxu0 0
      %1859 = vmatpush1.bf16.msra.mxu0 %v1840
      %1860 = vmatprep.subr.bf16.mxu0 0
      %1861 = vmatpush1.bf16.msra.mxu0 %v1839
      %1862 = vmatprep.subr.bf16.mxu0 0
      %1863 = vmatpush1.bf16.msra.mxu0 %v1838
      %1864 = vmatprep.subr.bf16.mxu0 0
      %1865 = vmatpush1.bf16.msra.mxu0 %v1837
      %1866 = vmatprep.subr.bf16.mxu0 0
      %1867 = vmatpush1.bf16.msra.mxu0 %v1836
      %1868 = vmatprep.subr.bf16.mxu0 0
      %1869 = vmatpush2.bf16.msra.mxu0 0
      %1870 = vmatprep.subr.bf16.mxu0 0
      %1871 = vmatpush2.bf16.msra.mxu0 0
      %1872 = vmatprep.subr.bf16.mxu0 0
      %1873 = vmatpush2.bf16.msra.mxu0 0
      %1874 = vmatprep.subr.bf16.mxu0 0
      %1875 = vmatpush2.bf16.msra.mxu0 0
      %1876 = vmatprep.subr.bf16.mxu0 0
      %1877 = vmatpush2.bf16.msra.mxu0 0
      %1878 = vmatprep.subr.bf16.mxu0 0
      %1879 = vmatpush2.bf16.msra.mxu0 0
      %1880 = vmatprep.subr.bf16.mxu0 0
      %1881 = vmatpush2.bf16.msra.mxu0 0
      %1882 = vmatprep.subr.bf16.mxu0 0
      %1883 = vmatpush2.bf16.msra.mxu0 0
      %1884 = vmatprep.mubr.bf16.mxu0 0
      %1885 = vmatmul.mubr.bf16.gmra.mxu0 %v1801
      %v1886 = vpop.f32.mrf.mxu0
      %v1887 = vadd.f32 0.0, %v1886
      %v1888 = vpop.f32.mrf.mxu0
      %v1889 = vpop.f32.mrf.mxu0
      %v1890 = vpop.f32.mrf.mxu0
      %1891 = vdwg.mxu0
      %v1892 = vadd.f32 %v1767, %v1887
      %v1893 = vadd.f32 %v1892, %v173
      %v1894 = vmul.f32 %v1893, 0.1
      %v1895 = vmax.f32 %v1893, %v1894
      %v1896 = vpack.c.bf16 %v1895, %v1895
      %s1897 = scalar_lea.vmem %s170, 2
      %v1898 = vld [vmem:[%s1897] sm:$0x1]
      %v1899 = vsel %vm749, %v1896, %v1898
      %1900 = vst [vmem:[%s1897] sm:$0x1] %v1899
      %s1901 = smul.u32 3, %s14
      %p1902 = scmp.lt.s32.totalorder %s1901, 5
      %s1903 = scalar_select %p1902, %s1901, 5
      %s1904 = scalar_lea.vmem %s3, %s1903
      // Predicated region
      $region33: #{multi_periodic_discriminator_forward.14} parent=31 // pred_check
        %p1905 = pneg %p100
      $region34: #{multi_periodic_discriminator_forward.14} parent=31 // pred_check_branch
        %1907 = sbr.rel (%p1905) target = $region36
      $region35: #{multi_periodic_discriminator_forward.14} parent=31 // pred_region
        %s1908 = smul.u32 3, %s14
      $region36: #{multi_periodic_discriminator_forward.14} parent=31 // pred_fallthru
        _
    $region32: #{multi_periodic_discriminator_forward.14} parent=5 // pred_fallthru
      _
    %p1909 = scmp.le.s32.totalorder 2, %s9
    // Predicated region
    $region37: #{multi_periodic_discriminator_forward.14} parent=5 // pred_check
      %p1910 = pneg %p1909
    $region38: #{multi_periodic_discriminator_forward.14} parent=5 // pred_check_branch
      %1912 = sbr.rel (%p1910) target = $region40
    $region39: #{multi_periodic_discriminator_forward.14} parent=5 // pred_region
      %s1913 = ssub.s32 %s9, 2
      // Predicated region
      $region41: #{multi_periodic_discriminator_forward.14} parent=39 // pred_check
        %p1914 = pneg %p106
      $region42: #{multi_periodic_discriminator_forward.14} parent=39 // pred_check_branch
        %1916 = sbr.rel (%p1914) target = $region44
      $region43: #{multi_periodic_discriminator_forward.14} parent=39 // pred_region
        %s1917 = smul.u32 3, %s15
        %p1918 = scmp.lt.s32.totalorder %s1917, 5
        %s1919 = scalar_select %p1918, %s1917, 5
        %s1920 = scalar_lea.vmem %s3, %s1919
      $region44: #{multi_periodic_discriminator_forward.14} parent=39 // pred_fallthru
        _
    $region40: #{multi_periodic_discriminator_forward.14} parent=5 // pred_fallthru
      _
  $region6: #{multi_periodic_discriminator_forward.14} parent=0 // loop_footer
    %s13 = sadd.s32 1, %s9
  $region7: #{multi_periodic_discriminator_forward.14} parent=0 // loop_footer_branch
    %8 = sbr.rel target = $region3
  $region8: #{multi_periodic_discriminator_forward.14} parent=0 // loop_exit
    _

// kernel: multi_periodic_discriminator_forward.8
$region0: #{multi_periodic_discriminator_forward.8}
  #allocation0 [shape = 'u32[]', space=smem, size = 0x4, offset = 0x4, fixed_abs, tag = 'smem constant byte address 0x4 - core index']
  #allocation1 [shape = 'u32[144,128]{1,0:T(1,128)}', space=vmem, size = 0x12000, scoped, tag = 'internal scratch']
  %s0 = inlined_call_operand.vmem [shape: f32[4,3,12,1], index: 0, kind: input, shape index: {}]
  %s1 = inlined_call_operand.vmem [shape: f32[5,1,128], index: 1, kind: input, shape index: {}]
  %s2 = inlined_call_operand.vmem [shape: f32[1,128], index: 2, kind: input, shape index: {}]
  %s3 = inlined_call_operand.vmem [shape: bf16[4,11,128], index: 3, kind: output, shape index: {}]
  %s4 = sld [smem:[#allocation0]]
  $region45: #{multi_periodic_discriminator_forward.8} parent=0
    _
  %s6 = ssub.s32 1, %s4
  %s7 = scalar_select 0, %s6, %s4
  loop: start=0, step=1, limit=4
  $region2: #{multi_periodic_discriminator_forward.8} parent=0 // loop_pre_header
    _
  $region3: #{multi_periodic_discriminator_forward.8} parent=0 // loop_header
    %s9 = sphi 0, %s13
    %p10 = scmp.ge.s32.totalorder %s9, 4
    %s19 = sphi 0, %s21
    %s22 = sphi 0, %s19
    %s23 = sphi 0, %s22
    %s39 = sphi 0, %s23
    %s43 = sphi 0, %s43
    %s45 = sphi 0, %s43
    %s46 = sphi 0, %s45
    %s60 = sphi 0, %s46
    %s64 = sphi 0, %s64
    %s66 = sphi 0, %s64
    %s67 = sphi 0, %s66
    %s81 = sphi 0, %s67
    %s87 = sphi 0, %s89
    %s90 = sphi 0, %s87
    %s91 = sphi 0, %s90
    %s107 = sphi 0, %s91
  $region4: #{multi_periodic_discriminator_forward.8} parent=0 // loop_header_branch
    %12 = sbr.rel (%p10) target = $region8
  $region5: #{multi_periodic_discriminator_forward.8} parent=0 // loop_body
    %s14 = ssub.s32 %s9, 1
    %s15 = ssub.s32 %s9, 2
    %s16 = sadd.s32 %s9, 1
    %s17 = ssub.s32 %s9, %s16
    %p18 = scmp.eq.s32.totalorder %s17, 0
    %s20 = sadd.s32 %s19, 1
    %s21 = scalar_select %p18, %s19, %s20
    %p24 = pneg %p18
    %p25 = scmp.eq.s32.totalorder %s9, 1
    %p26 = por %p24, %p25
    %p27 = scmp.ne.s32.totalorder %s19, %s22
    %p28 = scmp.eq.s32.totalorder %s9, 0
    %p29 = por %p27, %p28
    %p30 = scmp.ne.s32.totalorder %s19, %s22
    %p31 = scmp.eq.s32.totalorder %s14, 1
    %p32 = por %p30, %p31
    %p33 = scmp.ne.s32.totalorder %s22, %s23
    %p34 = scmp.eq.s32.totalorder %s14, 0
    %p35 = por %p33, %p34
    %p36 = scmp.ne.s32.totalorder %s22, %s23
    %p37 = scmp.eq.s32.totalorder %s15, 1
    %p38 = por %p36, %p37
    %p40 = scmp.ne.s32.totalorder %s23, %s39
    %p41 = scmp.eq.s32.totalorder %s15, 0
    %p42 = por %p40, %p41
    %s44 = sadd.s32 %s43, 1
    %p47 = scmp.eq.s32.totalorder %s9, 1
    %p48 = scmp.ne.s32.totalorder %s43, %s45
    %p49 = scmp.eq.s32.totalorder %s9, 0
    %p50 = por %p48, %p49
    %p51 = scmp.ne.s32.totalorder %s43, %s45
    %p52 = scmp.eq.s32.totalorder %s14, 1
    %p53 = por %p51, %p52
    %p54 = scmp.ne.s32.totalorder %s45, %s46
    %p55 = scmp.eq.s32.totalorder %s14, 0
    %p56 = por %p54, %p55
    %p57 = scmp.ne.s32.totalorder %s45, %s46
    %p58 = scmp.eq.s32.totalorder %s15, 1
    %p59 = por %p57, %p58
    %p61 = scmp.ne.s32.totalorder %s46, %s60
    %p62 = scmp.eq.s32.totalorder %s15, 0
    %p63 = por %p61, %p62
    %s65 = sadd.s32 %s64, 1
    %p68 = scmp.eq.s32.totalorder %s9, 1
    %p69 = scmp.ne.s32.totalorder %s64, %s66
    %p70 = scmp.eq.s32.totalorder %s9, 0
    %p71 = por %p69, %p70
    %p72 = scmp.ne.s32.totalorder %s64, %s66
    %p73 = scmp.eq.s32.totalorder %s14, 1
    %p74 = por %p72, %p73
    %p75 = scmp.ne.s32.totalorder %s66, %s67
    %p76 = scmp.eq.s32.totalorder %s14, 0
    %p77 = por %p75, %p76
    %p78 = scmp.ne.s32.totalorder %s66, %s67
    %p79 = scmp.eq.s32.totalorder %s15, 1
    %p80 = por %p78, %p79
    %p82 = scmp.ne.s32.totalorder %s67, %s81
    %p83 = scmp.eq.s32.totalorder %s15, 0
    %p84 = por %p82, %p83
    %s85 = ssub.s32 %s9, %s16
    %p86 = scmp.eq.s32.totalorder %s85, 0
    %s88 = sadd.s32 %s87, 1
    %s89 = scalar_select %p86, %s87, %s88
    %p92 = pneg %p86
    %p93 = scmp.eq.s32.totalorder %s9, 1
    %p94 = por %p92, %p93
    %p95 = scmp.ne.s32.totalorder %s87, %s90
    %p96 = scmp.eq.s32.totalorder %s9, 0
    %p97 = por %p95, %p96
    %p98 = scmp.ne.s32.totalorder %s87, %s90
    %p99 = scmp.eq.s32.totalorder %s14, 1
    %p100 = por %p98, %p99
    %p101 = scmp.ne.s32.totalorder %s90, %s91
    %p102 = scmp.eq.s32.totalorder %s14, 0
    %p103 = por %p101, %p102
    %p104 = scmp.ne.s32.totalorder %s90, %s91
    %p105 = scmp.eq.s32.totalorder %s15, 1
    %p106 = por %p104, %p105
    %p108 = scmp.ne.s32.totalorder %s91, %s107
    %p109 = scmp.eq.s32.totalorder %s15, 0
    %p110 = por %p108, %p109
    %p111 = scmp.le.s32.totalorder 1, %s9
    %p112 = scmp.lt.s32.totalorder %s9, 3
    %p113 = pnand %p111, %p112
    %p114 = pneg %p113
    // Predicated region
    $region9: #{multi_periodic_discriminator_forward.8} parent=5 // pred_check
      _
    $region10: #{multi_periodic_discriminator_forward.8} parent=5 // pred_check_branch
      %116 = sbr.rel (%p113) target = $region12
    $region11: #{multi_periodic_discriminator_forward.8} parent=5 // pred_region
      %s117 = ssub.s32 %s9, 1
      // Predicated region
      $region13: #{multi_periodic_discriminator_forward.8} parent=11 // pred_check
        %p118 = pneg %p56
      $region14: #{multi_periodic_discriminator_forward.8} parent=11 // pred_check_branch
        %120 = sbr.rel (%p118) target = $region16
      $region15: #{multi_periodic_discriminator_forward.8} parent=11 // pred_region
        _
      $region16: #{multi_periodic_discriminator_forward.8} parent=11 // pred_fallthru
        _
      // Predicated region
      $region17: #{multi_periodic_discriminator_forward.8} parent=11 // pred_check
        %p121 = pneg %p77
      $region18: #{multi_periodic_discriminator_forward.8} parent=11 // pred_check_branch
        %123 = sbr.rel (%p121) target = $region20
      $region19: #{multi_periodic_discriminator_forward.8} parent=11 // pred_region
        _
      $region20: #{multi_periodic_discriminator_forward.8} parent=11 // pred_fallthru
        _
    $region12: #{multi_periodic_discriminator_forward.8} parent=5 // pred_fallthru
      _
    %p124 = scmp.lt.s32.totalorder %s9, 2
    // Predicated region
    $region21: #{multi_periodic_discriminator_forward.8} parent=5 // pred_check
      %p125 = pneg %p124
    $region22: #{multi_periodic_discriminator_forward.8} parent=5 // pred_check_branch
      %127 = sbr.rel (%p125) target = $region24
    $region23: #{multi_periodic_discriminator_forward.8} parent=5 // pred_region
      // Predicated region
      $region25: #{multi_periodic_discriminator_forward.8} parent=23 // pred_check
        %p128 = pneg %p29
      $region26: #{multi_periodic_discriminator_forward.8} parent=23 // pred_check_branch
        %130 = sbr.rel (%p128) target = $region28
      $region27: #{multi_periodic_discriminator_forward.8} parent=23 // pred_region
        %s131 = smul.u32 2, %s9
        %p132 = scmp.lt.s32.totalorder %s131, 3
        %s133 = scalar_select %p132, %s131, 3
        %s134 = smul.addr %s133, 6
        %s135 = smul.addr %s134, 8
        %s136 = scalar_lea.vmem %s0, %s135
        %s137 = smul.u32 2, %s9
      $region28: #{multi_periodic_discriminator_forward.8} parent=23 // pred_fallthru
        _
    $region24: #{multi_periodic_discriminator_forward.8} parent=5 // pred_fallthru
      _
    %p138 = scmp.le.s32.totalorder 1, %s9
    %p139 = scmp.lt.s32.totalorder %s9, 3
    %p140 = pnand %p138, %p139
    %p141 = pneg %p140
    // Predicated region
    $region29: #{multi_periodic_discriminator_forward.8} parent=5 // pred_check
      _
    $region30: #{multi_periodic_discriminator_forward.8} parent=5 // pred_check_branch
      %143 = sbr.rel (%p140) target = $region32
    $region31: #{multi_periodic_discriminator_forward.8} parent=5 // pred_region
      %s144 = ssub.s32 %s9, 1
      %s145 = smul.u32 2, %s14
      %p146 = scmp.lt.s32.totalorder %s145, 3
      %s147 = scalar_select %p146, %s145, 3
      %s148 = smul.addr %s147, 6
      %s149 = smul.addr %s148, 8
      %s150 = scalar_lea.vmem %s0, %s149
      %p151 = pneg %p35
      %p152 = pneg %p32
      %p153 = pneg %p56
      %p154 = pneg %p53
      %p155 = pneg %p77
      %p156 = pneg %p74
      %p157 = pneg %p103
      %p158 = pneg %p100
      %s159 = smul.u32 2, %s14
      %p160 = scmp.lt.s32.totalorder %s159, 3
      %s161 = scalar_select %p160, %s159, 3
      %s162 = smul.addr %s161, 2
      %s163 = smul.addr %s162, 4
      %s164 = scalar_lea.vmem %s3, %s163
      %s165 = smul.u32 2, %s14
      %p166 = scmp.lt.s32.totalorder %s165, 3
      %s167 = scalar_select %p166, %s165, 3
      %s168 = smul.addr %s167, 6
      %s169 = smul.addr %s168, 8
      %s170 = scalar_lea.vmem %s0, %s169
      %s171 = smul.u32 2, %s14
      %s172 = smul.u32 2, %s14
      %p173 = scmp.lt.s32.totalorder %s172, 3
      %s174 = scalar_select %p173, %s172, 3
      %s175 = smul.addr %s174, 2
      %s176 = smul.addr %s175, 4
      %s177 = scalar_lea.vmem %s3, %s176
      %s178 = smul.u32 2, %s14
      %v179 = vld [vmem:[%s2] sm:$0x1]
      %v180 = vld [vmem:[%s170] sm:$0xff]
      %v181 = vld [vmem:[%s170 + $0x8] sm:$0x7]
      %v182 = vld [vmem:[%s1] sm:$0x1]
      %184 = vset.pattern.permute.xlu0 0
      %185 = vperm.xlu0 %184, %v180
      %v186 = vpop.permute.xlu0 %185
      %189 = vset.pattern.permute.xlu0 0
      %190 = vperm.xlu0 %189, %v181
      %v191 = vpop.permute.xlu0 %190
      %v194 = vlaneseq
      %v195 = vshrl.u32 %v194, 7
      %v196 = vsub.s32 0, %v195
      %v197 = vrot.slane %v182, %v196
      %v199 = vmul.f32 %v186, %v197
      %v200 = vmul.f32 %v191, %v197
      %v201 = vadd.f32 %v199, 0.0
      %v202 = vadd.f32 %v200, 0.0
      %s203 = scalar_lea.vmem %s170, 16
      %v204 = vld [vmem:[%s203] sm:$0xff]
      %v205 = vld [vmem:[%s203 + $0x8] sm:$0x7]
      %s206 = scalar_lea.vmem %s1, 1
      %v207 = vld [vmem:[%s206] sm:$0x1]
      %209 = vset.pattern.permute.xlu0 0
      %210 = vperm.xlu0 %209, %v204
      %v211 = vpop.permute.xlu0 %210
      %214 = vset.pattern.permute.xlu0 0
      %215 = vperm.xlu0 %214, %v205
      %v216 = vpop.permute.xlu0 %215
      %v219 = vlaneseq
      %v220 = vshrl.u32 %v219, 7
      %v221 = vsub.s32 0, %v220
      %v222 = vrot.slane %v207, %v221
      %v224 = vmul.f32 %v211, %v222
      %v225 = vmul.f32 %v216, %v222
      %v226 = vadd.f32 %v201, %v224
      %v227 = vadd.f32 %v202, %v225
      %s228 = scalar_lea.vmem %s170, 32
      %v229 = vld [vmem:[%s228] sm:$0xff]
      %v230 = vld [vmem:[%s228 + $0x8] sm:$0x7]
      %s231 = scalar_lea.vmem %s1, 2
      %v232 = vld [vmem:[%s231] sm:$0x1]
      %234 = vset.pattern.permute.xlu0 0
      %235 = vperm.xlu0 %234, %v229
      %v236 = vpop.permute.xlu0 %235
      %239 = vset.pattern.permute.xlu0 0
      %240 = vperm.xlu0 %239, %v230
      %v241 = vpop.permute.xlu0 %240
      %v244 = vlaneseq
      %v245 = vshrl.u32 %v244, 7
      %v246 = vsub.s32 0, %v245
      %v247 = vrot.slane %v232, %v246
      %v249 = vmul.f32 %v236, %v247
      %v250 = vmul.f32 %v241, %v247
      %v251 = vadd.f32 %v226, %v249
      %v252 = vadd.f32 %v227, %v250
      %v253 = vld [vmem:[%s170 + $0x1] sm:$0xff]
      %v254 = vld [vmem:[%s170 + $0x9] sm:$0x7]
      %s255 = scalar_lea.vmem %s1, 3
      %v256 = vld [vmem:[%s255] sm:$0x1]
      %258 = vset.pattern.permute.xlu0 0
      %259 = vperm.xlu0 %258, %v253
      %v260 = vpop.permute.xlu0 %259
      %263 = vset.pattern.permute.xlu0 0
      %264 = vperm.xlu0 %263, %v254
      %v265 = vpop.permute.xlu0 %264
      %v268 = vlaneseq
      %v269 = vshrl.u32 %v268, 7
      %v270 = vsub.s32 0, %v269
      %v271 = vrot.slane %v256, %v270
      %v273 = vmul.f32 %v260, %v271
      %v274 = vmul.f32 %v265, %v271
      %v275 = vadd.f32 %v251, %v273
      %v276 = vadd.f32 %v252, %v274
      %v277 = vld [vmem:[%s203 + $0x1] sm:$0xff]
      %v278 = vld [vmem:[%s203 + $0x9] sm:$0x7]
      %s279 = scalar_lea.vmem %s1, 4
      %v280 = vld [vmem:[%s279] sm:$0x1]
      %282 = vset.pattern.permute.xlu0 0
      %283 = vperm.xlu0 %282, %v277
      %v284 = vpop.permute.xlu0 %283
      %287 = vset.pattern.permute.xlu0 0
      %288 = vperm.xlu0 %287, %v278
      %v289 = vpop.permute.xlu0 %288
      %v292 = vlaneseq
      %v293 = vshrl.u32 %v292, 7
      %v294 = vsub.s32 0, %v293
      %v295 = vrot.slane %v280, %v294
      %v297 = vmul.f32 %v284, %v295
      %v298 = vmul.f32 %v289, %v295
      %v299 = vadd.f32 %v275, %v297
      %v300 = vadd.f32 %v276, %v298
      %v302 = vlaneseq
      %v303 = vshrl.u32 %v302, 7
      %v304 = vsub.s32 0, %v303
      %v305 = vrot.slane %v179, %v304
      %v307 = vadd.f32 %v299, %v305
      %v308 = vadd.f32 %v300, %v305
      %v309 = vmul.f32 %v307, 0.1
      %v310 = vmul.f32 %v308, 0.1
      %v311 = vmax.f32 %v307, %v309
      %v312 = vmax.f32 %v308, %v310
      %v313 = vpack.c.bf16 %v312, %v311
      %v315 = vunpack.c.l.b16 %v313
      %v316 = vunpack.c.h.b16 %v313
      %v317 = vpack.c.b16 %v315, %v315
      %v318 = vpack.c.b16 %v316, %v316
      %321 = vst [vmem:[%s177] sm:$0xf] %v317
      %vm322 = vcmask 1041408
      %vm323 = vsmask.f32 1280
      %vm324 = vmand %vm322, %vm323
      %v325 = vld [vmem:[%s177 + $0x4] sm:$0x3]
      %v326 = vsel %vm324, %v318, %v325
      %327 = vst [vmem:[%s177 + $0x4] sm:$0x3] %v326
      %s328 = scalar_lea.vmem %s170, 48
      %v329 = vld [vmem:[%s328] sm:$0xff]
      %v330 = vld [vmem:[%s328 + $0x8] sm:$0x7]
      %v331 = vld [vmem:[%s1] sm:$0x1]
      %333 = vset.pattern.permute.xlu0 0
      %334 = vperm.xlu0 %333, %v329
      %v335 = vpop.permute.xlu0 %334
      %338 = vset.pattern.permute.xlu0 0
      %339 = vperm.xlu0 %338, %v330
      %v340 = vpop.permute.xlu0 %339
      %v343 = vlaneseq
      %v344 = vshrl.u32 %v343, 7
      %v345 = vsub.s32 0, %v344
      %v346 = vrot.slane %v331, %v345
      %v348 = vmul.f32 %v335, %v346
      %v349 = vmul.f32 %v340, %v346
      %v350 = vadd.f32 %v348, 0.0
      %v351 = vadd.f32 %v349, 0.0
      %s352 = scalar_lea.vmem %s170, 64
      %v353 = vld [vmem:[%s352] sm:$0xff]
      %v354 = vld [vmem:[%s352 + $0x8] sm:$0x7]
      %v355 = vld [vmem:[%s206] sm:$0x1]
      %357 = vset.pattern.permute.xlu0 0
      %358 = vperm.xlu0 %357, %v353
      %v359 = vpop.permute.xlu0 %358
      %362 = vset.pattern.permute.xlu0 0
      %363 = vperm.xlu0 %362, %v354
      %v364 = vpop.permute.xlu0 %363
      %v367 = vlaneseq
      %v368 = vshrl.u32 %v367, 7
      %v369 = vsub.s32 0, %v368
      %v370 = vrot.slane %v355, %v369
      %v372 = vmul.f32 %v359, %v370
      %v373 = vmul.f32 %v364, %v370
      %v374 = vadd.f32 %v350, %v372
      %v375 = vadd.f32 %v351, %v373
      %s376 = scalar_lea.vmem %s170, 80
      %v377 = vld [vmem:[%s376] sm:$0xff]
      %v378 = vld [vmem:[%s376 + $0x8] sm:$0x7]
      %v379 = vld [vmem:[%s231] sm:$0x1]
      %381 = vset.pattern.permute.xlu0 0
      %382 = vperm.xlu0 %381, %v377
      %v383 = vpop.permute.xlu0 %382
      %386 = vset.pattern.permute.xlu0 0
      %387 = vperm.xlu0 %386, %v378
      %v388 = vpop.permute.xlu0 %387
      %v391 = vlaneseq
      %v392 = vshrl.u32 %v391, 7
      %v393 = vsub.s32 0, %v392
      %v394 = vrot.slane %v379, %v393
      %v396 = vmul.f32 %v383, %v394
      %v397 = vmul.f32 %v388, %v394
      %v398 = vadd.f32 %v374, %v396
      %v399 = vadd.f32 %v375, %v397
      %v400 = vld [vmem:[%s328 + $0x1] sm:$0xff]
      %v401 = vld [vmem:[%s328 + $0x9] sm:$0x7]
      %v402 = vld [vmem:[%s255] sm:$0x1]
      %404 = vset.pattern.permute.xlu0 0
      %405 = vperm.xlu0 %404, %v400
      %v406 = vpop.permute.xlu0 %405
      %409 = vset.pattern.permute.xlu0 0
      %410 = vperm.xlu0 %409, %v401
      %v411 = vpop.permute.xlu0 %410
      %v414 = vlaneseq
      %v415 = vshrl.u32 %v414, 7
      %v416 = vsub.s32 0, %v415
      %v417 = vrot.slane %v402, %v416
      %v419 = vmul.f32 %v406, %v417
      %v420 = vmul.f32 %v411, %v417
      %v421 = vadd.f32 %v398, %v419
      %v422 = vadd.f32 %v399, %v420
      %v423 = vld [vmem:[%s352 + $0x1] sm:$0xff]
      %v424 = vld [vmem:[%s352 + $0x9] sm:$0x7]
      %v425 = vld [vmem:[%s279] sm:$0x1]
      %427 = vset.pattern.permute.xlu0 0
      %428 = vperm.xlu0 %427, %v423
      %v429 = vpop.permute.xlu0 %428
      %432 = vset.pattern.permute.xlu0 0
      %433 = vperm.xlu0 %432, %v424
      %v434 = vpop.permute.xlu0 %433
      %v437 = vlaneseq
      %v438 = vshrl.u32 %v437, 7
      %v439 = vsub.s32 0, %v438
      %v440 = vrot.slane %v425, %v439
      %v442 = vmul.f32 %v429, %v440
      %v443 = vmul.f32 %v434, %v440
      %v444 = vadd.f32 %v421, %v442
      %v445 = vadd.f32 %v422, %v443
      %v446 = vadd.f32 %v444, %v305
      %v447 = vadd.f32 %v445, %v305
      %v448 = vmul.f32 %v446, 0.1
      %v449 = vmul.f32 %v447, 0.1
      %v450 = vmax.f32 %v446, %v448
      %v451 = vmax.f32 %v447, %v449
      %v452 = vpack.c.bf16 %v451, %v450
      %v454 = vunpack.c.l.b16 %v452
      %v455 = vunpack.c.h.b16 %v452
      %v456 = vpack.c.b16 %v454, %v454
      %v457 = vpack.c.b16 %v455, %v455
      %s460 = scalar_lea.vmem %s177, 8
      %461 = vst [vmem:[%s460] sm:$0xf] %v456
      %v462 = vld [vmem:[%s460 + $0x4] sm:$0x3]
      %v463 = vsel %vm324, %v457, %v462
      %464 = vst [vmem:[%s460 + $0x4] sm:$0x3] %v463
      %s465 = smul.u32 2, %s14
      %p466 = scmp.lt.s32.totalorder %s465, 3
      %s467 = scalar_select %p466, %s465, 3
      %s468 = smul.addr %s467, 2
      %s469 = smul.addr %s468, 4
      %s470 = scalar_lea.vmem %s3, %s469
      // Predicated region
      $region33: #{multi_periodic_discriminator_forward.8} parent=31 // pred_check
        %p471 = pneg %p100
      $region34: #{multi_periodic_discriminator_forward.8} parent=31 // pred_check_branch
        %473 = sbr.rel (%p471) target = $region36
      $region35: #{multi_periodic_discriminator_forward.8} parent=31 // pred_region
        %s474 = smul.u32 2, %s14
      $region36: #{multi_periodic_discriminator_forward.8} parent=31 // pred_fallthru
        _
    $region32: #{multi_periodic_discriminator_forward.8} parent=5 // pred_fallthru
      _
    %p475 = scmp.le.s32.totalorder 2, %s9
    // Predicated region
    $region37: #{multi_periodic_discriminator_forward.8} parent=5 // pred_check
      %p476 = pneg %p475
    $region38: #{multi_periodic_discriminator_forward.8} parent=5 // pred_check_branch
      %478 = sbr.rel (%p476) target = $region40
    $region39: #{multi_periodic_discriminator_forward.8} parent=5 // pred_region
      %s479 = ssub.s32 %s9, 2
      // Predicated region
      $region41: #{multi_periodic_discriminator_forward.8} parent=39 // pred_check
        %p480 = pneg %p106
      $region42: #{multi_periodic_discriminator_forward.8} parent=39 // pred_check_branch
        %482 = sbr.rel (%p480) target = $region44
      $region43: #{multi_periodic_discriminator_forward.8} parent=39 // pred_region
        %s483 = smul.u32 2, %s15
        %p484 = scmp.lt.s32.totalorder %s483, 3
        %s485 = scalar_select %p484, %s483, 3
        %s486 = smul.addr %s485, 2
        %s487 = smul.addr %s486, 4
        %s488 = scalar_lea.vmem %s3, %s487
      $region44: #{multi_periodic_discriminator_forward.8} parent=39 // pred_fallthru
        _
    $region40: #{multi_periodic_discriminator_forward.8} parent=5 // pred_fallthru
      _
  $region6: #{multi_periodic_discriminator_forward.8} parent=0 // loop_footer
    %s13 = sadd.s32 1, %s9
  $region7: #{multi_periodic_discriminator_forward.8} parent=0 // loop_footer_branch
    %8 = sbr.rel target = $region3
  $region8: #{multi_periodic_discriminator_forward.8} parent=0 // loop_exit
    _

// kernel: multi_periodic_discriminator_forward.10
$region0: #{multi_periodic_discriminator_forward.10}
  #allocation0 [shape = 'u32[]', space=smem, size = 0x4, offset = 0x4, fixed_abs, tag = 'smem constant byte address 0x4 - core index']
  #allocation1 [shape = 'u32[144,128]{1,0:T(1,128)}', space=vmem, size = 0x12000, scoped, tag = 'internal scratch']
  %s0 = inlined_call_operand.vmem [shape: bf16[4,3,384], index: 0, kind: input, shape index: {}]
  %s1 = inlined_call_operand.vmem [shape: bf16[5,128,128], index: 1, kind: input, shape index: {}]
  %s2 = inlined_call_operand.vmem [shape: f32[1,128], index: 2, kind: input, shape index: {}]
  %s3 = inlined_call_operand.vmem [shape: bf16[4,2,128], index: 3, kind: output, shape index: {}]
  %s4 = sld [smem:[#allocation0]]
  $region45: #{multi_periodic_discriminator_forward.10} parent=0
    _
  %s6 = ssub.s32 1, %s4
  %s7 = scalar_select 0, %s6, %s4
  loop: start=0, step=1, limit=4
  $region2: #{multi_periodic_discriminator_forward.10} parent=0 // loop_pre_header
    _
  $region3: #{multi_periodic_discriminator_forward.10} parent=0 // loop_header
    %s9 = sphi 0, %s13
    %p10 = scmp.ge.s32.totalorder %s9, 4
    %s19 = sphi 0, %s21
    %s22 = sphi 0, %s19
    %s23 = sphi 0, %s22
    %s39 = sphi 0, %s23
    %s43 = sphi 0, %s43
    %s45 = sphi 0, %s43
    %s46 = sphi 0, %s45
    %s60 = sphi 0, %s46
    %s64 = sphi 0, %s64
    %s66 = sphi 0, %s64
    %s67 = sphi 0, %s66
    %s81 = sphi 0, %s67
    %s87 = sphi 0, %s89
    %s90 = sphi 0, %s87
    %s91 = sphi 0, %s90
    %s107 = sphi 0, %s91
  $region4: #{multi_periodic_discriminator_forward.10} parent=0 // loop_header_branch
    %12 = sbr.rel (%p10) target = $region8
  $region5: #{multi_periodic_discriminator_forward.10} parent=0 // loop_body
    %s14 = ssub.s32 %s9, 1
    %s15 = ssub.s32 %s9, 2
    %s16 = sadd.s32 %s9, 1
    %s17 = ssub.s32 %s9, %s16
    %p18 = scmp.eq.s32.totalorder %s17, 0
    %s20 = sadd.s32 %s19, 1
    %s21 = scalar_select %p18, %s19, %s20
    %p24 = pneg %p18
    %p25 = scmp.eq.s32.totalorder %s9, 1
    %p26 = por %p24, %p25
    %p27 = scmp.ne.s32.totalorder %s19, %s22
    %p28 = scmp.eq.s32.totalorder %s9, 0
    %p29 = por %p27, %p28
    %p30 = scmp.ne.s32.totalorder %s19, %s22
    %p31 = scmp.eq.s32.totalorder %s14, 1
    %p32 = por %p30, %p31
    %p33 = scmp.ne.s32.totalorder %s22, %s23
    %p34 = scmp.eq.s32.totalorder %s14, 0
    %p35 = por %p33, %p34
    %p36 = scmp.ne.s32.totalorder %s22, %s23
    %p37 = scmp.eq.s32.totalorder %s15, 1
    %p38 = por %p36, %p37
    %p40 = scmp.ne.s32.totalorder %s23, %s39
    %p41 = scmp.eq.s32.totalorder %s15, 0
    %p42 = por %p40, %p41
    %s44 = sadd.s32 %s43, 1
    %p47 = scmp.eq.s32.totalorder %s9, 1
    %p48 = scmp.ne.s32.totalorder %s43, %s45
    %p49 = scmp.eq.s32.totalorder %s9, 0
    %p50 = por %p48, %p49
    %p51 = scmp.ne.s32.totalorder %s43, %s45
    %p52 = scmp.eq.s32.totalorder %s14, 1
    %p53 = por %p51, %p52
    %p54 = scmp.ne.s32.totalorder %s45, %s46
    %p55 = scmp.eq.s32.totalorder %s14, 0
    %p56 = por %p54, %p55
    %p57 = scmp.ne.s32.totalorder %s45, %s46
    %p58 = scmp.eq.s32.totalorder %s15, 1
    %p59 = por %p57, %p58
    %p61 = scmp.ne.s32.totalorder %s46, %s60
    %p62 = scmp.eq.s32.totalorder %s15, 0
    %p63 = por %p61, %p62
    %s65 = sadd.s32 %s64, 1
    %p68 = scmp.eq.s32.totalorder %s9, 1
    %p69 = scmp.ne.s32.totalorder %s64, %s66
    %p70 = scmp.eq.s32.totalorder %s9, 0
    %p71 = por %p69, %p70
    %p72 = scmp.ne.s32.totalorder %s64, %s66
    %p73 = scmp.eq.s32.totalorder %s14, 1
    %p74 = por %p72, %p73
    %p75 = scmp.ne.s32.totalorder %s66, %s67
    %p76 = scmp.eq.s32.totalorder %s14, 0
    %p77 = por %p75, %p76
    %p78 = scmp.ne.s32.totalorder %s66, %s67
    %p79 = scmp.eq.s32.totalorder %s15, 1
    %p80 = por %p78, %p79
    %p82 = scmp.ne.s32.totalorder %s67, %s81
    %p83 = scmp.eq.s32.totalorder %s15, 0
    %p84 = por %p82, %p83
    %s85 = ssub.s32 %s9, %s16
    %p86 = scmp.eq.s32.totalorder %s85, 0
    %s88 = sadd.s32 %s87, 1
    %s89 = scalar_select %p86, %s87, %s88
    %p92 = pneg %p86
    %p93 = scmp.eq.s32.totalorder %s9, 1
    %p94 = por %p92, %p93
    %p95 = scmp.ne.s32.totalorder %s87, %s90
    %p96 = scmp.eq.s32.totalorder %s9, 0
    %p97 = por %p95, %p96
    %p98 = scmp.ne.s32.totalorder %s87, %s90
    %p99 = scmp.eq.s32.totalorder %s14, 1
    %p100 = por %p98, %p99
    %p101 = scmp.ne.s32.totalorder %s90, %s91
    %p102 = scmp.eq.s32.totalorder %s14, 0
    %p103 = por %p101, %p102
    %p104 = scmp.ne.s32.totalorder %s90, %s91
    %p105 = scmp.eq.s32.totalorder %s15, 1
    %p106 = por %p104, %p105
    %p108 = scmp.ne.s32.totalorder %s91, %s107
    %p109 = scmp.eq.s32.totalorder %s15, 0
    %p110 = por %p108, %p109
    %p111 = scmp.le.s32.totalorder 1, %s9
    %p112 = scmp.lt.s32.totalorder %s9, 3
    %p113 = pnand %p111, %p112
    %p114 = pneg %p113
    // Predicated region
    $region9: #{multi_periodic_discriminator_forward.10} parent=5 // pred_check
      _
    $region10: #{multi_periodic_discriminator_forward.10} parent=5 // pred_check_branch
      %116 = sbr.rel (%p113) target = $region12
    $region11: #{multi_periodic_discriminator_forward.10} parent=5 // pred_region
      %s117 = ssub.s32 %s9, 1
      // Predicated region
      $region13: #{multi_periodic_discriminator_forward.10} parent=11 // pred_check
        %p118 = pneg %p56
      $region14: #{multi_periodic_discriminator_forward.10} parent=11 // pred_check_branch
        %120 = sbr.rel (%p118) target = $region16
      $region15: #{multi_periodic_discriminator_forward.10} parent=11 // pred_region
        _
      $region16: #{multi_periodic_discriminator_forward.10} parent=11 // pred_fallthru
        _
      // Predicated region
      $region17: #{multi_periodic_discriminator_forward.10} parent=11 // pred_check
        %p121 = pneg %p77
      $region18: #{multi_periodic_discriminator_forward.10} parent=11 // pred_check_branch
        %123 = sbr.rel (%p121) target = $region20
      $region19: #{multi_periodic_discriminator_forward.10} parent=11 // pred_region
        _
      $region20: #{multi_periodic_discriminator_forward.10} parent=11 // pred_fallthru
        _
    $region12: #{multi_periodic_discriminator_forward.10} parent=5 // pred_fallthru
      _
    %p124 = scmp.lt.s32.totalorder %s9, 2
    // Predicated region
    $region21: #{multi_periodic_discriminator_forward.10} parent=5 // pred_check
      %p125 = pneg %p124
    $region22: #{multi_periodic_discriminator_forward.10} parent=5 // pred_check_branch
      %127 = sbr.rel (%p125) target = $region24
    $region23: #{multi_periodic_discriminator_forward.10} parent=5 // pred_region
      // Predicated region
      $region25: #{multi_periodic_discriminator_forward.10} parent=23 // pred_check
        %p128 = pneg %p29
      $region26: #{multi_periodic_discriminator_forward.10} parent=23 // pred_check_branch
        %130 = sbr.rel (%p128) target = $region28
      $region27: #{multi_periodic_discriminator_forward.10} parent=23 // pred_region
        %s131 = smul.u32 2, %s9
        %p132 = scmp.lt.s32.totalorder %s131, 3
        %s133 = scalar_select %p132, %s131, 3
        %s134 = smul.addr %s133, 3
        %s135 = smul.addr %s134, 2
        %s136 = scalar_lea.vmem %s0, %s135
        %s137 = smul.u32 2, %s9
      $region28: #{multi_periodic_discriminator_forward.10} parent=23 // pred_fallthru
        _
    $region24: #{multi_periodic_discriminator_forward.10} parent=5 // pred_fallthru
      _
    %p138 = scmp.le.s32.totalorder 1, %s9
    %p139 = scmp.lt.s32.totalorder %s9, 3
    %p140 = pnand %p138, %p139
    %p141 = pneg %p140
    // Predicated region
    $region29: #{multi_periodic_discriminator_forward.10} parent=5 // pred_check
      _
    $region30: #{multi_periodic_discriminator_forward.10} parent=5 // pred_check_branch
      %143 = sbr.rel (%p140) target = $region32
    $region31: #{multi_periodic_discriminator_forward.10} parent=5 // pred_region
      %s144 = ssub.s32 %s9, 1
      %s145 = smul.u32 2, %s14
      %p146 = scmp.lt.s32.totalorder %s145, 3
      %s147 = scalar_select %p146, %s145, 3
      %s148 = smul.addr %s147, 3
      %s149 = smul.addr %s148, 2
      %s150 = scalar_lea.vmem %s0, %s149
      %p151 = pneg %p35
      %p152 = pneg %p32
      %p153 = pneg %p56
      %p154 = pneg %p53
      %p155 = pneg %p77
      %p156 = pneg %p74
      %p157 = pneg %p103
      %p158 = pneg %p100
      %s159 = smul.u32 2, %s14
      %p160 = scmp.lt.s32.totalorder %s159, 3
      %s161 = scalar_select %p160, %s159, 3
      %s162 = scalar_lea.vmem %s3, %s161
      %s163 = smul.u32 2, %s14
      %p164 = scmp.lt.s32.totalorder %s163, 3
      %s165 = scalar_select %p164, %s163, 3
      %s166 = smul.addr %s165, 3
      %s167 = smul.addr %s166, 2
      %s168 = scalar_lea.vmem %s0, %s167
      %s169 = smul.u32 2, %s14
      %s170 = smul.u32 2, %s14
      %p171 = scmp.lt.s32.totalorder %s170, 3
      %s172 = scalar_select %p171, %s170, 3
      %s173 = scalar_lea.vmem %s3, %s172
      %s174 = smul.u32 2, %s14
      %v176 = vld [vmem:[%s2] sm:$0x1]
      %v177 = vld [vmem:[%s168] sm:$0x1]
      %v178 = vld [vmem:[%s1] sm:$0xf]
      %v179 = vld [vmem:[%s1 + $0x4] sm:$0xf]
      %v180 = vld [vmem:[%s1 + $0x8] sm:$0xf]
      %v181 = vld [vmem:[%s1 + $0xc] sm:$0xf]
      %v182 = vld [vmem:[%s1 + $0x10] sm:$0xf]
      %v183 = vld [vmem:[%s1 + $0x14] sm:$0xf]
      %v184 = vld [vmem:[%s1 + $0x18] sm:$0xf]
      %v185 = vld [vmem:[%s1 + $0x1c] sm:$0xf]
      %v186 = vld [vmem:[%s1 + $0x20] sm:$0xf]
      %v187 = vld [vmem:[%s1 + $0x24] sm:$0xf]
      %v188 = vld [vmem:[%s1 + $0x28] sm:$0xf]
      %v189 = vld [vmem:[%s1 + $0x2c] sm:$0xf]
      %v190 = vld [vmem:[%s1 + $0x30] sm:$0xf]
      %v191 = vld [vmem:[%s1 + $0x34] sm:$0xf]
      %v192 = vld [vmem:[%s1 + $0x38] sm:$0xf]
      %v193 = vld [vmem:[%s1 + $0x3c] sm:$0xf]
      %v194 = vld [vmem:[%s168 + $0x2] sm:$0x1]
      %s195 = scalar_lea.vmem %s1, 64
      %v196 = vld [vmem:[%s195] sm:$0xf]
      %v197 = vld [vmem:[%s195 + $0x4] sm:$0xf]
      %v198 = vld [vmem:[%s195 + $0x8] sm:$0xf]
      %v199 = vld [vmem:[%s195 + $0xc] sm:$0xf]
      %v200 = vld [vmem:[%s195 + $0x10] sm:$0xf]
      %v201 = vld [vmem:[%s195 + $0x14] sm:$0xf]
      %v202 = vld [vmem:[%s195 + $0x18] sm:$0xf]
      %v203 = vld [vmem:[%s195 + $0x1c] sm:$0xf]
      %v204 = vld [vmem:[%s195 + $0x20] sm:$0xf]
      %v205 = vld [vmem:[%s195 + $0x24] sm:$0xf]
      %v206 = vld [vmem:[%s195 + $0x28] sm:$0xf]
      %v207 = vld [vmem:[%s195 + $0x2c] sm:$0xf]
      %v208 = vld [vmem:[%s195 + $0x30] sm:$0xf]
      %v209 = vld [vmem:[%s195 + $0x34] sm:$0xf]
      %v210 = vld [vmem:[%s195 + $0x38] sm:$0xf]
      %v211 = vld [vmem:[%s195 + $0x3c] sm:$0xf]
      %v228 = vunpack.c.l.b16 %v196
      %v229 = vunpack.c.l.b16 %v197
      %v230 = vunpack.c.l.b16 %v198
      %v231 = vunpack.c.l.b16 %v199
      %v232 = vunpack.c.l.b16 %v200
      %v233 = vunpack.c.l.b16 %v201
      %v234 = vunpack.c.l.b16 %v202
      %v235 = vunpack.c.l.b16 %v203
      %v236 = vunpack.c.l.b16 %v204
      %v237 = vunpack.c.l.b16 %v205
      %v238 = vunpack.c.l.b16 %v206
      %v239 = vunpack.c.l.b16 %v207
      %v240 = vunpack.c.l.b16 %v208
      %v241 = vunpack.c.l.b16 %v209
      %v242 = vunpack.c.l.b16 %v210
      %v243 = vunpack.c.l.b16 %v211
      %v244 = vpack.c.b16 %v229, %v228
      %v245 = vpack.c.b16 %v231, %v230
      %v246 = vpack.c.b16 %v233, %v232
      %v247 = vpack.c.b16 %v235, %v234
      %v248 = vpack.c.b16 %v237, %v236
      %v249 = vpack.c.b16 %v239, %v238
      %v250 = vpack.c.b16 %v241, %v240
      %v251 = vpack.c.b16 %v243, %v242
      %260 = vmatprep.subr.bf16.mxu0 0
      %261 = vmatpush1.bf16.msra.mxu0 %v251
      %262 = vmatprep.subr.bf16.mxu0 0
      %263 = vmatpush1.bf16.msra.mxu0 %v250
      %264 = vmatprep.subr.bf16.mxu0 0
      %265 = vmatpush1.bf16.msra.mxu0 %v249
      %266 = vmatprep.subr.bf16.mxu0 0
      %267 = vmatpush1.bf16.msra.mxu0 %v248
      %268 = vmatprep.subr.bf16.mxu0 0
      %269 = vmatpush1.bf16.msra.mxu0 %v247
      %270 = vmatprep.subr.bf16.mxu0 0
      %271 = vmatpush1.bf16.msra.mxu0 %v246
      %272 = vmatprep.subr.bf16.mxu0 0
      %273 = vmatpush1.bf16.msra.mxu0 %v245
      %274 = vmatprep.subr.bf16.mxu0 0
      %275 = vmatpush1.bf16.msra.mxu0 %v244
      %276 = vmatprep.subr.bf16.mxu0 0
      %277 = vmatpush2.bf16.msra.mxu0 0
      %278 = vmatprep.subr.bf16.mxu0 0
      %279 = vmatpush2.bf16.msra.mxu0 0
      %280 = vmatprep.subr.bf16.mxu0 0
      %281 = vmatpush2.bf16.msra.mxu0 0
      %282 = vmatprep.subr.bf16.mxu0 0
      %283 = vmatpush2.bf16.msra.mxu0 0
      %284 = vmatprep.subr.bf16.mxu0 0
      %285 = vmatpush2.bf16.msra.mxu0 0
      %286 = vmatprep.subr.bf16.mxu0 0
      %287 = vmatpush2.bf16.msra.mxu0 0
      %288 = vmatprep.subr.bf16.mxu0 0
      %289 = vmatpush2.bf16.msra.mxu0 0
      %290 = vmatprep.subr.bf16.mxu0 0
      %291 = vmatpush2.bf16.msra.mxu0 0
      %292 = vmatprep.mubr.bf16.mxu0 0
      %293 = vmatmul.mubr.bf16.gmra.mxu0 %v194
      %v294 = vpop.f32.mrf.mxu0
      %v295 = vadd.f32 0.0, %v294
      %v296 = vpop.f32.mrf.mxu0
      %v297 = vpop.f32.mrf.mxu0
      %v298 = vpop.f32.mrf.mxu0
      %299 = vdwg.mxu0
      %v316 = vunpack.c.l.b16 %v178
      %v317 = vunpack.c.l.b16 %v179
      %v318 = vunpack.c.l.b16 %v180
      %v319 = vunpack.c.l.b16 %v181
      %v320 = vunpack.c.l.b16 %v182
      %v321 = vunpack.c.l.b16 %v183
      %v322 = vunpack.c.l.b16 %v184
      %v323 = vunpack.c.l.b16 %v185
      %v324 = vunpack.c.l.b16 %v186
      %v325 = vunpack.c.l.b16 %v187
      %v326 = vunpack.c.l.b16 %v188
      %v327 = vunpack.c.l.b16 %v189
      %v328 = vunpack.c.l.b16 %v190
      %v329 = vunpack.c.l.b16 %v191
      %v330 = vunpack.c.l.b16 %v192
      %v331 = vunpack.c.l.b16 %v193
      %v332 = vpack.c.b16 %v317, %v316
      %v333 = vpack.c.b16 %v319, %v318
      %v334 = vpack.c.b16 %v321, %v320
      %v335 = vpack.c.b16 %v323, %v322
      %v336 = vpack.c.b16 %v325, %v324
      %v337 = vpack.c.b16 %v327, %v326
      %v338 = vpack.c.b16 %v329, %v328
      %v339 = vpack.c.b16 %v331, %v330
      %348 = vmatprep.subr.bf16.mxu0 0
      %349 = vmatpush1.bf16.msra.mxu0 %v339
      %350 = vmatprep.subr.bf16.mxu0 0
      %351 = vmatpush1.bf16.msra.mxu0 %v338
      %352 = vmatprep.subr.bf16.mxu0 0
      %353 = vmatpush1.bf16.msra.mxu0 %v337
      %354 = vmatprep.subr.bf16.mxu0 0
      %355 = vmatpush1.bf16.msra.mxu0 %v336
      %356 = vmatprep.subr.bf16.mxu0 0
      %357 = vmatpush1.bf16.msra.mxu0 %v335
      %358 = vmatprep.subr.bf16.mxu0 0
      %359 = vmatpush1.bf16.msra.mxu0 %v334
      %360 = vmatprep.subr.bf16.mxu0 0
      %361 = vmatpush1.bf16.msra.mxu0 %v333
      %362 = vmatprep.subr.bf16.mxu0 0
      %363 = vmatpush1.bf16.msra.mxu0 %v332
      %364 = vmatprep.subr.bf16.mxu0 0
      %365 = vmatpush2.bf16.msra.mxu0 0
      %366 = vmatprep.subr.bf16.mxu0 0
      %367 = vmatpush2.bf16.msra.mxu0 0
      %368 = vmatprep.subr.bf16.mxu0 0
      %369 = vmatpush2.bf16.msra.mxu0 0
      %370 = vmatprep.subr.bf16.mxu0 0
      %371 = vmatpush2.bf16.msra.mxu0 0
      %372 = vmatprep.subr.bf16.mxu0 0
      %373 = vmatpush2.bf16.msra.mxu0 0
      %374 = vmatprep.subr.bf16.mxu0 0
      %375 = vmatpush2.bf16.msra.mxu0 0
      %376 = vmatprep.subr.bf16.mxu0 0
      %377 = vmatpush2.bf16.msra.mxu0 0
      %378 = vmatprep.subr.bf16.mxu0 0
      %379 = vmatpush2.bf16.msra.mxu0 0
      %380 = vmatprep.mubr.bf16.mxu0 0
      %381 = vmatmul.mubr.bf16.gmra.mxu0 %v177
      %v382 = vpop.f32.mrf.mxu0
      %v383 = vadd.f32 %v295, %v382
      %v384 = vpop.f32.mrf.mxu0
      %v385 = vpop.f32.mrf.mxu0
      %v386 = vpop.f32.mrf.mxu0
      %387 = vdwg.mxu0
      %v388 = vld [vmem:[%s168 + $0x4] sm:$0x1]
      %s389 = scalar_lea.vmem %s1, 128
      %v390 = vld [vmem:[%s389] sm:$0xf]
      %v391 = vld [vmem:[%s389 + $0x4] sm:$0xf]
      %v392 = vld [vmem:[%s389 + $0x8] sm:$0xf]
      %v393 = vld [vmem:[%s389 + $0xc] sm:$0xf]
      %v394 = vld [vmem:[%s389 + $0x10] sm:$0xf]
      %v395 = vld [vmem:[%s389 + $0x14] sm:$0xf]
      %v396 = vld [vmem:[%s389 + $0x18] sm:$0xf]
      %v397 = vld [vmem:[%s389 + $0x1c] sm:$0xf]
      %v398 = vld [vmem:[%s389 + $0x20] sm:$0xf]
      %v399 = vld [vmem:[%s389 + $0x24] sm:$0xf]
      %v400 = vld [vmem:[%s389 + $0x28] sm:$0xf]
      %v401 = vld [vmem:[%s389 + $0x2c] sm:$0xf]
      %v402 = vld [vmem:[%s389 + $0x30] sm:$0xf]
      %v403 = vld [vmem:[%s389 + $0x34] sm:$0xf]
      %v404 = vld [vmem:[%s389 + $0x38] sm:$0xf]
      %v405 = vld [vmem:[%s389 + $0x3c] sm:$0xf]
      %v422 = vunpack.c.l.b16 %v390
      %v423 = vunpack.c.l.b16 %v391
      %v424 = vunpack.c.l.b16 %v392
      %v425 = vunpack.c.l.b16 %v393
      %v426 = vunpack.c.l.b16 %v394
      %v427 = vunpack.c.l.b16 %v395
      %v428 = vunpack.c.l.b16 %v396
      %v429 = vunpack.c.l.b16 %v397
      %v430 = vunpack.c.l.b16 %v398
      %v431 = vunpack.c.l.b16 %v399
      %v432 = vunpack.c.l.b16 %v400
      %v433 = vunpack.c.l.b16 %v401
      %v434 = vunpack.c.l.b16 %v402
      %v435 = vunpack.c.l.b16 %v403
      %v436 = vunpack.c.l.b16 %v404
      %v437 = vunpack.c.l.b16 %v405
      %v438 = vpack.c.b16 %v423, %v422
      %v439 = vpack.c.b16 %v425, %v424
      %v440 = vpack.c.b16 %v427, %v426
      %v441 = vpack.c.b16 %v429, %v428
      %v442 = vpack.c.b16 %v431, %v430
      %v443 = vpack.c.b16 %v433, %v432
      %v444 = vpack.c.b16 %v435, %v434
      %v445 = vpack.c.b16 %v437, %v436
      %454 = vmatprep.subr.bf16.mxu0 0
      %455 = vmatpush1.bf16.msra.mxu0 %v445
      %456 = vmatprep.subr.bf16.mxu0 0
      %457 = vmatpush1.bf16.msra.mxu0 %v444
      %458 = vmatprep.subr.bf16.mxu0 0
      %459 = vmatpush1.bf16.msra.mxu0 %v443
      %460 = vmatprep.subr.bf16.mxu0 0
      %461 = vmatpush1.bf16.msra.mxu0 %v442
      %462 = vmatprep.subr.bf16.mxu0 0
      %463 = vmatpush1.bf16.msra.mxu0 %v441
      %464 = vmatprep.subr.bf16.mxu0 0
      %465 = vmatpush1.bf16.msra.mxu0 %v440
      %466 = vmatprep.subr.bf16.mxu0 0
      %467 = vmatpush1.bf16.msra.mxu0 %v439
      %468 = vmatprep.subr.bf16.mxu0 0
      %469 = vmatpush1.bf16.msra.mxu0 %v438
      %470 = vmatprep.subr.bf16.mxu0 0
      %471 = vmatpush2.bf16.msra.mxu0 0
      %472 = vmatprep.subr.bf16.mxu0 0
      %473 = vmatpush2.bf16.msra.mxu0 0
      %474 = vmatprep.subr.bf16.mxu0 0
      %475 = vmatpush2.bf16.msra.mxu0 0
      %476 = vmatprep.subr.bf16.mxu0 0
      %477 = vmatpush2.bf16.msra.mxu0 0
      %478 = vmatprep.subr.bf16.mxu0 0
      %479 = vmatpush2.bf16.msra.mxu0 0
      %480 = vmatprep.subr.bf16.mxu0 0
      %481 = vmatpush2.bf16.msra.mxu0 0
      %482 = vmatprep.subr.bf16.mxu0 0
      %483 = vmatpush2.bf16.msra.mxu0 0
      %484 = vmatprep.subr.bf16.mxu0 0
      %485 = vmatpush2.bf16.msra.mxu0 0
      %486 = vmatprep.mubr.bf16.mxu0 0
      %487 = vmatmul.mubr.bf16.gmra.mxu0 %v388
      %v488 = vpop.f32.mrf.mxu0
      %v489 = vadd.f32 0.0, %v488
      %v490 = vpop.f32.mrf.mxu0
      %v491 = vpop.f32.mrf.mxu0
      %v492 = vpop.f32.mrf.mxu0
      %493 = vdwg.mxu0
      %v494 = vadd.f32 %v383, %v489
      %v495 = vld [vmem:[%s168] sm:$0x3]
      %s496 = scalar_lea.vmem %s1, 192
      %v497 = vld [vmem:[%s496] sm:$0xf]
      %v498 = vld [vmem:[%s496 + $0x4] sm:$0xf]
      %v499 = vld [vmem:[%s496 + $0x8] sm:$0xf]
      %v500 = vld [vmem:[%s496 + $0xc] sm:$0xf]
      %v501 = vld [vmem:[%s496 + $0x10] sm:$0xf]
      %v502 = vld [vmem:[%s496 + $0x14] sm:$0xf]
      %v503 = vld [vmem:[%s496 + $0x18] sm:$0xf]
      %v504 = vld [vmem:[%s496 + $0x1c] sm:$0xf]
      %v505 = vld [vmem:[%s496 + $0x20] sm:$0xf]
      %v506 = vld [vmem:[%s496 + $0x24] sm:$0xf]
      %v507 = vld [vmem:[%s496 + $0x28] sm:$0xf]
      %v508 = vld [vmem:[%s496 + $0x2c] sm:$0xf]
      %v509 = vld [vmem:[%s496 + $0x30] sm:$0xf]
      %v510 = vld [vmem:[%s496 + $0x34] sm:$0xf]
      %v511 = vld [vmem:[%s496 + $0x38] sm:$0xf]
      %v512 = vld [vmem:[%s496 + $0x3c] sm:$0xf]
      %v515 = vunpack.c.l.s4 1983009808
      %v516 = vunpack.c.0.s8 %v515
      %v517 = vlaneseq
      %v518 = vshrl.u32 %v517, 7
      %v519 = vsub.s32 %v516, %v518
      %v520 = vrot.slane %v495, %v519
      %v522 = vshrl.u32 %v520, 16
      %v524 = vshll.u32 %v520, 16
      %v526 = vrot.slane %v524, 1
      %v527 = vor.u32 %v522, %v526
      %v545 = vunpack.c.l.b16 %v497
      %v546 = vunpack.c.l.b16 %v498
      %v547 = vunpack.c.l.b16 %v499
      %v548 = vunpack.c.l.b16 %v500
      %v549 = vunpack.c.l.b16 %v501
      %v550 = vunpack.c.l.b16 %v502
      %v551 = vunpack.c.l.b16 %v503
      %v552 = vunpack.c.l.b16 %v504
      %v553 = vunpack.c.l.b16 %v505
      %v554 = vunpack.c.l.b16 %v506
      %v555 = vunpack.c.l.b16 %v507
      %v556 = vunpack.c.l.b16 %v508
      %v557 = vunpack.c.l.b16 %v509
      %v558 = vunpack.c.l.b16 %v510
      %v559 = vunpack.c.l.b16 %v511
      %v560 = vunpack.c.l.b16 %v512
      %v561 = vpack.c.b16 %v546, %v545
      %v562 = vpack.c.b16 %v548, %v547
      %v563 = vpack.c.b16 %v550, %v549
      %v564 = vpack.c.b16 %v552, %v551
      %v565 = vpack.c.b16 %v554, %v553
      %v566 = vpack.c.b16 %v556, %v555
      %v567 = vpack.c.b16 %v558, %v557
      %v568 = vpack.c.b16 %v560, %v559
      %577 = vmatprep.subr.bf16.mxu0 0
      %578 = vmatpush1.bf16.msra.mxu0 %v568
      %579 = vmatprep.subr.bf16.mxu0 0
      %580 = vmatpush1.bf16.msra.mxu0 %v567
      %581 = vmatprep.subr.bf16.mxu0 0
      %582 = vmatpush1.bf16.msra.mxu0 %v566
      %583 = vmatprep.subr.bf16.mxu0 0
      %584 = vmatpush1.bf16.msra.mxu0 %v565
      %585 = vmatprep.subr.bf16.mxu0 0
      %586 = vmatpush1.bf16.msra.mxu0 %v564
      %587 = vmatprep.subr.bf16.mxu0 0
      %588 = vmatpush1.bf16.msra.mxu0 %v563
      %589 = vmatprep.subr.bf16.mxu0 0
      %590 = vmatpush1.bf16.msra.mxu0 %v562
      %591 = vmatprep.subr.bf16.mxu0 0
      %592 = vmatpush1.bf16.msra.mxu0 %v561
      %593 = vmatprep.subr.bf16.mxu0 0
      %594 = vmatpush2.bf16.msra.mxu0 0
      %595 = vmatprep.subr.bf16.mxu0 0
      %596 = vmatpush2.bf16.msra.mxu0 0
      %597 = vmatprep.subr.bf16.mxu0 0
      %598 = vmatpush2.bf16.msra.mxu0 0
      %599 = vmatprep.subr.bf16.mxu0 0
      %600 = vmatpush2.bf16.msra.mxu0 0
      %601 = vmatprep.subr.bf16.mxu0 0
      %602 = vmatpush2.bf16.msra.mxu0 0
      %603 = vmatprep.subr.bf16.mxu0 0
      %604 = vmatpush2.bf16.msra.mxu0 0
      %605 = vmatprep.subr.bf16.mxu0 0
      %606 = vmatpush2.bf16.msra.mxu0 0
      %607 = vmatprep.subr.bf16.mxu0 0
      %608 = vmatpush2.bf16.msra.mxu0 0
      %609 = vmatprep.mubr.bf16.mxu0 0
      %610 = vmatmul.mubr.bf16.gmra.mxu0 %v527
      %v611 = vpop.f32.mrf.mxu0
      %v612 = vadd.f32 0.0, %v611
      %v613 = vpop.f32.mrf.mxu0
      %v614 = vpop.f32.mrf.mxu0
      %v615 = vpop.f32.mrf.mxu0
      %616 = vdwg.mxu0
      %v617 = vadd.f32 %v494, %v612
      %v618 = vld [vmem:[%s168 + $0x2] sm:$0x3]
      %s619 = scalar_lea.vmem %s1, 256
      %v620 = vld [vmem:[%s619] sm:$0xf]
      %v621 = vld [vmem:[%s619 + $0x4] sm:$0xf]
      %v622 = vld [vmem:[%s619 + $0x8] sm:$0xf]
      %v623 = vld [vmem:[%s619 + $0xc] sm:$0xf]
      %v624 = vld [vmem:[%s619 + $0x10] sm:$0xf]
      %v625 = vld [vmem:[%s619 + $0x14] sm:$0xf]
      %v626 = vld [vmem:[%s619 + $0x18] sm:$0xf]
      %v627 = vld [vmem:[%s619 + $0x1c] sm:$0xf]
      %v628 = vld [vmem:[%s619 + $0x20] sm:$0xf]
      %v629 = vld [vmem:[%s619 + $0x24] sm:$0xf]
      %v630 = vld [vmem:[%s619 + $0x28] sm:$0xf]
      %v631 = vld [vmem:[%s619 + $0x2c] sm:$0xf]
      %v632 = vld [vmem:[%s619 + $0x30] sm:$0xf]
      %v633 = vld [vmem:[%s619 + $0x34] sm:$0xf]
      %v634 = vld [vmem:[%s619 + $0x38] sm:$0xf]
      %v635 = vld [vmem:[%s619 + $0x3c] sm:$0xf]
      %v638 = vunpack.c.l.s4 1983009808
      %v639 = vunpack.c.0.s8 %v638
      %v640 = vlaneseq
      %v641 = vshrl.u32 %v640, 7
      %v642 = vsub.s32 %v639, %v641
      %v643 = vrot.slane %v618, %v642
      %v645 = vshrl.u32 %v643, 16
      %v647 = vshll.u32 %v643, 16
      %v649 = vrot.slane %v647, 1
      %v650 = vor.u32 %v645, %v649
      %v668 = vunpack.c.l.b16 %v620
      %v669 = vunpack.c.l.b16 %v621
      %v670 = vunpack.c.l.b16 %v622
      %v671 = vunpack.c.l.b16 %v623
      %v672 = vunpack.c.l.b16 %v624
      %v673 = vunpack.c.l.b16 %v625
      %v674 = vunpack.c.l.b16 %v626
      %v675 = vunpack.c.l.b16 %v627
      %v676 = vunpack.c.l.b16 %v628
      %v677 = vunpack.c.l.b16 %v629
      %v678 = vunpack.c.l.b16 %v630
      %v679 = vunpack.c.l.b16 %v631
      %v680 = vunpack.c.l.b16 %v632
      %v681 = vunpack.c.l.b16 %v633
      %v682 = vunpack.c.l.b16 %v634
      %v683 = vunpack.c.l.b16 %v635
      %v684 = vpack.c.b16 %v669, %v668
      %v685 = vpack.c.b16 %v671, %v670
      %v686 = vpack.c.b16 %v673, %v672
      %v687 = vpack.c.b16 %v675, %v674
      %v688 = vpack.c.b16 %v677, %v676
      %v689 = vpack.c.b16 %v679, %v678
      %v690 = vpack.c.b16 %v681, %v680
      %v691 = vpack.c.b16 %v683, %v682
      %700 = vmatprep.subr.bf16.mxu0 0
      %701 = vmatpush1.bf16.msra.mxu0 %v691
      %702 = vmatprep.subr.bf16.mxu0 0
      %703 = vmatpush1.bf16.msra.mxu0 %v690
      %704 = vmatprep.subr.bf16.mxu0 0
      %705 = vmatpush1.bf16.msra.mxu0 %v689
      %706 = vmatprep.subr.bf16.mxu0 0
      %707 = vmatpush1.bf16.msra.mxu0 %v688
      %708 = vmatprep.subr.bf16.mxu0 0
      %709 = vmatpush1.bf16.msra.mxu0 %v687
      %710 = vmatprep.subr.bf16.mxu0 0
      %711 = vmatpush1.bf16.msra.mxu0 %v686
      %712 = vmatprep.subr.bf16.mxu0 0
      %713 = vmatpush1.bf16.msra.mxu0 %v685
      %714 = vmatprep.subr.bf16.mxu0 0
      %715 = vmatpush1.bf16.msra.mxu0 %v684
      %716 = vmatprep.subr.bf16.mxu0 0
      %717 = vmatpush2.bf16.msra.mxu0 0
      %718 = vmatprep.subr.bf16.mxu0 0
      %719 = vmatpush2.bf16.msra.mxu0 0
      %720 = vmatprep.subr.bf16.mxu0 0
      %721 = vmatpush2.bf16.msra.mxu0 0
      %722 = vmatprep.subr.bf16.mxu0 0
      %723 = vmatpush2.bf16.msra.mxu0 0
      %724 = vmatprep.subr.bf16.mxu0 0
      %725 = vmatpush2.bf16.msra.mxu0 0
      %726 = vmatprep.subr.bf16.mxu0 0
      %727 = vmatpush2.bf16.msra.mxu0 0
      %728 = vmatprep.subr.bf16.mxu0 0
      %729 = vmatpush2.bf16.msra.mxu0 0
      %730 = vmatprep.subr.bf16.mxu0 0
      %731 = vmatpush2.bf16.msra.mxu0 0
      %732 = vmatprep.mubr.bf16.mxu0 0
      %733 = vmatmul.mubr.bf16.gmra.mxu0 %v650
      %v734 = vpop.f32.mrf.mxu0
      %v735 = vadd.f32 0.0, %v734
      %v736 = vpop.f32.mrf.mxu0
      %v737 = vpop.f32.mrf.mxu0
      %v738 = vpop.f32.mrf.mxu0
      %739 = vdwg.mxu0
      %v740 = vadd.f32 %v617, %v735
      %v742 = vlaneseq
      %v743 = vshrl.u32 %v742, 7
      %v744 = vsub.s32 0, %v743
      %v745 = vrot.slane %v176, %v744
      %v747 = vadd.f32 %v740, %v745
      %v748 = vmul.f32 %v747, 0.1
      %v749 = vmax.f32 %v747, %v748
      %v750 = vpack.c.bf16 %v749, %v749
      %751 = vst [vmem:[%s173] sm:$0x1] %v750
      %s752 = scalar_lea.vmem %s168, 6
      %v753 = vld [vmem:[%s752] sm:$0x1]
      %v754 = vld [vmem:[%s1] sm:$0xf]
      %v755 = vld [vmem:[%s1 + $0x4] sm:$0xf]
      %v756 = vld [vmem:[%s1 + $0x8] sm:$0xf]
      %v757 = vld [vmem:[%s1 + $0xc] sm:$0xf]
      %v758 = vld [vmem:[%s1 + $0x10] sm:$0xf]
      %v759 = vld [vmem:[%s1 + $0x14] sm:$0xf]
      %v760 = vld [vmem:[%s1 + $0x18] sm:$0xf]
      %v761 = vld [vmem:[%s1 + $0x1c] sm:$0xf]
      %v762 = vld [vmem:[%s1 + $0x20] sm:$0xf]
      %v763 = vld [vmem:[%s1 + $0x24] sm:$0xf]
      %v764 = vld [vmem:[%s1 + $0x28] sm:$0xf]
      %v765 = vld [vmem:[%s1 + $0x2c] sm:$0xf]
      %v766 = vld [vmem:[%s1 + $0x30] sm:$0xf]
      %v767 = vld [vmem:[%s1 + $0x34] sm:$0xf]
      %v768 = vld [vmem:[%s1 + $0x38] sm:$0xf]
      %v769 = vld [vmem:[%s1 + $0x3c] sm:$0xf]
      %v770 = vld [vmem:[%s752 + $0x2] sm:$0x1]
      %v771 = vld [vmem:[%s195] sm:$0xf]
      %v772 = vld [vmem:[%s195 + $0x4] sm:$0xf]
      %v773 = vld [vmem:[%s195 + $0x8] sm:$0xf]
      %v774 = vld [vmem:[%s195 + $0xc] sm:$0xf]
      %v775 = vld [vmem:[%s195 + $0x10] sm:$0xf]
      %v776 = vld [vmem:[%s195 + $0x14] sm:$0xf]
      %v777 = vld [vmem:[%s195 + $0x18] sm:$0xf]
      %v778 = vld [vmem:[%s195 + $0x1c] sm:$0xf]
      %v779 = vld [vmem:[%s195 + $0x20] sm:$0xf]
      %v780 = vld [vmem:[%s195 + $0x24] sm:$0xf]
      %v781 = vld [vmem:[%s195 + $0x28] sm:$0xf]
      %v782 = vld [vmem:[%s195 + $0x2c] sm:$0xf]
      %v783 = vld [vmem:[%s195 + $0x30] sm:$0xf]
      %v784 = vld [vmem:[%s195 + $0x34] sm:$0xf]
      %v785 = vld [vmem:[%s195 + $0x38] sm:$0xf]
      %v786 = vld [vmem:[%s195 + $0x3c] sm:$0xf]
      %v803 = vunpack.c.l.b16 %v771
      %v804 = vunpack.c.l.b16 %v772
      %v805 = vunpack.c.l.b16 %v773
      %v806 = vunpack.c.l.b16 %v774
      %v807 = vunpack.c.l.b16 %v775
      %v808 = vunpack.c.l.b16 %v776
      %v809 = vunpack.c.l.b16 %v777
      %v810 = vunpack.c.l.b16 %v778
      %v811 = vunpack.c.l.b16 %v779
      %v812 = vunpack.c.l.b16 %v780
      %v813 = vunpack.c.l.b16 %v781
      %v814 = vunpack.c.l.b16 %v782
      %v815 = vunpack.c.l.b16 %v783
      %v816 = vunpack.c.l.b16 %v784
      %v817 = vunpack.c.l.b16 %v785
      %v818 = vunpack.c.l.b16 %v786
      %v819 = vpack.c.b16 %v804, %v803
      %v820 = vpack.c.b16 %v806, %v805
      %v821 = vpack.c.b16 %v808, %v807
      %v822 = vpack.c.b16 %v810, %v809
      %v823 = vpack.c.b16 %v812, %v811
      %v824 = vpack.c.b16 %v814, %v813
      %v825 = vpack.c.b16 %v816, %v815
      %v826 = vpack.c.b16 %v818, %v817
      %835 = vmatprep.subr.bf16.mxu0 0
      %836 = vmatpush1.bf16.msra.mxu0 %v826
      %837 = vmatprep.subr.bf16.mxu0 0
      %838 = vmatpush1.bf16.msra.mxu0 %v825
      %839 = vmatprep.subr.bf16.mxu0 0
      %840 = vmatpush1.bf16.msra.mxu0 %v824
      %841 = vmatprep.subr.bf16.mxu0 0
      %842 = vmatpush1.bf16.msra.mxu0 %v823
      %843 = vmatprep.subr.bf16.mxu0 0
      %844 = vmatpush1.bf16.msra.mxu0 %v822
      %845 = vmatprep.subr.bf16.mxu0 0
      %846 = vmatpush1.bf16.msra.mxu0 %v821
      %847 = vmatprep.subr.bf16.mxu0 0
      %848 = vmatpush1.bf16.msra.mxu0 %v820
      %849 = vmatprep.subr.bf16.mxu0 0
      %850 = vmatpush1.bf16.msra.mxu0 %v819
      %851 = vmatprep.subr.bf16.mxu0 0
      %852 = vmatpush2.bf16.msra.mxu0 0
      %853 = vmatprep.subr.bf16.mxu0 0
      %854 = vmatpush2.bf16.msra.mxu0 0
      %855 = vmatprep.subr.bf16.mxu0 0
      %856 = vmatpush2.bf16.msra.mxu0 0
      %857 = vmatprep.subr.bf16.mxu0 0
      %858 = vmatpush2.bf16.msra.mxu0 0
      %859 = vmatprep.subr.bf16.mxu0 0
      %860 = vmatpush2.bf16.msra.mxu0 0
      %861 = vmatprep.subr.bf16.mxu0 0
      %862 = vmatpush2.bf16.msra.mxu0 0
      %863 = vmatprep.subr.bf16.mxu0 0
      %864 = vmatpush2.bf16.msra.mxu0 0
      %865 = vmatprep.subr.bf16.mxu0 0
      %866 = vmatpush2.bf16.msra.mxu0 0
      %867 = vmatprep.mubr.bf16.mxu0 0
      %868 = vmatmul.mubr.bf16.gmra.mxu0 %v770
      %v869 = vpop.f32.mrf.mxu0
      %v870 = vadd.f32 0.0, %v869
      %v871 = vpop.f32.mrf.mxu0
      %v872 = vpop.f32.mrf.mxu0
      %v873 = vpop.f32.mrf.mxu0
      %874 = vdwg.mxu0
      %v891 = vunpack.c.l.b16 %v754
      %v892 = vunpack.c.l.b16 %v755
      %v893 = vunpack.c.l.b16 %v756
      %v894 = vunpack.c.l.b16 %v757
      %v895 = vunpack.c.l.b16 %v758
      %v896 = vunpack.c.l.b16 %v759
      %v897 = vunpack.c.l.b16 %v760
      %v898 = vunpack.c.l.b16 %v761
      %v899 = vunpack.c.l.b16 %v762
      %v900 = vunpack.c.l.b16 %v763
      %v901 = vunpack.c.l.b16 %v764
      %v902 = vunpack.c.l.b16 %v765
      %v903 = vunpack.c.l.b16 %v766
      %v904 = vunpack.c.l.b16 %v767
      %v905 = vunpack.c.l.b16 %v768
      %v906 = vunpack.c.l.b16 %v769
      %v907 = vpack.c.b16 %v892, %v891
      %v908 = vpack.c.b16 %v894, %v893
      %v909 = vpack.c.b16 %v896, %v895
      %v910 = vpack.c.b16 %v898, %v897
      %v911 = vpack.c.b16 %v900, %v899
      %v912 = vpack.c.b16 %v902, %v901
      %v913 = vpack.c.b16 %v904, %v903
      %v914 = vpack.c.b16 %v906, %v905
      %923 = vmatprep.subr.bf16.mxu0 0
      %924 = vmatpush1.bf16.msra.mxu0 %v914
      %925 = vmatprep.subr.bf16.mxu0 0
      %926 = vmatpush1.bf16.msra.mxu0 %v913
      %927 = vmatprep.subr.bf16.mxu0 0
      %928 = vmatpush1.bf16.msra.mxu0 %v912
      %929 = vmatprep.subr.bf16.mxu0 0
      %930 = vmatpush1.bf16.msra.mxu0 %v911
      %931 = vmatprep.subr.bf16.mxu0 0
      %932 = vmatpush1.bf16.msra.mxu0 %v910
      %933 = vmatprep.subr.bf16.mxu0 0
      %934 = vmatpush1.bf16.msra.mxu0 %v909
      %935 = vmatprep.subr.bf16.mxu0 0
      %936 = vmatpush1.bf16.msra.mxu0 %v908
      %937 = vmatprep.subr.bf16.mxu0 0
      %938 = vmatpush1.bf16.msra.mxu0 %v907
      %939 = vmatprep.subr.bf16.mxu0 0
      %940 = vmatpush2.bf16.msra.mxu0 0
      %941 = vmatprep.subr.bf16.mxu0 0
      %942 = vmatpush2.bf16.msra.mxu0 0
      %943 = vmatprep.subr.bf16.mxu0 0
      %944 = vmatpush2.bf16.msra.mxu0 0
      %945 = vmatprep.subr.bf16.mxu0 0
      %946 = vmatpush2.bf16.msra.mxu0 0
      %947 = vmatprep.subr.bf16.mxu0 0
      %948 = vmatpush2.bf16.msra.mxu0 0
      %949 = vmatprep.subr.bf16.mxu0 0
      %950 = vmatpush2.bf16.msra.mxu0 0
      %951 = vmatprep.subr.bf16.mxu0 0
      %952 = vmatpush2.bf16.msra.mxu0 0
      %953 = vmatprep.subr.bf16.mxu0 0
      %954 = vmatpush2.bf16.msra.mxu0 0
      %955 = vmatprep.mubr.bf16.mxu0 0
      %956 = vmatmul.mubr.bf16.gmra.mxu0 %v753
      %v957 = vpop.f32.mrf.mxu0
      %v958 = vadd.f32 %v870, %v957
      %v959 = vpop.f32.mrf.mxu0
      %v960 = vpop.f32.mrf.mxu0
      %v961 = vpop.f32.mrf.mxu0
      %962 = vdwg.mxu0
      %v963 = vld [vmem:[%s752 + $0x4] sm:$0x1]
      %v964 = vld [vmem:[%s389] sm:$0xf]
      %v965 = vld [vmem:[%s389 + $0x4] sm:$0xf]
      %v966 = vld [vmem:[%s389 + $0x8] sm:$0xf]
      %v967 = vld [vmem:[%s389 + $0xc] sm:$0xf]
      %v968 = vld [vmem:[%s389 + $0x10] sm:$0xf]
      %v969 = vld [vmem:[%s389 + $0x14] sm:$0xf]
      %v970 = vld [vmem:[%s389 + $0x18] sm:$0xf]
      %v971 = vld [vmem:[%s389 + $0x1c] sm:$0xf]
      %v972 = vld [vmem:[%s389 + $0x20] sm:$0xf]
      %v973 = vld [vmem:[%s389 + $0x24] sm:$0xf]
      %v974 = vld [vmem:[%s389 + $0x28] sm:$0xf]
      %v975 = vld [vmem:[%s389 + $0x2c] sm:$0xf]
      %v976 = vld [vmem:[%s389 + $0x30] sm:$0xf]
      %v977 = vld [vmem:[%s389 + $0x34] sm:$0xf]
      %v978 = vld [vmem:[%s389 + $0x38] sm:$0xf]
      %v979 = vld [vmem:[%s389 + $0x3c] sm:$0xf]
      %v996 = vunpack.c.l.b16 %v964
      %v997 = vunpack.c.l.b16 %v965
      %v998 = vunpack.c.l.b16 %v966
      %v999 = vunpack.c.l.b16 %v967
      %v1000 = vunpack.c.l.b16 %v968
      %v1001 = vunpack.c.l.b16 %v969
      %v1002 = vunpack.c.l.b16 %v970
      %v1003 = vunpack.c.l.b16 %v971
      %v1004 = vunpack.c.l.b16 %v972
      %v1005 = vunpack.c.l.b16 %v973
      %v1006 = vunpack.c.l.b16 %v974
      %v1007 = vunpack.c.l.b16 %v975
      %v1008 = vunpack.c.l.b16 %v976
      %v1009 = vunpack.c.l.b16 %v977
      %v1010 = vunpack.c.l.b16 %v978
      %v1011 = vunpack.c.l.b16 %v979
      %v1012 = vpack.c.b16 %v997, %v996
      %v1013 = vpack.c.b16 %v999, %v998
      %v1014 = vpack.c.b16 %v1001, %v1000
      %v1015 = vpack.c.b16 %v1003, %v1002
      %v1016 = vpack.c.b16 %v1005, %v1004
      %v1017 = vpack.c.b16 %v1007, %v1006
      %v1018 = vpack.c.b16 %v1009, %v1008
      %v1019 = vpack.c.b16 %v1011, %v1010
      %1028 = vmatprep.subr.bf16.mxu0 0
      %1029 = vmatpush1.bf16.msra.mxu0 %v1019
      %1030 = vmatprep.subr.bf16.mxu0 0
      %1031 = vmatpush1.bf16.msra.mxu0 %v1018
      %1032 = vmatprep.subr.bf16.mxu0 0
      %1033 = vmatpush1.bf16.msra.mxu0 %v1017
      %1034 = vmatprep.subr.bf16.mxu0 0
      %1035 = vmatpush1.bf16.msra.mxu0 %v1016
      %1036 = vmatprep.subr.bf16.mxu0 0
      %1037 = vmatpush1.bf16.msra.mxu0 %v1015
      %1038 = vmatprep.subr.bf16.mxu0 0
      %1039 = vmatpush1.bf16.msra.mxu0 %v1014
      %1040 = vmatprep.subr.bf16.mxu0 0
      %1041 = vmatpush1.bf16.msra.mxu0 %v1013
      %1042 = vmatprep.subr.bf16.mxu0 0
      %1043 = vmatpush1.bf16.msra.mxu0 %v1012
      %1044 = vmatprep.subr.bf16.mxu0 0
      %1045 = vmatpush2.bf16.msra.mxu0 0
      %1046 = vmatprep.subr.bf16.mxu0 0
      %1047 = vmatpush2.bf16.msra.mxu0 0
      %1048 = vmatprep.subr.bf16.mxu0 0
      %1049 = vmatpush2.bf16.msra.mxu0 0
      %1050 = vmatprep.subr.bf16.mxu0 0
      %1051 = vmatpush2.bf16.msra.mxu0 0
      %1052 = vmatprep.subr.bf16.mxu0 0
      %1053 = vmatpush2.bf16.msra.mxu0 0
      %1054 = vmatprep.subr.bf16.mxu0 0
      %1055 = vmatpush2.bf16.msra.mxu0 0
      %1056 = vmatprep.subr.bf16.mxu0 0
      %1057 = vmatpush2.bf16.msra.mxu0 0
      %1058 = vmatprep.subr.bf16.mxu0 0
      %1059 = vmatpush2.bf16.msra.mxu0 0
      %1060 = vmatprep.mubr.bf16.mxu0 0
      %1061 = vmatmul.mubr.bf16.gmra.mxu0 %v963
      %v1062 = vpop.f32.mrf.mxu0
      %v1063 = vadd.f32 0.0, %v1062
      %v1064 = vpop.f32.mrf.mxu0
      %v1065 = vpop.f32.mrf.mxu0
      %v1066 = vpop.f32.mrf.mxu0
      %1067 = vdwg.mxu0
      %v1068 = vadd.f32 %v958, %v1063
      %v1069 = vld [vmem:[%s752] sm:$0x3]
      %v1070 = vld [vmem:[%s496] sm:$0xf]
      %v1071 = vld [vmem:[%s496 + $0x4] sm:$0xf]
      %v1072 = vld [vmem:[%s496 + $0x8] sm:$0xf]
      %v1073 = vld [vmem:[%s496 + $0xc] sm:$0xf]
      %v1074 = vld [vmem:[%s496 + $0x10] sm:$0xf]
      %v1075 = vld [vmem:[%s496 + $0x14] sm:$0xf]
      %v1076 = vld [vmem:[%s496 + $0x18] sm:$0xf]
      %v1077 = vld [vmem:[%s496 + $0x1c] sm:$0xf]
      %v1078 = vld [vmem:[%s496 + $0x20] sm:$0xf]
      %v1079 = vld [vmem:[%s496 + $0x24] sm:$0xf]
      %v1080 = vld [vmem:[%s496 + $0x28] sm:$0xf]
      %v1081 = vld [vmem:[%s496 + $0x2c] sm:$0xf]
      %v1082 = vld [vmem:[%s496 + $0x30] sm:$0xf]
      %v1083 = vld [vmem:[%s496 + $0x34] sm:$0xf]
      %v1084 = vld [vmem:[%s496 + $0x38] sm:$0xf]
      %v1085 = vld [vmem:[%s496 + $0x3c] sm:$0xf]
      %v1088 = vunpack.c.l.s4 1983009808
      %v1089 = vunpack.c.0.s8 %v1088
      %v1090 = vlaneseq
      %v1091 = vshrl.u32 %v1090, 7
      %v1092 = vsub.s32 %v1089, %v1091
      %v1093 = vrot.slane %v1069, %v1092
      %v1095 = vshrl.u32 %v1093, 16
      %v1097 = vshll.u32 %v1093, 16
      %v1099 = vrot.slane %v1097, 1
      %v1100 = vor.u32 %v1095, %v1099
      %v1118 = vunpack.c.l.b16 %v1070
      %v1119 = vunpack.c.l.b16 %v1071
      %v1120 = vunpack.c.l.b16 %v1072
      %v1121 = vunpack.c.l.b16 %v1073
      %v1122 = vunpack.c.l.b16 %v1074
      %v1123 = vunpack.c.l.b16 %v1075
      %v1124 = vunpack.c.l.b16 %v1076
      %v1125 = vunpack.c.l.b16 %v1077
      %v1126 = vunpack.c.l.b16 %v1078
      %v1127 = vunpack.c.l.b16 %v1079
      %v1128 = vunpack.c.l.b16 %v1080
      %v1129 = vunpack.c.l.b16 %v1081
      %v1130 = vunpack.c.l.b16 %v1082
      %v1131 = vunpack.c.l.b16 %v1083
      %v1132 = vunpack.c.l.b16 %v1084
      %v1133 = vunpack.c.l.b16 %v1085
      %v1134 = vpack.c.b16 %v1119, %v1118
      %v1135 = vpack.c.b16 %v1121, %v1120
      %v1136 = vpack.c.b16 %v1123, %v1122
      %v1137 = vpack.c.b16 %v1125, %v1124
      %v1138 = vpack.c.b16 %v1127, %v1126
      %v1139 = vpack.c.b16 %v1129, %v1128
      %v1140 = vpack.c.b16 %v1131, %v1130
      %v1141 = vpack.c.b16 %v1133, %v1132
      %1150 = vmatprep.subr.bf16.mxu0 0
      %1151 = vmatpush1.bf16.msra.mxu0 %v1141
      %1152 = vmatprep.subr.bf16.mxu0 0
      %1153 = vmatpush1.bf16.msra.mxu0 %v1140
      %1154 = vmatprep.subr.bf16.mxu0 0
      %1155 = vmatpush1.bf16.msra.mxu0 %v1139
      %1156 = vmatprep.subr.bf16.mxu0 0
      %1157 = vmatpush1.bf16.msra.mxu0 %v1138
      %1158 = vmatprep.subr.bf16.mxu0 0
      %1159 = vmatpush1.bf16.msra.mxu0 %v1137
      %1160 = vmatprep.subr.bf16.mxu0 0
      %1161 = vmatpush1.bf16.msra.mxu0 %v1136
      %1162 = vmatprep.subr.bf16.mxu0 0
      %1163 = vmatpush1.bf16.msra.mxu0 %v1135
      %1164 = vmatprep.subr.bf16.mxu0 0
      %1165 = vmatpush1.bf16.msra.mxu0 %v1134
      %1166 = vmatprep.subr.bf16.mxu0 0
      %1167 = vmatpush2.bf16.msra.mxu0 0
      %1168 = vmatprep.subr.bf16.mxu0 0
      %1169 = vmatpush2.bf16.msra.mxu0 0
      %1170 = vmatprep.subr.bf16.mxu0 0
      %1171 = vmatpush2.bf16.msra.mxu0 0
      %1172 = vmatprep.subr.bf16.mxu0 0
      %1173 = vmatpush2.bf16.msra.mxu0 0
      %1174 = vmatprep.subr.bf16.mxu0 0
      %1175 = vmatpush2.bf16.msra.mxu0 0
      %1176 = vmatprep.subr.bf16.mxu0 0
      %1177 = vmatpush2.bf16.msra.mxu0 0
      %1178 = vmatprep.subr.bf16.mxu0 0
      %1179 = vmatpush2.bf16.msra.mxu0 0
      %1180 = vmatprep.subr.bf16.mxu0 0
      %1181 = vmatpush2.bf16.msra.mxu0 0
      %1182 = vmatprep.mubr.bf16.mxu0 0
      %1183 = vmatmul.mubr.bf16.gmra.mxu0 %v1100
      %v1184 = vpop.f32.mrf.mxu0
      %v1185 = vadd.f32 0.0, %v1184
      %v1186 = vpop.f32.mrf.mxu0
      %v1187 = vpop.f32.mrf.mxu0
      %v1188 = vpop.f32.mrf.mxu0
      %1189 = vdwg.mxu0
      %v1190 = vadd.f32 %v1068, %v1185
      %v1191 = vld [vmem:[%s752 + $0x2] sm:$0x3]
      %v1192 = vld [vmem:[%s619] sm:$0xf]
      %v1193 = vld [vmem:[%s619 + $0x4] sm:$0xf]
      %v1194 = vld [vmem:[%s619 + $0x8] sm:$0xf]
      %v1195 = vld [vmem:[%s619 + $0xc] sm:$0xf]
      %v1196 = vld [vmem:[%s619 + $0x10] sm:$0xf]
      %v1197 = vld [vmem:[%s619 + $0x14] sm:$0xf]
      %v1198 = vld [vmem:[%s619 + $0x18] sm:$0xf]
      %v1199 = vld [vmem:[%s619 + $0x1c] sm:$0xf]
      %v1200 = vld [vmem:[%s619 + $0x20] sm:$0xf]
      %v1201 = vld [vmem:[%s619 + $0x24] sm:$0xf]
      %v1202 = vld [vmem:[%s619 + $0x28] sm:$0xf]
      %v1203 = vld [vmem:[%s619 + $0x2c] sm:$0xf]
      %v1204 = vld [vmem:[%s619 + $0x30] sm:$0xf]
      %v1205 = vld [vmem:[%s619 + $0x34] sm:$0xf]
      %v1206 = vld [vmem:[%s619 + $0x38] sm:$0xf]
      %v1207 = vld [vmem:[%s619 + $0x3c] sm:$0xf]
      %v1210 = vunpack.c.l.s4 1983009808
      %v1211 = vunpack.c.0.s8 %v1210
      %v1212 = vlaneseq
      %v1213 = vshrl.u32 %v1212, 7
      %v1214 = vsub.s32 %v1211, %v1213
      %v1215 = vrot.slane %v1191, %v1214
      %v1217 = vshrl.u32 %v1215, 16
      %v1219 = vshll.u32 %v1215, 16
      %v1221 = vrot.slane %v1219, 1
      %v1222 = vor.u32 %v1217, %v1221
      %v1240 = vunpack.c.l.b16 %v1192
      %v1241 = vunpack.c.l.b16 %v1193
      %v1242 = vunpack.c.l.b16 %v1194
      %v1243 = vunpack.c.l.b16 %v1195
      %v1244 = vunpack.c.l.b16 %v1196
      %v1245 = vunpack.c.l.b16 %v1197
      %v1246 = vunpack.c.l.b16 %v1198
      %v1247 = vunpack.c.l.b16 %v1199
      %v1248 = vunpack.c.l.b16 %v1200
      %v1249 = vunpack.c.l.b16 %v1201
      %v1250 = vunpack.c.l.b16 %v1202
      %v1251 = vunpack.c.l.b16 %v1203
      %v1252 = vunpack.c.l.b16 %v1204
      %v1253 = vunpack.c.l.b16 %v1205
      %v1254 = vunpack.c.l.b16 %v1206
      %v1255 = vunpack.c.l.b16 %v1207
      %v1256 = vpack.c.b16 %v1241, %v1240
      %v1257 = vpack.c.b16 %v1243, %v1242
      %v1258 = vpack.c.b16 %v1245, %v1244
      %v1259 = vpack.c.b16 %v1247, %v1246
      %v1260 = vpack.c.b16 %v1249, %v1248
      %v1261 = vpack.c.b16 %v1251, %v1250
      %v1262 = vpack.c.b16 %v1253, %v1252
      %v1263 = vpack.c.b16 %v1255, %v1254
      %1272 = vmatprep.subr.bf16.mxu0 0
      %1273 = vmatpush1.bf16.msra.mxu0 %v1263
      %1274 = vmatprep.subr.bf16.mxu0 0
      %1275 = vmatpush1.bf16.msra.mxu0 %v1262
      %1276 = vmatprep.subr.bf16.mxu0 0
      %1277 = vmatpush1.bf16.msra.mxu0 %v1261
      %1278 = vmatprep.subr.bf16.mxu0 0
      %1279 = vmatpush1.bf16.msra.mxu0 %v1260
      %1280 = vmatprep.subr.bf16.mxu0 0
      %1281 = vmatpush1.bf16.msra.mxu0 %v1259
      %1282 = vmatprep.subr.bf16.mxu0 0
      %1283 = vmatpush1.bf16.msra.mxu0 %v1258
      %1284 = vmatprep.subr.bf16.mxu0 0
      %1285 = vmatpush1.bf16.msra.mxu0 %v1257
      %1286 = vmatprep.subr.bf16.mxu0 0
      %1287 = vmatpush1.bf16.msra.mxu0 %v1256
      %1288 = vmatprep.subr.bf16.mxu0 0
      %1289 = vmatpush2.bf16.msra.mxu0 0
      %1290 = vmatprep.subr.bf16.mxu0 0
      %1291 = vmatpush2.bf16.msra.mxu0 0
      %1292 = vmatprep.subr.bf16.mxu0 0
      %1293 = vmatpush2.bf16.msra.mxu0 0
      %1294 = vmatprep.subr.bf16.mxu0 0
      %1295 = vmatpush2.bf16.msra.mxu0 0
      %1296 = vmatprep.subr.bf16.mxu0 0
      %1297 = vmatpush2.bf16.msra.mxu0 0
      %1298 = vmatprep.subr.bf16.mxu0 0
      %1299 = vmatpush2.bf16.msra.mxu0 0
      %1300 = vmatprep.subr.bf16.mxu0 0
      %1301 = vmatpush2.bf16.msra.mxu0 0
      %1302 = vmatprep.subr.bf16.mxu0 0
      %1303 = vmatpush2.bf16.msra.mxu0 0
      %1304 = vmatprep.mubr.bf16.mxu0 0
      %1305 = vmatmul.mubr.bf16.gmra.mxu0 %v1222
      %v1306 = vpop.f32.mrf.mxu0
      %v1307 = vadd.f32 0.0, %v1306
      %v1308 = vpop.f32.mrf.mxu0
      %v1309 = vpop.f32.mrf.mxu0
      %v1310 = vpop.f32.mrf.mxu0
      %1311 = vdwg.mxu0
      %v1312 = vadd.f32 %v1190, %v1307
      %v1313 = vadd.f32 %v1312, %v745
      %v1314 = vmul.f32 %v1313, 0.1
      %v1315 = vmax.f32 %v1313, %v1314
      %v1316 = vpack.c.bf16 %v1315, %v1315
      %s1317 = scalar_lea.vmem %s173, 1
      %1318 = vst [vmem:[%s1317] sm:$0x1] %v1316
      %s1319 = smul.u32 2, %s14
      %p1320 = scmp.lt.s32.totalorder %s1319, 3
      %s1321 = scalar_select %p1320, %s1319, 3
      %s1322 = scalar_lea.vmem %s3, %s1321
      // Predicated region
      $region33: #{multi_periodic_discriminator_forward.10} parent=31 // pred_check
        %p1323 = pneg %p100
      $region34: #{multi_periodic_discriminator_forward.10} parent=31 // pred_check_branch
        %1325 = sbr.rel (%p1323) target = $region36
      $region35: #{multi_periodic_discriminator_forward.10} parent=31 // pred_region
        %s1326 = smul.u32 2, %s14
      $region36: #{multi_periodic_discriminator_forward.10} parent=31 // pred_fallthru
        _
    $region32: #{multi_periodic_discriminator_forward.10} parent=5 // pred_fallthru
      _
    %p1327 = scmp.le.s32.totalorder 2, %s9
    // Predicated region
    $region37: #{multi_periodic_discriminator_forward.10} parent=5 // pred_check
      %p1328 = pneg %p1327
    $region38: #{multi_periodic_discriminator_forward.10} parent=5 // pred_check_branch
      %1330 = sbr.rel (%p1328) target = $region40
    $region39: #{multi_periodic_discriminator_forward.10} parent=5 // pred_region
      %s1331 = ssub.s32 %s9, 2
      // Predicated region
      $region41: #{multi_periodic_discriminator_forward.10} parent=39 // pred_check
        %p1332 = pneg %p106
      $region42: #{multi_periodic_discriminator_forward.10} parent=39 // pred_check_branch
        %1334 = sbr.rel (%p1332) target = $region44
      $region43: #{multi_periodic_discriminator_forward.10} parent=39 // pred_region
        %s1335 = smul.u32 2, %s15
        %p1336 = scmp.lt.s32.totalorder %s1335, 3
        %s1337 = scalar_select %p1336, %s1335, 3
        %s1338 = scalar_lea.vmem %s3, %s1337
      $region44: #{multi_periodic_discriminator_forward.10} parent=39 // pred_fallthru
        _
    $region40: #{multi_periodic_discriminator_forward.10} parent=5 // pred_fallthru
      _
  $region6: #{multi_periodic_discriminator_forward.10} parent=0 // loop_footer
    %s13 = sadd.s32 1, %s9
  $region7: #{multi_periodic_discriminator_forward.10} parent=0 // loop_footer_branch
    %8 = sbr.rel target = $region3
  $region8: #{multi_periodic_discriminator_forward.10} parent=0 // loop_exit
    _

// kernel: multi_periodic_discriminator_forward.9
$region0: #{multi_periodic_discriminator_forward.9}
  #allocation0 [shape = 'u32[]', space=smem, size = 0x4, offset = 0x4, fixed_abs, tag = 'smem constant byte address 0x4 - core index']
  #allocation1 [shape = 'u32[144,128]{1,0:T(1,128)}', space=vmem, size = 0x12000, scoped, tag = 'internal scratch']
  %s0 = inlined_call_operand.vmem [shape: bf16[4,5,384], index: 0, kind: input, shape index: {}]
  %s1 = inlined_call_operand.vmem [shape: bf16[5,128,128], index: 1, kind: input, shape index: {}]
  %s2 = inlined_call_operand.vmem [shape: f32[1,128], index: 2, kind: input, shape index: {}]
  %s3 = inlined_call_operand.vmem [shape: bf16[4,4,128], index: 3, kind: output, shape index: {}]
  %s4 = sld [smem:[#allocation0]]
  $region45: #{multi_periodic_discriminator_forward.9} parent=0
    _
  %s6 = ssub.s32 1, %s4
  %s7 = scalar_select 0, %s6, %s4
  loop: start=0, step=1, limit=4
  $region2: #{multi_periodic_discriminator_forward.9} parent=0 // loop_pre_header
    _
  $region3: #{multi_periodic_discriminator_forward.9} parent=0 // loop_header
    %s9 = sphi 0, %s13
    %p10 = scmp.ge.s32.totalorder %s9, 4
    %s19 = sphi 0, %s21
    %s22 = sphi 0, %s19
    %s23 = sphi 0, %s22
    %s39 = sphi 0, %s23
    %s43 = sphi 0, %s43
    %s45 = sphi 0, %s43
    %s46 = sphi 0, %s45
    %s60 = sphi 0, %s46
    %s64 = sphi 0, %s64
    %s66 = sphi 0, %s64
    %s67 = sphi 0, %s66
    %s81 = sphi 0, %s67
    %s87 = sphi 0, %s89
    %s90 = sphi 0, %s87
    %s91 = sphi 0, %s90
    %s107 = sphi 0, %s91
  $region4: #{multi_periodic_discriminator_forward.9} parent=0 // loop_header_branch
    %12 = sbr.rel (%p10) target = $region8
  $region5: #{multi_periodic_discriminator_forward.9} parent=0 // loop_body
    %s14 = ssub.s32 %s9, 1
    %s15 = ssub.s32 %s9, 2
    %s16 = sadd.s32 %s9, 1
    %s17 = ssub.s32 %s9, %s16
    %p18 = scmp.eq.s32.totalorder %s17, 0
    %s20 = sadd.s32 %s19, 1
    %s21 = scalar_select %p18, %s19, %s20
    %p24 = pneg %p18
    %p25 = scmp.eq.s32.totalorder %s9, 1
    %p26 = por %p24, %p25
    %p27 = scmp.ne.s32.totalorder %s19, %s22
    %p28 = scmp.eq.s32.totalorder %s9, 0
    %p29 = por %p27, %p28
    %p30 = scmp.ne.s32.totalorder %s19, %s22
    %p31 = scmp.eq.s32.totalorder %s14, 1
    %p32 = por %p30, %p31
    %p33 = scmp.ne.s32.totalorder %s22, %s23
    %p34 = scmp.eq.s32.totalorder %s14, 0
    %p35 = por %p33, %p34
    %p36 = scmp.ne.s32.totalorder %s22, %s23
    %p37 = scmp.eq.s32.totalorder %s15, 1
    %p38 = por %p36, %p37
    %p40 = scmp.ne.s32.totalorder %s23, %s39
    %p41 = scmp.eq.s32.totalorder %s15, 0
    %p42 = por %p40, %p41
    %s44 = sadd.s32 %s43, 1
    %p47 = scmp.eq.s32.totalorder %s9, 1
    %p48 = scmp.ne.s32.totalorder %s43, %s45
    %p49 = scmp.eq.s32.totalorder %s9, 0
    %p50 = por %p48, %p49
    %p51 = scmp.ne.s32.totalorder %s43, %s45
    %p52 = scmp.eq.s32.totalorder %s14, 1
    %p53 = por %p51, %p52
    %p54 = scmp.ne.s32.totalorder %s45, %s46
    %p55 = scmp.eq.s32.totalorder %s14, 0
    %p56 = por %p54, %p55
    %p57 = scmp.ne.s32.totalorder %s45, %s46
    %p58 = scmp.eq.s32.totalorder %s15, 1
    %p59 = por %p57, %p58
    %p61 = scmp.ne.s32.totalorder %s46, %s60
    %p62 = scmp.eq.s32.totalorder %s15, 0
    %p63 = por %p61, %p62
    %s65 = sadd.s32 %s64, 1
    %p68 = scmp.eq.s32.totalorder %s9, 1
    %p69 = scmp.ne.s32.totalorder %s64, %s66
    %p70 = scmp.eq.s32.totalorder %s9, 0
    %p71 = por %p69, %p70
    %p72 = scmp.ne.s32.totalorder %s64, %s66
    %p73 = scmp.eq.s32.totalorder %s14, 1
    %p74 = por %p72, %p73
    %p75 = scmp.ne.s32.totalorder %s66, %s67
    %p76 = scmp.eq.s32.totalorder %s14, 0
    %p77 = por %p75, %p76
    %p78 = scmp.ne.s32.totalorder %s66, %s67
    %p79 = scmp.eq.s32.totalorder %s15, 1
    %p80 = por %p78, %p79
    %p82 = scmp.ne.s32.totalorder %s67, %s81
    %p83 = scmp.eq.s32.totalorder %s15, 0
    %p84 = por %p82, %p83
    %s85 = ssub.s32 %s9, %s16
    %p86 = scmp.eq.s32.totalorder %s85, 0
    %s88 = sadd.s32 %s87, 1
    %s89 = scalar_select %p86, %s87, %s88
    %p92 = pneg %p86
    %p93 = scmp.eq.s32.totalorder %s9, 1
    %p94 = por %p92, %p93
    %p95 = scmp.ne.s32.totalorder %s87, %s90
    %p96 = scmp.eq.s32.totalorder %s9, 0
    %p97 = por %p95, %p96
    %p98 = scmp.ne.s32.totalorder %s87, %s90
    %p99 = scmp.eq.s32.totalorder %s14, 1
    %p100 = por %p98, %p99
    %p101 = scmp.ne.s32.totalorder %s90, %s91
    %p102 = scmp.eq.s32.totalorder %s14, 0
    %p103 = por %p101, %p102
    %p104 = scmp.ne.s32.totalorder %s90, %s91
    %p105 = scmp.eq.s32.totalorder %s15, 1
    %p106 = por %p104, %p105
    %p108 = scmp.ne.s32.totalorder %s91, %s107
    %p109 = scmp.eq.s32.totalorder %s15, 0
    %p110 = por %p108, %p109
    %p111 = scmp.le.s32.totalorder 1, %s9
    %p112 = scmp.lt.s32.totalorder %s9, 3
    %p113 = pnand %p111, %p112
    %p114 = pneg %p113
    // Predicated region
    $region9: #{multi_periodic_discriminator_forward.9} parent=5 // pred_check
      _
    $region10: #{multi_periodic_discriminator_forward.9} parent=5 // pred_check_branch
      %116 = sbr.rel (%p113) target = $region12
    $region11: #{multi_periodic_discriminator_forward.9} parent=5 // pred_region
      %s117 = ssub.s32 %s9, 1
      // Predicated region
      $region13: #{multi_periodic_discriminator_forward.9} parent=11 // pred_check
        %p118 = pneg %p56
      $region14: #{multi_periodic_discriminator_forward.9} parent=11 // pred_check_branch
        %120 = sbr.rel (%p118) target = $region16
      $region15: #{multi_periodic_discriminator_forward.9} parent=11 // pred_region
        _
      $region16: #{multi_periodic_discriminator_forward.9} parent=11 // pred_fallthru
        _
      // Predicated region
      $region17: #{multi_periodic_discriminator_forward.9} parent=11 // pred_check
        %p121 = pneg %p77
      $region18: #{multi_periodic_discriminator_forward.9} parent=11 // pred_check_branch
        %123 = sbr.rel (%p121) target = $region20
      $region19: #{multi_periodic_discriminator_forward.9} parent=11 // pred_region
        _
      $region20: #{multi_periodic_discriminator_forward.9} parent=11 // pred_fallthru
        _
    $region12: #{multi_periodic_discriminator_forward.9} parent=5 // pred_fallthru
      _
    %p124 = scmp.lt.s32.totalorder %s9, 2
    // Predicated region
    $region21: #{multi_periodic_discriminator_forward.9} parent=5 // pred_check
      %p125 = pneg %p124
    $region22: #{multi_periodic_discriminator_forward.9} parent=5 // pred_check_branch
      %127 = sbr.rel (%p125) target = $region24
    $region23: #{multi_periodic_discriminator_forward.9} parent=5 // pred_region
      // Predicated region
      $region25: #{multi_periodic_discriminator_forward.9} parent=23 // pred_check
        %p128 = pneg %p29
      $region26: #{multi_periodic_discriminator_forward.9} parent=23 // pred_check_branch
        %130 = sbr.rel (%p128) target = $region28
      $region27: #{multi_periodic_discriminator_forward.9} parent=23 // pred_region
        %s131 = smul.u32 2, %s9
        %p132 = scmp.lt.s32.totalorder %s131, 3
        %s133 = scalar_select %p132, %s131, 3
        %s134 = smul.addr %s133, 3
        %s135 = smul.addr %s134, 4
        %s136 = scalar_lea.vmem %s0, %s135
        %s137 = smul.u32 2, %s9
      $region28: #{multi_periodic_discriminator_forward.9} parent=23 // pred_fallthru
        _
    $region24: #{multi_periodic_discriminator_forward.9} parent=5 // pred_fallthru
      _
    %p138 = scmp.le.s32.totalorder 1, %s9
    %p139 = scmp.lt.s32.totalorder %s9, 3
    %p140 = pnand %p138, %p139
    %p141 = pneg %p140
    // Predicated region
    $region29: #{multi_periodic_discriminator_forward.9} parent=5 // pred_check
      _
    $region30: #{multi_periodic_discriminator_forward.9} parent=5 // pred_check_branch
      %143 = sbr.rel (%p140) target = $region32
    $region31: #{multi_periodic_discriminator_forward.9} parent=5 // pred_region
      %s144 = ssub.s32 %s9, 1
      %s145 = smul.u32 2, %s14
      %p146 = scmp.lt.s32.totalorder %s145, 3
      %s147 = scalar_select %p146, %s145, 3
      %s148 = smul.addr %s147, 3
      %s149 = smul.addr %s148, 4
      %s150 = scalar_lea.vmem %s0, %s149
      %p151 = pneg %p35
      %p152 = pneg %p32
      %p153 = pneg %p56
      %p154 = pneg %p53
      %p155 = pneg %p77
      %p156 = pneg %p74
      %p157 = pneg %p103
      %p158 = pneg %p100
      %s159 = smul.u32 2, %s14
      %p160 = scmp.lt.s32.totalorder %s159, 3
      %s161 = scalar_select %p160, %s159, 3
      %s162 = smul.addr %s161, 2
      %s163 = scalar_lea.vmem %s3, %s162
      %s164 = smul.u32 2, %s14
      %p165 = scmp.lt.s32.totalorder %s164, 3
      %s166 = scalar_select %p165, %s164, 3
      %s167 = smul.addr %s166, 3
      %s168 = smul.addr %s167, 4
      %s169 = scalar_lea.vmem %s0, %s168
      %s170 = smul.u32 2, %s14
      %s171 = smul.u32 2, %s14
      %p172 = scmp.lt.s32.totalorder %s171, 3
      %s173 = scalar_select %p172, %s171, 3
      %s174 = smul.addr %s173, 2
      %s175 = scalar_lea.vmem %s3, %s174
      %s176 = smul.u32 2, %s14
      %v178 = vld [vmem:[%s2] sm:$0x1]
      %v179 = vld [vmem:[%s169] sm:$0x3]
      %v180 = vld [vmem:[%s1] sm:$0xf]
      %v181 = vld [vmem:[%s1 + $0x4] sm:$0xf]
      %v182 = vld [vmem:[%s1 + $0x8] sm:$0xf]
      %v183 = vld [vmem:[%s1 + $0xc] sm:$0xf]
      %v184 = vld [vmem:[%s1 + $0x10] sm:$0xf]
      %v185 = vld [vmem:[%s1 + $0x14] sm:$0xf]
      %v186 = vld [vmem:[%s1 + $0x18] sm:$0xf]
      %v187 = vld [vmem:[%s1 + $0x1c] sm:$0xf]
      %v188 = vld [vmem:[%s1 + $0x20] sm:$0xf]
      %v189 = vld [vmem:[%s1 + $0x24] sm:$0xf]
      %v190 = vld [vmem:[%s1 + $0x28] sm:$0xf]
      %v191 = vld [vmem:[%s1 + $0x2c] sm:$0xf]
      %v192 = vld [vmem:[%s1 + $0x30] sm:$0xf]
      %v193 = vld [vmem:[%s1 + $0x34] sm:$0xf]
      %v194 = vld [vmem:[%s1 + $0x38] sm:$0xf]
      %v195 = vld [vmem:[%s1 + $0x3c] sm:$0xf]
      %v196 = vld [vmem:[%s169 + $0x4] sm:$0x3]
      %s197 = scalar_lea.vmem %s1, 64
      %v198 = vld [vmem:[%s197] sm:$0xf]
      %v199 = vld [vmem:[%s197 + $0x4] sm:$0xf]
      %v200 = vld [vmem:[%s197 + $0x8] sm:$0xf]
      %v201 = vld [vmem:[%s197 + $0xc] sm:$0xf]
      %v202 = vld [vmem:[%s197 + $0x10] sm:$0xf]
      %v203 = vld [vmem:[%s197 + $0x14] sm:$0xf]
      %v204 = vld [vmem:[%s197 + $0x18] sm:$0xf]
      %v205 = vld [vmem:[%s197 + $0x1c] sm:$0xf]
      %v206 = vld [vmem:[%s197 + $0x20] sm:$0xf]
      %v207 = vld [vmem:[%s197 + $0x24] sm:$0xf]
      %v208 = vld [vmem:[%s197 + $0x28] sm:$0xf]
      %v209 = vld [vmem:[%s197 + $0x2c] sm:$0xf]
      %v210 = vld [vmem:[%s197 + $0x30] sm:$0xf]
      %v211 = vld [vmem:[%s197 + $0x34] sm:$0xf]
      %v212 = vld [vmem:[%s197 + $0x38] sm:$0xf]
      %v213 = vld [vmem:[%s197 + $0x3c] sm:$0xf]
      %v230 = vunpack.c.l.b16 %v198
      %v231 = vunpack.c.l.b16 %v199
      %v232 = vunpack.c.l.b16 %v200
      %v233 = vunpack.c.l.b16 %v201
      %v234 = vunpack.c.l.b16 %v202
      %v235 = vunpack.c.l.b16 %v203
      %v236 = vunpack.c.l.b16 %v204
      %v237 = vunpack.c.l.b16 %v205
      %v238 = vunpack.c.l.b16 %v206
      %v239 = vunpack.c.l.b16 %v207
      %v240 = vunpack.c.l.b16 %v208
      %v241 = vunpack.c.l.b16 %v209
      %v242 = vunpack.c.l.b16 %v210
      %v243 = vunpack.c.l.b16 %v211
      %v244 = vunpack.c.l.b16 %v212
      %v245 = vunpack.c.l.b16 %v213
      %v246 = vpack.c.b16 %v231, %v230
      %v247 = vpack.c.b16 %v233, %v232
      %v248 = vpack.c.b16 %v235, %v234
      %v249 = vpack.c.b16 %v237, %v236
      %v250 = vpack.c.b16 %v239, %v238
      %v251 = vpack.c.b16 %v241, %v240
      %v252 = vpack.c.b16 %v243, %v242
      %v253 = vpack.c.b16 %v245, %v244
      %262 = vmatprep.subr.bf16.mxu0 0
      %263 = vmatpush1.bf16.msra.mxu0 %v253
      %264 = vmatprep.subr.bf16.mxu0 0
      %265 = vmatpush1.bf16.msra.mxu0 %v252
      %266 = vmatprep.subr.bf16.mxu0 0
      %267 = vmatpush1.bf16.msra.mxu0 %v251
      %268 = vmatprep.subr.bf16.mxu0 0
      %269 = vmatpush1.bf16.msra.mxu0 %v250
      %270 = vmatprep.subr.bf16.mxu0 0
      %271 = vmatpush1.bf16.msra.mxu0 %v249
      %272 = vmatprep.subr.bf16.mxu0 0
      %273 = vmatpush1.bf16.msra.mxu0 %v248
      %274 = vmatprep.subr.bf16.mxu0 0
      %275 = vmatpush1.bf16.msra.mxu0 %v247
      %276 = vmatprep.subr.bf16.mxu0 0
      %277 = vmatpush1.bf16.msra.mxu0 %v246
      %278 = vmatprep.subr.bf16.mxu0 0
      %279 = vmatpush2.bf16.msra.mxu0 0
      %280 = vmatprep.subr.bf16.mxu0 0
      %281 = vmatpush2.bf16.msra.mxu0 0
      %282 = vmatprep.subr.bf16.mxu0 0
      %283 = vmatpush2.bf16.msra.mxu0 0
      %284 = vmatprep.subr.bf16.mxu0 0
      %285 = vmatpush2.bf16.msra.mxu0 0
      %286 = vmatprep.subr.bf16.mxu0 0
      %287 = vmatpush2.bf16.msra.mxu0 0
      %288 = vmatprep.subr.bf16.mxu0 0
      %289 = vmatpush2.bf16.msra.mxu0 0
      %290 = vmatprep.subr.bf16.mxu0 0
      %291 = vmatpush2.bf16.msra.mxu0 0
      %292 = vmatprep.subr.bf16.mxu0 0
      %293 = vmatpush2.bf16.msra.mxu0 0
      %294 = vmatprep.mubr.bf16.mxu0 0
      %295 = vmatmul.mubr.bf16.gmra.mxu0 %v196
      %v296 = vpop.f32.mrf.mxu0
      %v297 = vadd.f32 0.0, %v296
      %v298 = vpop.f32.mrf.mxu0
      %v299 = vpop.f32.mrf.mxu0
      %v300 = vpop.f32.mrf.mxu0
      %301 = vdwg.mxu0
      %v318 = vunpack.c.l.b16 %v180
      %v319 = vunpack.c.l.b16 %v181
      %v320 = vunpack.c.l.b16 %v182
      %v321 = vunpack.c.l.b16 %v183
      %v322 = vunpack.c.l.b16 %v184
      %v323 = vunpack.c.l.b16 %v185
      %v324 = vunpack.c.l.b16 %v186
      %v325 = vunpack.c.l.b16 %v187
      %v326 = vunpack.c.l.b16 %v188
      %v327 = vunpack.c.l.b16 %v189
      %v328 = vunpack.c.l.b16 %v190
      %v329 = vunpack.c.l.b16 %v191
      %v330 = vunpack.c.l.b16 %v192
      %v331 = vunpack.c.l.b16 %v193
      %v332 = vunpack.c.l.b16 %v194
      %v333 = vunpack.c.l.b16 %v195
      %v334 = vpack.c.b16 %v319, %v318
      %v335 = vpack.c.b16 %v321, %v320
      %v336 = vpack.c.b16 %v323, %v322
      %v337 = vpack.c.b16 %v325, %v324
      %v338 = vpack.c.b16 %v327, %v326
      %v339 = vpack.c.b16 %v329, %v328
      %v340 = vpack.c.b16 %v331, %v330
      %v341 = vpack.c.b16 %v333, %v332
      %350 = vmatprep.subr.bf16.mxu0 0
      %351 = vmatpush1.bf16.msra.mxu0 %v341
      %352 = vmatprep.subr.bf16.mxu0 0
      %353 = vmatpush1.bf16.msra.mxu0 %v340
      %354 = vmatprep.subr.bf16.mxu0 0
      %355 = vmatpush1.bf16.msra.mxu0 %v339
      %356 = vmatprep.subr.bf16.mxu0 0
      %357 = vmatpush1.bf16.msra.mxu0 %v338
      %358 = vmatprep.subr.bf16.mxu0 0
      %359 = vmatpush1.bf16.msra.mxu0 %v337
      %360 = vmatprep.subr.bf16.mxu0 0
      %361 = vmatpush1.bf16.msra.mxu0 %v336
      %362 = vmatprep.subr.bf16.mxu0 0
      %363 = vmatpush1.bf16.msra.mxu0 %v335
      %364 = vmatprep.subr.bf16.mxu0 0
      %365 = vmatpush1.bf16.msra.mxu0 %v334
      %366 = vmatprep.subr.bf16.mxu0 0
      %367 = vmatpush2.bf16.msra.mxu0 0
      %368 = vmatprep.subr.bf16.mxu0 0
      %369 = vmatpush2.bf16.msra.mxu0 0
      %370 = vmatprep.subr.bf16.mxu0 0
      %371 = vmatpush2.bf16.msra.mxu0 0
      %372 = vmatprep.subr.bf16.mxu0 0
      %373 = vmatpush2.bf16.msra.mxu0 0
      %374 = vmatprep.subr.bf16.mxu0 0
      %375 = vmatpush2.bf16.msra.mxu0 0
      %376 = vmatprep.subr.bf16.mxu0 0
      %377 = vmatpush2.bf16.msra.mxu0 0
      %378 = vmatprep.subr.bf16.mxu0 0
      %379 = vmatpush2.bf16.msra.mxu0 0
      %380 = vmatprep.subr.bf16.mxu0 0
      %381 = vmatpush2.bf16.msra.mxu0 0
      %382 = vmatprep.mubr.bf16.mxu0 0
      %383 = vmatmul.mubr.bf16.gmra.mxu0 %v179
      %v384 = vpop.f32.mrf.mxu0
      %v385 = vadd.f32 %v297, %v384
      %v386 = vpop.f32.mrf.mxu0
      %v387 = vpop.f32.mrf.mxu0
      %v388 = vpop.f32.mrf.mxu0
      %389 = vdwg.mxu0
      %v390 = vld [vmem:[%s169 + $0x8] sm:$0x3]
      %s391 = scalar_lea.vmem %s1, 128
      %v392 = vld [vmem:[%s391] sm:$0xf]
      %v393 = vld [vmem:[%s391 + $0x4] sm:$0xf]
      %v394 = vld [vmem:[%s391 + $0x8] sm:$0xf]
      %v395 = vld [vmem:[%s391 + $0xc] sm:$0xf]
      %v396 = vld [vmem:[%s391 + $0x10] sm:$0xf]
      %v397 = vld [vmem:[%s391 + $0x14] sm:$0xf]
      %v398 = vld [vmem:[%s391 + $0x18] sm:$0xf]
      %v399 = vld [vmem:[%s391 + $0x1c] sm:$0xf]
      %v400 = vld [vmem:[%s391 + $0x20] sm:$0xf]
      %v401 = vld [vmem:[%s391 + $0x24] sm:$0xf]
      %v402 = vld [vmem:[%s391 + $0x28] sm:$0xf]
      %v403 = vld [vmem:[%s391 + $0x2c] sm:$0xf]
      %v404 = vld [vmem:[%s391 + $0x30] sm:$0xf]
      %v405 = vld [vmem:[%s391 + $0x34] sm:$0xf]
      %v406 = vld [vmem:[%s391 + $0x38] sm:$0xf]
      %v407 = vld [vmem:[%s391 + $0x3c] sm:$0xf]
      %v424 = vunpack.c.l.b16 %v392
      %v425 = vunpack.c.l.b16 %v393
      %v426 = vunpack.c.l.b16 %v394
      %v427 = vunpack.c.l.b16 %v395
      %v428 = vunpack.c.l.b16 %v396
      %v429 = vunpack.c.l.b16 %v397
      %v430 = vunpack.c.l.b16 %v398
      %v431 = vunpack.c.l.b16 %v399
      %v432 = vunpack.c.l.b16 %v400
      %v433 = vunpack.c.l.b16 %v401
      %v434 = vunpack.c.l.b16 %v402
      %v435 = vunpack.c.l.b16 %v403
      %v436 = vunpack.c.l.b16 %v404
      %v437 = vunpack.c.l.b16 %v405
      %v438 = vunpack.c.l.b16 %v406
      %v439 = vunpack.c.l.b16 %v407
      %v440 = vpack.c.b16 %v425, %v424
      %v441 = vpack.c.b16 %v427, %v426
      %v442 = vpack.c.b16 %v429, %v428
      %v443 = vpack.c.b16 %v431, %v430
      %v444 = vpack.c.b16 %v433, %v432
      %v445 = vpack.c.b16 %v435, %v434
      %v446 = vpack.c.b16 %v437, %v436
      %v447 = vpack.c.b16 %v439, %v438
      %456 = vmatprep.subr.bf16.mxu0 0
      %457 = vmatpush1.bf16.msra.mxu0 %v447
      %458 = vmatprep.subr.bf16.mxu0 0
      %459 = vmatpush1.bf16.msra.mxu0 %v446
      %460 = vmatprep.subr.bf16.mxu0 0
      %461 = vmatpush1.bf16.msra.mxu0 %v445
      %462 = vmatprep.subr.bf16.mxu0 0
      %463 = vmatpush1.bf16.msra.mxu0 %v444
      %464 = vmatprep.subr.bf16.mxu0 0
      %465 = vmatpush1.bf16.msra.mxu0 %v443
      %466 = vmatprep.subr.bf16.mxu0 0
      %467 = vmatpush1.bf16.msra.mxu0 %v442
      %468 = vmatprep.subr.bf16.mxu0 0
      %469 = vmatpush1.bf16.msra.mxu0 %v441
      %470 = vmatprep.subr.bf16.mxu0 0
      %471 = vmatpush1.bf16.msra.mxu0 %v440
      %472 = vmatprep.subr.bf16.mxu0 0
      %473 = vmatpush2.bf16.msra.mxu0 0
      %474 = vmatprep.subr.bf16.mxu0 0
      %475 = vmatpush2.bf16.msra.mxu0 0
      %476 = vmatprep.subr.bf16.mxu0 0
      %477 = vmatpush2.bf16.msra.mxu0 0
      %478 = vmatprep.subr.bf16.mxu0 0
      %479 = vmatpush2.bf16.msra.mxu0 0
      %480 = vmatprep.subr.bf16.mxu0 0
      %481 = vmatpush2.bf16.msra.mxu0 0
      %482 = vmatprep.subr.bf16.mxu0 0
      %483 = vmatpush2.bf16.msra.mxu0 0
      %484 = vmatprep.subr.bf16.mxu0 0
      %485 = vmatpush2.bf16.msra.mxu0 0
      %486 = vmatprep.subr.bf16.mxu0 0
      %487 = vmatpush2.bf16.msra.mxu0 0
      %488 = vmatprep.mubr.bf16.mxu0 0
      %489 = vmatmul.mubr.bf16.gmra.mxu0 %v390
      %v490 = vpop.f32.mrf.mxu0
      %v491 = vadd.f32 0.0, %v490
      %v492 = vpop.f32.mrf.mxu0
      %v493 = vpop.f32.mrf.mxu0
      %v494 = vpop.f32.mrf.mxu0
      %495 = vdwg.mxu0
      %v496 = vadd.f32 %v385, %v491
      %v497 = vld [vmem:[%s169] sm:$0x7]
      %s498 = scalar_lea.vmem %s1, 192
      %v499 = vld [vmem:[%s498] sm:$0xf]
      %v500 = vld [vmem:[%s498 + $0x4] sm:$0xf]
      %v501 = vld [vmem:[%s498 + $0x8] sm:$0xf]
      %v502 = vld [vmem:[%s498 + $0xc] sm:$0xf]
      %v503 = vld [vmem:[%s498 + $0x10] sm:$0xf]
      %v504 = vld [vmem:[%s498 + $0x14] sm:$0xf]
      %v505 = vld [vmem:[%s498 + $0x18] sm:$0xf]
      %v506 = vld [vmem:[%s498 + $0x1c] sm:$0xf]
      %v507 = vld [vmem:[%s498 + $0x20] sm:$0xf]
      %v508 = vld [vmem:[%s498 + $0x24] sm:$0xf]
      %v509 = vld [vmem:[%s498 + $0x28] sm:$0xf]
      %v510 = vld [vmem:[%s498 + $0x2c] sm:$0xf]
      %v511 = vld [vmem:[%s498 + $0x30] sm:$0xf]
      %v512 = vld [vmem:[%s498 + $0x34] sm:$0xf]
      %v513 = vld [vmem:[%s498 + $0x38] sm:$0xf]
      %v514 = vld [vmem:[%s498 + $0x3c] sm:$0xf]
      %v516 = vunpack.c.l.b16 %v497
      %v517 = vpack.c.b16 %v516, %v516
      %v519 = vshrl.u32 %v517, 16
      %v521 = vshll.u32 %v517, 16
      %v523 = vrot.slane %v521, 1
      %v524 = vor.u32 %v519, %v523
      %v542 = vunpack.c.l.b16 %v499
      %v543 = vunpack.c.l.b16 %v500
      %v544 = vunpack.c.l.b16 %v501
      %v545 = vunpack.c.l.b16 %v502
      %v546 = vunpack.c.l.b16 %v503
      %v547 = vunpack.c.l.b16 %v504
      %v548 = vunpack.c.l.b16 %v505
      %v549 = vunpack.c.l.b16 %v506
      %v550 = vunpack.c.l.b16 %v507
      %v551 = vunpack.c.l.b16 %v508
      %v552 = vunpack.c.l.b16 %v509
      %v553 = vunpack.c.l.b16 %v510
      %v554 = vunpack.c.l.b16 %v511
      %v555 = vunpack.c.l.b16 %v512
      %v556 = vunpack.c.l.b16 %v513
      %v557 = vunpack.c.l.b16 %v514
      %v558 = vpack.c.b16 %v543, %v542
      %v559 = vpack.c.b16 %v545, %v544
      %v560 = vpack.c.b16 %v547, %v546
      %v561 = vpack.c.b16 %v549, %v548
      %v562 = vpack.c.b16 %v551, %v550
      %v563 = vpack.c.b16 %v553, %v552
      %v564 = vpack.c.b16 %v555, %v554
      %v565 = vpack.c.b16 %v557, %v556
      %574 = vmatprep.subr.bf16.mxu0 0
      %575 = vmatpush1.bf16.msra.mxu0 %v565
      %576 = vmatprep.subr.bf16.mxu0 0
      %577 = vmatpush1.bf16.msra.mxu0 %v564
      %578 = vmatprep.subr.bf16.mxu0 0
      %579 = vmatpush1.bf16.msra.mxu0 %v563
      %580 = vmatprep.subr.bf16.mxu0 0
      %581 = vmatpush1.bf16.msra.mxu0 %v562
      %582 = vmatprep.subr.bf16.mxu0 0
      %583 = vmatpush1.bf16.msra.mxu0 %v561
      %584 = vmatprep.subr.bf16.mxu0 0
      %585 = vmatpush1.bf16.msra.mxu0 %v560
      %586 = vmatprep.subr.bf16.mxu0 0
      %587 = vmatpush1.bf16.msra.mxu0 %v559
      %588 = vmatprep.subr.bf16.mxu0 0
      %589 = vmatpush1.bf16.msra.mxu0 %v558
      %590 = vmatprep.subr.bf16.mxu0 0
      %591 = vmatpush2.bf16.msra.mxu0 0
      %592 = vmatprep.subr.bf16.mxu0 0
      %593 = vmatpush2.bf16.msra.mxu0 0
      %594 = vmatprep.subr.bf16.mxu0 0
      %595 = vmatpush2.bf16.msra.mxu0 0
      %596 = vmatprep.subr.bf16.mxu0 0
      %597 = vmatpush2.bf16.msra.mxu0 0
      %598 = vmatprep.subr.bf16.mxu0 0
      %599 = vmatpush2.bf16.msra.mxu0 0
      %600 = vmatprep.subr.bf16.mxu0 0
      %601 = vmatpush2.bf16.msra.mxu0 0
      %602 = vmatprep.subr.bf16.mxu0 0
      %603 = vmatpush2.bf16.msra.mxu0 0
      %604 = vmatprep.subr.bf16.mxu0 0
      %605 = vmatpush2.bf16.msra.mxu0 0
      %606 = vmatprep.mubr.bf16.mxu0 0
      %607 = vmatmul.mubr.bf16.gmra.mxu0 %v524
      %v608 = vpop.f32.mrf.mxu0
      %v609 = vadd.f32 0.0, %v608
      %v610 = vpop.f32.mrf.mxu0
      %v611 = vpop.f32.mrf.mxu0
      %v612 = vpop.f32.mrf.mxu0
      %613 = vdwg.mxu0
      %v614 = vadd.f32 %v496, %v609
      %v615 = vld [vmem:[%s169 + $0x4] sm:$0x7]
      %s616 = scalar_lea.vmem %s1, 256
      %v617 = vld [vmem:[%s616] sm:$0xf]
      %v618 = vld [vmem:[%s616 + $0x4] sm:$0xf]
      %v619 = vld [vmem:[%s616 + $0x8] sm:$0xf]
      %v620 = vld [vmem:[%s616 + $0xc] sm:$0xf]
      %v621 = vld [vmem:[%s616 + $0x10] sm:$0xf]
      %v622 = vld [vmem:[%s616 + $0x14] sm:$0xf]
      %v623 = vld [vmem:[%s616 + $0x18] sm:$0xf]
      %v624 = vld [vmem:[%s616 + $0x1c] sm:$0xf]
      %v625 = vld [vmem:[%s616 + $0x20] sm:$0xf]
      %v626 = vld [vmem:[%s616 + $0x24] sm:$0xf]
      %v627 = vld [vmem:[%s616 + $0x28] sm:$0xf]
      %v628 = vld [vmem:[%s616 + $0x2c] sm:$0xf]
      %v629 = vld [vmem:[%s616 + $0x30] sm:$0xf]
      %v630 = vld [vmem:[%s616 + $0x34] sm:$0xf]
      %v631 = vld [vmem:[%s616 + $0x38] sm:$0xf]
      %v632 = vld [vmem:[%s616 + $0x3c] sm:$0xf]
      %v634 = vunpack.c.l.b16 %v615
      %v635 = vpack.c.b16 %v634, %v634
      %v637 = vshrl.u32 %v635, 16
      %v639 = vshll.u32 %v635, 16
      %v641 = vrot.slane %v639, 1
      %v642 = vor.u32 %v637, %v641
      %v660 = vunpack.c.l.b16 %v617
      %v661 = vunpack.c.l.b16 %v618
      %v662 = vunpack.c.l.b16 %v619
      %v663 = vunpack.c.l.b16 %v620
      %v664 = vunpack.c.l.b16 %v621
      %v665 = vunpack.c.l.b16 %v622
      %v666 = vunpack.c.l.b16 %v623
      %v667 = vunpack.c.l.b16 %v624
      %v668 = vunpack.c.l.b16 %v625
      %v669 = vunpack.c.l.b16 %v626
      %v670 = vunpack.c.l.b16 %v627
      %v671 = vunpack.c.l.b16 %v628
      %v672 = vunpack.c.l.b16 %v629
      %v673 = vunpack.c.l.b16 %v630
      %v674 = vunpack.c.l.b16 %v631
      %v675 = vunpack.c.l.b16 %v632
      %v676 = vpack.c.b16 %v661, %v660
      %v677 = vpack.c.b16 %v663, %v662
      %v678 = vpack.c.b16 %v665, %v664
      %v679 = vpack.c.b16 %v667, %v666
      %v680 = vpack.c.b16 %v669, %v668
      %v681 = vpack.c.b16 %v671, %v670
      %v682 = vpack.c.b16 %v673, %v672
      %v683 = vpack.c.b16 %v675, %v674
      %692 = vmatprep.subr.bf16.mxu0 0
      %693 = vmatpush1.bf16.msra.mxu0 %v683
      %694 = vmatprep.subr.bf16.mxu0 0
      %695 = vmatpush1.bf16.msra.mxu0 %v682
      %696 = vmatprep.subr.bf16.mxu0 0
      %697 = vmatpush1.bf16.msra.mxu0 %v681
      %698 = vmatprep.subr.bf16.mxu0 0
      %699 = vmatpush1.bf16.msra.mxu0 %v680
      %700 = vmatprep.subr.bf16.mxu0 0
      %701 = vmatpush1.bf16.msra.mxu0 %v679
      %702 = vmatprep.subr.bf16.mxu0 0
      %703 = vmatpush1.bf16.msra.mxu0 %v678
      %704 = vmatprep.subr.bf16.mxu0 0
      %705 = vmatpush1.bf16.msra.mxu0 %v677
      %706 = vmatprep.subr.bf16.mxu0 0
      %707 = vmatpush1.bf16.msra.mxu0 %v676
      %708 = vmatprep.subr.bf16.mxu0 0
      %709 = vmatpush2.bf16.msra.mxu0 0
      %710 = vmatprep.subr.bf16.mxu0 0
      %711 = vmatpush2.bf16.msra.mxu0 0
      %712 = vmatprep.subr.bf16.mxu0 0
      %713 = vmatpush2.bf16.msra.mxu0 0
      %714 = vmatprep.subr.bf16.mxu0 0
      %715 = vmatpush2.bf16.msra.mxu0 0
      %716 = vmatprep.subr.bf16.mxu0 0
      %717 = vmatpush2.bf16.msra.mxu0 0
      %718 = vmatprep.subr.bf16.mxu0 0
      %719 = vmatpush2.bf16.msra.mxu0 0
      %720 = vmatprep.subr.bf16.mxu0 0
      %721 = vmatpush2.bf16.msra.mxu0 0
      %722 = vmatprep.subr.bf16.mxu0 0
      %723 = vmatpush2.bf16.msra.mxu0 0
      %724 = vmatprep.mubr.bf16.mxu0 0
      %725 = vmatmul.mubr.bf16.gmra.mxu0 %v642
      %v726 = vpop.f32.mrf.mxu0
      %v727 = vadd.f32 0.0, %v726
      %v728 = vpop.f32.mrf.mxu0
      %v729 = vpop.f32.mrf.mxu0
      %v730 = vpop.f32.mrf.mxu0
      %731 = vdwg.mxu0
      %v732 = vadd.f32 %v614, %v727
      %v734 = vlaneseq
      %v735 = vshrl.u32 %v734, 7
      %v736 = vsub.s32 0, %v735
      %v737 = vrot.slane %v178, %v736
      %v739 = vadd.f32 %v732, %v737
      %v740 = vmul.f32 %v739, 0.1
      %v741 = vmax.f32 %v739, %v740
      %v742 = vpack.c.bf16 %v741, %v741
      %743 = vst [vmem:[%s175] sm:$0x3] %v742
      %s744 = scalar_lea.vmem %s169, 12
      %v745 = vld [vmem:[%s744] sm:$0x3]
      %v746 = vld [vmem:[%s1] sm:$0xf]
      %v747 = vld [vmem:[%s1 + $0x4] sm:$0xf]
      %v748 = vld [vmem:[%s1 + $0x8] sm:$0xf]
      %v749 = vld [vmem:[%s1 + $0xc] sm:$0xf]
      %v750 = vld [vmem:[%s1 + $0x10] sm:$0xf]
      %v751 = vld [vmem:[%s1 + $0x14] sm:$0xf]
      %v752 = vld [vmem:[%s1 + $0x18] sm:$0xf]
      %v753 = vld [vmem:[%s1 + $0x1c] sm:$0xf]
      %v754 = vld [vmem:[%s1 + $0x20] sm:$0xf]
      %v755 = vld [vmem:[%s1 + $0x24] sm:$0xf]
      %v756 = vld [vmem:[%s1 + $0x28] sm:$0xf]
      %v757 = vld [vmem:[%s1 + $0x2c] sm:$0xf]
      %v758 = vld [vmem:[%s1 + $0x30] sm:$0xf]
      %v759 = vld [vmem:[%s1 + $0x34] sm:$0xf]
      %v760 = vld [vmem:[%s1 + $0x38] sm:$0xf]
      %v761 = vld [vmem:[%s1 + $0x3c] sm:$0xf]
      %v762 = vld [vmem:[%s744 + $0x4] sm:$0x3]
      %v763 = vld [vmem:[%s197] sm:$0xf]
      %v764 = vld [vmem:[%s197 + $0x4] sm:$0xf]
      %v765 = vld [vmem:[%s197 + $0x8] sm:$0xf]
      %v766 = vld [vmem:[%s197 + $0xc] sm:$0xf]
      %v767 = vld [vmem:[%s197 + $0x10] sm:$0xf]
      %v768 = vld [vmem:[%s197 + $0x14] sm:$0xf]
      %v769 = vld [vmem:[%s197 + $0x18] sm:$0xf]
      %v770 = vld [vmem:[%s197 + $0x1c] sm:$0xf]
      %v771 = vld [vmem:[%s197 + $0x20] sm:$0xf]
      %v772 = vld [vmem:[%s197 + $0x24] sm:$0xf]
      %v773 = vld [vmem:[%s197 + $0x28] sm:$0xf]
      %v774 = vld [vmem:[%s197 + $0x2c] sm:$0xf]
      %v775 = vld [vmem:[%s197 + $0x30] sm:$0xf]
      %v776 = vld [vmem:[%s197 + $0x34] sm:$0xf]
      %v777 = vld [vmem:[%s197 + $0x38] sm:$0xf]
      %v778 = vld [vmem:[%s197 + $0x3c] sm:$0xf]
      %v795 = vunpack.c.l.b16 %v763
      %v796 = vunpack.c.l.b16 %v764
      %v797 = vunpack.c.l.b16 %v765
      %v798 = vunpack.c.l.b16 %v766
      %v799 = vunpack.c.l.b16 %v767
      %v800 = vunpack.c.l.b16 %v768
      %v801 = vunpack.c.l.b16 %v769
      %v802 = vunpack.c.l.b16 %v770
      %v803 = vunpack.c.l.b16 %v771
      %v804 = vunpack.c.l.b16 %v772
      %v805 = vunpack.c.l.b16 %v773
      %v806 = vunpack.c.l.b16 %v774
      %v807 = vunpack.c.l.b16 %v775
      %v808 = vunpack.c.l.b16 %v776
      %v809 = vunpack.c.l.b16 %v777
      %v810 = vunpack.c.l.b16 %v778
      %v811 = vpack.c.b16 %v796, %v795
      %v812 = vpack.c.b16 %v798, %v797
      %v813 = vpack.c.b16 %v800, %v799
      %v814 = vpack.c.b16 %v802, %v801
      %v815 = vpack.c.b16 %v804, %v803
      %v816 = vpack.c.b16 %v806, %v805
      %v817 = vpack.c.b16 %v808, %v807
      %v818 = vpack.c.b16 %v810, %v809
      %827 = vmatprep.subr.bf16.mxu0 0
      %828 = vmatpush1.bf16.msra.mxu0 %v818
      %829 = vmatprep.subr.bf16.mxu0 0
      %830 = vmatpush1.bf16.msra.mxu0 %v817
      %831 = vmatprep.subr.bf16.mxu0 0
      %832 = vmatpush1.bf16.msra.mxu0 %v816
      %833 = vmatprep.subr.bf16.mxu0 0
      %834 = vmatpush1.bf16.msra.mxu0 %v815
      %835 = vmatprep.subr.bf16.mxu0 0
      %836 = vmatpush1.bf16.msra.mxu0 %v814
      %837 = vmatprep.subr.bf16.mxu0 0
      %838 = vmatpush1.bf16.msra.mxu0 %v813
      %839 = vmatprep.subr.bf16.mxu0 0
      %840 = vmatpush1.bf16.msra.mxu0 %v812
      %841 = vmatprep.subr.bf16.mxu0 0
      %842 = vmatpush1.bf16.msra.mxu0 %v811
      %843 = vmatprep.subr.bf16.mxu0 0
      %844 = vmatpush2.bf16.msra.mxu0 0
      %845 = vmatprep.subr.bf16.mxu0 0
      %846 = vmatpush2.bf16.msra.mxu0 0
      %847 = vmatprep.subr.bf16.mxu0 0
      %848 = vmatpush2.bf16.msra.mxu0 0
      %849 = vmatprep.subr.bf16.mxu0 0
      %850 = vmatpush2.bf16.msra.mxu0 0
      %851 = vmatprep.subr.bf16.mxu0 0
      %852 = vmatpush2.bf16.msra.mxu0 0
      %853 = vmatprep.subr.bf16.mxu0 0
      %854 = vmatpush2.bf16.msra.mxu0 0
      %855 = vmatprep.subr.bf16.mxu0 0
      %856 = vmatpush2.bf16.msra.mxu0 0
      %857 = vmatprep.subr.bf16.mxu0 0
      %858 = vmatpush2.bf16.msra.mxu0 0
      %859 = vmatprep.mubr.bf16.mxu0 0
      %860 = vmatmul.mubr.bf16.gmra.mxu0 %v762
      %v861 = vpop.f32.mrf.mxu0
      %v862 = vadd.f32 0.0, %v861
      %v863 = vpop.f32.mrf.mxu0
      %v864 = vpop.f32.mrf.mxu0
      %v865 = vpop.f32.mrf.mxu0
      %866 = vdwg.mxu0
      %v883 = vunpack.c.l.b16 %v746
      %v884 = vunpack.c.l.b16 %v747
      %v885 = vunpack.c.l.b16 %v748
      %v886 = vunpack.c.l.b16 %v749
      %v887 = vunpack.c.l.b16 %v750
      %v888 = vunpack.c.l.b16 %v751
      %v889 = vunpack.c.l.b16 %v752
      %v890 = vunpack.c.l.b16 %v753
      %v891 = vunpack.c.l.b16 %v754
      %v892 = vunpack.c.l.b16 %v755
      %v893 = vunpack.c.l.b16 %v756
      %v894 = vunpack.c.l.b16 %v757
      %v895 = vunpack.c.l.b16 %v758
      %v896 = vunpack.c.l.b16 %v759
      %v897 = vunpack.c.l.b16 %v760
      %v898 = vunpack.c.l.b16 %v761
      %v899 = vpack.c.b16 %v884, %v883
      %v900 = vpack.c.b16 %v886, %v885
      %v901 = vpack.c.b16 %v888, %v887
      %v902 = vpack.c.b16 %v890, %v889
      %v903 = vpack.c.b16 %v892, %v891
      %v904 = vpack.c.b16 %v894, %v893
      %v905 = vpack.c.b16 %v896, %v895
      %v906 = vpack.c.b16 %v898, %v897
      %915 = vmatprep.subr.bf16.mxu0 0
      %916 = vmatpush1.bf16.msra.mxu0 %v906
      %917 = vmatprep.subr.bf16.mxu0 0
      %918 = vmatpush1.bf16.msra.mxu0 %v905
      %919 = vmatprep.subr.bf16.mxu0 0
      %920 = vmatpush1.bf16.msra.mxu0 %v904
      %921 = vmatprep.subr.bf16.mxu0 0
      %922 = vmatpush1.bf16.msra.mxu0 %v903
      %923 = vmatprep.subr.bf16.mxu0 0
      %924 = vmatpush1.bf16.msra.mxu0 %v902
      %925 = vmatprep.subr.bf16.mxu0 0
      %926 = vmatpush1.bf16.msra.mxu0 %v901
      %927 = vmatprep.subr.bf16.mxu0 0
      %928 = vmatpush1.bf16.msra.mxu0 %v900
      %929 = vmatprep.subr.bf16.mxu0 0
      %930 = vmatpush1.bf16.msra.mxu0 %v899
      %931 = vmatprep.subr.bf16.mxu0 0
      %932 = vmatpush2.bf16.msra.mxu0 0
      %933 = vmatprep.subr.bf16.mxu0 0
      %934 = vmatpush2.bf16.msra.mxu0 0
      %935 = vmatprep.subr.bf16.mxu0 0
      %936 = vmatpush2.bf16.msra.mxu0 0
      %937 = vmatprep.subr.bf16.mxu0 0
      %938 = vmatpush2.bf16.msra.mxu0 0
      %939 = vmatprep.subr.bf16.mxu0 0
      %940 = vmatpush2.bf16.msra.mxu0 0
      %941 = vmatprep.subr.bf16.mxu0 0
      %942 = vmatpush2.bf16.msra.mxu0 0
      %943 = vmatprep.subr.bf16.mxu0 0
      %944 = vmatpush2.bf16.msra.mxu0 0
      %945 = vmatprep.subr.bf16.mxu0 0
      %946 = vmatpush2.bf16.msra.mxu0 0
      %947 = vmatprep.mubr.bf16.mxu0 0
      %948 = vmatmul.mubr.bf16.gmra.mxu0 %v745
      %v949 = vpop.f32.mrf.mxu0
      %v950 = vadd.f32 %v862, %v949
      %v951 = vpop.f32.mrf.mxu0
      %v952 = vpop.f32.mrf.mxu0
      %v953 = vpop.f32.mrf.mxu0
      %954 = vdwg.mxu0
      %v955 = vld [vmem:[%s744 + $0x8] sm:$0x3]
      %v956 = vld [vmem:[%s391] sm:$0xf]
      %v957 = vld [vmem:[%s391 + $0x4] sm:$0xf]
      %v958 = vld [vmem:[%s391 + $0x8] sm:$0xf]
      %v959 = vld [vmem:[%s391 + $0xc] sm:$0xf]
      %v960 = vld [vmem:[%s391 + $0x10] sm:$0xf]
      %v961 = vld [vmem:[%s391 + $0x14] sm:$0xf]
      %v962 = vld [vmem:[%s391 + $0x18] sm:$0xf]
      %v963 = vld [vmem:[%s391 + $0x1c] sm:$0xf]
      %v964 = vld [vmem:[%s391 + $0x20] sm:$0xf]
      %v965 = vld [vmem:[%s391 + $0x24] sm:$0xf]
      %v966 = vld [vmem:[%s391 + $0x28] sm:$0xf]
      %v967 = vld [vmem:[%s391 + $0x2c] sm:$0xf]
      %v968 = vld [vmem:[%s391 + $0x30] sm:$0xf]
      %v969 = vld [vmem:[%s391 + $0x34] sm:$0xf]
      %v970 = vld [vmem:[%s391 + $0x38] sm:$0xf]
      %v971 = vld [vmem:[%s391 + $0x3c] sm:$0xf]
      %v988 = vunpack.c.l.b16 %v956
      %v989 = vunpack.c.l.b16 %v957
      %v990 = vunpack.c.l.b16 %v958
      %v991 = vunpack.c.l.b16 %v959
      %v992 = vunpack.c.l.b16 %v960
      %v993 = vunpack.c.l.b16 %v961
      %v994 = vunpack.c.l.b16 %v962
      %v995 = vunpack.c.l.b16 %v963
      %v996 = vunpack.c.l.b16 %v964
      %v997 = vunpack.c.l.b16 %v965
      %v998 = vunpack.c.l.b16 %v966
      %v999 = vunpack.c.l.b16 %v967
      %v1000 = vunpack.c.l.b16 %v968
      %v1001 = vunpack.c.l.b16 %v969
      %v1002 = vunpack.c.l.b16 %v970
      %v1003 = vunpack.c.l.b16 %v971
      %v1004 = vpack.c.b16 %v989, %v988
      %v1005 = vpack.c.b16 %v991, %v990
      %v1006 = vpack.c.b16 %v993, %v992
      %v1007 = vpack.c.b16 %v995, %v994
      %v1008 = vpack.c.b16 %v997, %v996
      %v1009 = vpack.c.b16 %v999, %v998
      %v1010 = vpack.c.b16 %v1001, %v1000
      %v1011 = vpack.c.b16 %v1003, %v1002
      %1020 = vmatprep.subr.bf16.mxu0 0
      %1021 = vmatpush1.bf16.msra.mxu0 %v1011
      %1022 = vmatprep.subr.bf16.mxu0 0
      %1023 = vmatpush1.bf16.msra.mxu0 %v1010
      %1024 = vmatprep.subr.bf16.mxu0 0
      %1025 = vmatpush1.bf16.msra.mxu0 %v1009
      %1026 = vmatprep.subr.bf16.mxu0 0
      %1027 = vmatpush1.bf16.msra.mxu0 %v1008
      %1028 = vmatprep.subr.bf16.mxu0 0
      %1029 = vmatpush1.bf16.msra.mxu0 %v1007
      %1030 = vmatprep.subr.bf16.mxu0 0
      %1031 = vmatpush1.bf16.msra.mxu0 %v1006
      %1032 = vmatprep.subr.bf16.mxu0 0
      %1033 = vmatpush1.bf16.msra.mxu0 %v1005
      %1034 = vmatprep.subr.bf16.mxu0 0
      %1035 = vmatpush1.bf16.msra.mxu0 %v1004
      %1036 = vmatprep.subr.bf16.mxu0 0
      %1037 = vmatpush2.bf16.msra.mxu0 0
      %1038 = vmatprep.subr.bf16.mxu0 0
      %1039 = vmatpush2.bf16.msra.mxu0 0
      %1040 = vmatprep.subr.bf16.mxu0 0
      %1041 = vmatpush2.bf16.msra.mxu0 0
      %1042 = vmatprep.subr.bf16.mxu0 0
      %1043 = vmatpush2.bf16.msra.mxu0 0
      %1044 = vmatprep.subr.bf16.mxu0 0
      %1045 = vmatpush2.bf16.msra.mxu0 0
      %1046 = vmatprep.subr.bf16.mxu0 0
      %1047 = vmatpush2.bf16.msra.mxu0 0
      %1048 = vmatprep.subr.bf16.mxu0 0
      %1049 = vmatpush2.bf16.msra.mxu0 0
      %1050 = vmatprep.subr.bf16.mxu0 0
      %1051 = vmatpush2.bf16.msra.mxu0 0
      %1052 = vmatprep.mubr.bf16.mxu0 0
      %1053 = vmatmul.mubr.bf16.gmra.mxu0 %v955
      %v1054 = vpop.f32.mrf.mxu0
      %v1055 = vadd.f32 0.0, %v1054
      %v1056 = vpop.f32.mrf.mxu0
      %v1057 = vpop.f32.mrf.mxu0
      %v1058 = vpop.f32.mrf.mxu0
      %1059 = vdwg.mxu0
      %v1060 = vadd.f32 %v950, %v1055
      %v1061 = vld [vmem:[%s744] sm:$0x7]
      %v1062 = vld [vmem:[%s498] sm:$0xf]
      %v1063 = vld [vmem:[%s498 + $0x4] sm:$0xf]
      %v1064 = vld [vmem:[%s498 + $0x8] sm:$0xf]
      %v1065 = vld [vmem:[%s498 + $0xc] sm:$0xf]
      %v1066 = vld [vmem:[%s498 + $0x10] sm:$0xf]
      %v1067 = vld [vmem:[%s498 + $0x14] sm:$0xf]
      %v1068 = vld [vmem:[%s498 + $0x18] sm:$0xf]
      %v1069 = vld [vmem:[%s498 + $0x1c] sm:$0xf]
      %v1070 = vld [vmem:[%s498 + $0x20] sm:$0xf]
      %v1071 = vld [vmem:[%s498 + $0x24] sm:$0xf]
      %v1072 = vld [vmem:[%s498 + $0x28] sm:$0xf]
      %v1073 = vld [vmem:[%s498 + $0x2c] sm:$0xf]
      %v1074 = vld [vmem:[%s498 + $0x30] sm:$0xf]
      %v1075 = vld [vmem:[%s498 + $0x34] sm:$0xf]
      %v1076 = vld [vmem:[%s498 + $0x38] sm:$0xf]
      %v1077 = vld [vmem:[%s498 + $0x3c] sm:$0xf]
      %v1079 = vunpack.c.l.b16 %v1061
      %v1080 = vpack.c.b16 %v1079, %v1079
      %v1082 = vshrl.u32 %v1080, 16
      %v1084 = vshll.u32 %v1080, 16
      %v1086 = vrot.slane %v1084, 1
      %v1087 = vor.u32 %v1082, %v1086
      %v1105 = vunpack.c.l.b16 %v1062
      %v1106 = vunpack.c.l.b16 %v1063
      %v1107 = vunpack.c.l.b16 %v1064
      %v1108 = vunpack.c.l.b16 %v1065
      %v1109 = vunpack.c.l.b16 %v1066
      %v1110 = vunpack.c.l.b16 %v1067
      %v1111 = vunpack.c.l.b16 %v1068
      %v1112 = vunpack.c.l.b16 %v1069
      %v1113 = vunpack.c.l.b16 %v1070
      %v1114 = vunpack.c.l.b16 %v1071
      %v1115 = vunpack.c.l.b16 %v1072
      %v1116 = vunpack.c.l.b16 %v1073
      %v1117 = vunpack.c.l.b16 %v1074
      %v1118 = vunpack.c.l.b16 %v1075
      %v1119 = vunpack.c.l.b16 %v1076
      %v1120 = vunpack.c.l.b16 %v1077
      %v1121 = vpack.c.b16 %v1106, %v1105
      %v1122 = vpack.c.b16 %v1108, %v1107
      %v1123 = vpack.c.b16 %v1110, %v1109
      %v1124 = vpack.c.b16 %v1112, %v1111
      %v1125 = vpack.c.b16 %v1114, %v1113
      %v1126 = vpack.c.b16 %v1116, %v1115
      %v1127 = vpack.c.b16 %v1118, %v1117
      %v1128 = vpack.c.b16 %v1120, %v1119
      %1137 = vmatprep.subr.bf16.mxu0 0
      %1138 = vmatpush1.bf16.msra.mxu0 %v1128
      %1139 = vmatprep.subr.bf16.mxu0 0
      %1140 = vmatpush1.bf16.msra.mxu0 %v1127
      %1141 = vmatprep.subr.bf16.mxu0 0
      %1142 = vmatpush1.bf16.msra.mxu0 %v1126
      %1143 = vmatprep.subr.bf16.mxu0 0
      %1144 = vmatpush1.bf16.msra.mxu0 %v1125
      %1145 = vmatprep.subr.bf16.mxu0 0
      %1146 = vmatpush1.bf16.msra.mxu0 %v1124
      %1147 = vmatprep.subr.bf16.mxu0 0
      %1148 = vmatpush1.bf16.msra.mxu0 %v1123
      %1149 = vmatprep.subr.bf16.mxu0 0
      %1150 = vmatpush1.bf16.msra.mxu0 %v1122
      %1151 = vmatprep.subr.bf16.mxu0 0
      %1152 = vmatpush1.bf16.msra.mxu0 %v1121
      %1153 = vmatprep.subr.bf16.mxu0 0
      %1154 = vmatpush2.bf16.msra.mxu0 0
      %1155 = vmatprep.subr.bf16.mxu0 0
      %1156 = vmatpush2.bf16.msra.mxu0 0
      %1157 = vmatprep.subr.bf16.mxu0 0
      %1158 = vmatpush2.bf16.msra.mxu0 0
      %1159 = vmatprep.subr.bf16.mxu0 0
      %1160 = vmatpush2.bf16.msra.mxu0 0
      %1161 = vmatprep.subr.bf16.mxu0 0
      %1162 = vmatpush2.bf16.msra.mxu0 0
      %1163 = vmatprep.subr.bf16.mxu0 0
      %1164 = vmatpush2.bf16.msra.mxu0 0
      %1165 = vmatprep.subr.bf16.mxu0 0
      %1166 = vmatpush2.bf16.msra.mxu0 0
      %1167 = vmatprep.subr.bf16.mxu0 0
      %1168 = vmatpush2.bf16.msra.mxu0 0
      %1169 = vmatprep.mubr.bf16.mxu0 0
      %1170 = vmatmul.mubr.bf16.gmra.mxu0 %v1087
      %v1171 = vpop.f32.mrf.mxu0
      %v1172 = vadd.f32 0.0, %v1171
      %v1173 = vpop.f32.mrf.mxu0
      %v1174 = vpop.f32.mrf.mxu0
      %v1175 = vpop.f32.mrf.mxu0
      %1176 = vdwg.mxu0
      %v1177 = vadd.f32 %v1060, %v1172
      %v1178 = vld [vmem:[%s744 + $0x4] sm:$0x7]
      %v1179 = vld [vmem:[%s616] sm:$0xf]
      %v1180 = vld [vmem:[%s616 + $0x4] sm:$0xf]
      %v1181 = vld [vmem:[%s616 + $0x8] sm:$0xf]
      %v1182 = vld [vmem:[%s616 + $0xc] sm:$0xf]
      %v1183 = vld [vmem:[%s616 + $0x10] sm:$0xf]
      %v1184 = vld [vmem:[%s616 + $0x14] sm:$0xf]
      %v1185 = vld [vmem:[%s616 + $0x18] sm:$0xf]
      %v1186 = vld [vmem:[%s616 + $0x1c] sm:$0xf]
      %v1187 = vld [vmem:[%s616 + $0x20] sm:$0xf]
      %v1188 = vld [vmem:[%s616 + $0x24] sm:$0xf]
      %v1189 = vld [vmem:[%s616 + $0x28] sm:$0xf]
      %v1190 = vld [vmem:[%s616 + $0x2c] sm:$0xf]
      %v1191 = vld [vmem:[%s616 + $0x30] sm:$0xf]
      %v1192 = vld [vmem:[%s616 + $0x34] sm:$0xf]
      %v1193 = vld [vmem:[%s616 + $0x38] sm:$0xf]
      %v1194 = vld [vmem:[%s616 + $0x3c] sm:$0xf]
      %v1196 = vunpack.c.l.b16 %v1178
      %v1197 = vpack.c.b16 %v1196, %v1196
      %v1199 = vshrl.u32 %v1197, 16
      %v1201 = vshll.u32 %v1197, 16
      %v1203 = vrot.slane %v1201, 1
      %v1204 = vor.u32 %v1199, %v1203
      %v1222 = vunpack.c.l.b16 %v1179
      %v1223 = vunpack.c.l.b16 %v1180
      %v1224 = vunpack.c.l.b16 %v1181
      %v1225 = vunpack.c.l.b16 %v1182
      %v1226 = vunpack.c.l.b16 %v1183
      %v1227 = vunpack.c.l.b16 %v1184
      %v1228 = vunpack.c.l.b16 %v1185
      %v1229 = vunpack.c.l.b16 %v1186
      %v1230 = vunpack.c.l.b16 %v1187
      %v1231 = vunpack.c.l.b16 %v1188
      %v1232 = vunpack.c.l.b16 %v1189
      %v1233 = vunpack.c.l.b16 %v1190
      %v1234 = vunpack.c.l.b16 %v1191
      %v1235 = vunpack.c.l.b16 %v1192
      %v1236 = vunpack.c.l.b16 %v1193
      %v1237 = vunpack.c.l.b16 %v1194
      %v1238 = vpack.c.b16 %v1223, %v1222
      %v1239 = vpack.c.b16 %v1225, %v1224
      %v1240 = vpack.c.b16 %v1227, %v1226
      %v1241 = vpack.c.b16 %v1229, %v1228
      %v1242 = vpack.c.b16 %v1231, %v1230
      %v1243 = vpack.c.b16 %v1233, %v1232
      %v1244 = vpack.c.b16 %v1235, %v1234
      %v1245 = vpack.c.b16 %v1237, %v1236
      %1254 = vmatprep.subr.bf16.mxu0 0
      %1255 = vmatpush1.bf16.msra.mxu0 %v1245
      %1256 = vmatprep.subr.bf16.mxu0 0
      %1257 = vmatpush1.bf16.msra.mxu0 %v1244
      %1258 = vmatprep.subr.bf16.mxu0 0
      %1259 = vmatpush1.bf16.msra.mxu0 %v1243
      %1260 = vmatprep.subr.bf16.mxu0 0
      %1261 = vmatpush1.bf16.msra.mxu0 %v1242
      %1262 = vmatprep.subr.bf16.mxu0 0
      %1263 = vmatpush1.bf16.msra.mxu0 %v1241
      %1264 = vmatprep.subr.bf16.mxu0 0
      %1265 = vmatpush1.bf16.msra.mxu0 %v1240
      %1266 = vmatprep.subr.bf16.mxu0 0
      %1267 = vmatpush1.bf16.msra.mxu0 %v1239
      %1268 = vmatprep.subr.bf16.mxu0 0
      %1269 = vmatpush1.bf16.msra.mxu0 %v1238
      %1270 = vmatprep.subr.bf16.mxu0 0
      %1271 = vmatpush2.bf16.msra.mxu0 0
      %1272 = vmatprep.subr.bf16.mxu0 0
      %1273 = vmatpush2.bf16.msra.mxu0 0
      %1274 = vmatprep.subr.bf16.mxu0 0
      %1275 = vmatpush2.bf16.msra.mxu0 0
      %1276 = vmatprep.subr.bf16.mxu0 0
      %1277 = vmatpush2.bf16.msra.mxu0 0
      %1278 = vmatprep.subr.bf16.mxu0 0
      %1279 = vmatpush2.bf16.msra.mxu0 0
      %1280 = vmatprep.subr.bf16.mxu0 0
      %1281 = vmatpush2.bf16.msra.mxu0 0
      %1282 = vmatprep.subr.bf16.mxu0 0
      %1283 = vmatpush2.bf16.msra.mxu0 0
      %1284 = vmatprep.subr.bf16.mxu0 0
      %1285 = vmatpush2.bf16.msra.mxu0 0
      %1286 = vmatprep.mubr.bf16.mxu0 0
      %1287 = vmatmul.mubr.bf16.gmra.mxu0 %v1204
      %v1288 = vpop.f32.mrf.mxu0
      %v1289 = vadd.f32 0.0, %v1288
      %v1290 = vpop.f32.mrf.mxu0
      %v1291 = vpop.f32.mrf.mxu0
      %v1292 = vpop.f32.mrf.mxu0
      %1293 = vdwg.mxu0
      %v1294 = vadd.f32 %v1177, %v1289
      %v1295 = vadd.f32 %v1294, %v737
      %v1296 = vmul.f32 %v1295, 0.1
      %v1297 = vmax.f32 %v1295, %v1296
      %v1298 = vpack.c.bf16 %v1297, %v1297
      %s1299 = scalar_lea.vmem %s175, 2
      %1300 = vst [vmem:[%s1299] sm:$0x3] %v1298
      %s1301 = smul.u32 2, %s14
      %p1302 = scmp.lt.s32.totalorder %s1301, 3
      %s1303 = scalar_select %p1302, %s1301, 3
      %s1304 = smul.addr %s1303, 2
      %s1305 = scalar_lea.vmem %s3, %s1304
      // Predicated region
      $region33: #{multi_periodic_discriminator_forward.9} parent=31 // pred_check
        %p1306 = pneg %p100
      $region34: #{multi_periodic_discriminator_forward.9} parent=31 // pred_check_branch
        %1308 = sbr.rel (%p1306) target = $region36
      $region35: #{multi_periodic_discriminator_forward.9} parent=31 // pred_region
        %s1309 = smul.u32 2, %s14
      $region36: #{multi_periodic_discriminator_forward.9} parent=31 // pred_fallthru
        _
    $region32: #{multi_periodic_discriminator_forward.9} parent=5 // pred_fallthru
      _
    %p1310 = scmp.le.s32.totalorder 2, %s9
    // Predicated region
    $region37: #{multi_periodic_discriminator_forward.9} parent=5 // pred_check
      %p1311 = pneg %p1310
    $region38: #{multi_periodic_discriminator_forward.9} parent=5 // pred_check_branch
      %1313 = sbr.rel (%p1311) target = $region40
    $region39: #{multi_periodic_discriminator_forward.9} parent=5 // pred_region
      %s1314 = ssub.s32 %s9, 2
      // Predicated region
      $region41: #{multi_periodic_discriminator_forward.9} parent=39 // pred_check
        %p1315 = pneg %p106
      $region42: #{multi_periodic_discriminator_forward.9} parent=39 // pred_check_branch
        %1317 = sbr.rel (%p1315) target = $region44
      $region43: #{multi_periodic_discriminator_forward.9} parent=39 // pred_region
        %s1318 = smul.u32 2, %s15
        %p1319 = scmp.lt.s32.totalorder %s1318, 3
        %s1320 = scalar_select %p1319, %s1318, 3
        %s1321 = smul.addr %s1320, 2
        %s1322 = scalar_lea.vmem %s3, %s1321
      $region44: #{multi_periodic_discriminator_forward.9} parent=39 // pred_fallthru
        _
    $region40: #{multi_periodic_discriminator_forward.9} parent=5 // pred_fallthru
      _
  $region6: #{multi_periodic_discriminator_forward.9} parent=0 // loop_footer
    %s13 = sadd.s32 1, %s9
  $region7: #{multi_periodic_discriminator_forward.9} parent=0 // loop_footer_branch
    %8 = sbr.rel target = $region3
  $region8: #{multi_periodic_discriminator_forward.9} parent=0 // loop_exit
    _

// kernel: multi_periodic_discriminator_forward.11
$region0: #{multi_periodic_discriminator_forward.11}
  #allocation0 [shape = 'u32[]', space=smem, size = 0x4, offset = 0x4, fixed_abs, tag = 'smem constant byte address 0x4 - core index']
  #allocation1 [shape = 'u32[144,128]{1,0:T(1,128)}', space=vmem, size = 0x12000, scoped, tag = 'internal scratch']
  %s0 = inlined_call_operand.vmem [shape: bf16[4,4,128], index: 0, kind: input, shape index: {}]
  %s1 = inlined_call_operand.vmem [shape: bf16[3,128,128], index: 1, kind: input, shape index: {}]
  %s2 = inlined_call_operand.vmem [shape: f32[1,128], index: 2, kind: input, shape index: {}]
  %s3 = inlined_call_operand.vmem [shape: f32[4,2,128], index: 3, kind: output, shape index: {}]
  %s4 = sld [smem:[#allocation0]]
  $region45: #{multi_periodic_discriminator_forward.11} parent=0
    _
  %s6 = ssub.s32 1, %s4
  %s7 = scalar_select 0, %s6, %s4
  loop: start=0, step=1, limit=4
  $region2: #{multi_periodic_discriminator_forward.11} parent=0 // loop_pre_header
    _
  $region3: #{multi_periodic_discriminator_forward.11} parent=0 // loop_header
    %s9 = sphi 0, %s13
    %p10 = scmp.ge.s32.totalorder %s9, 4
    %s19 = sphi 0, %s21
    %s22 = sphi 0, %s19
    %s23 = sphi 0, %s22
    %s39 = sphi 0, %s23
    %s43 = sphi 0, %s43
    %s45 = sphi 0, %s43
    %s46 = sphi 0, %s45
    %s60 = sphi 0, %s46
    %s64 = sphi 0, %s64
    %s66 = sphi 0, %s64
    %s67 = sphi 0, %s66
    %s81 = sphi 0, %s67
    %s87 = sphi 0, %s89
    %s90 = sphi 0, %s87
    %s91 = sphi 0, %s90
    %s107 = sphi 0, %s91
  $region4: #{multi_periodic_discriminator_forward.11} parent=0 // loop_header_branch
    %12 = sbr.rel (%p10) target = $region8
  $region5: #{multi_periodic_discriminator_forward.11} parent=0 // loop_body
    %s14 = ssub.s32 %s9, 1
    %s15 = ssub.s32 %s9, 2
    %s16 = sadd.s32 %s9, 1
    %s17 = ssub.s32 %s9, %s16
    %p18 = scmp.eq.s32.totalorder %s17, 0
    %s20 = sadd.s32 %s19, 1
    %s21 = scalar_select %p18, %s19, %s20
    %p24 = pneg %p18
    %p25 = scmp.eq.s32.totalorder %s9, 1
    %p26 = por %p24, %p25
    %p27 = scmp.ne.s32.totalorder %s19, %s22
    %p28 = scmp.eq.s32.totalorder %s9, 0
    %p29 = por %p27, %p28
    %p30 = scmp.ne.s32.totalorder %s19, %s22
    %p31 = scmp.eq.s32.totalorder %s14, 1
    %p32 = por %p30, %p31
    %p33 = scmp.ne.s32.totalorder %s22, %s23
    %p34 = scmp.eq.s32.totalorder %s14, 0
    %p35 = por %p33, %p34
    %p36 = scmp.ne.s32.totalorder %s22, %s23
    %p37 = scmp.eq.s32.totalorder %s15, 1
    %p38 = por %p36, %p37
    %p40 = scmp.ne.s32.totalorder %s23, %s39
    %p41 = scmp.eq.s32.totalorder %s15, 0
    %p42 = por %p40, %p41
    %s44 = sadd.s32 %s43, 1
    %p47 = scmp.eq.s32.totalorder %s9, 1
    %p48 = scmp.ne.s32.totalorder %s43, %s45
    %p49 = scmp.eq.s32.totalorder %s9, 0
    %p50 = por %p48, %p49
    %p51 = scmp.ne.s32.totalorder %s43, %s45
    %p52 = scmp.eq.s32.totalorder %s14, 1
    %p53 = por %p51, %p52
    %p54 = scmp.ne.s32.totalorder %s45, %s46
    %p55 = scmp.eq.s32.totalorder %s14, 0
    %p56 = por %p54, %p55
    %p57 = scmp.ne.s32.totalorder %s45, %s46
    %p58 = scmp.eq.s32.totalorder %s15, 1
    %p59 = por %p57, %p58
    %p61 = scmp.ne.s32.totalorder %s46, %s60
    %p62 = scmp.eq.s32.totalorder %s15, 0
    %p63 = por %p61, %p62
    %s65 = sadd.s32 %s64, 1
    %p68 = scmp.eq.s32.totalorder %s9, 1
    %p69 = scmp.ne.s32.totalorder %s64, %s66
    %p70 = scmp.eq.s32.totalorder %s9, 0
    %p71 = por %p69, %p70
    %p72 = scmp.ne.s32.totalorder %s64, %s66
    %p73 = scmp.eq.s32.totalorder %s14, 1
    %p74 = por %p72, %p73
    %p75 = scmp.ne.s32.totalorder %s66, %s67
    %p76 = scmp.eq.s32.totalorder %s14, 0
    %p77 = por %p75, %p76
    %p78 = scmp.ne.s32.totalorder %s66, %s67
    %p79 = scmp.eq.s32.totalorder %s15, 1
    %p80 = por %p78, %p79
    %p82 = scmp.ne.s32.totalorder %s67, %s81
    %p83 = scmp.eq.s32.totalorder %s15, 0
    %p84 = por %p82, %p83
    %s85 = ssub.s32 %s9, %s16
    %p86 = scmp.eq.s32.totalorder %s85, 0
    %s88 = sadd.s32 %s87, 1
    %s89 = scalar_select %p86, %s87, %s88
    %p92 = pneg %p86
    %p93 = scmp.eq.s32.totalorder %s9, 1
    %p94 = por %p92, %p93
    %p95 = scmp.ne.s32.totalorder %s87, %s90
    %p96 = scmp.eq.s32.totalorder %s9, 0
    %p97 = por %p95, %p96
    %p98 = scmp.ne.s32.totalorder %s87, %s90
    %p99 = scmp.eq.s32.totalorder %s14, 1
    %p100 = por %p98, %p99
    %p101 = scmp.ne.s32.totalorder %s90, %s91
    %p102 = scmp.eq.s32.totalorder %s14, 0
    %p103 = por %p101, %p102
    %p104 = scmp.ne.s32.totalorder %s90, %s91
    %p105 = scmp.eq.s32.totalorder %s15, 1
    %p106 = por %p104, %p105
    %p108 = scmp.ne.s32.totalorder %s91, %s107
    %p109 = scmp.eq.s32.totalorder %s15, 0
    %p110 = por %p108, %p109
    %p111 = scmp.le.s32.totalorder 1, %s9
    %p112 = scmp.lt.s32.totalorder %s9, 3
    %p113 = pnand %p111, %p112
    %p114 = pneg %p113
    // Predicated region
    $region9: #{multi_periodic_discriminator_forward.11} parent=5 // pred_check
      _
    $region10: #{multi_periodic_discriminator_forward.11} parent=5 // pred_check_branch
      %116 = sbr.rel (%p113) target = $region12
    $region11: #{multi_periodic_discriminator_forward.11} parent=5 // pred_region
      %s117 = ssub.s32 %s9, 1
      // Predicated region
      $region13: #{multi_periodic_discriminator_forward.11} parent=11 // pred_check
        %p118 = pneg %p56
      $region14: #{multi_periodic_discriminator_forward.11} parent=11 // pred_check_branch
        %120 = sbr.rel (%p118) target = $region16
      $region15: #{multi_periodic_discriminator_forward.11} parent=11 // pred_region
        _
      $region16: #{multi_periodic_discriminator_forward.11} parent=11 // pred_fallthru
        _
      // Predicated region
      $region17: #{multi_periodic_discriminator_forward.11} parent=11 // pred_check
        %p121 = pneg %p77
      $region18: #{multi_periodic_discriminator_forward.11} parent=11 // pred_check_branch
        %123 = sbr.rel (%p121) target = $region20
      $region19: #{multi_periodic_discriminator_forward.11} parent=11 // pred_region
        _
      $region20: #{multi_periodic_discriminator_forward.11} parent=11 // pred_fallthru
        _
    $region12: #{multi_periodic_discriminator_forward.11} parent=5 // pred_fallthru
      _
    %p124 = scmp.lt.s32.totalorder %s9, 2
    // Predicated region
    $region21: #{multi_periodic_discriminator_forward.11} parent=5 // pred_check
      %p125 = pneg %p124
    $region22: #{multi_periodic_discriminator_forward.11} parent=5 // pred_check_branch
      %127 = sbr.rel (%p125) target = $region24
    $region23: #{multi_periodic_discriminator_forward.11} parent=5 // pred_region
      // Predicated region
      $region25: #{multi_periodic_discriminator_forward.11} parent=23 // pred_check
        %p128 = pneg %p29
      $region26: #{multi_periodic_discriminator_forward.11} parent=23 // pred_check_branch
        %130 = sbr.rel (%p128) target = $region28
      $region27: #{multi_periodic_discriminator_forward.11} parent=23 // pred_region
        %s131 = smul.u32 2, %s9
        %p132 = scmp.lt.s32.totalorder %s131, 3
        %s133 = scalar_select %p132, %s131, 3
        %s134 = smul.addr %s133, 2
        %s135 = scalar_lea.vmem %s0, %s134
        %s136 = smul.u32 2, %s9
      $region28: #{multi_periodic_discriminator_forward.11} parent=23 // pred_fallthru
        _
    $region24: #{multi_periodic_discriminator_forward.11} parent=5 // pred_fallthru
      _
    %p137 = scmp.le.s32.totalorder 1, %s9
    %p138 = scmp.lt.s32.totalorder %s9, 3
    %p139 = pnand %p137, %p138
    %p140 = pneg %p139
    // Predicated region
    $region29: #{multi_periodic_discriminator_forward.11} parent=5 // pred_check
      _
    $region30: #{multi_periodic_discriminator_forward.11} parent=5 // pred_check_branch
      %142 = sbr.rel (%p139) target = $region32
    $region31: #{multi_periodic_discriminator_forward.11} parent=5 // pred_region
      %s143 = ssub.s32 %s9, 1
      %s144 = smul.u32 2, %s14
      %p145 = scmp.lt.s32.totalorder %s144, 3
      %s146 = scalar_select %p145, %s144, 3
      %s147 = smul.addr %s146, 2
      %s148 = scalar_lea.vmem %s0, %s147
      %p149 = pneg %p35
      %p150 = pneg %p32
      %p151 = pneg %p56
      %p152 = pneg %p53
      %p153 = pneg %p77
      %p154 = pneg %p74
      %p155 = pneg %p103
      %p156 = pneg %p100
      %s157 = smul.u32 2, %s14
      %p158 = scmp.lt.s32.totalorder %s157, 3
      %s159 = scalar_select %p158, %s157, 3
      %s160 = smul.addr %s159, 2
      %s161 = scalar_lea.vmem %s3, %s160
      %s162 = smul.u32 2, %s14
      %p163 = scmp.lt.s32.totalorder %s162, 3
      %s164 = scalar_select %p163, %s162, 3
      %s165 = smul.addr %s164, 2
      %s166 = scalar_lea.vmem %s0, %s165
      %s167 = smul.u32 2, %s14
      %s168 = smul.u32 2, %s14
      %p169 = scmp.lt.s32.totalorder %s168, 3
      %s170 = scalar_select %p169, %s168, 3
      %s171 = smul.addr %s170, 2
      %s172 = scalar_lea.vmem %s3, %s171
      %s173 = smul.u32 2, %s14
      %v175 = vld [vmem:[%s2] sm:$0x1]
      %v176 = vld [vmem:[%s166] sm:$0x1]
      %v177 = vld [vmem:[%s1] sm:$0xf]
      %v178 = vld [vmem:[%s1 + $0x4] sm:$0xf]
      %v179 = vld [vmem:[%s1 + $0x8] sm:$0xf]
      %v180 = vld [vmem:[%s1 + $0xc] sm:$0xf]
      %v181 = vld [vmem:[%s1 + $0x10] sm:$0xf]
      %v182 = vld [vmem:[%s1 + $0x14] sm:$0xf]
      %v183 = vld [vmem:[%s1 + $0x18] sm:$0xf]
      %v184 = vld [vmem:[%s1 + $0x1c] sm:$0xf]
      %v185 = vld [vmem:[%s1 + $0x20] sm:$0xf]
      %v186 = vld [vmem:[%s1 + $0x24] sm:$0xf]
      %v187 = vld [vmem:[%s1 + $0x28] sm:$0xf]
      %v188 = vld [vmem:[%s1 + $0x2c] sm:$0xf]
      %v189 = vld [vmem:[%s1 + $0x30] sm:$0xf]
      %v190 = vld [vmem:[%s1 + $0x34] sm:$0xf]
      %v191 = vld [vmem:[%s1 + $0x38] sm:$0xf]
      %v192 = vld [vmem:[%s1 + $0x3c] sm:$0xf]
      %v193 = vld [vmem:[%s166] sm:$0x3]
      %s194 = scalar_lea.vmem %s1, 64
      %v195 = vld [vmem:[%s194] sm:$0xf]
      %v196 = vld [vmem:[%s194 + $0x4] sm:$0xf]
      %v197 = vld [vmem:[%s194 + $0x8] sm:$0xf]
      %v198 = vld [vmem:[%s194 + $0xc] sm:$0xf]
      %v199 = vld [vmem:[%s194 + $0x10] sm:$0xf]
      %v200 = vld [vmem:[%s194 + $0x14] sm:$0xf]
      %v201 = vld [vmem:[%s194 + $0x18] sm:$0xf]
      %v202 = vld [vmem:[%s194 + $0x1c] sm:$0xf]
      %v203 = vld [vmem:[%s194 + $0x20] sm:$0xf]
      %v204 = vld [vmem:[%s194 + $0x24] sm:$0xf]
      %v205 = vld [vmem:[%s194 + $0x28] sm:$0xf]
      %v206 = vld [vmem:[%s194 + $0x2c] sm:$0xf]
      %v207 = vld [vmem:[%s194 + $0x30] sm:$0xf]
      %v208 = vld [vmem:[%s194 + $0x34] sm:$0xf]
      %v209 = vld [vmem:[%s194 + $0x38] sm:$0xf]
      %v210 = vld [vmem:[%s194 + $0x3c] sm:$0xf]
      %v213 = vunpack.c.l.s4 1983009808
      %v214 = vunpack.c.0.s8 %v213
      %v215 = vlaneseq
      %v216 = vshrl.u32 %v215, 7
      %v217 = vsub.s32 %v214, %v216
      %v218 = vrot.slane %v193, %v217
      %v220 = vshrl.u32 %v218, 16
      %v222 = vshll.u32 %v218, 16
      %v224 = vrot.slane %v222, 1
      %v225 = vor.u32 %v220, %v224
      %v243 = vunpack.c.l.b16 %v195
      %v244 = vunpack.c.l.b16 %v196
      %v245 = vunpack.c.l.b16 %v197
      %v246 = vunpack.c.l.b16 %v198
      %v247 = vunpack.c.l.b16 %v199
      %v248 = vunpack.c.l.b16 %v200
      %v249 = vunpack.c.l.b16 %v201
      %v250 = vunpack.c.l.b16 %v202
      %v251 = vunpack.c.l.b16 %v203
      %v252 = vunpack.c.l.b16 %v204
      %v253 = vunpack.c.l.b16 %v205
      %v254 = vunpack.c.l.b16 %v206
      %v255 = vunpack.c.l.b16 %v207
      %v256 = vunpack.c.l.b16 %v208
      %v257 = vunpack.c.l.b16 %v209
      %v258 = vunpack.c.l.b16 %v210
      %v259 = vpack.c.b16 %v244, %v243
      %v260 = vpack.c.b16 %v246, %v245
      %v261 = vpack.c.b16 %v248, %v247
      %v262 = vpack.c.b16 %v250, %v249
      %v263 = vpack.c.b16 %v252, %v251
      %v264 = vpack.c.b16 %v254, %v253
      %v265 = vpack.c.b16 %v256, %v255
      %v266 = vpack.c.b16 %v258, %v257
      %275 = vmatprep.subr.bf16.mxu0 0
      %276 = vmatpush1.bf16.msra.mxu0 %v266
      %277 = vmatprep.subr.bf16.mxu0 0
      %278 = vmatpush1.bf16.msra.mxu0 %v265
      %279 = vmatprep.subr.bf16.mxu0 0
      %280 = vmatpush1.bf16.msra.mxu0 %v264
      %281 = vmatprep.subr.bf16.mxu0 0
      %282 = vmatpush1.bf16.msra.mxu0 %v263
      %283 = vmatprep.subr.bf16.mxu0 0
      %284 = vmatpush1.bf16.msra.mxu0 %v262
      %285 = vmatprep.subr.bf16.mxu0 0
      %286 = vmatpush1.bf16.msra.mxu0 %v261
      %287 = vmatprep.subr.bf16.mxu0 0
      %288 = vmatpush1.bf16.msra.mxu0 %v260
      %289 = vmatprep.subr.bf16.mxu0 0
      %290 = vmatpush1.bf16.msra.mxu0 %v259
      %291 = vmatprep.subr.bf16.mxu0 0
      %292 = vmatpush2.bf16.msra.mxu0 0
      %293 = vmatprep.subr.bf16.mxu0 0
      %294 = vmatpush2.bf16.msra.mxu0 0
      %295 = vmatprep.subr.bf16.mxu0 0
      %296 = vmatpush2.bf16.msra.mxu0 0
      %297 = vmatprep.subr.bf16.mxu0 0
      %298 = vmatpush2.bf16.msra.mxu0 0
      %299 = vmatprep.subr.bf16.mxu0 0
      %300 = vmatpush2.bf16.msra.mxu0 0
      %301 = vmatprep.subr.bf16.mxu0 0
      %302 = vmatpush2.bf16.msra.mxu0 0
      %303 = vmatprep.subr.bf16.mxu0 0
      %304 = vmatpush2.bf16.msra.mxu0 0
      %305 = vmatprep.subr.bf16.mxu0 0
      %306 = vmatpush2.bf16.msra.mxu0 0
      %307 = vmatprep.mubr.bf16.mxu0 0
      %308 = vmatmul.mubr.bf16.gmra.mxu0 %v225
      %v309 = vpop.f32.mrf.mxu0
      %v310 = vadd.f32 0.0, %v309
      %v311 = vpop.f32.mrf.mxu0
      %v312 = vpop.f32.mrf.mxu0
      %v313 = vpop.f32.mrf.mxu0
      %314 = vdwg.mxu0
      %v331 = vunpack.c.l.b16 %v177
      %v332 = vunpack.c.l.b16 %v178
      %v333 = vunpack.c.l.b16 %v179
      %v334 = vunpack.c.l.b16 %v180
      %v335 = vunpack.c.l.b16 %v181
      %v336 = vunpack.c.l.b16 %v182
      %v337 = vunpack.c.l.b16 %v183
      %v338 = vunpack.c.l.b16 %v184
      %v339 = vunpack.c.l.b16 %v185
      %v340 = vunpack.c.l.b16 %v186
      %v341 = vunpack.c.l.b16 %v187
      %v342 = vunpack.c.l.b16 %v188
      %v343 = vunpack.c.l.b16 %v189
      %v344 = vunpack.c.l.b16 %v190
      %v345 = vunpack.c.l.b16 %v191
      %v346 = vunpack.c.l.b16 %v192
      %v347 = vpack.c.b16 %v332, %v331
      %v348 = vpack.c.b16 %v334, %v333
      %v349 = vpack.c.b16 %v336, %v335
      %v350 = vpack.c.b16 %v338, %v337
      %v351 = vpack.c.b16 %v340, %v339
      %v352 = vpack.c.b16 %v342, %v341
      %v353 = vpack.c.b16 %v344, %v343
      %v354 = vpack.c.b16 %v346, %v345
      %363 = vmatprep.subr.bf16.mxu0 0
      %364 = vmatpush1.bf16.msra.mxu0 %v354
      %365 = vmatprep.subr.bf16.mxu0 0
      %366 = vmatpush1.bf16.msra.mxu0 %v353
      %367 = vmatprep.subr.bf16.mxu0 0
      %368 = vmatpush1.bf16.msra.mxu0 %v352
      %369 = vmatprep.subr.bf16.mxu0 0
      %370 = vmatpush1.bf16.msra.mxu0 %v351
      %371 = vmatprep.subr.bf16.mxu0 0
      %372 = vmatpush1.bf16.msra.mxu0 %v350
      %373 = vmatprep.subr.bf16.mxu0 0
      %374 = vmatpush1.bf16.msra.mxu0 %v349
      %375 = vmatprep.subr.bf16.mxu0 0
      %376 = vmatpush1.bf16.msra.mxu0 %v348
      %377 = vmatprep.subr.bf16.mxu0 0
      %378 = vmatpush1.bf16.msra.mxu0 %v347
      %379 = vmatprep.subr.bf16.mxu0 0
      %380 = vmatpush2.bf16.msra.mxu0 0
      %381 = vmatprep.subr.bf16.mxu0 0
      %382 = vmatpush2.bf16.msra.mxu0 0
      %383 = vmatprep.subr.bf16.mxu0 0
      %384 = vmatpush2.bf16.msra.mxu0 0
      %385 = vmatprep.subr.bf16.mxu0 0
      %386 = vmatpush2.bf16.msra.mxu0 0
      %387 = vmatprep.subr.bf16.mxu0 0
      %388 = vmatpush2.bf16.msra.mxu0 0
      %389 = vmatprep.subr.bf16.mxu0 0
      %390 = vmatpush2.bf16.msra.mxu0 0
      %391 = vmatprep.subr.bf16.mxu0 0
      %392 = vmatpush2.bf16.msra.mxu0 0
      %393 = vmatprep.subr.bf16.mxu0 0
      %394 = vmatpush2.bf16.msra.mxu0 0
      %395 = vmatprep.mubr.bf16.mxu0 0
      %396 = vmatmul.mubr.bf16.gmra.mxu0 %v176
      %v397 = vpop.f32.mrf.mxu0
      %v398 = vadd.f32 %v310, %v397
      %v399 = vpop.f32.mrf.mxu0
      %v400 = vpop.f32.mrf.mxu0
      %v401 = vpop.f32.mrf.mxu0
      %402 = vdwg.mxu0
      %v403 = vld [vmem:[%s166] sm:$0x2]
      %s404 = scalar_lea.vmem %s1, 128
      %v405 = vld [vmem:[%s404] sm:$0xf]
      %v406 = vld [vmem:[%s404 + $0x4] sm:$0xf]
      %v407 = vld [vmem:[%s404 + $0x8] sm:$0xf]
      %v408 = vld [vmem:[%s404 + $0xc] sm:$0xf]
      %v409 = vld [vmem:[%s404 + $0x10] sm:$0xf]
      %v410 = vld [vmem:[%s404 + $0x14] sm:$0xf]
      %v411 = vld [vmem:[%s404 + $0x18] sm:$0xf]
      %v412 = vld [vmem:[%s404 + $0x1c] sm:$0xf]
      %v413 = vld [vmem:[%s404 + $0x20] sm:$0xf]
      %v414 = vld [vmem:[%s404 + $0x24] sm:$0xf]
      %v415 = vld [vmem:[%s404 + $0x28] sm:$0xf]
      %v416 = vld [vmem:[%s404 + $0x2c] sm:$0xf]
      %v417 = vld [vmem:[%s404 + $0x30] sm:$0xf]
      %v418 = vld [vmem:[%s404 + $0x34] sm:$0xf]
      %v419 = vld [vmem:[%s404 + $0x38] sm:$0xf]
      %v420 = vld [vmem:[%s404 + $0x3c] sm:$0xf]
      %v423 = vunpack.c.l.s4 1983009808
      %v424 = vunpack.c.0.s8 %v423
      %v425 = vlaneseq
      %v426 = vshrl.u32 %v425, 7
      %v427 = vsub.s32 %v424, %v426
      %v428 = vrot.slane %v403, %v427
      %v429 = vrot.slane %v428, 1
      %v447 = vunpack.c.l.b16 %v405
      %v448 = vunpack.c.l.b16 %v406
      %v449 = vunpack.c.l.b16 %v407
      %v450 = vunpack.c.l.b16 %v408
      %v451 = vunpack.c.l.b16 %v409
      %v452 = vunpack.c.l.b16 %v410
      %v453 = vunpack.c.l.b16 %v411
      %v454 = vunpack.c.l.b16 %v412
      %v455 = vunpack.c.l.b16 %v413
      %v456 = vunpack.c.l.b16 %v414
      %v457 = vunpack.c.l.b16 %v415
      %v458 = vunpack.c.l.b16 %v416
      %v459 = vunpack.c.l.b16 %v417
      %v460 = vunpack.c.l.b16 %v418
      %v461 = vunpack.c.l.b16 %v419
      %v462 = vunpack.c.l.b16 %v420
      %v463 = vpack.c.b16 %v448, %v447
      %v464 = vpack.c.b16 %v450, %v449
      %v465 = vpack.c.b16 %v452, %v451
      %v466 = vpack.c.b16 %v454, %v453
      %v467 = vpack.c.b16 %v456, %v455
      %v468 = vpack.c.b16 %v458, %v457
      %v469 = vpack.c.b16 %v460, %v459
      %v470 = vpack.c.b16 %v462, %v461
      %479 = vmatprep.subr.bf16.mxu0 0
      %480 = vmatpush1.bf16.msra.mxu0 %v470
      %481 = vmatprep.subr.bf16.mxu0 0
      %482 = vmatpush1.bf16.msra.mxu0 %v469
      %483 = vmatprep.subr.bf16.mxu0 0
      %484 = vmatpush1.bf16.msra.mxu0 %v468
      %485 = vmatprep.subr.bf16.mxu0 0
      %486 = vmatpush1.bf16.msra.mxu0 %v467
      %487 = vmatprep.subr.bf16.mxu0 0
      %488 = vmatpush1.bf16.msra.mxu0 %v466
      %489 = vmatprep.subr.bf16.mxu0 0
      %490 = vmatpush1.bf16.msra.mxu0 %v465
      %491 = vmatprep.subr.bf16.mxu0 0
      %492 = vmatpush1.bf16.msra.mxu0 %v464
      %493 = vmatprep.subr.bf16.mxu0 0
      %494 = vmatpush1.bf16.msra.mxu0 %v463
      %495 = vmatprep.subr.bf16.mxu0 0
      %496 = vmatpush2.bf16.msra.mxu0 0
      %497 = vmatprep.subr.bf16.mxu0 0
      %498 = vmatpush2.bf16.msra.mxu0 0
      %499 = vmatprep.subr.bf16.mxu0 0
      %500 = vmatpush2.bf16.msra.mxu0 0
      %501 = vmatprep.subr.bf16.mxu0 0
      %502 = vmatpush2.bf16.msra.mxu0 0
      %503 = vmatprep.subr.bf16.mxu0 0
      %504 = vmatpush2.bf16.msra.mxu0 0
      %505 = vmatprep.subr.bf16.mxu0 0
      %506 = vmatpush2.bf16.msra.mxu0 0
      %507 = vmatprep.subr.bf16.mxu0 0
      %508 = vmatpush2.bf16.msra.mxu0 0
      %509 = vmatprep.subr.bf16.mxu0 0
      %510 = vmatpush2.bf16.msra.mxu0 0
      %511 = vmatprep.mubr.bf16.mxu0 0
      %512 = vmatmul.mubr.bf16.gmra.mxu0 %v429
      %v513 = vpop.f32.mrf.mxu0
      %v514 = vadd.f32 0.0, %v513
      %v515 = vpop.f32.mrf.mxu0
      %v516 = vpop.f32.mrf.mxu0
      %v517 = vpop.f32.mrf.mxu0
      %518 = vdwg.mxu0
      %v519 = vadd.f32 %v398, %v514
      %v521 = vlaneseq
      %v522 = vshrl.u32 %v521, 7
      %v523 = vsub.s32 0, %v522
      %v524 = vrot.slane %v175, %v523
      %v526 = vadd.f32 %v519, %v524
      %527 = vst [vmem:[%s172] sm:$0x3] %v526
      %s528 = scalar_lea.vmem %s166, 2
      %v529 = vld [vmem:[%s528] sm:$0x1]
      %v530 = vld [vmem:[%s1] sm:$0xf]
      %v531 = vld [vmem:[%s1 + $0x4] sm:$0xf]
      %v532 = vld [vmem:[%s1 + $0x8] sm:$0xf]
      %v533 = vld [vmem:[%s1 + $0xc] sm:$0xf]
      %v534 = vld [vmem:[%s1 + $0x10] sm:$0xf]
      %v535 = vld [vmem:[%s1 + $0x14] sm:$0xf]
      %v536 = vld [vmem:[%s1 + $0x18] sm:$0xf]
      %v537 = vld [vmem:[%s1 + $0x1c] sm:$0xf]
      %v538 = vld [vmem:[%s1 + $0x20] sm:$0xf]
      %v539 = vld [vmem:[%s1 + $0x24] sm:$0xf]
      %v540 = vld [vmem:[%s1 + $0x28] sm:$0xf]
      %v541 = vld [vmem:[%s1 + $0x2c] sm:$0xf]
      %v542 = vld [vmem:[%s1 + $0x30] sm:$0xf]
      %v543 = vld [vmem:[%s1 + $0x34] sm:$0xf]
      %v544 = vld [vmem:[%s1 + $0x38] sm:$0xf]
      %v545 = vld [vmem:[%s1 + $0x3c] sm:$0xf]
      %v546 = vld [vmem:[%s528] sm:$0x3]
      %v547 = vld [vmem:[%s194] sm:$0xf]
      %v548 = vld [vmem:[%s194 + $0x4] sm:$0xf]
      %v549 = vld [vmem:[%s194 + $0x8] sm:$0xf]
      %v550 = vld [vmem:[%s194 + $0xc] sm:$0xf]
      %v551 = vld [vmem:[%s194 + $0x10] sm:$0xf]
      %v552 = vld [vmem:[%s194 + $0x14] sm:$0xf]
      %v553 = vld [vmem:[%s194 + $0x18] sm:$0xf]
      %v554 = vld [vmem:[%s194 + $0x1c] sm:$0xf]
      %v555 = vld [vmem:[%s194 + $0x20] sm:$0xf]
      %v556 = vld [vmem:[%s194 + $0x24] sm:$0xf]
      %v557 = vld [vmem:[%s194 + $0x28] sm:$0xf]
      %v558 = vld [vmem:[%s194 + $0x2c] sm:$0xf]
      %v559 = vld [vmem:[%s194 + $0x30] sm:$0xf]
      %v560 = vld [vmem:[%s194 + $0x34] sm:$0xf]
      %v561 = vld [vmem:[%s194 + $0x38] sm:$0xf]
      %v562 = vld [vmem:[%s194 + $0x3c] sm:$0xf]
      %v565 = vunpack.c.l.s4 1983009808
      %v566 = vunpack.c.0.s8 %v565
      %v567 = vlaneseq
      %v568 = vshrl.u32 %v567, 7
      %v569 = vsub.s32 %v566, %v568
      %v570 = vrot.slane %v546, %v569
      %v572 = vshrl.u32 %v570, 16
      %v574 = vshll.u32 %v570, 16
      %v576 = vrot.slane %v574, 1
      %v577 = vor.u32 %v572, %v576
      %v595 = vunpack.c.l.b16 %v547
      %v596 = vunpack.c.l.b16 %v548
      %v597 = vunpack.c.l.b16 %v549
      %v598 = vunpack.c.l.b16 %v550
      %v599 = vunpack.c.l.b16 %v551
      %v600 = vunpack.c.l.b16 %v552
      %v601 = vunpack.c.l.b16 %v553
      %v602 = vunpack.c.l.b16 %v554
      %v603 = vunpack.c.l.b16 %v555
      %v604 = vunpack.c.l.b16 %v556
      %v605 = vunpack.c.l.b16 %v557
      %v606 = vunpack.c.l.b16 %v558
      %v607 = vunpack.c.l.b16 %v559
      %v608 = vunpack.c.l.b16 %v560
      %v609 = vunpack.c.l.b16 %v561
      %v610 = vunpack.c.l.b16 %v562
      %v611 = vpack.c.b16 %v596, %v595
      %v612 = vpack.c.b16 %v598, %v597
      %v613 = vpack.c.b16 %v600, %v599
      %v614 = vpack.c.b16 %v602, %v601
      %v615 = vpack.c.b16 %v604, %v603
      %v616 = vpack.c.b16 %v606, %v605
      %v617 = vpack.c.b16 %v608, %v607
      %v618 = vpack.c.b16 %v610, %v609
      %627 = vmatprep.subr.bf16.mxu0 0
      %628 = vmatpush1.bf16.msra.mxu0 %v618
      %629 = vmatprep.subr.bf16.mxu0 0
      %630 = vmatpush1.bf16.msra.mxu0 %v617
      %631 = vmatprep.subr.bf16.mxu0 0
      %632 = vmatpush1.bf16.msra.mxu0 %v616
      %633 = vmatprep.subr.bf16.mxu0 0
      %634 = vmatpush1.bf16.msra.mxu0 %v615
      %635 = vmatprep.subr.bf16.mxu0 0
      %636 = vmatpush1.bf16.msra.mxu0 %v614
      %637 = vmatprep.subr.bf16.mxu0 0
      %638 = vmatpush1.bf16.msra.mxu0 %v613
      %639 = vmatprep.subr.bf16.mxu0 0
      %640 = vmatpush1.bf16.msra.mxu0 %v612
      %641 = vmatprep.subr.bf16.mxu0 0
      %642 = vmatpush1.bf16.msra.mxu0 %v611
      %643 = vmatprep.subr.bf16.mxu0 0
      %644 = vmatpush2.bf16.msra.mxu0 0
      %645 = vmatprep.subr.bf16.mxu0 0
      %646 = vmatpush2.bf16.msra.mxu0 0
      %647 = vmatprep.subr.bf16.mxu0 0
      %648 = vmatpush2.bf16.msra.mxu0 0
      %649 = vmatprep.subr.bf16.mxu0 0
      %650 = vmatpush2.bf16.msra.mxu0 0
      %651 = vmatprep.subr.bf16.mxu0 0
      %652 = vmatpush2.bf16.msra.mxu0 0
      %653 = vmatprep.subr.bf16.mxu0 0
      %654 = vmatpush2.bf16.msra.mxu0 0
      %655 = vmatprep.subr.bf16.mxu0 0
      %656 = vmatpush2.bf16.msra.mxu0 0
      %657 = vmatprep.subr.bf16.mxu0 0
      %658 = vmatpush2.bf16.msra.mxu0 0
      %659 = vmatprep.mubr.bf16.mxu0 0
      %660 = vmatmul.mubr.bf16.gmra.mxu0 %v577
      %v661 = vpop.f32.mrf.mxu0
      %v662 = vadd.f32 0.0, %v661
      %v663 = vpop.f32.mrf.mxu0
      %v664 = vpop.f32.mrf.mxu0
      %v665 = vpop.f32.mrf.mxu0
      %666 = vdwg.mxu0
      %v683 = vunpack.c.l.b16 %v530
      %v684 = vunpack.c.l.b16 %v531
      %v685 = vunpack.c.l.b16 %v532
      %v686 = vunpack.c.l.b16 %v533
      %v687 = vunpack.c.l.b16 %v534
      %v688 = vunpack.c.l.b16 %v535
      %v689 = vunpack.c.l.b16 %v536
      %v690 = vunpack.c.l.b16 %v537
      %v691 = vunpack.c.l.b16 %v538
      %v692 = vunpack.c.l.b16 %v539
      %v693 = vunpack.c.l.b16 %v540
      %v694 = vunpack.c.l.b16 %v541
      %v695 = vunpack.c.l.b16 %v542
      %v696 = vunpack.c.l.b16 %v543
      %v697 = vunpack.c.l.b16 %v544
      %v698 = vunpack.c.l.b16 %v545
      %v699 = vpack.c.b16 %v684, %v683
      %v700 = vpack.c.b16 %v686, %v685
      %v701 = vpack.c.b16 %v688, %v687
      %v702 = vpack.c.b16 %v690, %v689
      %v703 = vpack.c.b16 %v692, %v691
      %v704 = vpack.c.b16 %v694, %v693
      %v705 = vpack.c.b16 %v696, %v695
      %v706 = vpack.c.b16 %v698, %v697
      %715 = vmatprep.subr.bf16.mxu0 0
      %716 = vmatpush1.bf16.msra.mxu0 %v706
      %717 = vmatprep.subr.bf16.mxu0 0
      %718 = vmatpush1.bf16.msra.mxu0 %v705
      %719 = vmatprep.subr.bf16.mxu0 0
      %720 = vmatpush1.bf16.msra.mxu0 %v704
      %721 = vmatprep.subr.bf16.mxu0 0
      %722 = vmatpush1.bf16.msra.mxu0 %v703
      %723 = vmatprep.subr.bf16.mxu0 0
      %724 = vmatpush1.bf16.msra.mxu0 %v702
      %725 = vmatprep.subr.bf16.mxu0 0
      %726 = vmatpush1.bf16.msra.mxu0 %v701
      %727 = vmatprep.subr.bf16.mxu0 0
      %728 = vmatpush1.bf16.msra.mxu0 %v700
      %729 = vmatprep.subr.bf16.mxu0 0
      %730 = vmatpush1.bf16.msra.mxu0 %v699
      %731 = vmatprep.subr.bf16.mxu0 0
      %732 = vmatpush2.bf16.msra.mxu0 0
      %733 = vmatprep.subr.bf16.mxu0 0
      %734 = vmatpush2.bf16.msra.mxu0 0
      %735 = vmatprep.subr.bf16.mxu0 0
      %736 = vmatpush2.bf16.msra.mxu0 0
      %737 = vmatprep.subr.bf16.mxu0 0
      %738 = vmatpush2.bf16.msra.mxu0 0
      %739 = vmatprep.subr.bf16.mxu0 0
      %740 = vmatpush2.bf16.msra.mxu0 0
      %741 = vmatprep.subr.bf16.mxu0 0
      %742 = vmatpush2.bf16.msra.mxu0 0
      %743 = vmatprep.subr.bf16.mxu0 0
      %744 = vmatpush2.bf16.msra.mxu0 0
      %745 = vmatprep.subr.bf16.mxu0 0
      %746 = vmatpush2.bf16.msra.mxu0 0
      %747 = vmatprep.mubr.bf16.mxu0 0
      %748 = vmatmul.mubr.bf16.gmra.mxu0 %v529
      %v749 = vpop.f32.mrf.mxu0
      %v750 = vadd.f32 %v662, %v749
      %v751 = vpop.f32.mrf.mxu0
      %v752 = vpop.f32.mrf.mxu0
      %v753 = vpop.f32.mrf.mxu0
      %754 = vdwg.mxu0
      %v755 = vld [vmem:[%s528] sm:$0x2]
      %v756 = vld [vmem:[%s404] sm:$0xf]
      %v757 = vld [vmem:[%s404 + $0x4] sm:$0xf]
      %v758 = vld [vmem:[%s404 + $0x8] sm:$0xf]
      %v759 = vld [vmem:[%s404 + $0xc] sm:$0xf]
      %v760 = vld [vmem:[%s404 + $0x10] sm:$0xf]
      %v761 = vld [vmem:[%s404 + $0x14] sm:$0xf]
      %v762 = vld [vmem:[%s404 + $0x18] sm:$0xf]
      %v763 = vld [vmem:[%s404 + $0x1c] sm:$0xf]
      %v764 = vld [vmem:[%s404 + $0x20] sm:$0xf]
      %v765 = vld [vmem:[%s404 + $0x24] sm:$0xf]
      %v766 = vld [vmem:[%s404 + $0x28] sm:$0xf]
      %v767 = vld [vmem:[%s404 + $0x2c] sm:$0xf]
      %v768 = vld [vmem:[%s404 + $0x30] sm:$0xf]
      %v769 = vld [vmem:[%s404 + $0x34] sm:$0xf]
      %v770 = vld [vmem:[%s404 + $0x38] sm:$0xf]
      %v771 = vld [vmem:[%s404 + $0x3c] sm:$0xf]
      %v774 = vunpack.c.l.s4 1983009808
      %v775 = vunpack.c.0.s8 %v774
      %v776 = vlaneseq
      %v777 = vshrl.u32 %v776, 7
      %v778 = vsub.s32 %v775, %v777
      %v779 = vrot.slane %v755, %v778
      %v780 = vrot.slane %v779, 1
      %v798 = vunpack.c.l.b16 %v756
      %v799 = vunpack.c.l.b16 %v757
      %v800 = vunpack.c.l.b16 %v758
      %v801 = vunpack.c.l.b16 %v759
      %v802 = vunpack.c.l.b16 %v760
      %v803 = vunpack.c.l.b16 %v761
      %v804 = vunpack.c.l.b16 %v762
      %v805 = vunpack.c.l.b16 %v763
      %v806 = vunpack.c.l.b16 %v764
      %v807 = vunpack.c.l.b16 %v765
      %v808 = vunpack.c.l.b16 %v766
      %v809 = vunpack.c.l.b16 %v767
      %v810 = vunpack.c.l.b16 %v768
      %v811 = vunpack.c.l.b16 %v769
      %v812 = vunpack.c.l.b16 %v770
      %v813 = vunpack.c.l.b16 %v771
      %v814 = vpack.c.b16 %v799, %v798
      %v815 = vpack.c.b16 %v801, %v800
      %v816 = vpack.c.b16 %v803, %v802
      %v817 = vpack.c.b16 %v805, %v804
      %v818 = vpack.c.b16 %v807, %v806
      %v819 = vpack.c.b16 %v809, %v808
      %v820 = vpack.c.b16 %v811, %v810
      %v821 = vpack.c.b16 %v813, %v812
      %830 = vmatprep.subr.bf16.mxu0 0
      %831 = vmatpush1.bf16.msra.mxu0 %v821
      %832 = vmatprep.subr.bf16.mxu0 0
      %833 = vmatpush1.bf16.msra.mxu0 %v820
      %834 = vmatprep.subr.bf16.mxu0 0
      %835 = vmatpush1.bf16.msra.mxu0 %v819
      %836 = vmatprep.subr.bf16.mxu0 0
      %837 = vmatpush1.bf16.msra.mxu0 %v818
      %838 = vmatprep.subr.bf16.mxu0 0
      %839 = vmatpush1.bf16.msra.mxu0 %v817
      %840 = vmatprep.subr.bf16.mxu0 0
      %841 = vmatpush1.bf16.msra.mxu0 %v816
      %842 = vmatprep.subr.bf16.mxu0 0
      %843 = vmatpush1.bf16.msra.mxu0 %v815
      %844 = vmatprep.subr.bf16.mxu0 0
      %845 = vmatpush1.bf16.msra.mxu0 %v814
      %846 = vmatprep.subr.bf16.mxu0 0
      %847 = vmatpush2.bf16.msra.mxu0 0
      %848 = vmatprep.subr.bf16.mxu0 0
      %849 = vmatpush2.bf16.msra.mxu0 0
      %850 = vmatprep.subr.bf16.mxu0 0
      %851 = vmatpush2.bf16.msra.mxu0 0
      %852 = vmatprep.subr.bf16.mxu0 0
      %853 = vmatpush2.bf16.msra.mxu0 0
      %854 = vmatprep.subr.bf16.mxu0 0
      %855 = vmatpush2.bf16.msra.mxu0 0
      %856 = vmatprep.subr.bf16.mxu0 0
      %857 = vmatpush2.bf16.msra.mxu0 0
      %858 = vmatprep.subr.bf16.mxu0 0
      %859 = vmatpush2.bf16.msra.mxu0 0
      %860 = vmatprep.subr.bf16.mxu0 0
      %861 = vmatpush2.bf16.msra.mxu0 0
      %862 = vmatprep.mubr.bf16.mxu0 0
      %863 = vmatmul.mubr.bf16.gmra.mxu0 %v780
      %v864 = vpop.f32.mrf.mxu0
      %v865 = vadd.f32 0.0, %v864
      %v866 = vpop.f32.mrf.mxu0
      %v867 = vpop.f32.mrf.mxu0
      %v868 = vpop.f32.mrf.mxu0
      %869 = vdwg.mxu0
      %v870 = vadd.f32 %v750, %v865
      %v871 = vadd.f32 %v870, %v524
      %s872 = scalar_lea.vmem %s172, 2
      %873 = vst [vmem:[%s872] sm:$0x3] %v871
      %s874 = smul.u32 2, %s14
      %p875 = scmp.lt.s32.totalorder %s874, 3
      %s876 = scalar_select %p875, %s874, 3
      %s877 = smul.addr %s876, 2
      %s878 = scalar_lea.vmem %s3, %s877
      // Predicated region
      $region33: #{multi_periodic_discriminator_forward.11} parent=31 // pred_check
        %p879 = pneg %p100
      $region34: #{multi_periodic_discriminator_forward.11} parent=31 // pred_check_branch
        %881 = sbr.rel (%p879) target = $region36
      $region35: #{multi_periodic_discriminator_forward.11} parent=31 // pred_region
        %s882 = smul.u32 2, %s14
      $region36: #{multi_periodic_discriminator_forward.11} parent=31 // pred_fallthru
        _
    $region32: #{multi_periodic_discriminator_forward.11} parent=5 // pred_fallthru
      _
    %p883 = scmp.le.s32.totalorder 2, %s9
    // Predicated region
    $region37: #{multi_periodic_discriminator_forward.11} parent=5 // pred_check
      %p884 = pneg %p883
    $region38: #{multi_periodic_discriminator_forward.11} parent=5 // pred_check_branch
      %886 = sbr.rel (%p884) target = $region40
    $region39: #{multi_periodic_discriminator_forward.11} parent=5 // pred_region
      %s887 = ssub.s32 %s9, 2
      // Predicated region
      $region41: #{multi_periodic_discriminator_forward.11} parent=39 // pred_check
        %p888 = pneg %p106
      $region42: #{multi_periodic_discriminator_forward.11} parent=39 // pred_check_branch
        %890 = sbr.rel (%p888) target = $region44
      $region43: #{multi_periodic_discriminator_forward.11} parent=39 // pred_region
        %s891 = smul.u32 2, %s15
        %p892 = scmp.lt.s32.totalorder %s891, 3
        %s893 = scalar_select %p892, %s891, 3
        %s894 = smul.addr %s893, 2
        %s895 = scalar_lea.vmem %s3, %s894
      $region44: #{multi_periodic_discriminator_forward.11} parent=39 // pred_fallthru
        _
    $region40: #{multi_periodic_discriminator_forward.11} parent=5 // pred_fallthru
      _
  $region6: #{multi_periodic_discriminator_forward.11} parent=0 // loop_footer
    %s13 = sadd.s32 1, %s9
  $region7: #{multi_periodic_discriminator_forward.11} parent=0 // loop_footer_branch
    %8 = sbr.rel target = $region3
  $region8: #{multi_periodic_discriminator_forward.11} parent=0 // loop_exit
    _

</llo_original>
